<compile_context>
chip_gen: v7x
topology: tpu7x:2x2x1
jax: 0.10.0
libtpu: 0.0.40
codegen_flags: <defaults>
</compile_context>

<pallas_src>
import jax
import jax.numpy as jnp
from jax.experimental import pallas as pl
from jax.experimental.pallas import tpu as pltpu

LANES = 128  # TPU lane width


# ---------------------------------------------------------------------------
# Stage 1: conv1(3x3,pad=1) + bias + ReLU + maxpool(2,2)  --  one im2col matmul per parity
# ---------------------------------------------------------------------------

def _conv1_pool_kernel(cols_ref, w_ref, b_ref, o_ref):
    """cols_ref: (1, 2, rb, Wo, K)  parity-split im2col LHS (K = 27 taps padded to 32)
       w_ref   : (K, Cp)            conv1 weight, Cout padded to 128 lanes
       b_ref   : (1, Cp)
       o_ref   : (1, rb//2, Wo, Cp) pooled output rows for this row block
    """
    _, _, rb, wo, k = cols_ref.shape
    cp = w_ref.shape[1]

    def conv(parity):  # conv at output columns w = 2*wo + parity
        lhs = cols_ref[0, parity].reshape(rb * wo, k)
        return jnp.dot(lhs, w_ref[...], preferred_element_type=jnp.float32)

    y = jnp.maximum(conv(0), conv(1))          # max over column parities == pool along W
    y = y.reshape(rb // 2, 2, wo, cp)          # pool along H (leading-dim slices are free)
    y = jnp.maximum(y[:, 0], y[:, 1])
    y = jnp.maximum(y + b_ref[...], 0.0)       # bias + ReLU (commute with the maxes)
    o_ref[0] = y.astype(o_ref.dtype)


def conv1_relu_pool(cols, w, b, *, row_block=16):
    B, _, H, Wo, K = cols.shape
    Cp = w.shape[1]
    return pl.pallas_call(
        _conv1_pool_kernel,
        out_shape=jax.ShapeDtypeStruct((B, H // 2, Wo, Cp), jnp.float32),
        grid=(B, H // row_block),
        in_specs=[
            pl.BlockSpec((1, 2, row_block, Wo, K), lambda b_, r: (b_, 0, r, 0, 0)),
            pl.BlockSpec((K, Cp), lambda b_, r: (0, 0)),
            pl.BlockSpec((1, Cp), lambda b_, r: (0, 0)),
        ],
        out_specs=pl.BlockSpec((1, row_block // 2, Wo, Cp), lambda b_, r: (b_, r, 0, 0)),
        compiler_params=pltpu.CompilerParams(
            dimension_semantics=("parallel", "parallel")),
    )(cols, w, b)


def _conv1_im2col(x_nhwc):
    """Parity-split im2col LHS for conv1 fused with 2x2 pooling (tiny; XLA-side glue)."""
    B, H, W, C = x_nhwc.shape
    xp = jnp.pad(x_nhwc, ((0, 0), (1, 1), (1, 1), (0, 0)))        # (B, H+2, W+2, C)
    xr = xp.reshape(B, H + 2, (W + 2) // 2, 2, C)                 # column pairs (unit-stride slices)
    cols = []
    for parity in (0, 1):
        taps = []
        for kh in range(3):
            for kw in range(3):
                t = parity + kw                                   # padded column = 2*wo + t
                taps.append(xr[:, kh:kh + H, t // 2:t // 2 + W // 2, t % 2, :])
        cols.append(jnp.concatenate(taps, axis=-1))               # (B, H, W//2, 27)
    cols = jnp.stack(cols, axis=1)                                # (B, 2, H, W//2, 27)
    pad_k = (-cols.shape[-1]) % 32
    return jnp.pad(cols, ((0, 0),) * 4 + ((0, pad_k),))           # K padded 27 -> 32


# ---------------------------------------------------------------------------
# Stage 2: conv2(3x3,pad=1) + bias + ReLU + maxpool(2,2)  --  real 32-ch contraction, 64-ch out
# ---------------------------------------------------------------------------

def _conv2_pool_kernel(xe_ref, xo_ref, w_ref, b_ref, o_ref):
    """xe_ref/xo_ref: (1, H+2, Wo+1, Cin) even/odd columns of the padded input (real channels only)
       w_ref: (3, 3, Cin, Cout)   b_ref: (1, Cout)   o_ref: (1, H//2, Wo, Cout)
    """
    _, hp, wp, cin = xe_ref.shape
    rb, wo = hp - 2, wp - 1
    cout = w_ref.shape[3]

    acc = [None, None]                                   # one accumulator per column parity
    for kh in range(3):
        wk = [w_ref[kh, kw] for kw in range(3)]          # load each tap weight once (reused by both parities)
        win = []
        for t in range(4):                               # only 4 distinct windows per kh
            src = xe_ref if t % 2 == 0 else xo_ref
            win.append(src[0, kh:kh + rb, t // 2:t // 2 + wo, :].reshape(rb * wo, cin))
        for p in range(2):
            for kw in range(3):
                d = jnp.dot(win[p + kw], wk[kw], preferred_element_type=jnp.float32)
                acc[p] = d if acc[p] is None else acc[p] + d      # init from first tap (no zeros-add)

    y = jnp.maximum(acc[0], acc[1])                      # pool along W
    y = y.reshape(rb // 2, 2, wo, cout)                  # pool along H
    y = jnp.maximum(y[:, 0], y[:, 1])
    y = jnp.maximum(y + b_ref[...], 0.0)                 # bias + ReLU
    o_ref[0] = y.astype(o_ref.dtype)


def conv2_relu_pool(xe, xo, w, b):
    B, Hp, Wp, Cin = xe.shape
    H, Wo = Hp - 2, Wp - 1
    Cout = w.shape[3]
    return pl.pallas_call(
        _conv2_pool_kernel,
        out_shape=jax.ShapeDtypeStruct((B, H // 2, Wo, Cout), jnp.float32),
        grid=(B,),
        in_specs=[
            pl.BlockSpec((1, Hp, Wp, Cin), lambda b_: (b_, 0, 0, 0)),
            pl.BlockSpec((1, Hp, Wp, Cin), lambda b_: (b_, 0, 0, 0)),
            pl.BlockSpec((3, 3, Cin, Cout), lambda b_: (0, 0, 0, 0)),
            pl.BlockSpec((1, Cout), lambda b_: (0, 0)),
        ],
        out_specs=pl.BlockSpec((1, H // 2, Wo, Cout), lambda b_: (b_, 0, 0, 0)),
        compiler_params=pltpu.CompilerParams(dimension_semantics=("parallel",)),
    )(xe, xo, w, b)


# ---------------------------------------------------------------------------
# Stage 3: fc1 + ReLU + (dropout: inference identity) + fc2, K split for DMA/MXU overlap
# ---------------------------------------------------------------------------

def _mlp_kernel(x_ref, w1_ref, b1_ref, w2_ref, b2_ref, o_ref, acc_ref):
    @pl.when(pl.program_id(0) == 0)
    def _():
        acc_ref[...] = jnp.zeros_like(acc_ref)

    acc_ref[...] += jnp.dot(x_ref[...].astype(jnp.bfloat16), w1_ref[...],
                            preferred_element_type=jnp.float32)

    @pl.when(pl.program_id(0) == pl.num_programs(0) - 1)
    def _():
        h = jnp.maximum(acc_ref[...] + b1_ref[...], 0.0)
        # Dropout(0.3): identity in inference mode.
        # TODO(synk): training-mode dropout would mask h with pltpu.prng_random_bits here.
        out = jnp.dot(h.astype(jnp.bfloat16), w2_ref[...],
                      preferred_element_type=jnp.float32) + b2_ref[...]
        o_ref[...] = out.astype(o_ref.dtype)


def fc1_relu_fc2(x, w1, b1, w2, b2, *, k_blocks=4):
    B, K = x.shape
    N1, N2 = w1.shape[1], w2.shape[1]
    assert K % k_blocks == 0
    kb = K // k_blocks
    return pl.pallas_call(
        _mlp_kernel,
        out_shape=jax.ShapeDtypeStruct((B, N2), jnp.float32),
        grid=(k_blocks,),
        in_specs=[
            pl.BlockSpec((B, kb), lambda k: (0, k)),
            pl.BlockSpec((kb, N1), lambda k: (k, 0)),
            pl.BlockSpec((1, N1), lambda k: (0, 0)),
            pl.BlockSpec((N1, N2), lambda k: (0, 0)),
            pl.BlockSpec((1, N2), lambda k: (0, 0)),
        ],
        out_specs=pl.BlockSpec((B, N2), lambda k: (0, 0)),
        scratch_shapes=[pltpu.VMEM((B, N1), jnp.float32)],
        compiler_params=pltpu.CompilerParams(dimension_semantics=("arbitrary",)),
    )(x, w1, b1, w2, b2)


# ---------------------------------------------------------------------------
# Full forward (takes packed params; all weight re-layout hoisted to pack_params)
# ---------------------------------------------------------------------------

def complete_test_model_forward(x_nchw, pk):
    B = x_nchw.shape[0]
    x = jnp.transpose(x_nchw, (0, 2, 3, 1))                               # NCHW -> NHWC
    cols = _conv1_im2col(x)                                               # (B,2,32,16,32)
    y1 = conv1_relu_pool(cols, pk["conv1_w"], pk["conv1_b"])              # (B,16,16,128)
    # conv2 glue: spatial pad, column-parity split, slice to the 32 real channels.
    y1p = jnp.pad(y1, ((0, 0), (1, 1), (1, 1), (0, 0)))                   # (B,18,18,128)
    y1r = y1p.reshape(B, 18, 9, 2, y1.shape[-1])
    xe = y1r[:, :, :, 0, :32]
    xo = y1r[:, :, :, 1, :32]                                             # (B,18,9,32)
    y2 = conv2_relu_pool(xe, xo, pk["conv2_w"], pk["conv2_b"])            # (B,8,8,64)
    x2 = y2.reshape(B, 64 * 8 * 8)                                        # (h,w,c) flatten, K=4096 (real)
    out = fc1_relu_fc2(x2, pk["fc1_w"], pk["fc1_b"], pk["fc2_w"], pk["fc2_b"])
    return out[:, :10]                                                    # drop zero-padded logits


# ---------------------------------------------------------------------------
# Parameters: PyTorch-layout init + one-time repack into kernel layouts
# ---------------------------------------------------------------------------

def init_params(key):
    ks = jax.random.split(key, 8)

    def init(k, shape, fan_in):
        bound = 1.0 / float(fan_in) ** 0.5
        return jax.random.uniform(k, shape, jnp.float32, -bound, bound)

    return {
        "conv1_w": init(ks[0], (32, 3, 3, 3), 3 * 9),
        "conv1_b": init(ks[1], (32,), 3 * 9),
        "conv2_w": init(ks[2], (64, 32, 3, 3), 32 * 9),
        "conv2_b": init(ks[3], (64,), 32 * 9),
        "fc1_w": init(ks[4], (128, 64 * 8 * 8), 64 * 8 * 8),
        "fc1_b": init(ks[5], (128,), 64 * 8 * 8),
        "fc2_w": init(ks[6], (10, 128), 128),
        "fc2_b": init(ks[7], (10,), 128),
    }


def pack_params(p):
    """One-time repack: pre-transpose, channel/logit padding, bf16 fc weights."""
    # conv1: (O=32,I=3,kh,kw) -> K rows in (kh,kw,I) order x Cout cols; K 27->32, Cout 32->128.
    w1 = jnp.transpose(p["conv1_w"], (2, 3, 1, 0)).reshape(27, 32)
    w1 = jnp.pad(w1, ((0, 5), (0, LANES - 32)))                           # (32, 128)
    b1 = jnp.pad(p["conv1_b"], (0, LANES - 32)).reshape(1, LANES)
    # conv2: (O=64,I=32,kh,kw) -> (kh,kw,I,O); no padding (real K=32, real Cout=64).
    w2 = jnp.transpose(p["conv2_w"], (2, 3, 1, 0))                        # (3,3,32,64)
    b2 = p["conv2_b"].reshape(1, 64)
    # fc1: PyTorch columns are (c,h,w)-ordered over (64,8,8); our flatten is (h,w,c).
    # K stays the real 4096; weights stored bf16 (the weight DMA dominates this stage).
    f1 = p["fc1_w"].reshape(128, 64, 8, 8)                                # (out, c, h, w)
    f1 = jnp.transpose(f1, (2, 3, 1, 0)).reshape(64 * 8 * 8, 128).astype(jnp.bfloat16)
    fb1 = p["fc1_b"].reshape(1, 128)
    # fc2: (10,128) -> (128,10) -> pad logits to 128 lanes (sliced off at the end), bf16.
    f2 = jnp.pad(p["fc2_w"].T, ((0, 0), (0, LANES - 10))).astype(jnp.bfloat16)
    fb2 = jnp.pad(p["fc2_b"], (0, LANES - 10)).reshape(1, LANES)
    return {"conv1_w": w1, "conv1_b": b1, "conv2_w": w2, "conv2_b": b2,
            "fc1_w": f1, "fc1_b": fb1, "fc2_w": f2, "fc2_b": fb2}


# ---------------------------------------------------------------------------
# Pure-JAX reference (high precision) for a correctness check
# ---------------------------------------------------------------------------

def reference_forward(x_nchw, p):
    hp = jax.lax.Precision.HIGHEST
    y = jax.lax.conv_general_dilated(
        x_nchw, p["conv1_w"], window_strides=(1, 1), padding=((1, 1), (1, 1)),
        dimension_numbers=("NCHW", "OIHW", "NCHW"), precision=hp)
    y = jax.nn.relu(y + p["conv1_b"][None, :, None, None])
    y = jax.lax.reduce_window(y, -jnp.inf, jax.lax.max, (1, 1, 2, 2), (1, 1, 2, 2), "VALID")
    y = jax.lax.conv_general_dilated(
        y, p["conv2_w"], window_strides=(1, 1), padding=((1, 1), (1, 1)),
        dimension_numbers=("NCHW", "OIHW", "NCHW"), precision=hp)
    y = jax.nn.relu(y + p["conv2_b"][None, :, None, None])
    y = jax.lax.reduce_window(y, -jnp.inf, jax.lax.max, (1, 1, 2, 2), (1, 1, 2, 2), "VALID")
    y = y.reshape(y.shape[0], -1)                                # (c,h,w) flatten, like PyTorch
    y = jax.nn.relu(jnp.dot(y, p["fc1_w"].T, precision=hp) + p["fc1_b"])
    y = jnp.dot(y, p["fc2_w"].T, precision=hp) + p["fc2_b"]
    return y


if __name__ == "__main__":
    key = jax.random.PRNGKey(0)
    pkey, xkey = jax.random.split(key)
    params = init_params(pkey)                 # PyTorch-layout params
    packed = pack_params(params)               # one-time repack, outside the jitted forward
    x = jax.random.normal(xkey, (2, 3, 32, 32), jnp.float32)   # NCHW, as in PyTorch

    fwd = jax.jit(complete_test_model_forward)
    out = jax.block_until_ready(fwd(x, packed))

    assert out.shape == (2, 10) and out.dtype == jnp.float32
    assert bool(jnp.all(jnp.isfinite(out)))
    ref = reference_forward(x, params)
    err = float(jnp.max(jnp.abs(out - ref)))
    assert bool(jnp.allclose(out, ref, atol=3e-2, rtol=3e-2)), f"max|out-ref| = {err}"
    print("KERNEL_OK")
</pallas_src>

<mosaic_0001>
module attributes {stable_mosaic.version = 11 : i64} {
  func.func @_conv1_pool_kernel(%arg0: i32, %arg1: i32, %arg2: memref<1x2x16x16x32xf32, #tpu.memory_space<vmem>>, %arg3: memref<32x128xf32, #tpu.memory_space<vmem>>, %arg4: memref<1x128xf32, #tpu.memory_space<vmem>>, %arg5: memref<1x8x16x128xf32, #tpu.memory_space<vmem>>) attributes {dimension_semantics = [#tpu.dimension_semantics<parallel>, #tpu.dimension_semantics<parallel>], iteration_bounds = array<i64: 2, 2>, scalar_prefetch = 0 : i64, scratch_operands = 0 : i64, tpu.core_type = #tpu.core_type<tc>, window_params = [{transform_indices = @transform_0, window_bounds = array<i64: 1, 2, 16, 16, 32>}, {pipeline_mode = #tpu.pipeline_mode<synchronous>, transform_indices = @transform_1, window_bounds = array<i64: 32, 128>}, {pipeline_mode = #tpu.pipeline_mode<synchronous>, transform_indices = @transform_2, window_bounds = array<i64: 1, 128>}, {transform_indices = @transform_3, window_bounds = array<i64: 1, 8, 16, 128>}]} {
    %c0 = arith.constant 0 : index
    %c0_0 = arith.constant 0 : index
    %c0_1 = arith.constant 0 : index
    %c0_2 = arith.constant 0 : index
    %c0_3 = arith.constant 0 : index
    %0 = vector.load %arg2[%c0, %c0_0, %c0_1, %c0_2, %c0_3] : memref<1x2x16x16x32xf32, #tpu.memory_space<vmem>>, vector<1x1x16x16x32xf32>
    %1 = vector.shape_cast %0 : vector<1x1x16x16x32xf32> to vector<16x16x32xf32>
    %2 = vector.shape_cast %1 : vector<16x16x32xf32> to vector<256x32xf32>
    %c0_4 = arith.constant 0 : index
    %c0_5 = arith.constant 0 : index
    %3 = vector.load %arg3[%c0_4, %c0_5] : memref<32x128xf32, #tpu.memory_space<vmem>>, vector<32x128xf32>
    %cst = arith.constant dense<0.000000e+00> : vector<256x128xf32>
    %4 = tpu.matmul %2, %3, %cst {dimension_numbers = #tpu.dot_dimension_numbers<[1], [0], [0], [1], [0, 0, 1, 1], [], []>} : vector<256x32xf32>, vector<32x128xf32>, vector<256x128xf32> -> vector<256x128xf32>
    %c0_6 = arith.constant 0 : index
    %c1 = arith.constant 1 : index
    %c0_7 = arith.constant 0 : index
    %c0_8 = arith.constant 0 : index
    %c0_9 = arith.constant 0 : index
    %5 = vector.load %arg2[%c0_6, %c1, %c0_7, %c0_8, %c0_9] : memref<1x2x16x16x32xf32, #tpu.memory_space<vmem>>, vector<1x1x16x16x32xf32>
    %6 = vector.shape_cast %5 : vector<1x1x16x16x32xf32> to vector<16x16x32xf32>
    %7 = vector.shape_cast %6 : vector<16x16x32xf32> to vector<256x32xf32>
    %c0_10 = arith.constant 0 : index
    %c0_11 = arith.constant 0 : index
    %8 = vector.load %arg3[%c0_10, %c0_11] : memref<32x128xf32, #tpu.memory_space<vmem>>, vector<32x128xf32>
    %cst_12 = arith.constant dense<0.000000e+00> : vector<256x128xf32>
    %9 = tpu.matmul %7, %8, %cst_12 {dimension_numbers = #tpu.dot_dimension_numbers<[1], [0], [0], [1], [0, 0, 1, 1], [], []>} : vector<256x32xf32>, vector<32x128xf32>, vector<256x128xf32> -> vector<256x128xf32>
    %10 = arith.maximumf %4, %9 : vector<256x128xf32>
    %11 = vector.shape_cast %10 : vector<256x128xf32> to vector<8x2x16x128xf32>
    %12 = vector.extract_strided_slice %11 {offsets = [0, 0, 0, 0], sizes = [8, 1, 16, 128], strides = [1, 1, 1, 1]} : vector<8x2x16x128xf32> to vector<8x1x16x128xf32>
    %13 = vector.shape_cast %12 : vector<8x1x16x128xf32> to vector<8x16x128xf32>
    %14 = vector.extract_strided_slice %11 {offsets = [0, 1, 0, 0], sizes = [8, 1, 16, 128], strides = [1, 1, 1, 1]} : vector<8x2x16x128xf32> to vector<8x1x16x128xf32>
    %15 = vector.shape_cast %14 : vector<8x1x16x128xf32> to vector<8x16x128xf32>
    %16 = arith.maximumf %13, %15 : vector<8x16x128xf32>
    %c0_13 = arith.constant 0 : index
    %c0_14 = arith.constant 0 : index
    %17 = vector.load %arg4[%c0_13, %c0_14] : memref<1x128xf32, #tpu.memory_space<vmem>>, vector<1x128xf32>
    %18 = vector.shape_cast %17 : vector<1x128xf32> to vector<1x1x128xf32>
    %19 = vector.broadcast %18 : vector<1x1x128xf32> to vector<8x16x128xf32>
    %20 = arith.addf %16, %19 : vector<8x16x128xf32>
    %cst_15 = arith.constant 0.000000e+00 : f32
    %21 = vector.broadcast %cst_15 : f32 to vector<8x16x128xf32>
    %22 = arith.maximumf %20, %21 : vector<8x16x128xf32>
    %c0_16 = arith.constant 0 : index
    %c0_17 = arith.constant 0 : index
    %c0_18 = arith.constant 0 : index
    %c0_19 = arith.constant 0 : index
    %23 = vector.load %arg5[%c0_16, %c0_17, %c0_18, %c0_19] : memref<1x8x16x128xf32, #tpu.memory_space<vmem>>, vector<1x8x16x128xf32>
    %24 = vector.shape_cast %23 : vector<1x8x16x128xf32> to vector<8x16x128xf32>
    %25 = vector.shape_cast %22 : vector<8x16x128xf32> to vector<1x8x16x128xf32>
    tpu.vector_store %arg5[%c0_16, %c0_17, %c0_18, %c0_19], %25 {strides = array<i32>} : memref<1x8x16x128xf32, #tpu.memory_space<vmem>>, vector<1x8x16x128xf32>,
    return
  }
  func.func @transform_0(%arg0: i32, %arg1: i32) -> (i32, i32, i32, i32, i32) {
    %c0_i32 = arith.constant 0 : i32
    %c0_i32_0 = arith.constant 0 : i32
    %c0_i32_1 = arith.constant 0 : i32
    %c0_i32_2 = arith.constant 0 : i32
    return %arg0, %c0_i32, %arg1, %c0_i32_0, %c0_i32_1 : i32, i32, i32, i32, i32
  }
  func.func @transform_1(%arg0: i32, %arg1: i32) -> (i32, i32) {
    %c0_i32 = arith.constant 0 : i32
    %c0_i32_0 = arith.constant 0 : i32
    %c0_i32_1 = arith.constant 0 : i32
    return %c0_i32, %c0_i32_0 : i32, i32
  }
  func.func @transform_2(%arg0: i32, %arg1: i32) -> (i32, i32) {
    %c0_i32 = arith.constant 0 : i32
    %c0_i32_0 = arith.constant 0 : i32
    %c0_i32_1 = arith.constant 0 : i32
    return %c0_i32, %c0_i32_0 : i32, i32
  }
  func.func @transform_3(%arg0: i32, %arg1: i32) -> (i32, i32, i32, i32) {
    %c0_i32 = arith.constant 0 : i32
    %c0_i32_0 = arith.constant 0 : i32
    %c0_i32_1 = arith.constant 0 : i32
    return %arg0, %arg1, %c0_i32, %c0_i32_0 : i32, i32, i32, i32
  }
}

module attributes {stable_mosaic.version = 11 : i64} {
  func.func @_mlp_kernel(%arg0: i32, %arg1: memref<2x1024xf32, #tpu.memory_space<vmem>>, %arg2: memref<1024x128xbf16, #tpu.memory_space<vmem>>, %arg3: memref<1x128xf32, #tpu.memory_space<vmem>>, %arg4: memref<128x128xbf16, #tpu.memory_space<vmem>>, %arg5: memref<1x128xf32, #tpu.memory_space<vmem>>, %arg6: memref<2x128xf32, #tpu.memory_space<vmem>>, %arg7: memref<2x128xf32, #tpu.memory_space<vmem>>) attributes {dimension_semantics = [#tpu.dimension_semantics<arbitrary>], iteration_bounds = array<i64: 4>, scalar_prefetch = 0 : i64, scratch_operands = 1 : i64, tpu.core_type = #tpu.core_type<tc>, window_params = [{transform_indices = @transform_0, window_bounds = array<i64: 2, 1024>}, {transform_indices = @transform_1, window_bounds = array<i64: 1024, 128>}, {pipeline_mode = #tpu.pipeline_mode<synchronous>, transform_indices = @transform_2, window_bounds = array<i64: 1, 128>}, {pipeline_mode = #tpu.pipeline_mode<synchronous>, transform_indices = @transform_3, window_bounds = array<i64: 128, 128>}, {pipeline_mode = #tpu.pipeline_mode<synchronous>, transform_indices = @transform_4, window_bounds = array<i64: 1, 128>}, {pipeline_mode = #tpu.pipeline_mode<synchronous>, transform_indices = @transform_5, window_bounds = array<i64: 2, 128>}]} {
    %c0_i32 = arith.constant 0 : i32
    %0 = arith.cmpi eq, %arg0, %c0_i32 : i32
    %1 = arith.extui %0 : i1 to i32
    %c0_i32_0 = arith.constant 0 : i32
    %2 = arith.cmpi ne, %1, %c0_i32_0 : i32
    scf.if %2 {
      %cst_9 = arith.constant 0.000000e+00 : f32
      %13 = vector.broadcast %cst_9 : f32 to vector<2x128xf32>
      %c0_10 = arith.constant 0 : index
      %c0_11 = arith.constant 0 : index
      %14 = vector.load %arg7[%c0_10, %c0_11] : memref<2x128xf32, #tpu.memory_space<vmem>>, vector<2x128xf32>
      tpu.vector_store %arg7[%c0_10, %c0_11], %13 {strides = array<i32>} : memref<2x128xf32, #tpu.memory_space<vmem>>, vector<2x128xf32>,
    } else {
    }
    %c0 = arith.constant 0 : index
    %c0_1 = arith.constant 0 : index
    %3 = vector.load %arg7[%c0, %c0_1] : memref<2x128xf32, #tpu.memory_space<vmem>>, vector<2x128xf32>
    %c0_2 = arith.constant 0 : index
    %c0_3 = arith.constant 0 : index
    %4 = vector.load %arg1[%c0_2, %c0_3] : memref<2x1024xf32, #tpu.memory_space<vmem>>, vector<2x1024xf32>
    %5 = arith.truncf %4 : vector<2x1024xf32> to vector<2x1024xbf16>
    %c0_4 = arith.constant 0 : index
    %c0_5 = arith.constant 0 : index
    %6 = vector.load %arg2[%c0_4, %c0_5] : memref<1024x128xbf16, #tpu.memory_space<vmem>>, vector<1024x128xbf16>
    %cst = arith.constant dense<0.000000e+00> : vector<2x128xf32>
    %7 = tpu.matmul %5, %6, %cst {dimension_numbers = #tpu.dot_dimension_numbers<[1], [0], [0], [1], [0, 0, 1, 1], [], []>} : vector<2x1024xbf16>, vector<1024x128xbf16>, vector<2x128xf32> -> vector<2x128xf32>
    %8 = arith.addf %3, %7 : vector<2x128xf32>
    %c0_6 = arith.constant 0 : index
    %c0_7 = arith.constant 0 : index
    %9 = vector.load %arg7[%c0_6, %c0_7] : memref<2x128xf32, #tpu.memory_space<vmem>>, vector<2x128xf32>
    tpu.vector_store %arg7[%c0_6, %c0_7], %8 {strides = array<i32>} : memref<2x128xf32, #tpu.memory_space<vmem>>, vector<2x128xf32>,
    %c3_i32 = arith.constant 3 : i32
    %10 = arith.cmpi eq, %arg0, %c3_i32 : i32
    %11 = arith.extui %10 : i1 to i32
    %c0_i32_8 = arith.constant 0 : i32
    %12 = arith.cmpi ne, %11, %c0_i32_8 : i32
    scf.if %12 {
      %c0_9 = arith.constant 0 : index
      %c0_10 = arith.constant 0 : index
      %13 = vector.load %arg7[%c0_9, %c0_10] : memref<2x128xf32, #tpu.memory_space<vmem>>, vector<2x128xf32>
      %c0_11 = arith.constant 0 : index
      %c0_12 = arith.constant 0 : index
      %14 = vector.load %arg3[%c0_11, %c0_12] : memref<1x128xf32, #tpu.memory_space<vmem>>, vector<1x128xf32>
      %15 = vector.broadcast %14 : vector<1x128xf32> to vector<2x128xf32>
      %16 = arith.addf %13, %15 : vector<2x128xf32>
      %cst_13 = arith.constant 0.000000e+00 : f32
      %17 = vector.broadcast %cst_13 : f32 to vector<2x128xf32>
      %18 = arith.maximumf %16, %17 : vector<2x128xf32>
      %19 = arith.truncf %18 : vector<2x128xf32> to vector<2x128xbf16>
      %c0_14 = arith.constant 0 : index
      %c0_15 = arith.constant 0 : index
      %20 = vector.load %arg4[%c0_14, %c0_15] : memref<128x128xbf16, #tpu.memory_space<vmem>>, vector<128x128xbf16>
      %cst_16 = arith.constant dense<0.000000e+00> : vector<2x128xf32>
      %21 = tpu.matmul %19, %20, %cst_16 {dimension_numbers = #tpu.dot_dimension_numbers<[1], [0], [0], [1], [0, 0, 1, 1], [], []>} : vector<2x128xbf16>, vector<128x128xbf16>, vector<2x128xf32> -> vector<2x128xf32>
      %c0_17 = arith.constant 0 : index
      %c0_18 = arith.constant 0 : index
      %22 = vector.load %arg5[%c0_17, %c0_18] : memref<1x128xf32, #tpu.memory_space<vmem>>, vector<1x128xf32>
      %23 = vector.broadcast %22 : vector<1x128xf32> to vector<2x128xf32>
      %24 = arith.addf %21, %23 : vector<2x128xf32>
      %c0_19 = arith.constant 0 : index
      %c0_20 = arith.constant 0 : index
      %25 = vector.load %arg6[%c0_19, %c0_20] : memref<2x128xf32, #tpu.memory_space<vmem>>, vector<2x128xf32>
      tpu.vector_store %arg6[%c0_19, %c0_20], %24 {strides = array<i32>} : memref<2x128xf32, #tpu.memory_space<vmem>>, vector<2x128xf32>,
    } else {
    }
    return
  }
  func.func @transform_0(%arg0: i32) -> (i32, i32) {
    %c0_i32 = arith.constant 0 : i32
    %c0_i32_0 = arith.constant 0 : i32
    return %c0_i32, %arg0 : i32, i32
  }
  func.func @transform_1(%arg0: i32) -> (i32, i32) {
    %c0_i32 = arith.constant 0 : i32
    %c0_i32_0 = arith.constant 0 : i32
    return %arg0, %c0_i32 : i32, i32
  }
  func.func @transform_2(%arg0: i32) -> (i32, i32) {
    %c0_i32 = arith.constant 0 : i32
    %c0_i32_0 = arith.constant 0 : i32
    %c0_i32_1 = arith.constant 0 : i32
    return %c0_i32, %c0_i32_0 : i32, i32
  }
  func.func @transform_3(%arg0: i32) -> (i32, i32) {
    %c0_i32 = arith.constant 0 : i32
    %c0_i32_0 = arith.constant 0 : i32
    %c0_i32_1 = arith.constant 0 : i32
    return %c0_i32, %c0_i32_0 : i32, i32
  }
  func.func @transform_4(%arg0: i32) -> (i32, i32) {
    %c0_i32 = arith.constant 0 : i32
    %c0_i32_0 = arith.constant 0 : i32
    %c0_i32_1 = arith.constant 0 : i32
    return %c0_i32, %c0_i32_0 : i32, i32
  }
  func.func @transform_5(%arg0: i32) -> (i32, i32) {
    %c0_i32 = arith.constant 0 : i32
    %c0_i32_0 = arith.constant 0 : i32
    %c0_i32_1 = arith.constant 0 : i32
    return %c0_i32, %c0_i32_0 : i32, i32
  }
}

module attributes {stable_mosaic.version = 11 : i64} {
  func.func @_conv2_pool_kernel(%arg0: i32, %arg1: memref<1x18x9x32xf32, #tpu.memory_space<vmem>>, %arg2: memref<1x18x9x32xf32, #tpu.memory_space<vmem>>, %arg3: memref<3x3x32x64xf32, #tpu.memory_space<vmem>>, %arg4: memref<1x64xf32, #tpu.memory_space<vmem>>, %arg5: memref<1x8x8x64xf32, #tpu.memory_space<vmem>>) attributes {dimension_semantics = [#tpu.dimension_semantics<parallel>], iteration_bounds = array<i64: 2>, scalar_prefetch = 0 : i64, scratch_operands = 0 : i64, tpu.core_type = #tpu.core_type<tc>, window_params = [{transform_indices = @transform_0, window_bounds = array<i64: 1, 18, 9, 32>}, {transform_indices = @transform_1, window_bounds = array<i64: 1, 18, 9, 32>}, {pipeline_mode = #tpu.pipeline_mode<synchronous>, transform_indices = @transform_2, window_bounds = array<i64: 3, 3, 32, 64>}, {pipeline_mode = #tpu.pipeline_mode<synchronous>, transform_indices = @transform_3, window_bounds = array<i64: 1, 64>}, {transform_indices = @transform_4, window_bounds = array<i64: 1, 8, 8, 64>}]} {
    %c0 = arith.constant 0 : index
    %c0_0 = arith.constant 0 : index
    %c0_1 = arith.constant 0 : index
    %c0_2 = arith.constant 0 : index
    %0 = vector.load %arg3[%c0, %c0_0, %c0_1, %c0_2] : memref<3x3x32x64xf32, #tpu.memory_space<vmem>>, vector<1x1x32x64xf32>
    %1 = vector.shape_cast %0 : vector<1x1x32x64xf32> to vector<32x64xf32>
    %c0_3 = arith.constant 0 : index
    %c1 = arith.constant 1 : index
    %c0_4 = arith.constant 0 : index
    %c0_5 = arith.constant 0 : index
    %2 = vector.load %arg3[%c0_3, %c1, %c0_4, %c0_5] : memref<3x3x32x64xf32, #tpu.memory_space<vmem>>, vector<1x1x32x64xf32>
    %3 = vector.shape_cast %2 : vector<1x1x32x64xf32> to vector<32x64xf32>
    %c0_6 = arith.constant 0 : index
    %c2 = arith.constant 2 : index
    %c0_7 = arith.constant 0 : index
    %c0_8 = arith.constant 0 : index
    %4 = vector.load %arg3[%c0_6, %c2, %c0_7, %c0_8] : memref<3x3x32x64xf32, #tpu.memory_space<vmem>>, vector<1x1x32x64xf32>
    %5 = vector.shape_cast %4 : vector<1x1x32x64xf32> to vector<32x64xf32>
    %c0_9 = arith.constant 0 : index
    %c0_10 = arith.constant 0 : index
    %c0_11 = arith.constant 0 : index
    %c0_12 = arith.constant 0 : index
    %6 = vector.load %arg1[%c0_9, %c0_10, %c0_11, %c0_12] : memref<1x18x9x32xf32, #tpu.memory_space<vmem>>, vector<1x16x8x32xf32>
    %7 = vector.shape_cast %6 : vector<1x16x8x32xf32> to vector<16x8x32xf32>
    %8 = vector.shape_cast %7 : vector<16x8x32xf32> to vector<128x32xf32>
    %c0_13 = arith.constant 0 : index
    %c0_14 = arith.constant 0 : index
    %c0_15 = arith.constant 0 : index
    %c0_16 = arith.constant 0 : index
    %9 = vector.load %arg2[%c0_13, %c0_14, %c0_15, %c0_16] : memref<1x18x9x32xf32, #tpu.memory_space<vmem>>, vector<1x16x8x32xf32>
    %10 = vector.shape_cast %9 : vector<1x16x8x32xf32> to vector<16x8x32xf32>
    %11 = vector.shape_cast %10 : vector<16x8x32xf32> to vector<128x32xf32>
    %c0_17 = arith.constant 0 : index
    %c0_18 = arith.constant 0 : index
    %c1_19 = arith.constant 1 : index
    %c0_20 = arith.constant 0 : index
    %12 = vector.load %arg1[%c0_17, %c0_18, %c1_19, %c0_20] : memref<1x18x9x32xf32, #tpu.memory_space<vmem>>, vector<1x16x8x32xf32>
    %13 = vector.shape_cast %12 : vector<1x16x8x32xf32> to vector<16x8x32xf32>
    %14 = vector.shape_cast %13 : vector<16x8x32xf32> to vector<128x32xf32>
    %c0_21 = arith.constant 0 : index
    %c0_22 = arith.constant 0 : index
    %c1_23 = arith.constant 1 : index
    %c0_24 = arith.constant 0 : index
    %15 = vector.load %arg2[%c0_21, %c0_22, %c1_23, %c0_24] : memref<1x18x9x32xf32, #tpu.memory_space<vmem>>, vector<1x16x8x32xf32>
    %16 = vector.shape_cast %15 : vector<1x16x8x32xf32> to vector<16x8x32xf32>
    %17 = vector.shape_cast %16 : vector<16x8x32xf32> to vector<128x32xf32>
    %cst = arith.constant dense<0.000000e+00> : vector<128x64xf32>
    %18 = tpu.matmul %8, %1, %cst {dimension_numbers = #tpu.dot_dimension_numbers<[1], [0], [0], [1], [0, 0, 1, 1], [], []>} : vector<128x32xf32>, vector<32x64xf32>, vector<128x64xf32> -> vector<128x64xf32>
    %cst_25 = arith.constant dense<0.000000e+00> : vector<128x64xf32>
    %19 = tpu.matmul %11, %3, %cst_25 {dimension_numbers = #tpu.dot_dimension_numbers<[1], [0], [0], [1], [0, 0, 1, 1], [], []>} : vector<128x32xf32>, vector<32x64xf32>, vector<128x64xf32> -> vector<128x64xf32>
    %20 = arith.addf %18, %19 : vector<128x64xf32>
    %cst_26 = arith.constant dense<0.000000e+00> : vector<128x64xf32>
    %21 = tpu.matmul %14, %5, %cst_26 {dimension_numbers = #tpu.dot_dimension_numbers<[1], [0], [0], [1], [0, 0, 1, 1], [], []>} : vector<128x32xf32>, vector<32x64xf32>, vector<128x64xf32> -> vector<128x64xf32>
    %22 = arith.addf %20, %21 : vector<128x64xf32>
    %cst_27 = arith.constant dense<0.000000e+00> : vector<128x64xf32>
    %23 = tpu.matmul %11, %1, %cst_27 {dimension_numbers = #tpu.dot_dimension_numbers<[1], [0], [0], [1], [0, 0, 1, 1], [], []>} : vector<128x32xf32>, vector<32x64xf32>, vector<128x64xf32> -> vector<128x64xf32>
    %cst_28 = arith.constant dense<0.000000e+00> : vector<128x64xf32>
    %24 = tpu.matmul %14, %3, %cst_28 {dimension_numbers = #tpu.dot_dimension_numbers<[1], [0], [0], [1], [0, 0, 1, 1], [], []>} : vector<128x32xf32>, vector<32x64xf32>, vector<128x64xf32> -> vector<128x64xf32>
    %25 = arith.addf %23, %24 : vector<128x64xf32>
    %cst_29 = arith.constant dense<0.000000e+00> : vector<128x64xf32>
    %26 = tpu.matmul %17, %5, %cst_29 {dimension_numbers = #tpu.dot_dimension_numbers<[1], [0], [0], [1], [0, 0, 1, 1], [], []>} : vector<128x32xf32>, vector<32x64xf32>, vector<128x64xf32> -> vector<128x64xf32>
    %27 = arith.addf %25, %26 : vector<128x64xf32>
    %c1_30 = arith.constant 1 : index
    %c0_31 = arith.constant 0 : index
    %c0_32 = arith.constant 0 : index
    %c0_33 = arith.constant 0 : index
    %28 = vector.load %arg3[%c1_30, %c0_31, %c0_32, %c0_33] : memref<3x3x32x64xf32, #tpu.memory_space<vmem>>, vector<1x1x32x64xf32>
    %29 = vector.shape_cast %28 : vector<1x1x32x64xf32> to vector<32x64xf32>
    %c1_34 = arith.constant 1 : index
    %c1_35 = arith.constant 1 : index
    %c0_36 = arith.constant 0 : index
    %c0_37 = arith.constant 0 : index
    %30 = vector.load %arg3[%c1_34, %c1_35, %c0_36, %c0_37] : memref<3x3x32x64xf32, #tpu.memory_space<vmem>>, vector<1x1x32x64xf32>
    %31 = vector.shape_cast %30 : vector<1x1x32x64xf32> to vector<32x64xf32>
    %c1_38 = arith.constant 1 : index
    %c2_39 = arith.constant 2 : index
    %c0_40 = arith.constant 0 : index
    %c0_41 = arith.constant 0 : index
    %32 = vector.load %arg3[%c1_38, %c2_39, %c0_40, %c0_41] : memref<3x3x32x64xf32, #tpu.memory_space<vmem>>, vector<1x1x32x64xf32>
    %33 = vector.shape_cast %32 : vector<1x1x32x64xf32> to vector<32x64xf32>
    %c0_42 = arith.constant 0 : index
    %c1_43 = arith.constant 1 : index
    %c0_44 = arith.constant 0 : index
    %c0_45 = arith.constant 0 : index
    %34 = vector.load %arg1[%c0_42, %c1_43, %c0_44, %c0_45] : memref<1x18x9x32xf32, #tpu.memory_space<vmem>>, vector<1x16x8x32xf32>
    %35 = vector.shape_cast %34 : vector<1x16x8x32xf32> to vector<16x8x32xf32>
    %36 = vector.shape_cast %35 : vector<16x8x32xf32> to vector<128x32xf32>
    %c0_46 = arith.constant 0 : index
    %c1_47 = arith.constant 1 : index
    %c0_48 = arith.constant 0 : index
    %c0_49 = arith.constant 0 : index
    %37 = vector.load %arg2[%c0_46, %c1_47, %c0_48, %c0_49] : memref<1x18x9x32xf32, #tpu.memory_space<vmem>>, vector<1x16x8x32xf32>
    %38 = vector.shape_cast %37 : vector<1x16x8x32xf32> to vector<16x8x32xf32>
    %39 = vector.shape_cast %38 : vector<16x8x32xf32> to vector<128x32xf32>
    %c0_50 = arith.constant 0 : index
    %c1_51 = arith.constant 1 : index
    %c1_52 = arith.constant 1 : index
    %c0_53 = arith.constant 0 : index
    %40 = vector.load %arg1[%c0_50, %c1_51, %c1_52, %c0_53] : memref<1x18x9x32xf32, #tpu.memory_space<vmem>>, vector<1x16x8x32xf32>
    %41 = vector.shape_cast %40 : vector<1x16x8x32xf32> to vector<16x8x32xf32>
    %42 = vector.shape_cast %41 : vector<16x8x32xf32> to vector<128x32xf32>
    %c0_54 = arith.constant 0 : index
    %c1_55 = arith.constant 1 : index
    %c1_56 = arith.constant 1 : index
    %c0_57 = arith.constant 0 : index
    %43 = vector.load %arg2[%c0_54, %c1_55, %c1_56, %c0_57] : memref<1x18x9x32xf32, #tpu.memory_space<vmem>>, vector<1x16x8x32xf32>
    %44 = vector.shape_cast %43 : vector<1x16x8x32xf32> to vector<16x8x32xf32>
    %45 = vector.shape_cast %44 : vector<16x8x32xf32> to vector<128x32xf32>
    %cst_58 = arith.constant dense<0.000000e+00> : vector<128x64xf32>
    %46 = tpu.matmul %36, %29, %cst_58 {dimension_numbers = #tpu.dot_dimension_numbers<[1], [0], [0], [1], [0, 0, 1, 1], [], []>} : vector<128x32xf32>, vector<32x64xf32>, vector<128x64xf32> -> vector<128x64xf32>
    %47 = arith.addf %22, %46 : vector<128x64xf32>
    %cst_59 = arith.constant dense<0.000000e+00> : vector<128x64xf32>
    %48 = tpu.matmul %39, %31, %cst_59 {dimension_numbers = #tpu.dot_dimension_numbers<[1], [0], [0], [1], [0, 0, 1, 1], [], []>} : vector<128x32xf32>, vector<32x64xf32>, vector<128x64xf32> -> vector<128x64xf32>
    %49 = arith.addf %47, %48 : vector<128x64xf32>
    %cst_60 = arith.constant dense<0.000000e+00> : vector<128x64xf32>
    %50 = tpu.matmul %42, %33, %cst_60 {dimension_numbers = #tpu.dot_dimension_numbers<[1], [0], [0], [1], [0, 0, 1, 1], [], []>} : vector<128x32xf32>, vector<32x64xf32>, vector<128x64xf32> -> vector<128x64xf32>
    %51 = arith.addf %49, %50 : vector<128x64xf32>
    %cst_61 = arith.constant dense<0.000000e+00> : vector<128x64xf32>
    %52 = tpu.matmul %39, %29, %cst_61 {dimension_numbers = #tpu.dot_dimension_numbers<[1], [0], [0], [1], [0, 0, 1, 1], [], []>} : vector<128x32xf32>, vector<32x64xf32>, vector<128x64xf32> -> vector<128x64xf32>
    %53 = arith.addf %27, %52 : vector<128x64xf32>
    %cst_62 = arith.constant dense<0.000000e+00> : vector<128x64xf32>
    %54 = tpu.matmul %42, %31, %cst_62 {dimension_numbers = #tpu.dot_dimension_numbers<[1], [0], [0], [1], [0, 0, 1, 1], [], []>} : vector<128x32xf32>, vector<32x64xf32>, vector<128x64xf32> -> vector<128x64xf32>
    %55 = arith.addf %53, %54 : vector<128x64xf32>
    %cst_63 = arith.constant dense<0.000000e+00> : vector<128x64xf32>
    %56 = tpu.matmul %45, %33, %cst_63 {dimension_numbers = #tpu.dot_dimension_numbers<[1], [0], [0], [1], [0, 0, 1, 1], [], []>} : vector<128x32xf32>, vector<32x64xf32>, vector<128x64xf32> -> vector<128x64xf32>
    %57 = arith.addf %55, %56 : vector<128x64xf32>
    %c2_64 = arith.constant 2 : index
    %c0_65 = arith.constant 0 : index
    %c0_66 = arith.constant 0 : index
    %c0_67 = arith.constant 0 : index
    %58 = vector.load %arg3[%c2_64, %c0_65, %c0_66, %c0_67] : memref<3x3x32x64xf32, #tpu.memory_space<vmem>>, vector<1x1x32x64xf32>
    %59 = vector.shape_cast %58 : vector<1x1x32x64xf32> to vector<32x64xf32>
    %c2_68 = arith.constant 2 : index
    %c1_69 = arith.constant 1 : index
    %c0_70 = arith.constant 0 : index
    %c0_71 = arith.constant 0 : index
    %60 = vector.load %arg3[%c2_68, %c1_69, %c0_70, %c0_71] : memref<3x3x32x64xf32, #tpu.memory_space<vmem>>, vector<1x1x32x64xf32>
    %61 = vector.shape_cast %60 : vector<1x1x32x64xf32> to vector<32x64xf32>
    %c2_72 = arith.constant 2 : index
    %c2_73 = arith.constant 2 : index
    %c0_74 = arith.constant 0 : index
    %c0_75 = arith.constant 0 : index
    %62 = vector.load %arg3[%c2_72, %c2_73, %c0_74, %c0_75] : memref<3x3x32x64xf32, #tpu.memory_space<vmem>>, vector<1x1x32x64xf32>
    %63 = vector.shape_cast %62 : vector<1x1x32x64xf32> to vector<32x64xf32>
    %c0_76 = arith.constant 0 : index
    %c2_77 = arith.constant 2 : index
    %c0_78 = arith.constant 0 : index
    %c0_79 = arith.constant 0 : index
    %64 = vector.load %arg1[%c0_76, %c2_77, %c0_78, %c0_79] : memref<1x18x9x32xf32, #tpu.memory_space<vmem>>, vector<1x16x8x32xf32>
    %65 = vector.shape_cast %64 : vector<1x16x8x32xf32> to vector<16x8x32xf32>
    %66 = vector.shape_cast %65 : vector<16x8x32xf32> to vector<128x32xf32>
    %c0_80 = arith.constant 0 : index
    %c2_81 = arith.constant 2 : index
    %c0_82 = arith.constant 0 : index
    %c0_83 = arith.constant 0 : index
    %67 = vector.load %arg2[%c0_80, %c2_81, %c0_82, %c0_83] : memref<1x18x9x32xf32, #tpu.memory_space<vmem>>, vector<1x16x8x32xf32>
    %68 = vector.shape_cast %67 : vector<1x16x8x32xf32> to vector<16x8x32xf32>
    %69 = vector.shape_cast %68 : vector<16x8x32xf32> to vector<128x32xf32>
    %c0_84 = arith.constant 0 : index
    %c2_85 = arith.constant 2 : index
    %c1_86 = arith.constant 1 : index
    %c0_87 = arith.constant 0 : index
    %70 = vector.load %arg1[%c0_84, %c2_85, %c1_86, %c0_87] : memref<1x18x9x32xf32, #tpu.memory_space<vmem>>, vector<1x16x8x32xf32>
    %71 = vector.shape_cast %70 : vector<1x16x8x32xf32> to vector<16x8x32xf32>
    %72 = vector.shape_cast %71 : vector<16x8x32xf32> to vector<128x32xf32>
    %c0_88 = arith.constant 0 : index
    %c2_89 = arith.constant 2 : index
    %c1_90 = arith.constant 1 : index
    %c0_91 = arith.constant 0 : index
    %73 = vector.load %arg2[%c0_88, %c2_89, %c1_90, %c0_91] : memref<1x18x9x32xf32, #tpu.memory_space<vmem>>, vector<1x16x8x32xf32>
    %74 = vector.shape_cast %73 : vector<1x16x8x32xf32> to vector<16x8x32xf32>
    %75 = vector.shape_cast %74 : vector<16x8x32xf32> to vector<128x32xf32>
    %cst_92 = arith.constant dense<0.000000e+00> : vector<128x64xf32>
    %76 = tpu.matmul %66, %59, %cst_92 {dimension_numbers = #tpu.dot_dimension_numbers<[1], [0], [0], [1], [0, 0, 1, 1], [], []>} : vector<128x32xf32>, vector<32x64xf32>, vector<128x64xf32> -> vector<128x64xf32>
    %77 = arith.addf %51, %76 : vector<128x64xf32>
    %cst_93 = arith.constant dense<0.000000e+00> : vector<128x64xf32>
    %78 = tpu.matmul %69, %61, %cst_93 {dimension_numbers = #tpu.dot_dimension_numbers<[1], [0], [0], [1], [0, 0, 1, 1], [], []>} : vector<128x32xf32>, vector<32x64xf32>, vector<128x64xf32> -> vector<128x64xf32>
    %79 = arith.addf %77, %78 : vector<128x64xf32>
    %cst_94 = arith.constant dense<0.000000e+00> : vector<128x64xf32>
    %80 = tpu.matmul %72, %63, %cst_94 {dimension_numbers = #tpu.dot_dimension_numbers<[1], [0], [0], [1], [0, 0, 1, 1], [], []>} : vector<128x32xf32>, vector<32x64xf32>, vector<128x64xf32> -> vector<128x64xf32>
    %81 = arith.addf %79, %80 : vector<128x64xf32>
    %cst_95 = arith.constant dense<0.000000e+00> : vector<128x64xf32>
    %82 = tpu.matmul %69, %59, %cst_95 {dimension_numbers = #tpu.dot_dimension_numbers<[1], [0], [0], [1], [0, 0, 1, 1], [], []>} : vector<128x32xf32>, vector<32x64xf32>, vector<128x64xf32> -> vector<128x64xf32>
    %83 = arith.addf %57, %82 : vector<128x64xf32>
    %cst_96 = arith.constant dense<0.000000e+00> : vector<128x64xf32>
    %84 = tpu.matmul %72, %61, %cst_96 {dimension_numbers = #tpu.dot_dimension_numbers<[1], [0], [0], [1], [0, 0, 1, 1], [], []>} : vector<128x32xf32>, vector<32x64xf32>, vector<128x64xf32> -> vector<128x64xf32>
    %85 = arith.addf %83, %84 : vector<128x64xf32>
    %cst_97 = arith.constant dense<0.000000e+00> : vector<128x64xf32>
    %86 = tpu.matmul %75, %63, %cst_97 {dimension_numbers = #tpu.dot_dimension_numbers<[1], [0], [0], [1], [0, 0, 1, 1], [], []>} : vector<128x32xf32>, vector<32x64xf32>, vector<128x64xf32> -> vector<128x64xf32>
    %87 = arith.addf %85, %86 : vector<128x64xf32>
    %88 = arith.maximumf %81, %87 : vector<128x64xf32>
    %89 = vector.shape_cast %88 : vector<128x64xf32> to vector<8x2x8x64xf32>
    %90 = vector.extract_strided_slice %89 {offsets = [0, 0, 0, 0], sizes = [8, 1, 8, 64], strides = [1, 1, 1, 1]} : vector<8x2x8x64xf32> to vector<8x1x8x64xf32>
    %91 = vector.shape_cast %90 : vector<8x1x8x64xf32> to vector<8x8x64xf32>
    %92 = vector.extract_strided_slice %89 {offsets = [0, 1, 0, 0], sizes = [8, 1, 8, 64], strides = [1, 1, 1, 1]} : vector<8x2x8x64xf32> to vector<8x1x8x64xf32>
    %93 = vector.shape_cast %92 : vector<8x1x8x64xf32> to vector<8x8x64xf32>
    %94 = arith.maximumf %91, %93 : vector<8x8x64xf32>
    %c0_98 = arith.constant 0 : index
    %c0_99 = arith.constant 0 : index
    %95 = vector.load %arg4[%c0_98, %c0_99] : memref<1x64xf32, #tpu.memory_space<vmem>>, vector<1x64xf32>
    %96 = vector.shape_cast %95 : vector<1x64xf32> to vector<1x1x64xf32>
    %97 = vector.broadcast %96 : vector<1x1x64xf32> to vector<8x8x64xf32>
    %98 = arith.addf %94, %97 : vector<8x8x64xf32>
    %cst_100 = arith.constant 0.000000e+00 : f32
    %99 = vector.broadcast %cst_100 : f32 to vector<8x8x64xf32>
    %100 = arith.maximumf %98, %99 : vector<8x8x64xf32>
    %c0_101 = arith.constant 0 : index
    %c0_102 = arith.constant 0 : index
    %c0_103 = arith.constant 0 : index
    %c0_104 = arith.constant 0 : index
    %101 = vector.load %arg5[%c0_101, %c0_102, %c0_103, %c0_104] : memref<1x8x8x64xf32, #tpu.memory_space<vmem>>, vector<1x8x8x64xf32>
    %102 = vector.shape_cast %101 : vector<1x8x8x64xf32> to vector<8x8x64xf32>
    %103 = vector.shape_cast %100 : vector<8x8x64xf32> to vector<1x8x8x64xf32>
    tpu.vector_store %arg5[%c0_101, %c0_102, %c0_103, %c0_104], %103 {strides = array<i32>} : memref<1x8x8x64xf32, #tpu.memory_space<vmem>>, vector<1x8x8x64xf32>,
    return
  }
  func.func @transform_0(%arg0: i32) -> (i32, i32, i32, i32) {
    %c0_i32 = arith.constant 0 : i32
    %c0_i32_0 = arith.constant 0 : i32
    %c0_i32_1 = arith.constant 0 : i32
    %c0_i32_2 = arith.constant 0 : i32
    return %arg0, %c0_i32, %c0_i32_0, %c0_i32_1 : i32, i32, i32, i32
  }
  func.func @transform_1(%arg0: i32) -> (i32, i32, i32, i32) {
    %c0_i32 = arith.constant 0 : i32
    %c0_i32_0 = arith.constant 0 : i32
    %c0_i32_1 = arith.constant 0 : i32
    %c0_i32_2 = arith.constant 0 : i32
    return %arg0, %c0_i32, %c0_i32_0, %c0_i32_1 : i32, i32, i32, i32
  }
  func.func @transform_2(%arg0: i32) -> (i32, i32, i32, i32) {
    %c0_i32 = arith.constant 0 : i32
    %c0_i32_0 = arith.constant 0 : i32
    %c0_i32_1 = arith.constant 0 : i32
    %c0_i32_2 = arith.constant 0 : i32
    %c0_i32_3 = arith.constant 0 : i32
    return %c0_i32, %c0_i32_0, %c0_i32_1, %c0_i32_2 : i32, i32, i32, i32
  }
  func.func @transform_3(%arg0: i32) -> (i32, i32) {
    %c0_i32 = arith.constant 0 : i32
    %c0_i32_0 = arith.constant 0 : i32
    %c0_i32_1 = arith.constant 0 : i32
    return %c0_i32, %c0_i32_0 : i32, i32
  }
  func.func @transform_4(%arg0: i32) -> (i32, i32, i32, i32) {
    %c0_i32 = arith.constant 0 : i32
    %c0_i32_0 = arith.constant 0 : i32
    %c0_i32_1 = arith.constant 0 : i32
    %c0_i32_2 = arith.constant 0 : i32
    return %arg0, %c0_i32, %c0_i32_0, %c0_i32_1 : i32, i32, i32, i32
  }
}

</mosaic_0001>

<llo_original>
// kernel: complete_test_model_forward.3
$region0: #{complete_test_model_forward.3}
  #allocation0 [shape = 'u32[]', space=smem, size = 0x4, offset = 0x4, fixed_abs, tag = 'smem constant byte address 0x4 - core index']
  #allocation1 [shape = 'u32[144,128]{1,0:T(1,128)}', space=vmem, size = 0x12000, scoped, tag = 'internal scratch']
  %s0 = inlined_call_operand.vmem [shape: f32[2,2,32,16,32], index: 0, kind: input, shape index: {}]
  %s1 = inlined_call_operand.vmem [shape: f32[32,128], index: 1, kind: input, shape index: {}]
  %s2 = inlined_call_operand.vmem [shape: f32[1,128], index: 2, kind: input, shape index: {}]
  %s3 = inlined_call_operand.vmem [shape: f32[2,16,16,128], index: 3, kind: output, shape index: {}]
  %s4 = sld [smem:[#allocation0]]
  $region83: #{complete_test_model_forward.3} parent=0
    _
  %s6 = ssub.s32 1, %s4
  %s7 = scalar_select 0, %s6, %s4
  $region1: #{complete_test_model_forward.3} parent=0
    #allocation2 [shape = 'u8[524288]{0}', space=vmem, size = 0x80000, scoped, tag = 'input window, operand 0']
    loop: start=0, step=1, limit=6
    $region2: #{complete_test_model_forward.3} parent=1 // loop_pre_header
      _
    $region3: #{complete_test_model_forward.3} parent=1 // loop_header
      %s9 = sphi 0, %s13
      %p10 = scmp.ge.s32.totalorder %s9, 6
      %s16 = sphi 0, %s28
      %s17 = sphi 0, %s24
      %s18 = sphi 0, %s16
      %s19 = sphi 0, %s17
      %s20 = sphi 0, %s18
      %s21 = sphi 0, %s19
      %s33 = sphi 0, %s35
      %s36 = sphi 0, %s33
      %s37 = sphi 0, %s36
      %s53 = sphi 0, %s37
      %s57 = sphi 0, %s57
      %s59 = sphi 0, %s57
      %s60 = sphi 0, %s59
      %s74 = sphi 0, %s60
      %s78 = sphi 0, %s78
      %s80 = sphi 0, %s78
      %s81 = sphi 0, %s80
      %s95 = sphi 0, %s81
      %s103 = sphi 0, %s105
      %s106 = sphi 0, %s103
      %s107 = sphi 0, %s106
      %s123 = sphi 0, %s107
    $region4: #{complete_test_model_forward.3} parent=1 // loop_header_branch
      %12 = sbr.rel (%p10) target = $region8
    $region5: #{complete_test_model_forward.3} parent=1 // loop_body
      %s14 = ssub.s32 %s9, 1
      %s15 = ssub.s32 %s9, 2
      %s22 = sadd.s32 1, %s17
      %p23 = scmp.ge.s32.totalorder %s22, 2
      %s24 = scalar_select %p23, 0, %s22
      %s25 = sadd.s32 1, %s16
      %s26 = scalar_select %p23, %s25, %s16
      %p27 = scmp.ge.s32.totalorder %s26, 2
      %s28 = scalar_select %p27, 0, %s26
      %s29 = ssub.s32 %s16, %s28
      %s30 = ssub.s32 %s17, %s24
      %s31 = sor.u32 %s29, %s30
      %p32 = scmp.eq.s32.totalorder %s31, 0
      %s34 = sadd.s32 %s33, 1
      %s35 = scalar_select %p32, %s33, %s34
      %p38 = pneg %p32
      %p39 = scmp.eq.s32.totalorder %s9, 3
      %p40 = por %p38, %p39
      %p41 = scmp.ne.s32.totalorder %s33, %s36
      %p42 = scmp.eq.s32.totalorder %s9, 0
      %p43 = por %p41, %p42
      %p44 = scmp.ne.s32.totalorder %s33, %s36
      %p45 = scmp.eq.s32.totalorder %s14, 3
      %p46 = por %p44, %p45
      %p47 = scmp.ne.s32.totalorder %s36, %s37
      %p48 = scmp.eq.s32.totalorder %s14, 0
      %p49 = por %p47, %p48
      %p50 = scmp.ne.s32.totalorder %s36, %s37
      %p51 = scmp.eq.s32.totalorder %s15, 3
      %p52 = por %p50, %p51
      %p54 = scmp.ne.s32.totalorder %s37, %s53
      %p55 = scmp.eq.s32.totalorder %s15, 0
      %p56 = por %p54, %p55
      %s58 = sadd.s32 %s57, 1
      %p61 = scmp.eq.s32.totalorder %s9, 3
      %p62 = scmp.ne.s32.totalorder %s57, %s59
      %p63 = scmp.eq.s32.totalorder %s9, 0
      %p64 = por %p62, %p63
      %p65 = scmp.ne.s32.totalorder %s57, %s59
      %p66 = scmp.eq.s32.totalorder %s14, 3
      %p67 = por %p65, %p66
      %p68 = scmp.ne.s32.totalorder %s59, %s60
      %p69 = scmp.eq.s32.totalorder %s14, 0
      %p70 = por %p68, %p69
      %p71 = scmp.ne.s32.totalorder %s59, %s60
      %p72 = scmp.eq.s32.totalorder %s15, 3
      %p73 = por %p71, %p72
      %p75 = scmp.ne.s32.totalorder %s60, %s74
      %p76 = scmp.eq.s32.totalorder %s15, 0
      %p77 = por %p75, %p76
      %s79 = sadd.s32 %s78, 1
      %p82 = scmp.eq.s32.totalorder %s9, 3
      %p83 = scmp.ne.s32.totalorder %s78, %s80
      %p84 = scmp.eq.s32.totalorder %s9, 0
      %p85 = por %p83, %p84
      %p86 = scmp.ne.s32.totalorder %s78, %s80
      %p87 = scmp.eq.s32.totalorder %s14, 3
      %p88 = por %p86, %p87
      %p89 = scmp.ne.s32.totalorder %s80, %s81
      %p90 = scmp.eq.s32.totalorder %s14, 0
      %p91 = por %p89, %p90
      %p92 = scmp.ne.s32.totalorder %s80, %s81
      %p93 = scmp.eq.s32.totalorder %s15, 3
      %p94 = por %p92, %p93
      %p96 = scmp.ne.s32.totalorder %s81, %s95
      %p97 = scmp.eq.s32.totalorder %s15, 0
      %p98 = por %p96, %p97
      %s99 = ssub.s32 %s16, %s28
      %s100 = ssub.s32 %s17, %s24
      %s101 = sor.u32 %s99, %s100
      %p102 = scmp.eq.s32.totalorder %s101, 0
      %s104 = sadd.s32 %s103, 1
      %s105 = scalar_select %p102, %s103, %s104
      %p108 = pneg %p102
      %p109 = scmp.eq.s32.totalorder %s9, 3
      %p110 = por %p108, %p109
      %p111 = scmp.ne.s32.totalorder %s103, %s106
      %p112 = scmp.eq.s32.totalorder %s9, 0
      %p113 = por %p111, %p112
      %p114 = scmp.ne.s32.totalorder %s103, %s106
      %p115 = scmp.eq.s32.totalorder %s14, 3
      %p116 = por %p114, %p115
      %p117 = scmp.ne.s32.totalorder %s106, %s107
      %p118 = scmp.eq.s32.totalorder %s14, 0
      %p119 = por %p117, %p118
      %p120 = scmp.ne.s32.totalorder %s106, %s107
      %p121 = scmp.eq.s32.totalorder %s15, 3
      %p122 = por %p120, %p121
      %p124 = scmp.ne.s32.totalorder %s107, %s123
      %p125 = scmp.eq.s32.totalorder %s15, 0
      %p126 = por %p124, %p125
      %p127 = scmp.le.s32.totalorder 1, %s9
      %p128 = scmp.lt.s32.totalorder %s9, 5
      %p129 = pnand %p127, %p128
      %p130 = pneg %p129
      // Predicated region
      $region9: #{complete_test_model_forward.3} parent=5 // pred_check
        _
      $region10: #{complete_test_model_forward.3} parent=5 // pred_check_branch
        %132 = sbr.rel (%p129) target = $region12
      $region11: #{complete_test_model_forward.3} parent=5 // pred_region
        %s133 = ssub.s32 %s9, 1
        // Predicated region
        $region13: #{complete_test_model_forward.3} parent=11 // pred_check
          %p134 = pneg %p70
        $region14: #{complete_test_model_forward.3} parent=11 // pred_check_branch
          %136 = sbr.rel (%p134) target = $region16
        $region15: #{complete_test_model_forward.3} parent=11 // pred_region
          _
        $region16: #{complete_test_model_forward.3} parent=11 // pred_fallthru
          _
        // Predicated region
        $region17: #{complete_test_model_forward.3} parent=11 // pred_check
          %p137 = pneg %p91
        $region18: #{complete_test_model_forward.3} parent=11 // pred_check_branch
          %139 = sbr.rel (%p137) target = $region20
        $region19: #{complete_test_model_forward.3} parent=11 // pred_region
          _
        $region20: #{complete_test_model_forward.3} parent=11 // pred_fallthru
          _
      $region12: #{complete_test_model_forward.3} parent=5 // pred_fallthru
        _
      %p140 = scmp.lt.s32.totalorder %s9, 4
      // Predicated region
      $region21: #{complete_test_model_forward.3} parent=5 // pred_check
        %p141 = pneg %p140
      $region22: #{complete_test_model_forward.3} parent=5 // pred_check_branch
        %143 = sbr.rel (%p141) target = $region24
      $region23: #{complete_test_model_forward.3} parent=5 // pred_region
        // Predicated region
        $region25: #{complete_test_model_forward.3} parent=23 // pred_check
          %p144 = pneg %p43
        $region26: #{complete_test_model_forward.3} parent=23 // pred_check_branch
          %146 = sbr.rel (%p144) target = $region28
        $region27: #{complete_test_model_forward.3} parent=23 // pred_region
          %s147 = sand.u32 %s33, 1
          %s148 = sand.u32 %s33, 1
          %s149 = smul.addr %s148, 512
          %s150 = scalar_lea.vmem [#allocation2], %s149
          %s151 = smul.u32 16, %s17
          %s152 = smul.addr %s151, 2
          %s153 = smul.addr %s16, 128
          %s154 = sadd.s32 %s152, %s153
          %s155 = smul.addr %s154, 8
          %s156 = scalar_lea.vmem %s0, %s155
          // Predicated region
          $region29: #{complete_test_model_forward.3} parent=27 // pred_check
            _
          $region30: #{complete_test_model_forward.3} parent=27 // pred_check_branch
            %158 = sbr.rel (0) target = $region32
          $region31: #{complete_test_model_forward.3} parent=27 // pred_region
            // Predicated region
            $region33: #{complete_test_model_forward.3} parent=31 // pred_check
              _
            $region34: #{complete_test_model_forward.3} parent=31 // pred_check_branch
              %160 = sbr.rel (0) target = $region36
            $region35: #{complete_test_model_forward.3} parent=31 // pred_region
              // Predicated region
              $region48: #{complete_test_model_forward.3} parent=35 // pred_check
                _
              $region49: #{complete_test_model_forward.3} parent=35 // pred_check_branch
                %301 = sbr.rel (0) target = $region51
              $region50: #{complete_test_model_forward.3} parent=35 // pred_region
                loop: start=0, step=1, limit=1
                $region52: #{complete_test_model_forward.3} parent=50 // loop_pre_header
                  _
                $region53: #{complete_test_model_forward.3} parent=50 // loop_header
                  %s303 = sphi 0, %s307
                  %p304 = scmp.ge.s32.totalorder %s303, 1
                  %s308 = sphi %s156, %s156
                  %s309 = sphi %s150, %s150
                $region54: #{complete_test_model_forward.3} parent=50 // loop_header_branch
                  %306 = sbr.rel (%p304) target = $region58
                $region55: #{complete_test_model_forward.3} parent=50 // loop_body
                  %v310 = vld [vmem:[%s308] sm:$0xff]
                  %311 = vst [vmem:[%s309] sm:$0xff] %v310
                  %v312 = vld [vmem:[%s308 + $0x8] sm:$0xff]
                  %313 = vst [vmem:[%s309 + $0x8] sm:$0xff] %v312
                  %v314 = vld [vmem:[%s308 + $0x10] sm:$0xff]
                  %315 = vst [vmem:[%s309 + $0x10] sm:$0xff] %v314
                  %v316 = vld [vmem:[%s308 + $0x18] sm:$0xff]
                  %317 = vst [vmem:[%s309 + $0x18] sm:$0xff] %v316
                  %v318 = vld [vmem:[%s308 + $0x20] sm:$0xff]
                  %319 = vst [vmem:[%s309 + $0x20] sm:$0xff] %v318
                  %v320 = vld [vmem:[%s308 + $0x28] sm:$0xff]
                  %321 = vst [vmem:[%s309 + $0x28] sm:$0xff] %v320
                  %v322 = vld [vmem:[%s308 + $0x30] sm:$0xff]
                  %323 = vst [vmem:[%s309 + $0x30] sm:$0xff] %v322
                  %v324 = vld [vmem:[%s308 + $0x38] sm:$0xff]
                  %325 = vst [vmem:[%s309 + $0x38] sm:$0xff] %v324
                  %v326 = vld [vmem:[%s308 + $0x40] sm:$0xff]
                  %327 = vst [vmem:[%s309 + $0x40] sm:$0xff] %v326
                  %v328 = vld [vmem:[%s308 + $0x48] sm:$0xff]
                  %329 = vst [vmem:[%s309 + $0x48] sm:$0xff] %v328
                  %v330 = vld [vmem:[%s308 + $0x50] sm:$0xff]
                  %331 = vst [vmem:[%s309 + $0x50] sm:$0xff] %v330
                  %v332 = vld [vmem:[%s308 + $0x58] sm:$0xff]
                  %333 = vst [vmem:[%s309 + $0x58] sm:$0xff] %v332
                  %v334 = vld [vmem:[%s308 + $0x60] sm:$0xff]
                  %335 = vst [vmem:[%s309 + $0x60] sm:$0xff] %v334
                  %v336 = vld [vmem:[%s308 + $0x68] sm:$0xff]
                  %337 = vst [vmem:[%s309 + $0x68] sm:$0xff] %v336
                  %v338 = vld [vmem:[%s308 + $0x70] sm:$0xff]
                  %339 = vst [vmem:[%s309 + $0x70] sm:$0xff] %v338
                  %v340 = vld [vmem:[%s308 + $0x78] sm:$0xff]
                  %341 = vst [vmem:[%s309 + $0x78] sm:$0xff] %v340
                  %v342 = vld [vmem:[%s308 + $0x80] sm:$0xff]
                  %343 = vst [vmem:[%s309 + $0x80] sm:$0xff] %v342
                  %v344 = vld [vmem:[%s308 + $0x88] sm:$0xff]
                  %345 = vst [vmem:[%s309 + $0x88] sm:$0xff] %v344
                  %v346 = vld [vmem:[%s308 + $0x90] sm:$0xff]
                  %347 = vst [vmem:[%s309 + $0x90] sm:$0xff] %v346
                  %v348 = vld [vmem:[%s308 + $0x98] sm:$0xff]
                  %349 = vst [vmem:[%s309 + $0x98] sm:$0xff] %v348
                  %v350 = vld [vmem:[%s308 + $0xa0] sm:$0xff]
                  %351 = vst [vmem:[%s309 + $0xa0] sm:$0xff] %v350
                  %v352 = vld [vmem:[%s308 + $0xa8] sm:$0xff]
                  %353 = vst [vmem:[%s309 + $0xa8] sm:$0xff] %v352
                  %v354 = vld [vmem:[%s308 + $0xb0] sm:$0xff]
                  %355 = vst [vmem:[%s309 + $0xb0] sm:$0xff] %v354
                  %v356 = vld [vmem:[%s308 + $0xb8] sm:$0xff]
                  %357 = vst [vmem:[%s309 + $0xb8] sm:$0xff] %v356
                  %v358 = vld [vmem:[%s308 + $0xc0] sm:$0xff]
                  %359 = vst [vmem:[%s309 + $0xc0] sm:$0xff] %v358
                  %v360 = vld [vmem:[%s308 + $0xc8] sm:$0xff]
                  %361 = vst [vmem:[%s309 + $0xc8] sm:$0xff] %v360
                  %v362 = vld [vmem:[%s308 + $0xd0] sm:$0xff]
                  %363 = vst [vmem:[%s309 + $0xd0] sm:$0xff] %v362
                  %v364 = vld [vmem:[%s308 + $0xd8] sm:$0xff]
                  %365 = vst [vmem:[%s309 + $0xd8] sm:$0xff] %v364
                  %v366 = vld [vmem:[%s308 + $0xe0] sm:$0xff]
                  %367 = vst [vmem:[%s309 + $0xe0] sm:$0xff] %v366
                  %v368 = vld [vmem:[%s308 + $0xe8] sm:$0xff]
                  %369 = vst [vmem:[%s309 + $0xe8] sm:$0xff] %v368
                  %v370 = vld [vmem:[%s308 + $0xf0] sm:$0xff]
                  %371 = vst [vmem:[%s309 + $0xf0] sm:$0xff] %v370
                  %v372 = vld [vmem:[%s308 + $0xf8] sm:$0xff]
                  %373 = vst [vmem:[%s309 + $0xf8] sm:$0xff] %v372
                  %v374 = vld [vmem:[%s308 + $0x200] sm:$0xff]
                  %375 = vst [vmem:[%s309 + $0x100] sm:$0xff] %v374
                  %v376 = vld [vmem:[%s308 + $0x208] sm:$0xff]
                  %377 = vst [vmem:[%s309 + $0x108] sm:$0xff] %v376
                  %v378 = vld [vmem:[%s308 + $0x210] sm:$0xff]
                  %379 = vst [vmem:[%s309 + $0x110] sm:$0xff] %v378
                  %v380 = vld [vmem:[%s308 + $0x218] sm:$0xff]
                  %381 = vst [vmem:[%s309 + $0x118] sm:$0xff] %v380
                  %v382 = vld [vmem:[%s308 + $0x220] sm:$0xff]
                  %383 = vst [vmem:[%s309 + $0x120] sm:$0xff] %v382
                  %v384 = vld [vmem:[%s308 + $0x228] sm:$0xff]
                  %385 = vst [vmem:[%s309 + $0x128] sm:$0xff] %v384
                  %v386 = vld [vmem:[%s308 + $0x230] sm:$0xff]
                  %387 = vst [vmem:[%s309 + $0x130] sm:$0xff] %v386
                  %v388 = vld [vmem:[%s308 + $0x238] sm:$0xff]
                  %389 = vst [vmem:[%s309 + $0x138] sm:$0xff] %v388
                  %v390 = vld [vmem:[%s308 + $0x240] sm:$0xff]
                  %391 = vst [vmem:[%s309 + $0x140] sm:$0xff] %v390
                  %v392 = vld [vmem:[%s308 + $0x248] sm:$0xff]
                  %393 = vst [vmem:[%s309 + $0x148] sm:$0xff] %v392
                  %v394 = vld [vmem:[%s308 + $0x250] sm:$0xff]
                  %395 = vst [vmem:[%s309 + $0x150] sm:$0xff] %v394
                  %v396 = vld [vmem:[%s308 + $0x258] sm:$0xff]
                  %397 = vst [vmem:[%s309 + $0x158] sm:$0xff] %v396
                  %v398 = vld [vmem:[%s308 + $0x260] sm:$0xff]
                  %399 = vst [vmem:[%s309 + $0x160] sm:$0xff] %v398
                  %v400 = vld [vmem:[%s308 + $0x268] sm:$0xff]
                  %401 = vst [vmem:[%s309 + $0x168] sm:$0xff] %v400
                  %v402 = vld [vmem:[%s308 + $0x270] sm:$0xff]
                  %403 = vst [vmem:[%s309 + $0x170] sm:$0xff] %v402
                  %v404 = vld [vmem:[%s308 + $0x278] sm:$0xff]
                  %405 = vst [vmem:[%s309 + $0x178] sm:$0xff] %v404
                  %v406 = vld [vmem:[%s308 + $0x280] sm:$0xff]
                  %407 = vst [vmem:[%s309 + $0x180] sm:$0xff] %v406
                  %v408 = vld [vmem:[%s308 + $0x288] sm:$0xff]
                  %409 = vst [vmem:[%s309 + $0x188] sm:$0xff] %v408
                  %v410 = vld [vmem:[%s308 + $0x290] sm:$0xff]
                  %411 = vst [vmem:[%s309 + $0x190] sm:$0xff] %v410
                  %v412 = vld [vmem:[%s308 + $0x298] sm:$0xff]
                  %413 = vst [vmem:[%s309 + $0x198] sm:$0xff] %v412
                  %v414 = vld [vmem:[%s308 + $0x2a0] sm:$0xff]
                  %415 = vst [vmem:[%s309 + $0x1a0] sm:$0xff] %v414
                  %v416 = vld [vmem:[%s308 + $0x2a8] sm:$0xff]
                  %417 = vst [vmem:[%s309 + $0x1a8] sm:$0xff] %v416
                  %v418 = vld [vmem:[%s308 + $0x2b0] sm:$0xff]
                  %419 = vst [vmem:[%s309 + $0x1b0] sm:$0xff] %v418
                  %v420 = vld [vmem:[%s308 + $0x2b8] sm:$0xff]
                  %421 = vst [vmem:[%s309 + $0x1b8] sm:$0xff] %v420
                  %v422 = vld [vmem:[%s308 + $0x2c0] sm:$0xff]
                  %423 = vst [vmem:[%s309 + $0x1c0] sm:$0xff] %v422
                  %v424 = vld [vmem:[%s308 + $0x2c8] sm:$0xff]
                  %425 = vst [vmem:[%s309 + $0x1c8] sm:$0xff] %v424
                  %v426 = vld [vmem:[%s308 + $0x2d0] sm:$0xff]
                  %427 = vst [vmem:[%s309 + $0x1d0] sm:$0xff] %v426
                  %v428 = vld [vmem:[%s308 + $0x2d8] sm:$0xff]
                  %429 = vst [vmem:[%s309 + $0x1d8] sm:$0xff] %v428
                  %v430 = vld [vmem:[%s308 + $0x2e0] sm:$0xff]
                  %431 = vst [vmem:[%s309 + $0x1e0] sm:$0xff] %v430
                  %v432 = vld [vmem:[%s308 + $0x2e8] sm:$0xff]
                  %433 = vst [vmem:[%s309 + $0x1e8] sm:$0xff] %v432
                  %v434 = vld [vmem:[%s308 + $0x2f0] sm:$0xff]
                  %435 = vst [vmem:[%s309 + $0x1f0] sm:$0xff] %v434
                  %v436 = vld [vmem:[%s308 + $0x2f8] sm:$0xff]
                  %437 = vst [vmem:[%s309 + $0x1f8] sm:$0xff] %v436
                $region56: #{complete_test_model_forward.3} parent=50 // loop_footer
                  %s307 = sadd.s32 1, %s303
                $region57: #{complete_test_model_forward.3} parent=50 // loop_footer_branch
                  %302 = sbr.rel target = $region53
                $region58: #{complete_test_model_forward.3} parent=50 // loop_exit
                  _
              $region51: #{complete_test_model_forward.3} parent=35 // pred_fallthru
                _
              // Predicated region
              $region59: #{complete_test_model_forward.3} parent=35 // pred_check
                _
              $region60: #{complete_test_model_forward.3} parent=35 // pred_check_branch
                %439 = sbr.rel target = $region62
              $region61: #{complete_test_model_forward.3} parent=35 // pred_region
                _
              $region62: #{complete_test_model_forward.3} parent=35 // pred_fallthru
                _
            $region36: #{complete_test_model_forward.3} parent=31 // pred_fallthru
              _
            // Predicated region
            $region37: #{complete_test_model_forward.3} parent=31 // pred_check
              _
            $region38: #{complete_test_model_forward.3} parent=31 // pred_check_branch
              %162 = sbr.rel target = $region40
            $region39: #{complete_test_model_forward.3} parent=31 // pred_region
              loop: start=0, step=1, limit=1
              $region41: #{complete_test_model_forward.3} parent=39 // loop_pre_header
                _
              $region42: #{complete_test_model_forward.3} parent=39 // loop_header
                %s165 = sphi 0, %s169
                %p166 = scmp.ge.s32.totalorder %s165, 1
                %s170 = sphi %s156, %s156
                %s171 = sphi %s150, %s150
              $region43: #{complete_test_model_forward.3} parent=39 // loop_header_branch
                %168 = sbr.rel (%p166) target = $region47
              $region44: #{complete_test_model_forward.3} parent=39 // loop_body
                %v172 = vld [vmem:[%s170] sm:$0xff]
                %173 = vst [vmem:[%s171] sm:$0xff] %v172
                %v174 = vld [vmem:[%s170 + $0x8] sm:$0xff]
                %175 = vst [vmem:[%s171 + $0x8] sm:$0xff] %v174
                %v176 = vld [vmem:[%s170 + $0x10] sm:$0xff]
                %177 = vst [vmem:[%s171 + $0x10] sm:$0xff] %v176
                %v178 = vld [vmem:[%s170 + $0x18] sm:$0xff]
                %179 = vst [vmem:[%s171 + $0x18] sm:$0xff] %v178
                %v180 = vld [vmem:[%s170 + $0x20] sm:$0xff]
                %181 = vst [vmem:[%s171 + $0x20] sm:$0xff] %v180
                %v182 = vld [vmem:[%s170 + $0x28] sm:$0xff]
                %183 = vst [vmem:[%s171 + $0x28] sm:$0xff] %v182
                %v184 = vld [vmem:[%s170 + $0x30] sm:$0xff]
                %185 = vst [vmem:[%s171 + $0x30] sm:$0xff] %v184
                %v186 = vld [vmem:[%s170 + $0x38] sm:$0xff]
                %187 = vst [vmem:[%s171 + $0x38] sm:$0xff] %v186
                %v188 = vld [vmem:[%s170 + $0x40] sm:$0xff]
                %189 = vst [vmem:[%s171 + $0x40] sm:$0xff] %v188
                %v190 = vld [vmem:[%s170 + $0x48] sm:$0xff]
                %191 = vst [vmem:[%s171 + $0x48] sm:$0xff] %v190
                %v192 = vld [vmem:[%s170 + $0x50] sm:$0xff]
                %193 = vst [vmem:[%s171 + $0x50] sm:$0xff] %v192
                %v194 = vld [vmem:[%s170 + $0x58] sm:$0xff]
                %195 = vst [vmem:[%s171 + $0x58] sm:$0xff] %v194
                %v196 = vld [vmem:[%s170 + $0x60] sm:$0xff]
                %197 = vst [vmem:[%s171 + $0x60] sm:$0xff] %v196
                %v198 = vld [vmem:[%s170 + $0x68] sm:$0xff]
                %199 = vst [vmem:[%s171 + $0x68] sm:$0xff] %v198
                %v200 = vld [vmem:[%s170 + $0x70] sm:$0xff]
                %201 = vst [vmem:[%s171 + $0x70] sm:$0xff] %v200
                %v202 = vld [vmem:[%s170 + $0x78] sm:$0xff]
                %203 = vst [vmem:[%s171 + $0x78] sm:$0xff] %v202
                %v204 = vld [vmem:[%s170 + $0x80] sm:$0xff]
                %205 = vst [vmem:[%s171 + $0x80] sm:$0xff] %v204
                %v206 = vld [vmem:[%s170 + $0x88] sm:$0xff]
                %207 = vst [vmem:[%s171 + $0x88] sm:$0xff] %v206
                %v208 = vld [vmem:[%s170 + $0x90] sm:$0xff]
                %209 = vst [vmem:[%s171 + $0x90] sm:$0xff] %v208
                %v210 = vld [vmem:[%s170 + $0x98] sm:$0xff]
                %211 = vst [vmem:[%s171 + $0x98] sm:$0xff] %v210
                %v212 = vld [vmem:[%s170 + $0xa0] sm:$0xff]
                %213 = vst [vmem:[%s171 + $0xa0] sm:$0xff] %v212
                %v214 = vld [vmem:[%s170 + $0xa8] sm:$0xff]
                %215 = vst [vmem:[%s171 + $0xa8] sm:$0xff] %v214
                %v216 = vld [vmem:[%s170 + $0xb0] sm:$0xff]
                %217 = vst [vmem:[%s171 + $0xb0] sm:$0xff] %v216
                %v218 = vld [vmem:[%s170 + $0xb8] sm:$0xff]
                %219 = vst [vmem:[%s171 + $0xb8] sm:$0xff] %v218
                %v220 = vld [vmem:[%s170 + $0xc0] sm:$0xff]
                %221 = vst [vmem:[%s171 + $0xc0] sm:$0xff] %v220
                %v222 = vld [vmem:[%s170 + $0xc8] sm:$0xff]
                %223 = vst [vmem:[%s171 + $0xc8] sm:$0xff] %v222
                %v224 = vld [vmem:[%s170 + $0xd0] sm:$0xff]
                %225 = vst [vmem:[%s171 + $0xd0] sm:$0xff] %v224
                %v226 = vld [vmem:[%s170 + $0xd8] sm:$0xff]
                %227 = vst [vmem:[%s171 + $0xd8] sm:$0xff] %v226
                %v228 = vld [vmem:[%s170 + $0xe0] sm:$0xff]
                %229 = vst [vmem:[%s171 + $0xe0] sm:$0xff] %v228
                %v230 = vld [vmem:[%s170 + $0xe8] sm:$0xff]
                %231 = vst [vmem:[%s171 + $0xe8] sm:$0xff] %v230
                %v232 = vld [vmem:[%s170 + $0xf0] sm:$0xff]
                %233 = vst [vmem:[%s171 + $0xf0] sm:$0xff] %v232
                %v234 = vld [vmem:[%s170 + $0xf8] sm:$0xff]
                %235 = vst [vmem:[%s171 + $0xf8] sm:$0xff] %v234
                %v236 = vld [vmem:[%s170 + $0x200] sm:$0xff]
                %237 = vst [vmem:[%s171 + $0x100] sm:$0xff] %v236
                %v238 = vld [vmem:[%s170 + $0x208] sm:$0xff]
                %239 = vst [vmem:[%s171 + $0x108] sm:$0xff] %v238
                %v240 = vld [vmem:[%s170 + $0x210] sm:$0xff]
                %241 = vst [vmem:[%s171 + $0x110] sm:$0xff] %v240
                %v242 = vld [vmem:[%s170 + $0x218] sm:$0xff]
                %243 = vst [vmem:[%s171 + $0x118] sm:$0xff] %v242
                %v244 = vld [vmem:[%s170 + $0x220] sm:$0xff]
                %245 = vst [vmem:[%s171 + $0x120] sm:$0xff] %v244
                %v246 = vld [vmem:[%s170 + $0x228] sm:$0xff]
                %247 = vst [vmem:[%s171 + $0x128] sm:$0xff] %v246
                %v248 = vld [vmem:[%s170 + $0x230] sm:$0xff]
                %249 = vst [vmem:[%s171 + $0x130] sm:$0xff] %v248
                %v250 = vld [vmem:[%s170 + $0x238] sm:$0xff]
                %251 = vst [vmem:[%s171 + $0x138] sm:$0xff] %v250
                %v252 = vld [vmem:[%s170 + $0x240] sm:$0xff]
                %253 = vst [vmem:[%s171 + $0x140] sm:$0xff] %v252
                %v254 = vld [vmem:[%s170 + $0x248] sm:$0xff]
                %255 = vst [vmem:[%s171 + $0x148] sm:$0xff] %v254
                %v256 = vld [vmem:[%s170 + $0x250] sm:$0xff]
                %257 = vst [vmem:[%s171 + $0x150] sm:$0xff] %v256
                %v258 = vld [vmem:[%s170 + $0x258] sm:$0xff]
                %259 = vst [vmem:[%s171 + $0x158] sm:$0xff] %v258
                %v260 = vld [vmem:[%s170 + $0x260] sm:$0xff]
                %261 = vst [vmem:[%s171 + $0x160] sm:$0xff] %v260
                %v262 = vld [vmem:[%s170 + $0x268] sm:$0xff]
                %263 = vst [vmem:[%s171 + $0x168] sm:$0xff] %v262
                %v264 = vld [vmem:[%s170 + $0x270] sm:$0xff]
                %265 = vst [vmem:[%s171 + $0x170] sm:$0xff] %v264
                %v266 = vld [vmem:[%s170 + $0x278] sm:$0xff]
                %267 = vst [vmem:[%s171 + $0x178] sm:$0xff] %v266
                %v268 = vld [vmem:[%s170 + $0x280] sm:$0xff]
                %269 = vst [vmem:[%s171 + $0x180] sm:$0xff] %v268
                %v270 = vld [vmem:[%s170 + $0x288] sm:$0xff]
                %271 = vst [vmem:[%s171 + $0x188] sm:$0xff] %v270
                %v272 = vld [vmem:[%s170 + $0x290] sm:$0xff]
                %273 = vst [vmem:[%s171 + $0x190] sm:$0xff] %v272
                %v274 = vld [vmem:[%s170 + $0x298] sm:$0xff]
                %275 = vst [vmem:[%s171 + $0x198] sm:$0xff] %v274
                %v276 = vld [vmem:[%s170 + $0x2a0] sm:$0xff]
                %277 = vst [vmem:[%s171 + $0x1a0] sm:$0xff] %v276
                %v278 = vld [vmem:[%s170 + $0x2a8] sm:$0xff]
                %279 = vst [vmem:[%s171 + $0x1a8] sm:$0xff] %v278
                %v280 = vld [vmem:[%s170 + $0x2b0] sm:$0xff]
                %281 = vst [vmem:[%s171 + $0x1b0] sm:$0xff] %v280
                %v282 = vld [vmem:[%s170 + $0x2b8] sm:$0xff]
                %283 = vst [vmem:[%s171 + $0x1b8] sm:$0xff] %v282
                %v284 = vld [vmem:[%s170 + $0x2c0] sm:$0xff]
                %285 = vst [vmem:[%s171 + $0x1c0] sm:$0xff] %v284
                %v286 = vld [vmem:[%s170 + $0x2c8] sm:$0xff]
                %287 = vst [vmem:[%s171 + $0x1c8] sm:$0xff] %v286
                %v288 = vld [vmem:[%s170 + $0x2d0] sm:$0xff]
                %289 = vst [vmem:[%s171 + $0x1d0] sm:$0xff] %v288
                %v290 = vld [vmem:[%s170 + $0x2d8] sm:$0xff]
                %291 = vst [vmem:[%s171 + $0x1d8] sm:$0xff] %v290
                %v292 = vld [vmem:[%s170 + $0x2e0] sm:$0xff]
                %293 = vst [vmem:[%s171 + $0x1e0] sm:$0xff] %v292
                %v294 = vld [vmem:[%s170 + $0x2e8] sm:$0xff]
                %295 = vst [vmem:[%s171 + $0x1e8] sm:$0xff] %v294
                %v296 = vld [vmem:[%s170 + $0x2f0] sm:$0xff]
                %297 = vst [vmem:[%s171 + $0x1f0] sm:$0xff] %v296
                %v298 = vld [vmem:[%s170 + $0x2f8] sm:$0xff]
                %299 = vst [vmem:[%s171 + $0x1f8] sm:$0xff] %v298
              $region45: #{complete_test_model_forward.3} parent=39 // loop_footer
                %s169 = sadd.s32 1, %s165
              $region46: #{complete_test_model_forward.3} parent=39 // loop_footer_branch
                %164 = sbr.rel target = $region42
              $region47: #{complete_test_model_forward.3} parent=39 // loop_exit
                _
            $region40: #{complete_test_model_forward.3} parent=31 // pred_fallthru
              _
          $region32: #{complete_test_model_forward.3} parent=27 // pred_fallthru
            _
          %440 = vnop
        $region28: #{complete_test_model_forward.3} parent=23 // pred_fallthru
          _
      $region24: #{complete_test_model_forward.3} parent=5 // pred_fallthru
        _
      %p441 = scmp.le.s32.totalorder 1, %s9
      %p442 = scmp.lt.s32.totalorder %s9, 5
      %p443 = pnand %p441, %p442
      %p444 = pneg %p443
      // Predicated region
      $region63: #{complete_test_model_forward.3} parent=5 // pred_check
        _
      $region64: #{complete_test_model_forward.3} parent=5 // pred_check_branch
        %446 = sbr.rel (%p443) target = $region66
      $region65: #{complete_test_model_forward.3} parent=5 // pred_region
        %s447 = ssub.s32 %s9, 1
        %s448 = sand.u32 %s36, 1
        %s449 = sand.u32 %s36, 1
        %s450 = smul.addr %s449, 512
        %s451 = scalar_lea.vmem [#allocation2], %s450
        // Predicated region
        $region67: #{complete_test_model_forward.3} parent=65 // pred_check
          %p452 = pneg %p49
        $region68: #{complete_test_model_forward.3} parent=65 // pred_check_branch
          %454 = sbr.rel (%p452) target = $region70
        $region69: #{complete_test_model_forward.3} parent=65 // pred_region
          _
        $region70: #{complete_test_model_forward.3} parent=65 // pred_fallthru
          _
        %s455 = sand.u32 %s36, 1
        %s456 = sand.u32 %s36, 1
        %s457 = smul.addr %s456, 512
        %s458 = scalar_lea.vmem [#allocation2], %s457
        %p459 = pneg %p49
        %p460 = pneg %p46
        %p461 = pneg %p70
        %p462 = pneg %p67
        %p463 = pneg %p91
        %p464 = pneg %p88
        %p465 = pneg %p119
        %p466 = pneg %p116
        %s467 = smul.u32 8, %s19
        %p468 = scmp.lt.s32.totalorder %s18, 1
        %s469 = scalar_select %p468, %s18, 1
        %p470 = scmp.lt.s32.totalorder %s467, 15
        %s471 = scalar_select %p470, %s467, 15
        %s472 = smul.addr %s471, 2
        %s473 = smul.addr %s469, 32
        %s474 = sadd.s32 %s472, %s473
        %s475 = smul.addr %s474, 8
        %s476 = scalar_lea.vmem %s3, %s475
        %s477 = smul.u32 16, %s19
        %s478 = smul.u32 8, %s19
        %p479 = scmp.lt.s32.totalorder %s18, 1
        %s480 = scalar_select %p479, %s18, 1
        %p481 = scmp.lt.s32.totalorder %s478, 15
        %s482 = scalar_select %p481, %s478, 15
        %s483 = smul.addr %s482, 2
        %s484 = smul.addr %s480, 32
        %s485 = sadd.s32 %s483, %s484
        %s486 = smul.addr %s485, 8
        %s487 = scalar_lea.vmem %s3, %s486
        %s488 = smul.u32 8, %s19
        %v489 = vld [vmem:[%s451] sm:$0xff]
        %v490 = vld [vmem:[%s451 + $0x8] sm:$0xff]
        %v491 = vld [vmem:[%s451 + $0x10] sm:$0xff]
        %v492 = vld [vmem:[%s451 + $0x18] sm:$0xff]
        %v493 = vld [vmem:[%s451 + $0x20] sm:$0xff]
        %v494 = vld [vmem:[%s451 + $0x28] sm:$0xff]
        %v495 = vld [vmem:[%s451 + $0x30] sm:$0xff]
        %v496 = vld [vmem:[%s451 + $0x38] sm:$0xff]
        %v497 = vld [vmem:[%s451 + $0x40] sm:$0xff]
        %v498 = vld [vmem:[%s451 + $0x48] sm:$0xff]
        %v499 = vld [vmem:[%s451 + $0x50] sm:$0xff]
        %v500 = vld [vmem:[%s451 + $0x58] sm:$0xff]
        %v501 = vld [vmem:[%s451 + $0x60] sm:$0xff]
        %v502 = vld [vmem:[%s451 + $0x68] sm:$0xff]
        %v503 = vld [vmem:[%s451 + $0x70] sm:$0xff]
        %v504 = vld [vmem:[%s451 + $0x78] sm:$0xff]
        %v505 = vld [vmem:[%s451 + $0x80] sm:$0xff]
        %v506 = vld [vmem:[%s451 + $0x88] sm:$0xff]
        %v507 = vld [vmem:[%s451 + $0x90] sm:$0xff]
        %v508 = vld [vmem:[%s451 + $0x98] sm:$0xff]
        %v509 = vld [vmem:[%s451 + $0xa0] sm:$0xff]
        %v510 = vld [vmem:[%s451 + $0xa8] sm:$0xff]
        %v511 = vld [vmem:[%s451 + $0xb0] sm:$0xff]
        %v512 = vld [vmem:[%s451 + $0xb8] sm:$0xff]
        %v513 = vld [vmem:[%s451 + $0xc0] sm:$0xff]
        %v514 = vld [vmem:[%s451 + $0xc8] sm:$0xff]
        %v515 = vld [vmem:[%s451 + $0xd0] sm:$0xff]
        %v516 = vld [vmem:[%s451 + $0xd8] sm:$0xff]
        %v517 = vld [vmem:[%s451 + $0xe0] sm:$0xff]
        %v518 = vld [vmem:[%s451 + $0xe8] sm:$0xff]
        %v519 = vld [vmem:[%s451 + $0xf0] sm:$0xff]
        %v520 = vld [vmem:[%s451 + $0xf8] sm:$0xff]
        %v521 = vld [vmem:[%s1] sm:$0xff]
        %v522 = vld [vmem:[%s1 + $0x8] sm:$0xff]
        %v523 = vld [vmem:[%s1 + $0x10] sm:$0xff]
        %v524 = vld [vmem:[%s1 + $0x18] sm:$0xff]
        %vm525 = vcmask 261120
        %v527 = vsel %vm525, %v489, 0
        %v530 = vsel %vm525, %v490, 0
        %v533 = vsel %vm525, %v491, 0
        %v536 = vsel %vm525, %v492, 0
        %v539 = vsel %vm525, %v493, 0
        %v542 = vsel %vm525, %v494, 0
        %v545 = vsel %vm525, %v495, 0
        %v548 = vsel %vm525, %v496, 0
        %v551 = vsel %vm525, %v497, 0
        %v554 = vsel %vm525, %v498, 0
        %v557 = vsel %vm525, %v499, 0
        %v560 = vsel %vm525, %v500, 0
        %v563 = vsel %vm525, %v501, 0
        %v566 = vsel %vm525, %v502, 0
        %v569 = vsel %vm525, %v503, 0
        %v572 = vsel %vm525, %v504, 0
        %v575 = vsel %vm525, %v505, 0
        %v578 = vsel %vm525, %v506, 0
        %v581 = vsel %vm525, %v507, 0
        %v584 = vsel %vm525, %v508, 0
        %v587 = vsel %vm525, %v509, 0
        %v590 = vsel %vm525, %v510, 0
        %v593 = vsel %vm525, %v511, 0
        %v596 = vsel %vm525, %v512, 0
        %v599 = vsel %vm525, %v513, 0
        %v602 = vsel %vm525, %v514, 0
        %v605 = vsel %vm525, %v515, 0
        %v608 = vsel %vm525, %v516, 0
        %v611 = vsel %vm525, %v517, 0
        %v614 = vsel %vm525, %v518, 0
        %v617 = vsel %vm525, %v519, 0
        %v620 = vsel %vm525, %v520, 0
        %622 = vmatprep.subr.mxu0 0.0
        %623 = vmatpush1.msra.mxu0 %v521
        %624 = vmatprep.subr.mxu0 0.0
        %625 = vmatpush1.msra.mxu0 %v522
        %626 = vmatprep.subr.mxu0 0.0
        %627 = vmatpush1.msra.mxu0 %v523
        %628 = vmatprep.subr.mxu0 0.0
        %629 = vmatpush1.msra.mxu0 %v524
        %630 = vmatprep.subr.mxu0 0.0
        %631 = vmatpush1.msra.mxu0 0.0
        %632 = vmatprep.subr.mxu0 0.0
        %633 = vmatpush1.msra.mxu0 0.0
        %634 = vmatprep.subr.mxu0 0.0
        %635 = vmatpush1.msra.mxu0 0.0
        %636 = vmatprep.subr.mxu0 0.0
        %637 = vmatpush1.msra.mxu0 0.0
        %638 = vmatprep.subr.mxu0 0.0
        %639 = vmatpush1.msra.mxu0 0.0
        %640 = vmatprep.subr.mxu0 0.0
        %641 = vmatpush1.msra.mxu0 0.0
        %642 = vmatprep.subr.mxu0 0.0
        %643 = vmatpush1.msra.mxu0 0.0
        %644 = vmatprep.subr.mxu0 0.0
        %645 = vmatpush1.msra.mxu0 0.0
        %646 = vmatprep.subr.mxu0 0.0
        %647 = vmatpush1.msra.mxu0 0.0
        %648 = vmatprep.subr.mxu0 0.0
        %649 = vmatpush1.msra.mxu0 0.0
        %650 = vmatprep.subr.mxu0 0.0
        %651 = vmatpush1.msra.mxu0 0.0
        %652 = vmatprep.subr.mxu0 0.0
        %653 = vmatpush1.msra.mxu0 0.0
        %654 = vmatprep.subr.mxu0 0.0
        %655 = vmatpush1.msra.mxu0 0.0
        %656 = vmatprep.subr.mxu0 0.0
        %657 = vmatpush1.msra.mxu0 0.0
        %658 = vmatprep.subr.mxu0 0.0
        %659 = vmatpush1.msra.mxu0 0.0
        %660 = vmatprep.subr.mxu0 0.0
        %661 = vmatpush1.msra.mxu0 0.0
        %662 = vmatprep.subr.mxu0 0.0
        %663 = vmatpush1.msra.mxu0 0.0
        %664 = vmatprep.subr.mxu0 0.0
        %665 = vmatpush1.msra.mxu0 0.0
        %666 = vmatprep.subr.mxu0 0.0
        %667 = vmatpush1.msra.mxu0 0.0
        %668 = vmatprep.subr.mxu0 0.0
        %669 = vmatpush1.msra.mxu0 0.0
        %670 = vmatprep.subr.mxu0 0.0
        %671 = vmatpush1.msra.mxu0 0.0
        %672 = vmatprep.subr.mxu0 0.0
        %673 = vmatpush1.msra.mxu0 0.0
        %674 = vmatprep.subr.mxu0 0.0
        %675 = vmatpush1.msra.mxu0 0.0
        %676 = vmatprep.subr.mxu0 0.0
        %677 = vmatpush1.msra.mxu0 0.0
        %678 = vmatprep.subr.mxu0 0.0
        %679 = vmatpush1.msra.mxu0 0.0
        %680 = vmatprep.subr.mxu0 0.0
        %681 = vmatpush1.msra.mxu0 0.0
        %682 = vmatprep.subr.mxu0 0.0
        %683 = vmatpush1.msra.mxu0 0.0
        %684 = vmatprep.subr.mxu0 0.0
        %685 = vmatpush1.msra.mxu0 0.0
        %686 = vmatprep.mubr.f32.mxu0 0.0
        %687 = vmatmul.mubr.f32.gmra.mrb[0].mxu0 %v527
        %v688 = vpop.f32.mrb[0].mxu0
        %v689 = vadd.f32 0.0, %v688
        %v690 = vpop.f32.mrb[0].mxu0
        %691 = vmatprep.mubr.f32.mxu0 0.0
        %692 = vmatmul.mubr.f32.gmra.mrb[0].mxu0 %v530
        %v693 = vpop.f32.mrb[0].mxu0
        %v694 = vadd.f32 0.0, %v693
        %v695 = vpop.f32.mrb[0].mxu0
        %696 = vmatprep.mubr.f32.mxu0 0.0
        %697 = vmatmul.mubr.f32.gmra.mrb[0].mxu0 %v533
        %v698 = vpop.f32.mrb[0].mxu0
        %v699 = vadd.f32 0.0, %v698
        %v700 = vpop.f32.mrb[0].mxu0
        %701 = vmatprep.mubr.f32.mxu0 0.0
        %702 = vmatmul.mubr.f32.gmra.mrb[0].mxu0 %v536
        %v703 = vpop.f32.mrb[0].mxu0
        %v704 = vadd.f32 0.0, %v703
        %v705 = vpop.f32.mrb[0].mxu0
        %706 = vmatprep.mubr.f32.mxu0 0.0
        %707 = vmatmul.mubr.f32.gmra.mrb[0].mxu0 %v539
        %v708 = vpop.f32.mrb[0].mxu0
        %v709 = vadd.f32 0.0, %v708
        %v710 = vpop.f32.mrb[0].mxu0
        %711 = vmatprep.mubr.f32.mxu0 0.0
        %712 = vmatmul.mubr.f32.gmra.mrb[0].mxu0 %v542
        %v713 = vpop.f32.mrb[0].mxu0
        %v714 = vadd.f32 0.0, %v713
        %v715 = vpop.f32.mrb[0].mxu0
        %716 = vmatprep.mubr.f32.mxu0 0.0
        %717 = vmatmul.mubr.f32.gmra.mrb[0].mxu0 %v545
        %v718 = vpop.f32.mrb[0].mxu0
        %v719 = vadd.f32 0.0, %v718
        %v720 = vpop.f32.mrb[0].mxu0
        %721 = vmatprep.mubr.f32.mxu0 0.0
        %722 = vmatmul.mubr.f32.gmra.mrb[0].mxu0 %v548
        %v723 = vpop.f32.mrb[0].mxu0
        %v724 = vadd.f32 0.0, %v723
        %v725 = vpop.f32.mrb[0].mxu0
        %726 = vmatprep.mubr.f32.mxu0 0.0
        %727 = vmatmul.mubr.f32.gmra.mrb[0].mxu0 %v551
        %v728 = vpop.f32.mrb[0].mxu0
        %v729 = vadd.f32 0.0, %v728
        %v730 = vpop.f32.mrb[0].mxu0
        %731 = vmatprep.mubr.f32.mxu0 0.0
        %732 = vmatmul.mubr.f32.gmra.mrb[0].mxu0 %v554
        %v733 = vpop.f32.mrb[0].mxu0
        %v734 = vadd.f32 0.0, %v733
        %v735 = vpop.f32.mrb[0].mxu0
        %736 = vmatprep.mubr.f32.mxu0 0.0
        %737 = vmatmul.mubr.f32.gmra.mrb[0].mxu0 %v557
        %v738 = vpop.f32.mrb[0].mxu0
        %v739 = vadd.f32 0.0, %v738
        %v740 = vpop.f32.mrb[0].mxu0
        %741 = vmatprep.mubr.f32.mxu0 0.0
        %742 = vmatmul.mubr.f32.gmra.mrb[0].mxu0 %v560
        %v743 = vpop.f32.mrb[0].mxu0
        %v744 = vadd.f32 0.0, %v743
        %v745 = vpop.f32.mrb[0].mxu0
        %746 = vmatprep.mubr.f32.mxu0 0.0
        %747 = vmatmul.mubr.f32.gmra.mrb[0].mxu0 %v563
        %v748 = vpop.f32.mrb[0].mxu0
        %v749 = vadd.f32 0.0, %v748
        %v750 = vpop.f32.mrb[0].mxu0
        %751 = vmatprep.mubr.f32.mxu0 0.0
        %752 = vmatmul.mubr.f32.gmra.mrb[0].mxu0 %v566
        %v753 = vpop.f32.mrb[0].mxu0
        %v754 = vadd.f32 0.0, %v753
        %v755 = vpop.f32.mrb[0].mxu0
        %756 = vmatprep.mubr.f32.mxu0 0.0
        %757 = vmatmul.mubr.f32.gmra.mrb[0].mxu0 %v569
        %v758 = vpop.f32.mrb[0].mxu0
        %v759 = vadd.f32 0.0, %v758
        %v760 = vpop.f32.mrb[0].mxu0
        %761 = vmatprep.mubr.f32.mxu0 0.0
        %762 = vmatmul.mubr.f32.gmra.mrb[0].mxu0 %v572
        %v763 = vpop.f32.mrb[0].mxu0
        %v764 = vadd.f32 0.0, %v763
        %v765 = vpop.f32.mrb[0].mxu0
        %766 = vmatprep.mubr.f32.mxu0 0.0
        %767 = vmatmul.mubr.f32.gmra.mrb[0].mxu0 %v575
        %v768 = vpop.f32.mrb[0].mxu0
        %v769 = vadd.f32 0.0, %v768
        %v770 = vpop.f32.mrb[0].mxu0
        %771 = vmatprep.mubr.f32.mxu0 0.0
        %772 = vmatmul.mubr.f32.gmra.mrb[0].mxu0 %v578
        %v773 = vpop.f32.mrb[0].mxu0
        %v774 = vadd.f32 0.0, %v773
        %v775 = vpop.f32.mrb[0].mxu0
        %776 = vmatprep.mubr.f32.mxu0 0.0
        %777 = vmatmul.mubr.f32.gmra.mrb[0].mxu0 %v581
        %v778 = vpop.f32.mrb[0].mxu0
        %v779 = vadd.f32 0.0, %v778
        %v780 = vpop.f32.mrb[0].mxu0
        %781 = vmatprep.mubr.f32.mxu0 0.0
        %782 = vmatmul.mubr.f32.gmra.mrb[0].mxu0 %v584
        %v783 = vpop.f32.mrb[0].mxu0
        %v784 = vadd.f32 0.0, %v783
        %v785 = vpop.f32.mrb[0].mxu0
        %786 = vmatprep.mubr.f32.mxu0 0.0
        %787 = vmatmul.mubr.f32.gmra.mrb[0].mxu0 %v587
        %v788 = vpop.f32.mrb[0].mxu0
        %v789 = vadd.f32 0.0, %v788
        %v790 = vpop.f32.mrb[0].mxu0
        %791 = vmatprep.mubr.f32.mxu0 0.0
        %792 = vmatmul.mubr.f32.gmra.mrb[0].mxu0 %v590
        %v793 = vpop.f32.mrb[0].mxu0
        %v794 = vadd.f32 0.0, %v793
        %v795 = vpop.f32.mrb[0].mxu0
        %796 = vmatprep.mubr.f32.mxu0 0.0
        %797 = vmatmul.mubr.f32.gmra.mrb[0].mxu0 %v593
        %v798 = vpop.f32.mrb[0].mxu0
        %v799 = vadd.f32 0.0, %v798
        %v800 = vpop.f32.mrb[0].mxu0
        %801 = vmatprep.mubr.f32.mxu0 0.0
        %802 = vmatmul.mubr.f32.gmra.mrb[0].mxu0 %v596
        %v803 = vpop.f32.mrb[0].mxu0
        %v804 = vadd.f32 0.0, %v803
        %v805 = vpop.f32.mrb[0].mxu0
        %806 = vmatprep.mubr.f32.mxu0 0.0
        %807 = vmatmul.mubr.f32.gmra.mrb[0].mxu0 %v599
        %v808 = vpop.f32.mrb[0].mxu0
        %v809 = vadd.f32 0.0, %v808
        %v810 = vpop.f32.mrb[0].mxu0
        %811 = vmatprep.mubr.f32.mxu0 0.0
        %812 = vmatmul.mubr.f32.gmra.mrb[0].mxu0 %v602
        %v813 = vpop.f32.mrb[0].mxu0
        %v814 = vadd.f32 0.0, %v813
        %v815 = vpop.f32.mrb[0].mxu0
        %816 = vmatprep.mubr.f32.mxu0 0.0
        %817 = vmatmul.mubr.f32.gmra.mrb[0].mxu0 %v605
        %v818 = vpop.f32.mrb[0].mxu0
        %v819 = vadd.f32 0.0, %v818
        %v820 = vpop.f32.mrb[0].mxu0
        %821 = vmatprep.mubr.f32.mxu0 0.0
        %822 = vmatmul.mubr.f32.gmra.mrb[0].mxu0 %v608
        %v823 = vpop.f32.mrb[0].mxu0
        %v824 = vadd.f32 0.0, %v823
        %v825 = vpop.f32.mrb[0].mxu0
        %826 = vmatprep.mubr.f32.mxu0 0.0
        %827 = vmatmul.mubr.f32.gmra.mrb[0].mxu0 %v611
        %v828 = vpop.f32.mrb[0].mxu0
        %v829 = vadd.f32 0.0, %v828
        %v830 = vpop.f32.mrb[0].mxu0
        %831 = vmatprep.mubr.f32.mxu0 0.0
        %832 = vmatmul.mubr.f32.gmra.mrb[0].mxu0 %v614
        %v833 = vpop.f32.mrb[0].mxu0
        %v834 = vadd.f32 0.0, %v833
        %v835 = vpop.f32.mrb[0].mxu0
        %836 = vmatprep.mubr.f32.mxu0 0.0
        %837 = vmatmul.mubr.f32.gmra.mrb[0].mxu0 %v617
        %v838 = vpop.f32.mrb[0].mxu0
        %v839 = vadd.f32 0.0, %v838
        %v840 = vpop.f32.mrb[0].mxu0
        %841 = vmatprep.mubr.f32.mxu0 0.0
        %842 = vmatmul.mubr.f32.gmra.mrb[0].mxu0 %v620
        %v843 = vpop.f32.mrb[0].mxu0
        %v844 = vadd.f32 0.0, %v843
        %v845 = vpop.f32.mrb[0].mxu0
        %846 = vdwg.mxu0
        %s847 = scalar_lea.vmem %s451, 256 [#allocation2]
        %v848 = vld [vmem:[%s847] sm:$0xff]
        %v849 = vld [vmem:[%s847 + $0x8] sm:$0xff]
        %v850 = vld [vmem:[%s847 + $0x10] sm:$0xff]
        %v851 = vld [vmem:[%s847 + $0x18] sm:$0xff]
        %v852 = vld [vmem:[%s847 + $0x20] sm:$0xff]
        %v853 = vld [vmem:[%s847 + $0x28] sm:$0xff]
        %v854 = vld [vmem:[%s847 + $0x30] sm:$0xff]
        %v855 = vld [vmem:[%s847 + $0x38] sm:$0xff]
        %v856 = vld [vmem:[%s847 + $0x40] sm:$0xff]
        %v857 = vld [vmem:[%s847 + $0x48] sm:$0xff]
        %v858 = vld [vmem:[%s847 + $0x50] sm:$0xff]
        %v859 = vld [vmem:[%s847 + $0x58] sm:$0xff]
        %v860 = vld [vmem:[%s847 + $0x60] sm:$0xff]
        %v861 = vld [vmem:[%s847 + $0x68] sm:$0xff]
        %v862 = vld [vmem:[%s847 + $0x70] sm:$0xff]
        %v863 = vld [vmem:[%s847 + $0x78] sm:$0xff]
        %v864 = vld [vmem:[%s847 + $0x80] sm:$0xff]
        %v865 = vld [vmem:[%s847 + $0x88] sm:$0xff]
        %v866 = vld [vmem:[%s847 + $0x90] sm:$0xff]
        %v867 = vld [vmem:[%s847 + $0x98] sm:$0xff]
        %v868 = vld [vmem:[%s847 + $0xa0] sm:$0xff]
        %v869 = vld [vmem:[%s847 + $0xa8] sm:$0xff]
        %v870 = vld [vmem:[%s847 + $0xb0] sm:$0xff]
        %v871 = vld [vmem:[%s847 + $0xb8] sm:$0xff]
        %v872 = vld [vmem:[%s847 + $0xc0] sm:$0xff]
        %v873 = vld [vmem:[%s847 + $0xc8] sm:$0xff]
        %v874 = vld [vmem:[%s847 + $0xd0] sm:$0xff]
        %v875 = vld [vmem:[%s847 + $0xd8] sm:$0xff]
        %v876 = vld [vmem:[%s847 + $0xe0] sm:$0xff]
        %v877 = vld [vmem:[%s847 + $0xe8] sm:$0xff]
        %v878 = vld [vmem:[%s847 + $0xf0] sm:$0xff]
        %v879 = vld [vmem:[%s847 + $0xf8] sm:$0xff]
        %v881 = vsel %vm525, %v848, 0
        %v884 = vsel %vm525, %v849, 0
        %v887 = vsel %vm525, %v850, 0
        %v890 = vsel %vm525, %v851, 0
        %v893 = vsel %vm525, %v852, 0
        %v896 = vsel %vm525, %v853, 0
        %v899 = vsel %vm525, %v854, 0
        %v902 = vsel %vm525, %v855, 0
        %v905 = vsel %vm525, %v856, 0
        %v908 = vsel %vm525, %v857, 0
        %v911 = vsel %vm525, %v858, 0
        %v914 = vsel %vm525, %v859, 0
        %v917 = vsel %vm525, %v860, 0
        %v920 = vsel %vm525, %v861, 0
        %v923 = vsel %vm525, %v862, 0
        %v926 = vsel %vm525, %v863, 0
        %v929 = vsel %vm525, %v864, 0
        %v932 = vsel %vm525, %v865, 0
        %v935 = vsel %vm525, %v866, 0
        %v938 = vsel %vm525, %v867, 0
        %v941 = vsel %vm525, %v868, 0
        %v944 = vsel %vm525, %v869, 0
        %v947 = vsel %vm525, %v870, 0
        %v950 = vsel %vm525, %v871, 0
        %v953 = vsel %vm525, %v872, 0
        %v956 = vsel %vm525, %v873, 0
        %v959 = vsel %vm525, %v874, 0
        %v962 = vsel %vm525, %v875, 0
        %v965 = vsel %vm525, %v876, 0
        %v968 = vsel %vm525, %v877, 0
        %v971 = vsel %vm525, %v878, 0
        %v974 = vsel %vm525, %v879, 0
        %976 = vmatprep.subr.mxu0 0.0
        %977 = vmatpush1.msra.mxu0 %v521
        %978 = vmatprep.subr.mxu0 0.0
        %979 = vmatpush1.msra.mxu0 %v522
        %980 = vmatprep.subr.mxu0 0.0
        %981 = vmatpush1.msra.mxu0 %v523
        %982 = vmatprep.subr.mxu0 0.0
        %983 = vmatpush1.msra.mxu0 %v524
        %984 = vmatprep.subr.mxu0 0.0
        %985 = vmatpush1.msra.mxu0 0.0
        %986 = vmatprep.subr.mxu0 0.0
        %987 = vmatpush1.msra.mxu0 0.0
        %988 = vmatprep.subr.mxu0 0.0
        %989 = vmatpush1.msra.mxu0 0.0
        %990 = vmatprep.subr.mxu0 0.0
        %991 = vmatpush1.msra.mxu0 0.0
        %992 = vmatprep.subr.mxu0 0.0
        %993 = vmatpush1.msra.mxu0 0.0
        %994 = vmatprep.subr.mxu0 0.0
        %995 = vmatpush1.msra.mxu0 0.0
        %996 = vmatprep.subr.mxu0 0.0
        %997 = vmatpush1.msra.mxu0 0.0
        %998 = vmatprep.subr.mxu0 0.0
        %999 = vmatpush1.msra.mxu0 0.0
        %1000 = vmatprep.subr.mxu0 0.0
        %1001 = vmatpush1.msra.mxu0 0.0
        %1002 = vmatprep.subr.mxu0 0.0
        %1003 = vmatpush1.msra.mxu0 0.0
        %1004 = vmatprep.subr.mxu0 0.0
        %1005 = vmatpush1.msra.mxu0 0.0
        %1006 = vmatprep.subr.mxu0 0.0
        %1007 = vmatpush1.msra.mxu0 0.0
        %1008 = vmatprep.subr.mxu0 0.0
        %1009 = vmatpush1.msra.mxu0 0.0
        %1010 = vmatprep.subr.mxu0 0.0
        %1011 = vmatpush1.msra.mxu0 0.0
        %1012 = vmatprep.subr.mxu0 0.0
        %1013 = vmatpush1.msra.mxu0 0.0
        %1014 = vmatprep.subr.mxu0 0.0
        %1015 = vmatpush1.msra.mxu0 0.0
        %1016 = vmatprep.subr.mxu0 0.0
        %1017 = vmatpush1.msra.mxu0 0.0
        %1018 = vmatprep.subr.mxu0 0.0
        %1019 = vmatpush1.msra.mxu0 0.0
        %1020 = vmatprep.subr.mxu0 0.0
        %1021 = vmatpush1.msra.mxu0 0.0
        %1022 = vmatprep.subr.mxu0 0.0
        %1023 = vmatpush1.msra.mxu0 0.0
        %1024 = vmatprep.subr.mxu0 0.0
        %1025 = vmatpush1.msra.mxu0 0.0
        %1026 = vmatprep.subr.mxu0 0.0
        %1027 = vmatpush1.msra.mxu0 0.0
        %1028 = vmatprep.subr.mxu0 0.0
        %1029 = vmatpush1.msra.mxu0 0.0
        %1030 = vmatprep.subr.mxu0 0.0
        %1031 = vmatpush1.msra.mxu0 0.0
        %1032 = vmatprep.subr.mxu0 0.0
        %1033 = vmatpush1.msra.mxu0 0.0
        %1034 = vmatprep.subr.mxu0 0.0
        %1035 = vmatpush1.msra.mxu0 0.0
        %1036 = vmatprep.subr.mxu0 0.0
        %1037 = vmatpush1.msra.mxu0 0.0
        %1038 = vmatprep.subr.mxu0 0.0
        %1039 = vmatpush1.msra.mxu0 0.0
        %1040 = vmatprep.mubr.f32.mxu0 0.0
        %1041 = vmatmul.mubr.f32.gmra.mrb[0].mxu0 %v881
        %v1042 = vpop.f32.mrb[0].mxu0
        %v1043 = vadd.f32 0.0, %v1042
        %v1044 = vpop.f32.mrb[0].mxu0
        %1045 = vmatprep.mubr.f32.mxu0 0.0
        %1046 = vmatmul.mubr.f32.gmra.mrb[0].mxu0 %v884
        %v1047 = vpop.f32.mrb[0].mxu0
        %v1048 = vadd.f32 0.0, %v1047
        %v1049 = vpop.f32.mrb[0].mxu0
        %1050 = vmatprep.mubr.f32.mxu0 0.0
        %1051 = vmatmul.mubr.f32.gmra.mrb[0].mxu0 %v887
        %v1052 = vpop.f32.mrb[0].mxu0
        %v1053 = vadd.f32 0.0, %v1052
        %v1054 = vpop.f32.mrb[0].mxu0
        %1055 = vmatprep.mubr.f32.mxu0 0.0
        %1056 = vmatmul.mubr.f32.gmra.mrb[0].mxu0 %v890
        %v1057 = vpop.f32.mrb[0].mxu0
        %v1058 = vadd.f32 0.0, %v1057
        %v1059 = vpop.f32.mrb[0].mxu0
        %1060 = vmatprep.mubr.f32.mxu0 0.0
        %1061 = vmatmul.mubr.f32.gmra.mrb[0].mxu0 %v893
        %v1062 = vpop.f32.mrb[0].mxu0
        %v1063 = vadd.f32 0.0, %v1062
        %v1064 = vpop.f32.mrb[0].mxu0
        %1065 = vmatprep.mubr.f32.mxu0 0.0
        %1066 = vmatmul.mubr.f32.gmra.mrb[0].mxu0 %v896
        %v1067 = vpop.f32.mrb[0].mxu0
        %v1068 = vadd.f32 0.0, %v1067
        %v1069 = vpop.f32.mrb[0].mxu0
        %1070 = vmatprep.mubr.f32.mxu0 0.0
        %1071 = vmatmul.mubr.f32.gmra.mrb[0].mxu0 %v899
        %v1072 = vpop.f32.mrb[0].mxu0
        %v1073 = vadd.f32 0.0, %v1072
        %v1074 = vpop.f32.mrb[0].mxu0
        %1075 = vmatprep.mubr.f32.mxu0 0.0
        %1076 = vmatmul.mubr.f32.gmra.mrb[0].mxu0 %v902
        %v1077 = vpop.f32.mrb[0].mxu0
        %v1078 = vadd.f32 0.0, %v1077
        %v1079 = vpop.f32.mrb[0].mxu0
        %1080 = vmatprep.mubr.f32.mxu0 0.0
        %1081 = vmatmul.mubr.f32.gmra.mrb[0].mxu0 %v905
        %v1082 = vpop.f32.mrb[0].mxu0
        %v1083 = vadd.f32 0.0, %v1082
        %v1084 = vpop.f32.mrb[0].mxu0
        %1085 = vmatprep.mubr.f32.mxu0 0.0
        %1086 = vmatmul.mubr.f32.gmra.mrb[0].mxu0 %v908
        %v1087 = vpop.f32.mrb[0].mxu0
        %v1088 = vadd.f32 0.0, %v1087
        %v1089 = vpop.f32.mrb[0].mxu0
        %1090 = vmatprep.mubr.f32.mxu0 0.0
        %1091 = vmatmul.mubr.f32.gmra.mrb[0].mxu0 %v911
        %v1092 = vpop.f32.mrb[0].mxu0
        %v1093 = vadd.f32 0.0, %v1092
        %v1094 = vpop.f32.mrb[0].mxu0
        %1095 = vmatprep.mubr.f32.mxu0 0.0
        %1096 = vmatmul.mubr.f32.gmra.mrb[0].mxu0 %v914
        %v1097 = vpop.f32.mrb[0].mxu0
        %v1098 = vadd.f32 0.0, %v1097
        %v1099 = vpop.f32.mrb[0].mxu0
        %1100 = vmatprep.mubr.f32.mxu0 0.0
        %1101 = vmatmul.mubr.f32.gmra.mrb[0].mxu0 %v917
        %v1102 = vpop.f32.mrb[0].mxu0
        %v1103 = vadd.f32 0.0, %v1102
        %v1104 = vpop.f32.mrb[0].mxu0
        %1105 = vmatprep.mubr.f32.mxu0 0.0
        %1106 = vmatmul.mubr.f32.gmra.mrb[0].mxu0 %v920
        %v1107 = vpop.f32.mrb[0].mxu0
        %v1108 = vadd.f32 0.0, %v1107
        %v1109 = vpop.f32.mrb[0].mxu0
        %1110 = vmatprep.mubr.f32.mxu0 0.0
        %1111 = vmatmul.mubr.f32.gmra.mrb[0].mxu0 %v923
        %v1112 = vpop.f32.mrb[0].mxu0
        %v1113 = vadd.f32 0.0, %v1112
        %v1114 = vpop.f32.mrb[0].mxu0
        %1115 = vmatprep.mubr.f32.mxu0 0.0
        %1116 = vmatmul.mubr.f32.gmra.mrb[0].mxu0 %v926
        %v1117 = vpop.f32.mrb[0].mxu0
        %v1118 = vadd.f32 0.0, %v1117
        %v1119 = vpop.f32.mrb[0].mxu0
        %1120 = vmatprep.mubr.f32.mxu0 0.0
        %1121 = vmatmul.mubr.f32.gmra.mrb[0].mxu0 %v929
        %v1122 = vpop.f32.mrb[0].mxu0
        %v1123 = vadd.f32 0.0, %v1122
        %v1124 = vpop.f32.mrb[0].mxu0
        %1125 = vmatprep.mubr.f32.mxu0 0.0
        %1126 = vmatmul.mubr.f32.gmra.mrb[0].mxu0 %v932
        %v1127 = vpop.f32.mrb[0].mxu0
        %v1128 = vadd.f32 0.0, %v1127
        %v1129 = vpop.f32.mrb[0].mxu0
        %1130 = vmatprep.mubr.f32.mxu0 0.0
        %1131 = vmatmul.mubr.f32.gmra.mrb[0].mxu0 %v935
        %v1132 = vpop.f32.mrb[0].mxu0
        %v1133 = vadd.f32 0.0, %v1132
        %v1134 = vpop.f32.mrb[0].mxu0
        %1135 = vmatprep.mubr.f32.mxu0 0.0
        %1136 = vmatmul.mubr.f32.gmra.mrb[0].mxu0 %v938
        %v1137 = vpop.f32.mrb[0].mxu0
        %v1138 = vadd.f32 0.0, %v1137
        %v1139 = vpop.f32.mrb[0].mxu0
        %1140 = vmatprep.mubr.f32.mxu0 0.0
        %1141 = vmatmul.mubr.f32.gmra.mrb[0].mxu0 %v941
        %v1142 = vpop.f32.mrb[0].mxu0
        %v1143 = vadd.f32 0.0, %v1142
        %v1144 = vpop.f32.mrb[0].mxu0
        %1145 = vmatprep.mubr.f32.mxu0 0.0
        %1146 = vmatmul.mubr.f32.gmra.mrb[0].mxu0 %v944
        %v1147 = vpop.f32.mrb[0].mxu0
        %v1148 = vadd.f32 0.0, %v1147
        %v1149 = vpop.f32.mrb[0].mxu0
        %1150 = vmatprep.mubr.f32.mxu0 0.0
        %1151 = vmatmul.mubr.f32.gmra.mrb[0].mxu0 %v947
        %v1152 = vpop.f32.mrb[0].mxu0
        %v1153 = vadd.f32 0.0, %v1152
        %v1154 = vpop.f32.mrb[0].mxu0
        %1155 = vmatprep.mubr.f32.mxu0 0.0
        %1156 = vmatmul.mubr.f32.gmra.mrb[0].mxu0 %v950
        %v1157 = vpop.f32.mrb[0].mxu0
        %v1158 = vadd.f32 0.0, %v1157
        %v1159 = vpop.f32.mrb[0].mxu0
        %1160 = vmatprep.mubr.f32.mxu0 0.0
        %1161 = vmatmul.mubr.f32.gmra.mrb[0].mxu0 %v953
        %v1162 = vpop.f32.mrb[0].mxu0
        %v1163 = vadd.f32 0.0, %v1162
        %v1164 = vpop.f32.mrb[0].mxu0
        %1165 = vmatprep.mubr.f32.mxu0 0.0
        %1166 = vmatmul.mubr.f32.gmra.mrb[0].mxu0 %v956
        %v1167 = vpop.f32.mrb[0].mxu0
        %v1168 = vadd.f32 0.0, %v1167
        %v1169 = vpop.f32.mrb[0].mxu0
        %1170 = vmatprep.mubr.f32.mxu0 0.0
        %1171 = vmatmul.mubr.f32.gmra.mrb[0].mxu0 %v959
        %v1172 = vpop.f32.mrb[0].mxu0
        %v1173 = vadd.f32 0.0, %v1172
        %v1174 = vpop.f32.mrb[0].mxu0
        %1175 = vmatprep.mubr.f32.mxu0 0.0
        %1176 = vmatmul.mubr.f32.gmra.mrb[0].mxu0 %v962
        %v1177 = vpop.f32.mrb[0].mxu0
        %v1178 = vadd.f32 0.0, %v1177
        %v1179 = vpop.f32.mrb[0].mxu0
        %1180 = vmatprep.mubr.f32.mxu0 0.0
        %1181 = vmatmul.mubr.f32.gmra.mrb[0].mxu0 %v965
        %v1182 = vpop.f32.mrb[0].mxu0
        %v1183 = vadd.f32 0.0, %v1182
        %v1184 = vpop.f32.mrb[0].mxu0
        %1185 = vmatprep.mubr.f32.mxu0 0.0
        %1186 = vmatmul.mubr.f32.gmra.mrb[0].mxu0 %v968
        %v1187 = vpop.f32.mrb[0].mxu0
        %v1188 = vadd.f32 0.0, %v1187
        %v1189 = vpop.f32.mrb[0].mxu0
        %1190 = vmatprep.mubr.f32.mxu0 0.0
        %1191 = vmatmul.mubr.f32.gmra.mrb[0].mxu0 %v971
        %v1192 = vpop.f32.mrb[0].mxu0
        %v1193 = vadd.f32 0.0, %v1192
        %v1194 = vpop.f32.mrb[0].mxu0
        %1195 = vmatprep.mubr.f32.mxu0 0.0
        %1196 = vmatmul.mubr.f32.gmra.mrb[0].mxu0 %v974
        %v1197 = vpop.f32.mrb[0].mxu0
        %v1198 = vadd.f32 0.0, %v1197
        %v1199 = vpop.f32.mrb[0].mxu0
        %1200 = vdwg.mxu0
        %v1201 = vmax.f32 %v689, %v1043
        %v1202 = vmax.f32 %v694, %v1048
        %v1203 = vmax.f32 %v699, %v1053
        %v1204 = vmax.f32 %v704, %v1058
        %v1205 = vmax.f32 %v709, %v1063
        %v1206 = vmax.f32 %v714, %v1068
        %v1207 = vmax.f32 %v719, %v1073
        %v1208 = vmax.f32 %v724, %v1078
        %v1209 = vmax.f32 %v729, %v1083
        %v1210 = vmax.f32 %v734, %v1088
        %v1211 = vmax.f32 %v739, %v1093
        %v1212 = vmax.f32 %v744, %v1098
        %v1213 = vmax.f32 %v749, %v1103
        %v1214 = vmax.f32 %v754, %v1108
        %v1215 = vmax.f32 %v759, %v1113
        %v1216 = vmax.f32 %v764, %v1118
        %v1217 = vmax.f32 %v769, %v1123
        %v1218 = vmax.f32 %v774, %v1128
        %v1219 = vmax.f32 %v779, %v1133
        %v1220 = vmax.f32 %v784, %v1138
        %v1221 = vmax.f32 %v789, %v1143
        %v1222 = vmax.f32 %v794, %v1148
        %v1223 = vmax.f32 %v799, %v1153
        %v1224 = vmax.f32 %v804, %v1158
        %v1225 = vmax.f32 %v809, %v1163
        %v1226 = vmax.f32 %v814, %v1168
        %v1227 = vmax.f32 %v819, %v1173
        %v1228 = vmax.f32 %v824, %v1178
        %v1229 = vmax.f32 %v829, %v1183
        %v1230 = vmax.f32 %v834, %v1188
        %v1231 = vmax.f32 %v839, %v1193
        %v1232 = vmax.f32 %v844, %v1198
        %v1233 = vmax.f32 %v1201, %v1203
        %v1234 = vmax.f32 %v1202, %v1204
        %v1235 = vmax.f32 %v1205, %v1207
        %v1236 = vmax.f32 %v1206, %v1208
        %v1237 = vmax.f32 %v1209, %v1211
        %v1238 = vmax.f32 %v1210, %v1212
        %v1239 = vmax.f32 %v1213, %v1215
        %v1240 = vmax.f32 %v1214, %v1216
        %v1241 = vmax.f32 %v1217, %v1219
        %v1242 = vmax.f32 %v1218, %v1220
        %v1243 = vmax.f32 %v1221, %v1223
        %v1244 = vmax.f32 %v1222, %v1224
        %v1245 = vmax.f32 %v1225, %v1227
        %v1246 = vmax.f32 %v1226, %v1228
        %v1247 = vmax.f32 %v1229, %v1231
        %v1248 = vmax.f32 %v1230, %v1232
        %v1249 = vld [vmem:[%s2] sm:$0x1]
        %v1251 = vlaneseq
        %v1252 = vshrl.u32 %v1251, 7
        %v1253 = vsub.s32 0, %v1252
        %v1254 = vrot.slane %v1249, %v1253
        %v1256 = vadd.f32 %v1233, %v1254
        %v1257 = vadd.f32 %v1234, %v1254
        %v1258 = vadd.f32 %v1235, %v1254
        %v1259 = vadd.f32 %v1236, %v1254
        %v1260 = vadd.f32 %v1237, %v1254
        %v1261 = vadd.f32 %v1238, %v1254
        %v1262 = vadd.f32 %v1239, %v1254
        %v1263 = vadd.f32 %v1240, %v1254
        %v1264 = vadd.f32 %v1241, %v1254
        %v1265 = vadd.f32 %v1242, %v1254
        %v1266 = vadd.f32 %v1243, %v1254
        %v1267 = vadd.f32 %v1244, %v1254
        %v1268 = vadd.f32 %v1245, %v1254
        %v1269 = vadd.f32 %v1246, %v1254
        %v1270 = vadd.f32 %v1247, %v1254
        %v1271 = vadd.f32 %v1248, %v1254
        %v1272 = vmax.f32 %v1256, 0.0
        %v1273 = vmax.f32 %v1257, 0.0
        %v1274 = vmax.f32 %v1258, 0.0
        %v1275 = vmax.f32 %v1259, 0.0
        %v1276 = vmax.f32 %v1260, 0.0
        %v1277 = vmax.f32 %v1261, 0.0
        %v1278 = vmax.f32 %v1262, 0.0
        %v1279 = vmax.f32 %v1263, 0.0
        %v1280 = vmax.f32 %v1264, 0.0
        %v1281 = vmax.f32 %v1265, 0.0
        %v1282 = vmax.f32 %v1266, 0.0
        %v1283 = vmax.f32 %v1267, 0.0
        %v1284 = vmax.f32 %v1268, 0.0
        %v1285 = vmax.f32 %v1269, 0.0
        %v1286 = vmax.f32 %v1270, 0.0
        %v1287 = vmax.f32 %v1271, 0.0
        %1288 = vst [vmem:[%s487] sm:$0xff] %v1272
        %1289 = vst [vmem:[%s487 + $0x8] sm:$0xff] %v1273
        %1290 = vst [vmem:[%s487 + $0x10] sm:$0xff] %v1274
        %1291 = vst [vmem:[%s487 + $0x18] sm:$0xff] %v1275
        %1292 = vst [vmem:[%s487 + $0x20] sm:$0xff] %v1276
        %1293 = vst [vmem:[%s487 + $0x28] sm:$0xff] %v1277
        %1294 = vst [vmem:[%s487 + $0x30] sm:$0xff] %v1278
        %1295 = vst [vmem:[%s487 + $0x38] sm:$0xff] %v1279
        %1296 = vst [vmem:[%s487 + $0x40] sm:$0xff] %v1280
        %1297 = vst [vmem:[%s487 + $0x48] sm:$0xff] %v1281
        %1298 = vst [vmem:[%s487 + $0x50] sm:$0xff] %v1282
        %1299 = vst [vmem:[%s487 + $0x58] sm:$0xff] %v1283
        %1300 = vst [vmem:[%s487 + $0x60] sm:$0xff] %v1284
        %1301 = vst [vmem:[%s487 + $0x68] sm:$0xff] %v1285
        %1302 = vst [vmem:[%s487 + $0x70] sm:$0xff] %v1286
        %1303 = vst [vmem:[%s487 + $0x78] sm:$0xff] %v1287
        %s1304 = smul.u32 8, %s19
        %p1305 = scmp.lt.s32.totalorder %s18, 1
        %s1306 = scalar_select %p1305, %s18, 1
        %p1307 = scmp.lt.s32.totalorder %s1304, 15
        %s1308 = scalar_select %p1307, %s1304, 15
        %s1309 = smul.addr %s1308, 2
        %s1310 = smul.addr %s1306, 32
        %s1311 = sadd.s32 %s1309, %s1310
        %s1312 = smul.addr %s1311, 8
        %s1313 = scalar_lea.vmem %s3, %s1312
        // Predicated region
        $region71: #{complete_test_model_forward.3} parent=65 // pred_check
          %p1314 = pneg %p116
        $region72: #{complete_test_model_forward.3} parent=65 // pred_check_branch
          %1316 = sbr.rel (%p1314) target = $region74
        $region73: #{complete_test_model_forward.3} parent=65 // pred_region
          %s1317 = smul.u32 8, %s19
        $region74: #{complete_test_model_forward.3} parent=65 // pred_fallthru
          _
      $region66: #{complete_test_model_forward.3} parent=5 // pred_fallthru
        _
      %p1318 = scmp.le.s32.totalorder 2, %s9
      // Predicated region
      $region75: #{complete_test_model_forward.3} parent=5 // pred_check
        %p1319 = pneg %p1318
      $region76: #{complete_test_model_forward.3} parent=5 // pred_check_branch
        %1321 = sbr.rel (%p1319) target = $region78
      $region77: #{complete_test_model_forward.3} parent=5 // pred_region
        %s1322 = ssub.s32 %s9, 2
        // Predicated region
        $region79: #{complete_test_model_forward.3} parent=77 // pred_check
          %p1323 = pneg %p122
        $region80: #{complete_test_model_forward.3} parent=77 // pred_check_branch
          %1325 = sbr.rel (%p1323) target = $region82
        $region81: #{complete_test_model_forward.3} parent=77 // pred_region
          %s1326 = smul.u32 8, %s21
          %p1327 = scmp.lt.s32.totalorder %s20, 1
          %s1328 = scalar_select %p1327, %s20, 1
          %p1329 = scmp.lt.s32.totalorder %s1326, 15
          %s1330 = scalar_select %p1329, %s1326, 15
          %s1331 = smul.addr %s1330, 2
          %s1332 = smul.addr %s1328, 32
          %s1333 = sadd.s32 %s1331, %s1332
          %s1334 = smul.addr %s1333, 8
          %s1335 = scalar_lea.vmem %s3, %s1334
        $region82: #{complete_test_model_forward.3} parent=77 // pred_fallthru
          _
      $region78: #{complete_test_model_forward.3} parent=5 // pred_fallthru
        _
    $region6: #{complete_test_model_forward.3} parent=1 // loop_footer
      %s13 = sadd.s32 1, %s9
    $region7: #{complete_test_model_forward.3} parent=1 // loop_footer_branch
      %8 = sbr.rel target = $region3
    $region8: #{complete_test_model_forward.3} parent=1 // loop_exit
      _

// kernel: complete_test_model_forward.5
$region0: #{complete_test_model_forward.5}
  #allocation0 [shape = 'u32[]', space=smem, size = 0x4, offset = 0x4, fixed_abs, tag = 'smem constant byte address 0x4 - core index']
  #allocation1 [shape = 'u32[144,128]{1,0:T(1,128)}', space=vmem, size = 0x12000, scoped, tag = 'internal scratch']
  #allocation2 [shape = 'f32[2,128]{1,0:T(2,128)}', space=vmem, size = 0x400, scoped, tag = 'scratch operand']
  %s0 = inlined_call_operand.vmem [shape: f32[2,4096], index: 0, kind: input, shape index: {}]
  %s1 = inlined_call_operand.vmem [shape: bf16[4096,128], index: 1, kind: input, shape index: {}]
  %s2 = inlined_call_operand.vmem [shape: f32[1,128], index: 2, kind: input, shape index: {}]
  %s3 = inlined_call_operand.vmem [shape: bf16[128,128], index: 3, kind: input, shape index: {}]
  %s4 = inlined_call_operand.vmem [shape: f32[1,128], index: 4, kind: input, shape index: {}]
  %s5 = inlined_call_operand.hbm [shape: f32[2,128], index: 5, kind: output, shape index: {}]
  %s6 = sld [smem:[#allocation0]]
  $region61: #{complete_test_model_forward.5} parent=0
    _
  %s8 = ssub.s32 1, %s6
  %s9 = scalar_select 0, %s8, %s6
  $region1: #{complete_test_model_forward.5} parent=0
    #allocation3 [shape = 'u8[1024]{0}', space=vmem, size = 0x400, scoped, tag = 'output window, operand 0, single buffered']
    #allocation4 [shape = 's32[2]{0}', space=sflag, size = 0x8, scoped, tag = 'scoped memory for complete_test_model_forward.5']
    %10 = vsyncpa [#allocation4], 0
    loop: start=0, step=1, limit=6
    $region2: #{complete_test_model_forward.5} parent=1 // loop_pre_header
      _
    $region3: #{complete_test_model_forward.5} parent=1 // loop_header
      %s12 = sphi 0, %s16
      %p13 = scmp.ge.s32.totalorder %s12, 6
      %s22 = sphi 0, %s24
      %s25 = sphi 0, %s22
      %s26 = sphi 0, %s25
      %s42 = sphi 0, %s26
      %s48 = sphi 0, %s50
      %s51 = sphi 0, %s48
      %s52 = sphi 0, %s51
      %s68 = sphi 0, %s52
      %s72 = sphi 0, %s72
      %s74 = sphi 0, %s72
      %s75 = sphi 0, %s74
      %s89 = sphi 0, %s75
      %s93 = sphi 0, %s93
      %s95 = sphi 0, %s93
      %s96 = sphi 0, %s95
      %s110 = sphi 0, %s96
      %s114 = sphi 0, %s114
      %s116 = sphi 0, %s114
      %s117 = sphi 0, %s116
      %s131 = sphi 0, %s117
      %s135 = sphi 0, %s135
      %s137 = sphi 0, %s135
      %s138 = sphi 0, %s137
      %s152 = sphi 0, %s138
    $region4: #{complete_test_model_forward.5} parent=1 // loop_header_branch
      %15 = sbr.rel (%p13) target = $region8
    $region5: #{complete_test_model_forward.5} parent=1 // loop_body
      %s17 = ssub.s32 %s12, 1
      %s18 = ssub.s32 %s12, 2
      %s19 = sadd.s32 %s12, 1
      %s20 = ssub.s32 %s12, %s19
      %p21 = scmp.eq.s32.totalorder %s20, 0
      %s23 = sadd.s32 %s22, 1
      %s24 = scalar_select %p21, %s22, %s23
      %p27 = pneg %p21
      %p28 = scmp.eq.s32.totalorder %s12, 3
      %p29 = por %p27, %p28
      %p30 = scmp.ne.s32.totalorder %s22, %s25
      %p31 = scmp.eq.s32.totalorder %s12, 0
      %p32 = por %p30, %p31
      %p33 = scmp.ne.s32.totalorder %s22, %s25
      %p34 = scmp.eq.s32.totalorder %s17, 3
      %p35 = por %p33, %p34
      %p36 = scmp.ne.s32.totalorder %s25, %s26
      %p37 = scmp.eq.s32.totalorder %s17, 0
      %p38 = por %p36, %p37
      %p39 = scmp.ne.s32.totalorder %s25, %s26
      %p40 = scmp.eq.s32.totalorder %s18, 3
      %p41 = por %p39, %p40
      %p43 = scmp.ne.s32.totalorder %s26, %s42
      %p44 = scmp.eq.s32.totalorder %s18, 0
      %p45 = por %p43, %p44
      %s46 = ssub.s32 %s12, %s19
      %p47 = scmp.eq.s32.totalorder %s46, 0
      %s49 = sadd.s32 %s48, 1
      %s50 = scalar_select %p47, %s48, %s49
      %p53 = pneg %p47
      %p54 = scmp.eq.s32.totalorder %s12, 3
      %p55 = por %p53, %p54
      %p56 = scmp.ne.s32.totalorder %s48, %s51
      %p57 = scmp.eq.s32.totalorder %s12, 0
      %p58 = por %p56, %p57
      %p59 = scmp.ne.s32.totalorder %s48, %s51
      %p60 = scmp.eq.s32.totalorder %s17, 3
      %p61 = por %p59, %p60
      %p62 = scmp.ne.s32.totalorder %s51, %s52
      %p63 = scmp.eq.s32.totalorder %s17, 0
      %p64 = por %p62, %p63
      %p65 = scmp.ne.s32.totalorder %s51, %s52
      %p66 = scmp.eq.s32.totalorder %s18, 3
      %p67 = por %p65, %p66
      %p69 = scmp.ne.s32.totalorder %s52, %s68
      %p70 = scmp.eq.s32.totalorder %s18, 0
      %p71 = por %p69, %p70
      %s73 = sadd.s32 %s72, 1
      %p76 = scmp.eq.s32.totalorder %s12, 3
      %p77 = scmp.ne.s32.totalorder %s72, %s74
      %p78 = scmp.eq.s32.totalorder %s12, 0
      %p79 = por %p77, %p78
      %p80 = scmp.ne.s32.totalorder %s72, %s74
      %p81 = scmp.eq.s32.totalorder %s17, 3
      %p82 = por %p80, %p81
      %p83 = scmp.ne.s32.totalorder %s74, %s75
      %p84 = scmp.eq.s32.totalorder %s17, 0
      %p85 = por %p83, %p84
      %p86 = scmp.ne.s32.totalorder %s74, %s75
      %p87 = scmp.eq.s32.totalorder %s18, 3
      %p88 = por %p86, %p87
      %p90 = scmp.ne.s32.totalorder %s75, %s89
      %p91 = scmp.eq.s32.totalorder %s18, 0
      %p92 = por %p90, %p91
      %s94 = sadd.s32 %s93, 1
      %p97 = scmp.eq.s32.totalorder %s12, 3
      %p98 = scmp.ne.s32.totalorder %s93, %s95
      %p99 = scmp.eq.s32.totalorder %s12, 0
      %p100 = por %p98, %p99
      %p101 = scmp.ne.s32.totalorder %s93, %s95
      %p102 = scmp.eq.s32.totalorder %s17, 3
      %p103 = por %p101, %p102
      %p104 = scmp.ne.s32.totalorder %s95, %s96
      %p105 = scmp.eq.s32.totalorder %s17, 0
      %p106 = por %p104, %p105
      %p107 = scmp.ne.s32.totalorder %s95, %s96
      %p108 = scmp.eq.s32.totalorder %s18, 3
      %p109 = por %p107, %p108
      %p111 = scmp.ne.s32.totalorder %s96, %s110
      %p112 = scmp.eq.s32.totalorder %s18, 0
      %p113 = por %p111, %p112
      %s115 = sadd.s32 %s114, 1
      %p118 = scmp.eq.s32.totalorder %s12, 3
      %p119 = scmp.ne.s32.totalorder %s114, %s116
      %p120 = scmp.eq.s32.totalorder %s12, 0
      %p121 = por %p119, %p120
      %p122 = scmp.ne.s32.totalorder %s114, %s116
      %p123 = scmp.eq.s32.totalorder %s17, 3
      %p124 = por %p122, %p123
      %p125 = scmp.ne.s32.totalorder %s116, %s117
      %p126 = scmp.eq.s32.totalorder %s17, 0
      %p127 = por %p125, %p126
      %p128 = scmp.ne.s32.totalorder %s116, %s117
      %p129 = scmp.eq.s32.totalorder %s18, 3
      %p130 = por %p128, %p129
      %p132 = scmp.ne.s32.totalorder %s117, %s131
      %p133 = scmp.eq.s32.totalorder %s18, 0
      %p134 = por %p132, %p133
      %s136 = sadd.s32 %s135, 1
      %p139 = scmp.eq.s32.totalorder %s12, 3
      %p140 = scmp.ne.s32.totalorder %s135, %s137
      %p141 = scmp.eq.s32.totalorder %s12, 0
      %p142 = por %p140, %p141
      %p143 = scmp.ne.s32.totalorder %s135, %s137
      %p144 = scmp.eq.s32.totalorder %s17, 3
      %p145 = por %p143, %p144
      %p146 = scmp.ne.s32.totalorder %s137, %s138
      %p147 = scmp.eq.s32.totalorder %s17, 0
      %p148 = por %p146, %p147
      %p149 = scmp.ne.s32.totalorder %s137, %s138
      %p150 = scmp.eq.s32.totalorder %s18, 3
      %p151 = por %p149, %p150
      %p153 = scmp.ne.s32.totalorder %s138, %s152
      %p154 = scmp.eq.s32.totalorder %s18, 0
      %p155 = por %p153, %p154
      %p156 = scmp.le.s32.totalorder 1, %s12
      %p157 = scmp.lt.s32.totalorder %s12, 5
      %p158 = pnand %p156, %p157
      %p159 = pneg %p158
      // Predicated region
      $region9: #{complete_test_model_forward.5} parent=5 // pred_check
        _
      $region10: #{complete_test_model_forward.5} parent=5 // pred_check_branch
        %161 = sbr.rel (%p158) target = $region12
      $region11: #{complete_test_model_forward.5} parent=5 // pred_region
        %s162 = ssub.s32 %s12, 1
        // Predicated region
        $region13: #{complete_test_model_forward.5} parent=11 // pred_check
          %p163 = pneg %p85
        $region14: #{complete_test_model_forward.5} parent=11 // pred_check_branch
          %165 = sbr.rel (%p163) target = $region16
        $region15: #{complete_test_model_forward.5} parent=11 // pred_region
          _
        $region16: #{complete_test_model_forward.5} parent=11 // pred_fallthru
          _
        // Predicated region
        $region17: #{complete_test_model_forward.5} parent=11 // pred_check
          %p166 = pneg %p106
        $region18: #{complete_test_model_forward.5} parent=11 // pred_check_branch
          %168 = sbr.rel (%p166) target = $region20
        $region19: #{complete_test_model_forward.5} parent=11 // pred_region
          _
        $region20: #{complete_test_model_forward.5} parent=11 // pred_fallthru
          _
        // Predicated region
        $region21: #{complete_test_model_forward.5} parent=11 // pred_check
          %p169 = pneg %p127
        $region22: #{complete_test_model_forward.5} parent=11 // pred_check_branch
          %171 = sbr.rel (%p169) target = $region24
        $region23: #{complete_test_model_forward.5} parent=11 // pred_region
          _
        $region24: #{complete_test_model_forward.5} parent=11 // pred_fallthru
          _
      $region12: #{complete_test_model_forward.5} parent=5 // pred_fallthru
        _
      %p172 = scmp.lt.s32.totalorder %s12, 4
      // Predicated region
      $region25: #{complete_test_model_forward.5} parent=5 // pred_check
        %p173 = pneg %p172
      $region26: #{complete_test_model_forward.5} parent=5 // pred_check_branch
        %175 = sbr.rel (%p173) target = $region28
      $region27: #{complete_test_model_forward.5} parent=5 // pred_region
        // Predicated region
        $region29: #{complete_test_model_forward.5} parent=27 // pred_check
          %p176 = pneg %p32
        $region30: #{complete_test_model_forward.5} parent=27 // pred_check_branch
          %178 = sbr.rel (%p176) target = $region32
        $region31: #{complete_test_model_forward.5} parent=27 // pred_region
          %s179 = smul.u32 8, %s12
          %p180 = scmp.lt.s32.totalorder %s179, 31
          %s181 = scalar_select %p180, %s179, 31
          %s182 = smul.addr %s181, 2
          %s183 = scalar_lea.vmem %s0, %s182
          %s184 = smul.u32 8, %s12
        $region32: #{complete_test_model_forward.5} parent=27 // pred_fallthru
          _
        // Predicated region
        $region33: #{complete_test_model_forward.5} parent=27 // pred_check
          %p185 = pneg %p58
        $region34: #{complete_test_model_forward.5} parent=27 // pred_check_branch
          %187 = sbr.rel (%p185) target = $region36
        $region35: #{complete_test_model_forward.5} parent=27 // pred_region
          %s188 = smul.u32 128, %s12
          %p189 = scmp.lt.s32.totalorder %s188, 511
          %s190 = scalar_select %p189, %s188, 511
          %s191 = smul.addr %s190, 4
          %s192 = scalar_lea.vmem %s1, %s191
          %s193 = smul.u32 128, %s12
        $region36: #{complete_test_model_forward.5} parent=27 // pred_fallthru
          _
      $region28: #{complete_test_model_forward.5} parent=5 // pred_fallthru
        _
      %p194 = scmp.le.s32.totalorder 1, %s12
      %p195 = scmp.lt.s32.totalorder %s12, 5
      %p196 = pnand %p194, %p195
      %p197 = pneg %p196
      // Predicated region
      $region37: #{complete_test_model_forward.5} parent=5 // pred_check
        _
      $region38: #{complete_test_model_forward.5} parent=5 // pred_check_branch
        %199 = sbr.rel (%p196) target = $region40
      $region39: #{complete_test_model_forward.5} parent=5 // pred_region
        %s200 = ssub.s32 %s12, 1
        %s201 = smul.u32 8, %s17
        %p202 = scmp.lt.s32.totalorder %s201, 31
        %s203 = scalar_select %p202, %s201, 31
        %s204 = smul.addr %s203, 2
        %s205 = scalar_lea.vmem %s0, %s204
        %p206 = pneg %p38
        %p207 = pneg %p35
        %s208 = smul.u32 128, %s17
        %p209 = scmp.lt.s32.totalorder %s208, 511
        %s210 = scalar_select %p209, %s208, 511
        %s211 = smul.addr %s210, 4
        %s212 = scalar_lea.vmem %s1, %s211
        %p213 = pneg %p64
        %p214 = pneg %p61
        %p215 = pneg %p85
        %p216 = pneg %p82
        %p217 = pneg %p106
        %p218 = pneg %p103
        %p219 = pneg %p127
        %p220 = pneg %p124
        %p221 = pneg %p148
        %p222 = pneg %p145
        %s223 = smul.u32 8, %s17
        %p224 = scmp.lt.s32.totalorder %s223, 31
        %s225 = scalar_select %p224, %s223, 31
        %s226 = smul.addr %s225, 2
        %s227 = scalar_lea.vmem %s0, %s226
        %s228 = smul.u32 8, %s17
        %s229 = smul.u32 128, %s17
        %p230 = scmp.lt.s32.totalorder %s229, 511
        %s231 = scalar_select %p230, %s229, 511
        %s232 = smul.addr %s231, 4
        %s233 = scalar_lea.vmem %s1, %s232
        %s234 = smul.u32 128, %s17
        %p236 = scmp.eq.s32.totalorder %s17, 0
        // Predicated region
        $region41: #{complete_test_model_forward.5} parent=39 // pred_check
          %p237 = pneg %p236
        $region42: #{complete_test_model_forward.5} parent=39 // pred_check_branch
          %239 = sbr.rel (%p237) target = $region44
        $region43: #{complete_test_model_forward.5} parent=39 // pred_region
          %240 = vst [vmem:[#allocation2] sm:$0x3] 0.0
        $region44: #{complete_test_model_forward.5} parent=39 // pred_fallthru
          _
        %v241 = vld [vmem:[#allocation2] sm:$0x3]
        %v242 = vld [vmem:[%s227] sm:$0xff]
        %v243 = vld [vmem:[%s227 + $0x8] sm:$0xff]
        %v246 = vcombine.high %v242, %v242
        %v248 = vunpack.c.l.s4 1983009808
        %v249 = vunpack.c.0.s8 %v248
        %v250 = vlaneseq
        %v251 = vshrl.u32 %v250, 7
        %v252 = vsub.s32 %v249, %v251
        %v253 = vrot.slane %v242, %v252
        %v255 = vunpack.c.l.s4 1983009808
        %v256 = vunpack.c.0.s8 %v255
        %v257 = vlaneseq
        %v258 = vshrl.u32 %v257, 7
        %v259 = vsub.s32 %v256, %v258
        %v260 = vrot.slane %v246, %v259
        %v261 = vcombine.high %v253, %v253
        %v262 = vcombine.high %v260, %v260
        %v263 = vcombine.high %v243, %v243
        %v265 = vunpack.c.l.s4 1983009808
        %v266 = vunpack.c.0.s8 %v265
        %v267 = vlaneseq
        %v268 = vshrl.u32 %v267, 7
        %v269 = vsub.s32 %v266, %v268
        %v270 = vrot.slane %v243, %v269
        %v272 = vunpack.c.l.s4 1983009808
        %v273 = vunpack.c.0.s8 %v272
        %v274 = vlaneseq
        %v275 = vshrl.u32 %v274, 7
        %v276 = vsub.s32 %v273, %v275
        %v277 = vrot.slane %v263, %v276
        %v278 = vcombine.high %v270, %v270
        %v279 = vcombine.high %v277, %v277
        %v288 = vpack.c.bf16 %v253, %v253
        %v289 = vpack.c.bf16 %v261, %v261
        %v290 = vpack.c.bf16 %v260, %v260
        %v291 = vpack.c.bf16 %v262, %v262
        %v292 = vpack.c.bf16 %v270, %v270
        %v293 = vpack.c.bf16 %v278, %v278
        %v294 = vpack.c.bf16 %v277, %v277
        %v295 = vpack.c.bf16 %v279, %v279
        %v296 = vld [vmem:[%s233] sm:$0xf]
        %v297 = vld [vmem:[%s233 + $0x4] sm:$0xf]
        %v298 = vld [vmem:[%s233 + $0x8] sm:$0xf]
        %v299 = vld [vmem:[%s233 + $0xc] sm:$0xf]
        %v300 = vld [vmem:[%s233 + $0x10] sm:$0xf]
        %v301 = vld [vmem:[%s233 + $0x14] sm:$0xf]
        %v302 = vld [vmem:[%s233 + $0x18] sm:$0xf]
        %v303 = vld [vmem:[%s233 + $0x1c] sm:$0xf]
        %v304 = vld [vmem:[%s233 + $0x20] sm:$0xf]
        %v305 = vld [vmem:[%s233 + $0x24] sm:$0xf]
        %v306 = vld [vmem:[%s233 + $0x28] sm:$0xf]
        %v307 = vld [vmem:[%s233 + $0x2c] sm:$0xf]
        %v308 = vld [vmem:[%s233 + $0x30] sm:$0xf]
        %v309 = vld [vmem:[%s233 + $0x34] sm:$0xf]
        %v310 = vld [vmem:[%s233 + $0x38] sm:$0xf]
        %v311 = vld [vmem:[%s233 + $0x3c] sm:$0xf]
        %v312 = vld [vmem:[%s233 + $0x40] sm:$0xf]
        %v313 = vld [vmem:[%s233 + $0x44] sm:$0xf]
        %v314 = vld [vmem:[%s233 + $0x48] sm:$0xf]
        %v315 = vld [vmem:[%s233 + $0x4c] sm:$0xf]
        %v316 = vld [vmem:[%s233 + $0x50] sm:$0xf]
        %v317 = vld [vmem:[%s233 + $0x54] sm:$0xf]
        %v318 = vld [vmem:[%s233 + $0x58] sm:$0xf]
        %v319 = vld [vmem:[%s233 + $0x5c] sm:$0xf]
        %v320 = vld [vmem:[%s233 + $0x60] sm:$0xf]
        %v321 = vld [vmem:[%s233 + $0x64] sm:$0xf]
        %v322 = vld [vmem:[%s233 + $0x68] sm:$0xf]
        %v323 = vld [vmem:[%s233 + $0x6c] sm:$0xf]
        %v324 = vld [vmem:[%s233 + $0x70] sm:$0xf]
        %v325 = vld [vmem:[%s233 + $0x74] sm:$0xf]
        %v326 = vld [vmem:[%s233 + $0x78] sm:$0xf]
        %v327 = vld [vmem:[%s233 + $0x7c] sm:$0xf]
        %v328 = vld [vmem:[%s233 + $0x80] sm:$0xf]
        %v329 = vld [vmem:[%s233 + $0x84] sm:$0xf]
        %v330 = vld [vmem:[%s233 + $0x88] sm:$0xf]
        %v331 = vld [vmem:[%s233 + $0x8c] sm:$0xf]
        %v332 = vld [vmem:[%s233 + $0x90] sm:$0xf]
        %v333 = vld [vmem:[%s233 + $0x94] sm:$0xf]
        %v334 = vld [vmem:[%s233 + $0x98] sm:$0xf]
        %v335 = vld [vmem:[%s233 + $0x9c] sm:$0xf]
        %v336 = vld [vmem:[%s233 + $0xa0] sm:$0xf]
        %v337 = vld [vmem:[%s233 + $0xa4] sm:$0xf]
        %v338 = vld [vmem:[%s233 + $0xa8] sm:$0xf]
        %v339 = vld [vmem:[%s233 + $0xac] sm:$0xf]
        %v340 = vld [vmem:[%s233 + $0xb0] sm:$0xf]
        %v341 = vld [vmem:[%s233 + $0xb4] sm:$0xf]
        %v342 = vld [vmem:[%s233 + $0xb8] sm:$0xf]
        %v343 = vld [vmem:[%s233 + $0xbc] sm:$0xf]
        %v344 = vld [vmem:[%s233 + $0xc0] sm:$0xf]
        %v345 = vld [vmem:[%s233 + $0xc4] sm:$0xf]
        %v346 = vld [vmem:[%s233 + $0xc8] sm:$0xf]
        %v347 = vld [vmem:[%s233 + $0xcc] sm:$0xf]
        %v348 = vld [vmem:[%s233 + $0xd0] sm:$0xf]
        %v349 = vld [vmem:[%s233 + $0xd4] sm:$0xf]
        %v350 = vld [vmem:[%s233 + $0xd8] sm:$0xf]
        %v351 = vld [vmem:[%s233 + $0xdc] sm:$0xf]
        %v352 = vld [vmem:[%s233 + $0xe0] sm:$0xf]
        %v353 = vld [vmem:[%s233 + $0xe4] sm:$0xf]
        %v354 = vld [vmem:[%s233 + $0xe8] sm:$0xf]
        %v355 = vld [vmem:[%s233 + $0xec] sm:$0xf]
        %v356 = vld [vmem:[%s233 + $0xf0] sm:$0xf]
        %v357 = vld [vmem:[%s233 + $0xf4] sm:$0xf]
        %v358 = vld [vmem:[%s233 + $0xf8] sm:$0xf]
        %v359 = vld [vmem:[%s233 + $0xfc] sm:$0xf]
        %v360 = vld [vmem:[%s233 + $0x100] sm:$0xf]
        %v361 = vld [vmem:[%s233 + $0x104] sm:$0xf]
        %v362 = vld [vmem:[%s233 + $0x108] sm:$0xf]
        %v363 = vld [vmem:[%s233 + $0x10c] sm:$0xf]
        %v364 = vld [vmem:[%s233 + $0x110] sm:$0xf]
        %v365 = vld [vmem:[%s233 + $0x114] sm:$0xf]
        %v366 = vld [vmem:[%s233 + $0x118] sm:$0xf]
        %v367 = vld [vmem:[%s233 + $0x11c] sm:$0xf]
        %v368 = vld [vmem:[%s233 + $0x120] sm:$0xf]
        %v369 = vld [vmem:[%s233 + $0x124] sm:$0xf]
        %v370 = vld [vmem:[%s233 + $0x128] sm:$0xf]
        %v371 = vld [vmem:[%s233 + $0x12c] sm:$0xf]
        %v372 = vld [vmem:[%s233 + $0x130] sm:$0xf]
        %v373 = vld [vmem:[%s233 + $0x134] sm:$0xf]
        %v374 = vld [vmem:[%s233 + $0x138] sm:$0xf]
        %v375 = vld [vmem:[%s233 + $0x13c] sm:$0xf]
        %v376 = vld [vmem:[%s233 + $0x140] sm:$0xf]
        %v377 = vld [vmem:[%s233 + $0x144] sm:$0xf]
        %v378 = vld [vmem:[%s233 + $0x148] sm:$0xf]
        %v379 = vld [vmem:[%s233 + $0x14c] sm:$0xf]
        %v380 = vld [vmem:[%s233 + $0x150] sm:$0xf]
        %v381 = vld [vmem:[%s233 + $0x154] sm:$0xf]
        %v382 = vld [vmem:[%s233 + $0x158] sm:$0xf]
        %v383 = vld [vmem:[%s233 + $0x15c] sm:$0xf]
        %v384 = vld [vmem:[%s233 + $0x160] sm:$0xf]
        %v385 = vld [vmem:[%s233 + $0x164] sm:$0xf]
        %v386 = vld [vmem:[%s233 + $0x168] sm:$0xf]
        %v387 = vld [vmem:[%s233 + $0x16c] sm:$0xf]
        %v388 = vld [vmem:[%s233 + $0x170] sm:$0xf]
        %v389 = vld [vmem:[%s233 + $0x174] sm:$0xf]
        %v390 = vld [vmem:[%s233 + $0x178] sm:$0xf]
        %v391 = vld [vmem:[%s233 + $0x17c] sm:$0xf]
        %v392 = vld [vmem:[%s233 + $0x180] sm:$0xf]
        %v393 = vld [vmem:[%s233 + $0x184] sm:$0xf]
        %v394 = vld [vmem:[%s233 + $0x188] sm:$0xf]
        %v395 = vld [vmem:[%s233 + $0x18c] sm:$0xf]
        %v396 = vld [vmem:[%s233 + $0x190] sm:$0xf]
        %v397 = vld [vmem:[%s233 + $0x194] sm:$0xf]
        %v398 = vld [vmem:[%s233 + $0x198] sm:$0xf]
        %v399 = vld [vmem:[%s233 + $0x19c] sm:$0xf]
        %v400 = vld [vmem:[%s233 + $0x1a0] sm:$0xf]
        %v401 = vld [vmem:[%s233 + $0x1a4] sm:$0xf]
        %v402 = vld [vmem:[%s233 + $0x1a8] sm:$0xf]
        %v403 = vld [vmem:[%s233 + $0x1ac] sm:$0xf]
        %v404 = vld [vmem:[%s233 + $0x1b0] sm:$0xf]
        %v405 = vld [vmem:[%s233 + $0x1b4] sm:$0xf]
        %v406 = vld [vmem:[%s233 + $0x1b8] sm:$0xf]
        %v407 = vld [vmem:[%s233 + $0x1bc] sm:$0xf]
        %v408 = vld [vmem:[%s233 + $0x1c0] sm:$0xf]
        %v409 = vld [vmem:[%s233 + $0x1c4] sm:$0xf]
        %v410 = vld [vmem:[%s233 + $0x1c8] sm:$0xf]
        %v411 = vld [vmem:[%s233 + $0x1cc] sm:$0xf]
        %v412 = vld [vmem:[%s233 + $0x1d0] sm:$0xf]
        %v413 = vld [vmem:[%s233 + $0x1d4] sm:$0xf]
        %v414 = vld [vmem:[%s233 + $0x1d8] sm:$0xf]
        %v415 = vld [vmem:[%s233 + $0x1dc] sm:$0xf]
        %v416 = vld [vmem:[%s233 + $0x1e0] sm:$0xf]
        %v417 = vld [vmem:[%s233 + $0x1e4] sm:$0xf]
        %v418 = vld [vmem:[%s233 + $0x1e8] sm:$0xf]
        %v419 = vld [vmem:[%s233 + $0x1ec] sm:$0xf]
        %v420 = vld [vmem:[%s233 + $0x1f0] sm:$0xf]
        %v421 = vld [vmem:[%s233 + $0x1f4] sm:$0xf]
        %v422 = vld [vmem:[%s233 + $0x1f8] sm:$0xf]
        %v423 = vld [vmem:[%s233 + $0x1fc] sm:$0xf]
        %v552 = vunpack.c.l.b16 %v296
        %v553 = vunpack.c.l.b16 %v297
        %v554 = vunpack.c.l.b16 %v298
        %v555 = vunpack.c.l.b16 %v299
        %v556 = vunpack.c.l.b16 %v300
        %v557 = vunpack.c.l.b16 %v301
        %v558 = vunpack.c.l.b16 %v302
        %v559 = vunpack.c.l.b16 %v303
        %v560 = vunpack.c.l.b16 %v304
        %v561 = vunpack.c.l.b16 %v305
        %v562 = vunpack.c.l.b16 %v306
        %v563 = vunpack.c.l.b16 %v307
        %v564 = vunpack.c.l.b16 %v308
        %v565 = vunpack.c.l.b16 %v309
        %v566 = vunpack.c.l.b16 %v310
        %v567 = vunpack.c.l.b16 %v311
        %v568 = vunpack.c.l.b16 %v312
        %v569 = vunpack.c.l.b16 %v313
        %v570 = vunpack.c.l.b16 %v314
        %v571 = vunpack.c.l.b16 %v315
        %v572 = vunpack.c.l.b16 %v316
        %v573 = vunpack.c.l.b16 %v317
        %v574 = vunpack.c.l.b16 %v318
        %v575 = vunpack.c.l.b16 %v319
        %v576 = vunpack.c.l.b16 %v320
        %v577 = vunpack.c.l.b16 %v321
        %v578 = vunpack.c.l.b16 %v322
        %v579 = vunpack.c.l.b16 %v323
        %v580 = vunpack.c.l.b16 %v324
        %v581 = vunpack.c.l.b16 %v325
        %v582 = vunpack.c.l.b16 %v326
        %v583 = vunpack.c.l.b16 %v327
        %v584 = vunpack.c.l.b16 %v328
        %v585 = vunpack.c.l.b16 %v329
        %v586 = vunpack.c.l.b16 %v330
        %v587 = vunpack.c.l.b16 %v331
        %v588 = vunpack.c.l.b16 %v332
        %v589 = vunpack.c.l.b16 %v333
        %v590 = vunpack.c.l.b16 %v334
        %v591 = vunpack.c.l.b16 %v335
        %v592 = vunpack.c.l.b16 %v336
        %v593 = vunpack.c.l.b16 %v337
        %v594 = vunpack.c.l.b16 %v338
        %v595 = vunpack.c.l.b16 %v339
        %v596 = vunpack.c.l.b16 %v340
        %v597 = vunpack.c.l.b16 %v341
        %v598 = vunpack.c.l.b16 %v342
        %v599 = vunpack.c.l.b16 %v343
        %v600 = vunpack.c.l.b16 %v344
        %v601 = vunpack.c.l.b16 %v345
        %v602 = vunpack.c.l.b16 %v346
        %v603 = vunpack.c.l.b16 %v347
        %v604 = vunpack.c.l.b16 %v348
        %v605 = vunpack.c.l.b16 %v349
        %v606 = vunpack.c.l.b16 %v350
        %v607 = vunpack.c.l.b16 %v351
        %v608 = vunpack.c.l.b16 %v352
        %v609 = vunpack.c.l.b16 %v353
        %v610 = vunpack.c.l.b16 %v354
        %v611 = vunpack.c.l.b16 %v355
        %v612 = vunpack.c.l.b16 %v356
        %v613 = vunpack.c.l.b16 %v357
        %v614 = vunpack.c.l.b16 %v358
        %v615 = vunpack.c.l.b16 %v359
        %v616 = vunpack.c.l.b16 %v360
        %v617 = vunpack.c.l.b16 %v361
        %v618 = vunpack.c.l.b16 %v362
        %v619 = vunpack.c.l.b16 %v363
        %v620 = vunpack.c.l.b16 %v364
        %v621 = vunpack.c.l.b16 %v365
        %v622 = vunpack.c.l.b16 %v366
        %v623 = vunpack.c.l.b16 %v367
        %v624 = vunpack.c.l.b16 %v368
        %v625 = vunpack.c.l.b16 %v369
        %v626 = vunpack.c.l.b16 %v370
        %v627 = vunpack.c.l.b16 %v371
        %v628 = vunpack.c.l.b16 %v372
        %v629 = vunpack.c.l.b16 %v373
        %v630 = vunpack.c.l.b16 %v374
        %v631 = vunpack.c.l.b16 %v375
        %v632 = vunpack.c.l.b16 %v376
        %v633 = vunpack.c.l.b16 %v377
        %v634 = vunpack.c.l.b16 %v378
        %v635 = vunpack.c.l.b16 %v379
        %v636 = vunpack.c.l.b16 %v380
        %v637 = vunpack.c.l.b16 %v381
        %v638 = vunpack.c.l.b16 %v382
        %v639 = vunpack.c.l.b16 %v383
        %v640 = vunpack.c.l.b16 %v384
        %v641 = vunpack.c.l.b16 %v385
        %v642 = vunpack.c.l.b16 %v386
        %v643 = vunpack.c.l.b16 %v387
        %v644 = vunpack.c.l.b16 %v388
        %v645 = vunpack.c.l.b16 %v389
        %v646 = vunpack.c.l.b16 %v390
        %v647 = vunpack.c.l.b16 %v391
        %v648 = vunpack.c.l.b16 %v392
        %v649 = vunpack.c.l.b16 %v393
        %v650 = vunpack.c.l.b16 %v394
        %v651 = vunpack.c.l.b16 %v395
        %v652 = vunpack.c.l.b16 %v396
        %v653 = vunpack.c.l.b16 %v397
        %v654 = vunpack.c.l.b16 %v398
        %v655 = vunpack.c.l.b16 %v399
        %v656 = vunpack.c.l.b16 %v400
        %v657 = vunpack.c.l.b16 %v401
        %v658 = vunpack.c.l.b16 %v402
        %v659 = vunpack.c.l.b16 %v403
        %v660 = vunpack.c.l.b16 %v404
        %v661 = vunpack.c.l.b16 %v405
        %v662 = vunpack.c.l.b16 %v406
        %v663 = vunpack.c.l.b16 %v407
        %v664 = vunpack.c.l.b16 %v408
        %v665 = vunpack.c.l.b16 %v409
        %v666 = vunpack.c.l.b16 %v410
        %v667 = vunpack.c.l.b16 %v411
        %v668 = vunpack.c.l.b16 %v412
        %v669 = vunpack.c.l.b16 %v413
        %v670 = vunpack.c.l.b16 %v414
        %v671 = vunpack.c.l.b16 %v415
        %v672 = vunpack.c.l.b16 %v416
        %v673 = vunpack.c.l.b16 %v417
        %v674 = vunpack.c.l.b16 %v418
        %v675 = vunpack.c.l.b16 %v419
        %v676 = vunpack.c.l.b16 %v420
        %v677 = vunpack.c.l.b16 %v421
        %v678 = vunpack.c.l.b16 %v422
        %v679 = vunpack.c.l.b16 %v423
        %v680 = vpack.c.b16 %v553, %v552
        %v681 = vpack.c.b16 %v555, %v554
        %v682 = vpack.c.b16 %v557, %v556
        %v683 = vpack.c.b16 %v559, %v558
        %v684 = vpack.c.b16 %v561, %v560
        %v685 = vpack.c.b16 %v563, %v562
        %v686 = vpack.c.b16 %v565, %v564
        %v687 = vpack.c.b16 %v567, %v566
        %v688 = vpack.c.b16 %v569, %v568
        %v689 = vpack.c.b16 %v571, %v570
        %v690 = vpack.c.b16 %v573, %v572
        %v691 = vpack.c.b16 %v575, %v574
        %v692 = vpack.c.b16 %v577, %v576
        %v693 = vpack.c.b16 %v579, %v578
        %v694 = vpack.c.b16 %v581, %v580
        %v695 = vpack.c.b16 %v583, %v582
        %v696 = vpack.c.b16 %v585, %v584
        %v697 = vpack.c.b16 %v587, %v586
        %v698 = vpack.c.b16 %v589, %v588
        %v699 = vpack.c.b16 %v591, %v590
        %v700 = vpack.c.b16 %v593, %v592
        %v701 = vpack.c.b16 %v595, %v594
        %v702 = vpack.c.b16 %v597, %v596
        %v703 = vpack.c.b16 %v599, %v598
        %v704 = vpack.c.b16 %v601, %v600
        %v705 = vpack.c.b16 %v603, %v602
        %v706 = vpack.c.b16 %v605, %v604
        %v707 = vpack.c.b16 %v607, %v606
        %v708 = vpack.c.b16 %v609, %v608
        %v709 = vpack.c.b16 %v611, %v610
        %v710 = vpack.c.b16 %v613, %v612
        %v711 = vpack.c.b16 %v615, %v614
        %v712 = vpack.c.b16 %v617, %v616
        %v713 = vpack.c.b16 %v619, %v618
        %v714 = vpack.c.b16 %v621, %v620
        %v715 = vpack.c.b16 %v623, %v622
        %v716 = vpack.c.b16 %v625, %v624
        %v717 = vpack.c.b16 %v627, %v626
        %v718 = vpack.c.b16 %v629, %v628
        %v719 = vpack.c.b16 %v631, %v630
        %v720 = vpack.c.b16 %v633, %v632
        %v721 = vpack.c.b16 %v635, %v634
        %v722 = vpack.c.b16 %v637, %v636
        %v723 = vpack.c.b16 %v639, %v638
        %v724 = vpack.c.b16 %v641, %v640
        %v725 = vpack.c.b16 %v643, %v642
        %v726 = vpack.c.b16 %v645, %v644
        %v727 = vpack.c.b16 %v647, %v646
        %v728 = vpack.c.b16 %v649, %v648
        %v729 = vpack.c.b16 %v651, %v650
        %v730 = vpack.c.b16 %v653, %v652
        %v731 = vpack.c.b16 %v655, %v654
        %v732 = vpack.c.b16 %v657, %v656
        %v733 = vpack.c.b16 %v659, %v658
        %v734 = vpack.c.b16 %v661, %v660
        %v735 = vpack.c.b16 %v663, %v662
        %v736 = vpack.c.b16 %v665, %v664
        %v737 = vpack.c.b16 %v667, %v666
        %v738 = vpack.c.b16 %v669, %v668
        %v739 = vpack.c.b16 %v671, %v670
        %v740 = vpack.c.b16 %v673, %v672
        %v741 = vpack.c.b16 %v675, %v674
        %v742 = vpack.c.b16 %v677, %v676
        %v743 = vpack.c.b16 %v679, %v678
        %808 = vmatprep.subr.bf16.mxu0 0
        %809 = vmatpush1.bf16.msra.mxu0 %v680
        %810 = vmatprep.subr.bf16.mxu0 0
        %811 = vmatpush1.bf16.msra.mxu0 %v681
        %812 = vmatprep.subr.bf16.mxu0 0
        %813 = vmatpush1.bf16.msra.mxu0 %v682
        %814 = vmatprep.subr.bf16.mxu0 0
        %815 = vmatpush1.bf16.msra.mxu0 %v683
        %816 = vmatprep.subr.bf16.mxu0 0
        %817 = vmatpush1.bf16.msra.mxu0 %v684
        %818 = vmatprep.subr.bf16.mxu0 0
        %819 = vmatpush1.bf16.msra.mxu0 %v685
        %820 = vmatprep.subr.bf16.mxu0 0
        %821 = vmatpush1.bf16.msra.mxu0 %v686
        %822 = vmatprep.subr.bf16.mxu0 0
        %823 = vmatpush1.bf16.msra.mxu0 %v687
        %824 = vmatprep.subr.bf16.mxu0 0
        %825 = vmatpush1.bf16.msra.mxu0 %v688
        %826 = vmatprep.subr.bf16.mxu0 0
        %827 = vmatpush1.bf16.msra.mxu0 %v689
        %828 = vmatprep.subr.bf16.mxu0 0
        %829 = vmatpush1.bf16.msra.mxu0 %v690
        %830 = vmatprep.subr.bf16.mxu0 0
        %831 = vmatpush1.bf16.msra.mxu0 %v691
        %832 = vmatprep.subr.bf16.mxu0 0
        %833 = vmatpush1.bf16.msra.mxu0 %v692
        %834 = vmatprep.subr.bf16.mxu0 0
        %835 = vmatpush1.bf16.msra.mxu0 %v693
        %836 = vmatprep.subr.bf16.mxu0 0
        %837 = vmatpush1.bf16.msra.mxu0 %v694
        %838 = vmatprep.subr.bf16.mxu0 0
        %839 = vmatpush1.bf16.msra.mxu0 %v695
        %840 = vmatprep.mubr.bf16.mxu0 %v289
        %841 = vmatmul.mubr.bf16.gmra.mrb[0].mxu0 %v288
        %v842 = vpop.f32.mrb[0].mxu0
        %v843 = vadd.f32 0.0, %v842
        %v844 = vpop.f32.mrb[0].mxu0
        %v845 = vpop.f32.mrb[0].mxu0
        %v846 = vpop.f32.mrb[0].mxu0
        %847 = vdwg.mxu0
        %848 = vmatprep.subr.bf16.mxu0 0
        %849 = vmatpush1.bf16.msra.mxu0 %v696
        %850 = vmatprep.subr.bf16.mxu0 0
        %851 = vmatpush1.bf16.msra.mxu0 %v697
        %852 = vmatprep.subr.bf16.mxu0 0
        %853 = vmatpush1.bf16.msra.mxu0 %v698
        %854 = vmatprep.subr.bf16.mxu0 0
        %855 = vmatpush1.bf16.msra.mxu0 %v699
        %856 = vmatprep.subr.bf16.mxu0 0
        %857 = vmatpush1.bf16.msra.mxu0 %v700
        %858 = vmatprep.subr.bf16.mxu0 0
        %859 = vmatpush1.bf16.msra.mxu0 %v701
        %860 = vmatprep.subr.bf16.mxu0 0
        %861 = vmatpush1.bf16.msra.mxu0 %v702
        %862 = vmatprep.subr.bf16.mxu0 0
        %863 = vmatpush1.bf16.msra.mxu0 %v703
        %864 = vmatprep.subr.bf16.mxu0 0
        %865 = vmatpush1.bf16.msra.mxu0 %v704
        %866 = vmatprep.subr.bf16.mxu0 0
        %867 = vmatpush1.bf16.msra.mxu0 %v705
        %868 = vmatprep.subr.bf16.mxu0 0
        %869 = vmatpush1.bf16.msra.mxu0 %v706
        %870 = vmatprep.subr.bf16.mxu0 0
        %871 = vmatpush1.bf16.msra.mxu0 %v707
        %872 = vmatprep.subr.bf16.mxu0 0
        %873 = vmatpush1.bf16.msra.mxu0 %v708
        %874 = vmatprep.subr.bf16.mxu0 0
        %875 = vmatpush1.bf16.msra.mxu0 %v709
        %876 = vmatprep.subr.bf16.mxu0 0
        %877 = vmatpush1.bf16.msra.mxu0 %v710
        %878 = vmatprep.subr.bf16.mxu0 0
        %879 = vmatpush1.bf16.msra.mxu0 %v711
        %880 = vmatprep.mubr.bf16.mxu0 %v291
        %881 = vmatmul.mubr.bf16.gmra.mrb[0].mxu0 %v290
        %v882 = vpop.f32.mrb[0].mxu0
        %v883 = vadd.f32 %v843, %v882
        %v884 = vpop.f32.mrb[0].mxu0
        %v885 = vpop.f32.mrb[0].mxu0
        %v886 = vpop.f32.mrb[0].mxu0
        %887 = vdwg.mxu0
        %888 = vmatprep.subr.bf16.mxu0 0
        %889 = vmatpush1.bf16.msra.mxu0 %v712
        %890 = vmatprep.subr.bf16.mxu0 0
        %891 = vmatpush1.bf16.msra.mxu0 %v713
        %892 = vmatprep.subr.bf16.mxu0 0
        %893 = vmatpush1.bf16.msra.mxu0 %v714
        %894 = vmatprep.subr.bf16.mxu0 0
        %895 = vmatpush1.bf16.msra.mxu0 %v715
        %896 = vmatprep.subr.bf16.mxu0 0
        %897 = vmatpush1.bf16.msra.mxu0 %v716
        %898 = vmatprep.subr.bf16.mxu0 0
        %899 = vmatpush1.bf16.msra.mxu0 %v717
        %900 = vmatprep.subr.bf16.mxu0 0
        %901 = vmatpush1.bf16.msra.mxu0 %v718
        %902 = vmatprep.subr.bf16.mxu0 0
        %903 = vmatpush1.bf16.msra.mxu0 %v719
        %904 = vmatprep.subr.bf16.mxu0 0
        %905 = vmatpush1.bf16.msra.mxu0 %v720
        %906 = vmatprep.subr.bf16.mxu0 0
        %907 = vmatpush1.bf16.msra.mxu0 %v721
        %908 = vmatprep.subr.bf16.mxu0 0
        %909 = vmatpush1.bf16.msra.mxu0 %v722
        %910 = vmatprep.subr.bf16.mxu0 0
        %911 = vmatpush1.bf16.msra.mxu0 %v723
        %912 = vmatprep.subr.bf16.mxu0 0
        %913 = vmatpush1.bf16.msra.mxu0 %v724
        %914 = vmatprep.subr.bf16.mxu0 0
        %915 = vmatpush1.bf16.msra.mxu0 %v725
        %916 = vmatprep.subr.bf16.mxu0 0
        %917 = vmatpush1.bf16.msra.mxu0 %v726
        %918 = vmatprep.subr.bf16.mxu0 0
        %919 = vmatpush1.bf16.msra.mxu0 %v727
        %920 = vmatprep.mubr.bf16.mxu0 %v293
        %921 = vmatmul.mubr.bf16.gmra.mrb[0].mxu0 %v292
        %v922 = vpop.f32.mrb[0].mxu0
        %v923 = vadd.f32 %v883, %v922
        %v924 = vpop.f32.mrb[0].mxu0
        %v925 = vpop.f32.mrb[0].mxu0
        %v926 = vpop.f32.mrb[0].mxu0
        %927 = vdwg.mxu0
        %928 = vmatprep.subr.bf16.mxu0 0
        %929 = vmatpush1.bf16.msra.mxu0 %v728
        %930 = vmatprep.subr.bf16.mxu0 0
        %931 = vmatpush1.bf16.msra.mxu0 %v729
        %932 = vmatprep.subr.bf16.mxu0 0
        %933 = vmatpush1.bf16.msra.mxu0 %v730
        %934 = vmatprep.subr.bf16.mxu0 0
        %935 = vmatpush1.bf16.msra.mxu0 %v731
        %936 = vmatprep.subr.bf16.mxu0 0
        %937 = vmatpush1.bf16.msra.mxu0 %v732
        %938 = vmatprep.subr.bf16.mxu0 0
        %939 = vmatpush1.bf16.msra.mxu0 %v733
        %940 = vmatprep.subr.bf16.mxu0 0
        %941 = vmatpush1.bf16.msra.mxu0 %v734
        %942 = vmatprep.subr.bf16.mxu0 0
        %943 = vmatpush1.bf16.msra.mxu0 %v735
        %944 = vmatprep.subr.bf16.mxu0 0
        %945 = vmatpush1.bf16.msra.mxu0 %v736
        %946 = vmatprep.subr.bf16.mxu0 0
        %947 = vmatpush1.bf16.msra.mxu0 %v737
        %948 = vmatprep.subr.bf16.mxu0 0
        %949 = vmatpush1.bf16.msra.mxu0 %v738
        %950 = vmatprep.subr.bf16.mxu0 0
        %951 = vmatpush1.bf16.msra.mxu0 %v739
        %952 = vmatprep.subr.bf16.mxu0 0
        %953 = vmatpush1.bf16.msra.mxu0 %v740
        %954 = vmatprep.subr.bf16.mxu0 0
        %955 = vmatpush1.bf16.msra.mxu0 %v741
        %956 = vmatprep.subr.bf16.mxu0 0
        %957 = vmatpush1.bf16.msra.mxu0 %v742
        %958 = vmatprep.subr.bf16.mxu0 0
        %959 = vmatpush1.bf16.msra.mxu0 %v743
        %960 = vmatprep.mubr.bf16.mxu0 %v295
        %961 = vmatmul.mubr.bf16.gmra.mrb[0].mxu0 %v294
        %v962 = vpop.f32.mrb[0].mxu0
        %v963 = vadd.f32 %v923, %v962
        %v964 = vpop.f32.mrb[0].mxu0
        %v965 = vpop.f32.mrb[0].mxu0
        %v966 = vpop.f32.mrb[0].mxu0
        %967 = vdwg.mxu0
        %v968 = vadd.f32 %v241, %v963
        %969 = vst [vmem:[#allocation2] sm:$0x3] %v968
        %p970 = scmp.eq.s32.totalorder %s17, 3
        // Predicated region
        $region45: #{complete_test_model_forward.5} parent=39 // pred_check
          %p971 = pneg %p970
        $region46: #{complete_test_model_forward.5} parent=39 // pred_check_branch
          %973 = sbr.rel (%p971) target = $region48
        $region47: #{complete_test_model_forward.5} parent=39 // pred_region
          %v974 = vld [vmem:[#allocation2] sm:$0x3]
          %v975 = vld [vmem:[%s2] sm:$0x1]
          %v977 = vlaneseq
          %v978 = vshrl.u32 %v977, 7
          %v979 = vsub.s32 0, %v978
          %v980 = vrot.slane %v975, %v979
          %v982 = vadd.f32 %v974, %v980
          %v983 = vmax.f32 %v982, 0.0
          %v984 = vpack.c.bf16 %v983, %v983
          %v985 = vld [vmem:[%s3] sm:$0xf]
          %v986 = vld [vmem:[%s3 + $0x4] sm:$0xf]
          %v987 = vld [vmem:[%s3 + $0x8] sm:$0xf]
          %v988 = vld [vmem:[%s3 + $0xc] sm:$0xf]
          %v989 = vld [vmem:[%s3 + $0x10] sm:$0xf]
          %v990 = vld [vmem:[%s3 + $0x14] sm:$0xf]
          %v991 = vld [vmem:[%s3 + $0x18] sm:$0xf]
          %v992 = vld [vmem:[%s3 + $0x1c] sm:$0xf]
          %v993 = vld [vmem:[%s3 + $0x20] sm:$0xf]
          %v994 = vld [vmem:[%s3 + $0x24] sm:$0xf]
          %v995 = vld [vmem:[%s3 + $0x28] sm:$0xf]
          %v996 = vld [vmem:[%s3 + $0x2c] sm:$0xf]
          %v997 = vld [vmem:[%s3 + $0x30] sm:$0xf]
          %v998 = vld [vmem:[%s3 + $0x34] sm:$0xf]
          %v999 = vld [vmem:[%s3 + $0x38] sm:$0xf]
          %v1000 = vld [vmem:[%s3 + $0x3c] sm:$0xf]
          %v1001 = vld [vmem:[%s4] sm:$0x1]
          %v1003 = vlaneseq
          %v1004 = vshrl.u32 %v1003, 7
          %v1005 = vsub.s32 0, %v1004
          %v1006 = vrot.slane %v1001, %v1005
          %v1024 = vunpack.c.l.b16 %v985
          %v1025 = vunpack.c.l.b16 %v986
          %v1026 = vunpack.c.l.b16 %v987
          %v1027 = vunpack.c.l.b16 %v988
          %v1028 = vunpack.c.l.b16 %v989
          %v1029 = vunpack.c.l.b16 %v990
          %v1030 = vunpack.c.l.b16 %v991
          %v1031 = vunpack.c.l.b16 %v992
          %v1032 = vunpack.c.l.b16 %v993
          %v1033 = vunpack.c.l.b16 %v994
          %v1034 = vunpack.c.l.b16 %v995
          %v1035 = vunpack.c.l.b16 %v996
          %v1036 = vunpack.c.l.b16 %v997
          %v1037 = vunpack.c.l.b16 %v998
          %v1038 = vunpack.c.l.b16 %v999
          %v1039 = vunpack.c.l.b16 %v1000
          %v1040 = vpack.c.b16 %v1025, %v1024
          %v1041 = vpack.c.b16 %v1027, %v1026
          %v1042 = vpack.c.b16 %v1029, %v1028
          %v1043 = vpack.c.b16 %v1031, %v1030
          %v1044 = vpack.c.b16 %v1033, %v1032
          %v1045 = vpack.c.b16 %v1035, %v1034
          %v1046 = vpack.c.b16 %v1037, %v1036
          %v1047 = vpack.c.b16 %v1039, %v1038
          %1056 = vmatprep.subr.bf16.mxu0 0
          %1057 = vmatpush1.bf16.msra.mxu0 %v1040
          %1058 = vmatprep.subr.bf16.mxu0 0
          %1059 = vmatpush1.bf16.msra.mxu0 %v1041
          %1060 = vmatprep.subr.bf16.mxu0 0
          %1061 = vmatpush1.bf16.msra.mxu0 %v1042
          %1062 = vmatprep.subr.bf16.mxu0 0
          %1063 = vmatpush1.bf16.msra.mxu0 %v1043
          %1064 = vmatprep.subr.bf16.mxu0 0
          %1065 = vmatpush1.bf16.msra.mxu0 %v1044
          %1066 = vmatprep.subr.bf16.mxu0 0
          %1067 = vmatpush1.bf16.msra.mxu0 %v1045
          %1068 = vmatprep.subr.bf16.mxu0 0
          %1069 = vmatpush1.bf16.msra.mxu0 %v1046
          %1070 = vmatprep.subr.bf16.mxu0 0
          %1071 = vmatpush1.bf16.msra.mxu0 %v1047
          %1072 = vmatprep.subr.bf16.mxu0 0
          %1073 = vmatpush1.bf16.msra.mxu0 0
          %1074 = vmatprep.subr.bf16.mxu0 0
          %1075 = vmatpush1.bf16.msra.mxu0 0
          %1076 = vmatprep.subr.bf16.mxu0 0
          %1077 = vmatpush1.bf16.msra.mxu0 0
          %1078 = vmatprep.subr.bf16.mxu0 0
          %1079 = vmatpush1.bf16.msra.mxu0 0
          %1080 = vmatprep.subr.bf16.mxu0 0
          %1081 = vmatpush1.bf16.msra.mxu0 0
          %1082 = vmatprep.subr.bf16.mxu0 0
          %1083 = vmatpush1.bf16.msra.mxu0 0
          %1084 = vmatprep.subr.bf16.mxu0 0
          %1085 = vmatpush1.bf16.msra.mxu0 0
          %1086 = vmatprep.subr.bf16.mxu0 0
          %1087 = vmatpush1.bf16.msra.mxu0 0
          %1088 = vmatprep.mubr.bf16.mxu0 0
          %1089 = vmatmul.mubr.bf16.gmra.mrb[0].mxu0 %v984
          %v1090 = vpop.f32.mrb[0].mxu0
          %v1091 = vadd.f32 %v1006, %v1090
          %v1092 = vpop.f32.mrb[0].mxu0
          %v1093 = vpop.f32.mrb[0].mxu0
          %v1094 = vpop.f32.mrb[0].mxu0
          %1095 = vdwg.mxu0
          %1096 = vst [vmem:[#allocation3] sm:$0x3] %v1091
        $region48: #{complete_test_model_forward.5} parent=39 // pred_fallthru
          _
        // Predicated region
        $region49: #{complete_test_model_forward.5} parent=39 // pred_check
          %p1097 = pneg %p145
        $region50: #{complete_test_model_forward.5} parent=39 // pred_check_branch
          %1099 = sbr.rel (%p1097) target = $region52
        $region51: #{complete_test_model_forward.5} parent=39 // pred_region
          %s1101 = ssub.s32 32, 32
          %1102 = vsyncadd [#allocation4], %s1101
          %s1104 = sshll.u32 [#allocation3], 4
          %s1105 = int_to_ptr.vmem [resolvable:$true] %s1104
          %1107 = dma.vmem_to_hbm [thread:$0]  %s1105, 32, %s5, [#allocation4]
        $region52: #{complete_test_model_forward.5} parent=39 // pred_fallthru
          _
        // Predicated region
        $region53: #{complete_test_model_forward.5} parent=39 // pred_check
          %p1108 = pneg %p145
        $region54: #{complete_test_model_forward.5} parent=39 // pred_check_branch
          %1110 = sbr.rel (%p1108) target = $region56
        $region55: #{complete_test_model_forward.5} parent=39 // pred_region
          %1111 = dma.done [#allocation4], 32
        $region56: #{complete_test_model_forward.5} parent=39 // pred_fallthru
          _
      $region40: #{complete_test_model_forward.5} parent=5 // pred_fallthru
        _
      %p1112 = scmp.le.s32.totalorder 2, %s12
      // Predicated region
      $region57: #{complete_test_model_forward.5} parent=5 // pred_check
        %p1113 = pneg %p1112
      $region58: #{complete_test_model_forward.5} parent=5 // pred_check_branch
        %1115 = sbr.rel (%p1113) target = $region60
      $region59: #{complete_test_model_forward.5} parent=5 // pred_region
        %s1116 = ssub.s32 %s12, 2
      $region60: #{complete_test_model_forward.5} parent=5 // pred_fallthru
        _
    $region6: #{complete_test_model_forward.5} parent=1 // loop_footer
      %s16 = sadd.s32 1, %s12
    $region7: #{complete_test_model_forward.5} parent=1 // loop_footer_branch
      %11 = sbr.rel target = $region3
    $region8: #{complete_test_model_forward.5} parent=1 // loop_exit
      _
    %1117 = vsyncpa [#allocation4], 1
    %s1118 = scalar_lea.sflag [#allocation4], 1
    %1119 = vsyncpa %s1118, 1

// kernel: complete_test_model_forward.4
$region0: #{complete_test_model_forward.4}
  #allocation0 [shape = 'u32[]', space=smem, size = 0x4, offset = 0x4, fixed_abs, tag = 'smem constant byte address 0x4 - core index']
  #allocation1 [shape = 'u32[144,128]{1,0:T(1,128)}', space=vmem, size = 0x12000, scoped, tag = 'internal scratch']
  %s0 = inlined_call_operand.vmem [shape: f32[2,18,9,32], index: 0, kind: input, shape index: {}]
  %s1 = inlined_call_operand.vmem [shape: f32[2,18,9,32], index: 1, kind: input, shape index: {}]
  %s2 = inlined_call_operand.vmem [shape: f32[3,3,32,64], index: 2, kind: input, shape index: {}]
  %s3 = inlined_call_operand.vmem [shape: f32[1,64], index: 3, kind: input, shape index: {}]
  %s4 = inlined_call_operand.vmem [shape: f32[2,8,8,64], index: 4, kind: output, shape index: {}]
  %s5 = sld [smem:[#allocation0]]
  $region49: #{complete_test_model_forward.4} parent=0
    _
  %s7 = ssub.s32 1, %s5
  %s8 = scalar_select 0, %s7, %s5
  loop: start=0, step=1, limit=4
  $region2: #{complete_test_model_forward.4} parent=0 // loop_pre_header
    _
  $region3: #{complete_test_model_forward.4} parent=0 // loop_header
    %s10 = sphi 0, %s14
    %p11 = scmp.ge.s32.totalorder %s10, 4
    %s20 = sphi 0, %s22
    %s23 = sphi 0, %s20
    %s24 = sphi 0, %s23
    %s40 = sphi 0, %s24
    %s46 = sphi 0, %s48
    %s49 = sphi 0, %s46
    %s50 = sphi 0, %s49
    %s66 = sphi 0, %s50
    %s70 = sphi 0, %s70
    %s72 = sphi 0, %s70
    %s73 = sphi 0, %s72
    %s87 = sphi 0, %s73
    %s91 = sphi 0, %s91
    %s93 = sphi 0, %s91
    %s94 = sphi 0, %s93
    %s108 = sphi 0, %s94
    %s114 = sphi 0, %s116
    %s117 = sphi 0, %s114
    %s118 = sphi 0, %s117
    %s134 = sphi 0, %s118
  $region4: #{complete_test_model_forward.4} parent=0 // loop_header_branch
    %13 = sbr.rel (%p11) target = $region8
  $region5: #{complete_test_model_forward.4} parent=0 // loop_body
    %s15 = ssub.s32 %s10, 1
    %s16 = ssub.s32 %s10, 2
    %s17 = sadd.s32 %s10, 1
    %s18 = ssub.s32 %s10, %s17
    %p19 = scmp.eq.s32.totalorder %s18, 0
    %s21 = sadd.s32 %s20, 1
    %s22 = scalar_select %p19, %s20, %s21
    %p25 = pneg %p19
    %p26 = scmp.eq.s32.totalorder %s10, 1
    %p27 = por %p25, %p26
    %p28 = scmp.ne.s32.totalorder %s20, %s23
    %p29 = scmp.eq.s32.totalorder %s10, 0
    %p30 = por %p28, %p29
    %p31 = scmp.ne.s32.totalorder %s20, %s23
    %p32 = scmp.eq.s32.totalorder %s15, 1
    %p33 = por %p31, %p32
    %p34 = scmp.ne.s32.totalorder %s23, %s24
    %p35 = scmp.eq.s32.totalorder %s15, 0
    %p36 = por %p34, %p35
    %p37 = scmp.ne.s32.totalorder %s23, %s24
    %p38 = scmp.eq.s32.totalorder %s16, 1
    %p39 = por %p37, %p38
    %p41 = scmp.ne.s32.totalorder %s24, %s40
    %p42 = scmp.eq.s32.totalorder %s16, 0
    %p43 = por %p41, %p42
    %s44 = ssub.s32 %s10, %s17
    %p45 = scmp.eq.s32.totalorder %s44, 0
    %s47 = sadd.s32 %s46, 1
    %s48 = scalar_select %p45, %s46, %s47
    %p51 = pneg %p45
    %p52 = scmp.eq.s32.totalorder %s10, 1
    %p53 = por %p51, %p52
    %p54 = scmp.ne.s32.totalorder %s46, %s49
    %p55 = scmp.eq.s32.totalorder %s10, 0
    %p56 = por %p54, %p55
    %p57 = scmp.ne.s32.totalorder %s46, %s49
    %p58 = scmp.eq.s32.totalorder %s15, 1
    %p59 = por %p57, %p58
    %p60 = scmp.ne.s32.totalorder %s49, %s50
    %p61 = scmp.eq.s32.totalorder %s15, 0
    %p62 = por %p60, %p61
    %p63 = scmp.ne.s32.totalorder %s49, %s50
    %p64 = scmp.eq.s32.totalorder %s16, 1
    %p65 = por %p63, %p64
    %p67 = scmp.ne.s32.totalorder %s50, %s66
    %p68 = scmp.eq.s32.totalorder %s16, 0
    %p69 = por %p67, %p68
    %s71 = sadd.s32 %s70, 1
    %p74 = scmp.eq.s32.totalorder %s10, 1
    %p75 = scmp.ne.s32.totalorder %s70, %s72
    %p76 = scmp.eq.s32.totalorder %s10, 0
    %p77 = por %p75, %p76
    %p78 = scmp.ne.s32.totalorder %s70, %s72
    %p79 = scmp.eq.s32.totalorder %s15, 1
    %p80 = por %p78, %p79
    %p81 = scmp.ne.s32.totalorder %s72, %s73
    %p82 = scmp.eq.s32.totalorder %s15, 0
    %p83 = por %p81, %p82
    %p84 = scmp.ne.s32.totalorder %s72, %s73
    %p85 = scmp.eq.s32.totalorder %s16, 1
    %p86 = por %p84, %p85
    %p88 = scmp.ne.s32.totalorder %s73, %s87
    %p89 = scmp.eq.s32.totalorder %s16, 0
    %p90 = por %p88, %p89
    %s92 = sadd.s32 %s91, 1
    %p95 = scmp.eq.s32.totalorder %s10, 1
    %p96 = scmp.ne.s32.totalorder %s91, %s93
    %p97 = scmp.eq.s32.totalorder %s10, 0
    %p98 = por %p96, %p97
    %p99 = scmp.ne.s32.totalorder %s91, %s93
    %p100 = scmp.eq.s32.totalorder %s15, 1
    %p101 = por %p99, %p100
    %p102 = scmp.ne.s32.totalorder %s93, %s94
    %p103 = scmp.eq.s32.totalorder %s15, 0
    %p104 = por %p102, %p103
    %p105 = scmp.ne.s32.totalorder %s93, %s94
    %p106 = scmp.eq.s32.totalorder %s16, 1
    %p107 = por %p105, %p106
    %p109 = scmp.ne.s32.totalorder %s94, %s108
    %p110 = scmp.eq.s32.totalorder %s16, 0
    %p111 = por %p109, %p110
    %s112 = ssub.s32 %s10, %s17
    %p113 = scmp.eq.s32.totalorder %s112, 0
    %s115 = sadd.s32 %s114, 1
    %s116 = scalar_select %p113, %s114, %s115
    %p119 = pneg %p113
    %p120 = scmp.eq.s32.totalorder %s10, 1
    %p121 = por %p119, %p120
    %p122 = scmp.ne.s32.totalorder %s114, %s117
    %p123 = scmp.eq.s32.totalorder %s10, 0
    %p124 = por %p122, %p123
    %p125 = scmp.ne.s32.totalorder %s114, %s117
    %p126 = scmp.eq.s32.totalorder %s15, 1
    %p127 = por %p125, %p126
    %p128 = scmp.ne.s32.totalorder %s117, %s118
    %p129 = scmp.eq.s32.totalorder %s15, 0
    %p130 = por %p128, %p129
    %p131 = scmp.ne.s32.totalorder %s117, %s118
    %p132 = scmp.eq.s32.totalorder %s16, 1
    %p133 = por %p131, %p132
    %p135 = scmp.ne.s32.totalorder %s118, %s134
    %p136 = scmp.eq.s32.totalorder %s16, 0
    %p137 = por %p135, %p136
    %p138 = scmp.le.s32.totalorder 1, %s10
    %p139 = scmp.lt.s32.totalorder %s10, 3
    %p140 = pnand %p138, %p139
    %p141 = pneg %p140
    // Predicated region
    $region9: #{complete_test_model_forward.4} parent=5 // pred_check
      _
    $region10: #{complete_test_model_forward.4} parent=5 // pred_check_branch
      %143 = sbr.rel (%p140) target = $region12
    $region11: #{complete_test_model_forward.4} parent=5 // pred_region
      %s144 = ssub.s32 %s10, 1
      // Predicated region
      $region13: #{complete_test_model_forward.4} parent=11 // pred_check
        %p145 = pneg %p83
      $region14: #{complete_test_model_forward.4} parent=11 // pred_check_branch
        %147 = sbr.rel (%p145) target = $region16
      $region15: #{complete_test_model_forward.4} parent=11 // pred_region
        _
      $region16: #{complete_test_model_forward.4} parent=11 // pred_fallthru
        _
      // Predicated region
      $region17: #{complete_test_model_forward.4} parent=11 // pred_check
        %p148 = pneg %p104
      $region18: #{complete_test_model_forward.4} parent=11 // pred_check_branch
        %150 = sbr.rel (%p148) target = $region20
      $region19: #{complete_test_model_forward.4} parent=11 // pred_region
        _
      $region20: #{complete_test_model_forward.4} parent=11 // pred_fallthru
        _
    $region12: #{complete_test_model_forward.4} parent=5 // pred_fallthru
      _
    %p151 = scmp.lt.s32.totalorder %s10, 2
    // Predicated region
    $region21: #{complete_test_model_forward.4} parent=5 // pred_check
      %p152 = pneg %p151
    $region22: #{complete_test_model_forward.4} parent=5 // pred_check_branch
      %154 = sbr.rel (%p152) target = $region24
    $region23: #{complete_test_model_forward.4} parent=5 // pred_region
      // Predicated region
      $region25: #{complete_test_model_forward.4} parent=23 // pred_check
        %p155 = pneg %p30
      $region26: #{complete_test_model_forward.4} parent=23 // pred_check_branch
        %157 = sbr.rel (%p155) target = $region28
      $region27: #{complete_test_model_forward.4} parent=23 // pred_region
        %p158 = scmp.lt.s32.totalorder %s10, 1
        %s159 = scalar_select %p158, %s10, 1
        %s160 = smul.addr %s159, 36
        %s161 = smul.addr %s160, 8
        %s162 = scalar_lea.vmem %s0, %s161
      $region28: #{complete_test_model_forward.4} parent=23 // pred_fallthru
        _
      // Predicated region
      $region29: #{complete_test_model_forward.4} parent=23 // pred_check
        %p163 = pneg %p56
      $region30: #{complete_test_model_forward.4} parent=23 // pred_check_branch
        %165 = sbr.rel (%p163) target = $region32
      $region31: #{complete_test_model_forward.4} parent=23 // pred_region
        %p166 = scmp.lt.s32.totalorder %s10, 1
        %s167 = scalar_select %p166, %s10, 1
        %s168 = smul.addr %s167, 36
        %s169 = smul.addr %s168, 8
        %s170 = scalar_lea.vmem %s1, %s169
      $region32: #{complete_test_model_forward.4} parent=23 // pred_fallthru
        _
    $region24: #{complete_test_model_forward.4} parent=5 // pred_fallthru
      _
    %p171 = scmp.le.s32.totalorder 1, %s10
    %p172 = scmp.lt.s32.totalorder %s10, 3
    %p173 = pnand %p171, %p172
    %p174 = pneg %p173
    // Predicated region
    $region33: #{complete_test_model_forward.4} parent=5 // pred_check
      _
    $region34: #{complete_test_model_forward.4} parent=5 // pred_check_branch
      %176 = sbr.rel (%p173) target = $region36
    $region35: #{complete_test_model_forward.4} parent=5 // pred_region
      %s177 = ssub.s32 %s10, 1
      %p178 = scmp.lt.s32.totalorder %s15, 1
      %s179 = scalar_select %p178, %s15, 1
      %s180 = smul.addr %s179, 36
      %s181 = smul.addr %s180, 8
      %s182 = scalar_lea.vmem %s0, %s181
      %p183 = pneg %p36
      %p184 = pneg %p33
      %p185 = scmp.lt.s32.totalorder %s15, 1
      %s186 = scalar_select %p185, %s15, 1
      %s187 = smul.addr %s186, 36
      %s188 = smul.addr %s187, 8
      %s189 = scalar_lea.vmem %s1, %s188
      %p190 = pneg %p62
      %p191 = pneg %p59
      %p192 = pneg %p83
      %p193 = pneg %p80
      %p194 = pneg %p104
      %p195 = pneg %p101
      %p196 = pneg %p130
      %p197 = pneg %p127
      %p198 = scmp.lt.s32.totalorder %s15, 1
      %s199 = scalar_select %p198, %s15, 1
      %s200 = smul.addr %s199, 8
      %s201 = smul.addr %s200, 8
      %s202 = scalar_lea.vmem %s4, %s201
      %p203 = scmp.lt.s32.totalorder %s15, 1
      %s204 = scalar_select %p203, %s15, 1
      %s205 = smul.addr %s204, 36
      %s206 = smul.addr %s205, 8
      %s207 = scalar_lea.vmem %s0, %s206
      %p208 = scmp.lt.s32.totalorder %s15, 1
      %s209 = scalar_select %p208, %s15, 1
      %s210 = smul.addr %s209, 36
      %s211 = smul.addr %s210, 8
      %s212 = scalar_lea.vmem %s1, %s211
      %p213 = scmp.lt.s32.totalorder %s15, 1
      %s214 = scalar_select %p213, %s15, 1
      %s215 = smul.addr %s214, 8
      %s216 = smul.addr %s215, 8
      %s217 = scalar_lea.vmem %s4, %s216
      %v218 = vld [vmem:[%s2] sm:$0xff]
      %v219 = vld [vmem:[%s2 + $0x8] sm:$0xff]
      %v220 = vld [vmem:[%s2 + $0x10] sm:$0xff]
      %v221 = vld [vmem:[%s2 + $0x18] sm:$0xff]
      %s222 = scalar_lea.vmem %s2, 32
      %v223 = vld [vmem:[%s222] sm:$0xff]
      %v224 = vld [vmem:[%s222 + $0x8] sm:$0xff]
      %v225 = vld [vmem:[%s222 + $0x10] sm:$0xff]
      %v226 = vld [vmem:[%s222 + $0x18] sm:$0xff]
      %s227 = scalar_lea.vmem %s2, 64
      %v228 = vld [vmem:[%s227] sm:$0xff]
      %v229 = vld [vmem:[%s227 + $0x8] sm:$0xff]
      %v230 = vld [vmem:[%s227 + $0x10] sm:$0xff]
      %v231 = vld [vmem:[%s227 + $0x18] sm:$0xff]
      %v232 = vld [vmem:[%s207] sm:$0xff]
      %v233 = vld [vmem:[%s207 + $0x10] sm:$0xff]
      %v234 = vld [vmem:[%s207 + $0x20] sm:$0xff]
      %v235 = vld [vmem:[%s207 + $0x30] sm:$0xff]
      %v236 = vld [vmem:[%s207 + $0x40] sm:$0xff]
      %v237 = vld [vmem:[%s207 + $0x50] sm:$0xff]
      %v238 = vld [vmem:[%s207 + $0x60] sm:$0xff]
      %v239 = vld [vmem:[%s207 + $0x70] sm:$0xff]
      %v240 = vld [vmem:[%s207 + $0x80] sm:$0xff]
      %v241 = vld [vmem:[%s207 + $0x90] sm:$0xff]
      %v242 = vld [vmem:[%s207 + $0xa0] sm:$0xff]
      %v243 = vld [vmem:[%s207 + $0xb0] sm:$0xff]
      %v244 = vld [vmem:[%s207 + $0xc0] sm:$0xff]
      %v245 = vld [vmem:[%s207 + $0xd0] sm:$0xff]
      %v246 = vld [vmem:[%s207 + $0xe0] sm:$0xff]
      %v247 = vld [vmem:[%s207 + $0xf0] sm:$0xff]
      %v248 = vld [vmem:[%s212] sm:$0xff]
      %v249 = vld [vmem:[%s212 + $0x10] sm:$0xff]
      %v250 = vld [vmem:[%s212 + $0x20] sm:$0xff]
      %v251 = vld [vmem:[%s212 + $0x30] sm:$0xff]
      %v252 = vld [vmem:[%s212 + $0x40] sm:$0xff]
      %v253 = vld [vmem:[%s212 + $0x50] sm:$0xff]
      %v254 = vld [vmem:[%s212 + $0x60] sm:$0xff]
      %v255 = vld [vmem:[%s212 + $0x70] sm:$0xff]
      %v256 = vld [vmem:[%s212 + $0x80] sm:$0xff]
      %v257 = vld [vmem:[%s212 + $0x90] sm:$0xff]
      %v258 = vld [vmem:[%s212 + $0xa0] sm:$0xff]
      %v259 = vld [vmem:[%s212 + $0xb0] sm:$0xff]
      %v260 = vld [vmem:[%s212 + $0xc0] sm:$0xff]
      %v261 = vld [vmem:[%s212 + $0xd0] sm:$0xff]
      %v262 = vld [vmem:[%s212 + $0xe0] sm:$0xff]
      %v263 = vld [vmem:[%s212 + $0xf0] sm:$0xff]
      %v264 = vld [vmem:[%s207 + $0x1] sm:$0xff]
      %v265 = vld [vmem:[%s207 + $0x11] sm:$0xff]
      %v266 = vld [vmem:[%s207 + $0x21] sm:$0xff]
      %v267 = vld [vmem:[%s207 + $0x31] sm:$0xff]
      %v268 = vld [vmem:[%s207 + $0x41] sm:$0xff]
      %v269 = vld [vmem:[%s207 + $0x51] sm:$0xff]
      %v270 = vld [vmem:[%s207 + $0x61] sm:$0xff]
      %v271 = vld [vmem:[%s207 + $0x71] sm:$0xff]
      %v272 = vld [vmem:[%s207 + $0x81] sm:$0xff]
      %v273 = vld [vmem:[%s207 + $0x91] sm:$0xff]
      %v274 = vld [vmem:[%s207 + $0xa1] sm:$0xff]
      %v275 = vld [vmem:[%s207 + $0xb1] sm:$0xff]
      %v276 = vld [vmem:[%s207 + $0xc1] sm:$0xff]
      %v277 = vld [vmem:[%s207 + $0xd1] sm:$0xff]
      %v278 = vld [vmem:[%s207 + $0xe1] sm:$0xff]
      %v279 = vld [vmem:[%s207 + $0xf1] sm:$0xff]
      %v280 = vld [vmem:[%s212 + $0x1] sm:$0xff]
      %v281 = vld [vmem:[%s212 + $0x11] sm:$0xff]
      %v282 = vld [vmem:[%s212 + $0x21] sm:$0xff]
      %v283 = vld [vmem:[%s212 + $0x31] sm:$0xff]
      %v284 = vld [vmem:[%s212 + $0x41] sm:$0xff]
      %v285 = vld [vmem:[%s212 + $0x51] sm:$0xff]
      %v286 = vld [vmem:[%s212 + $0x61] sm:$0xff]
      %v287 = vld [vmem:[%s212 + $0x71] sm:$0xff]
      %v288 = vld [vmem:[%s212 + $0x81] sm:$0xff]
      %v289 = vld [vmem:[%s212 + $0x91] sm:$0xff]
      %v290 = vld [vmem:[%s212 + $0xa1] sm:$0xff]
      %v291 = vld [vmem:[%s212 + $0xb1] sm:$0xff]
      %v292 = vld [vmem:[%s212 + $0xc1] sm:$0xff]
      %v293 = vld [vmem:[%s212 + $0xd1] sm:$0xff]
      %v294 = vld [vmem:[%s212 + $0xe1] sm:$0xff]
      %v295 = vld [vmem:[%s212 + $0xf1] sm:$0xff]
      %vm296 = vcmask 261120
      %v298 = vsel %vm296, %v248, 0
      %v301 = vsel %vm296, %v249, 0
      %v304 = vsel %vm296, %v250, 0
      %v307 = vsel %vm296, %v251, 0
      %v310 = vsel %vm296, %v252, 0
      %v313 = vsel %vm296, %v253, 0
      %v316 = vsel %vm296, %v254, 0
      %v319 = vsel %vm296, %v255, 0
      %v322 = vsel %vm296, %v256, 0
      %v325 = vsel %vm296, %v257, 0
      %v328 = vsel %vm296, %v258, 0
      %v331 = vsel %vm296, %v259, 0
      %v334 = vsel %vm296, %v260, 0
      %v337 = vsel %vm296, %v261, 0
      %v340 = vsel %vm296, %v262, 0
      %v343 = vsel %vm296, %v263, 0
      %345 = vmatprep.subr.mxu0 0.0
      %346 = vmatpush1.msra.mxu0 %v223
      %347 = vmatprep.subr.mxu0 0.0
      %348 = vmatpush1.msra.mxu0 %v224
      %349 = vmatprep.subr.mxu0 0.0
      %350 = vmatpush1.msra.mxu0 %v225
      %351 = vmatprep.subr.mxu0 0.0
      %352 = vmatpush1.msra.mxu0 %v226
      %353 = vmatprep.subr.mxu0 0.0
      %354 = vmatpush1.msra.mxu0 0.0
      %355 = vmatprep.subr.mxu0 0.0
      %356 = vmatpush1.msra.mxu0 0.0
      %357 = vmatprep.subr.mxu0 0.0
      %358 = vmatpush1.msra.mxu0 0.0
      %359 = vmatprep.subr.mxu0 0.0
      %360 = vmatpush1.msra.mxu0 0.0
      %361 = vmatprep.subr.mxu0 0.0
      %362 = vmatpush1.msra.mxu0 0.0
      %363 = vmatprep.subr.mxu0 0.0
      %364 = vmatpush1.msra.mxu0 0.0
      %365 = vmatprep.subr.mxu0 0.0
      %366 = vmatpush1.msra.mxu0 0.0
      %367 = vmatprep.subr.mxu0 0.0
      %368 = vmatpush1.msra.mxu0 0.0
      %369 = vmatprep.subr.mxu0 0.0
      %370 = vmatpush1.msra.mxu0 0.0
      %371 = vmatprep.subr.mxu0 0.0
      %372 = vmatpush1.msra.mxu0 0.0
      %373 = vmatprep.subr.mxu0 0.0
      %374 = vmatpush1.msra.mxu0 0.0
      %375 = vmatprep.subr.mxu0 0.0
      %376 = vmatpush1.msra.mxu0 0.0
      %377 = vmatprep.subr.mxu0 0.0
      %378 = vmatpush1.msra.mxu0 0.0
      %379 = vmatprep.subr.mxu0 0.0
      %380 = vmatpush1.msra.mxu0 0.0
      %381 = vmatprep.subr.mxu0 0.0
      %382 = vmatpush1.msra.mxu0 0.0
      %383 = vmatprep.subr.mxu0 0.0
      %384 = vmatpush1.msra.mxu0 0.0
      %385 = vmatprep.subr.mxu0 0.0
      %386 = vmatpush1.msra.mxu0 0.0
      %387 = vmatprep.subr.mxu0 0.0
      %388 = vmatpush1.msra.mxu0 0.0
      %389 = vmatprep.subr.mxu0 0.0
      %390 = vmatpush1.msra.mxu0 0.0
      %391 = vmatprep.subr.mxu0 0.0
      %392 = vmatpush1.msra.mxu0 0.0
      %393 = vmatprep.subr.mxu0 0.0
      %394 = vmatpush1.msra.mxu0 0.0
      %395 = vmatprep.subr.mxu0 0.0
      %396 = vmatpush1.msra.mxu0 0.0
      %397 = vmatprep.subr.mxu0 0.0
      %398 = vmatpush1.msra.mxu0 0.0
      %399 = vmatprep.subr.mxu0 0.0
      %400 = vmatpush1.msra.mxu0 0.0
      %401 = vmatprep.subr.mxu0 0.0
      %402 = vmatpush1.msra.mxu0 0.0
      %403 = vmatprep.subr.mxu0 0.0
      %404 = vmatpush1.msra.mxu0 0.0
      %405 = vmatprep.subr.mxu0 0.0
      %406 = vmatpush1.msra.mxu0 0.0
      %407 = vmatprep.subr.mxu0 0.0
      %408 = vmatpush1.msra.mxu0 0.0
      %409 = vmatprep.mubr.f32.mxu0 0.0
      %410 = vmatmul.mubr.f32.gmra.mrb[0].mxu0 %v298
      %v411 = vpop.f32.mrb[0].mxu0
      %v412 = vadd.f32 0.0, %v411
      %v413 = vpop.f32.mrb[0].mxu0
      %414 = vmatprep.mubr.f32.mxu0 0.0
      %415 = vmatmul.mubr.f32.gmra.mrb[0].mxu0 %v301
      %v416 = vpop.f32.mrb[0].mxu0
      %v417 = vadd.f32 0.0, %v416
      %v418 = vpop.f32.mrb[0].mxu0
      %419 = vmatprep.mubr.f32.mxu0 0.0
      %420 = vmatmul.mubr.f32.gmra.mrb[0].mxu0 %v304
      %v421 = vpop.f32.mrb[0].mxu0
      %v422 = vadd.f32 0.0, %v421
      %v423 = vpop.f32.mrb[0].mxu0
      %424 = vmatprep.mubr.f32.mxu0 0.0
      %425 = vmatmul.mubr.f32.gmra.mrb[0].mxu0 %v307
      %v426 = vpop.f32.mrb[0].mxu0
      %v427 = vadd.f32 0.0, %v426
      %v428 = vpop.f32.mrb[0].mxu0
      %429 = vmatprep.mubr.f32.mxu0 0.0
      %430 = vmatmul.mubr.f32.gmra.mrb[0].mxu0 %v310
      %v431 = vpop.f32.mrb[0].mxu0
      %v432 = vadd.f32 0.0, %v431
      %v433 = vpop.f32.mrb[0].mxu0
      %434 = vmatprep.mubr.f32.mxu0 0.0
      %435 = vmatmul.mubr.f32.gmra.mrb[0].mxu0 %v313
      %v436 = vpop.f32.mrb[0].mxu0
      %v437 = vadd.f32 0.0, %v436
      %v438 = vpop.f32.mrb[0].mxu0
      %439 = vmatprep.mubr.f32.mxu0 0.0
      %440 = vmatmul.mubr.f32.gmra.mrb[0].mxu0 %v316
      %v441 = vpop.f32.mrb[0].mxu0
      %v442 = vadd.f32 0.0, %v441
      %v443 = vpop.f32.mrb[0].mxu0
      %444 = vmatprep.mubr.f32.mxu0 0.0
      %445 = vmatmul.mubr.f32.gmra.mrb[0].mxu0 %v319
      %v446 = vpop.f32.mrb[0].mxu0
      %v447 = vadd.f32 0.0, %v446
      %v448 = vpop.f32.mrb[0].mxu0
      %449 = vmatprep.mubr.f32.mxu0 0.0
      %450 = vmatmul.mubr.f32.gmra.mrb[0].mxu0 %v322
      %v451 = vpop.f32.mrb[0].mxu0
      %v452 = vadd.f32 0.0, %v451
      %v453 = vpop.f32.mrb[0].mxu0
      %454 = vmatprep.mubr.f32.mxu0 0.0
      %455 = vmatmul.mubr.f32.gmra.mrb[0].mxu0 %v325
      %v456 = vpop.f32.mrb[0].mxu0
      %v457 = vadd.f32 0.0, %v456
      %v458 = vpop.f32.mrb[0].mxu0
      %459 = vmatprep.mubr.f32.mxu0 0.0
      %460 = vmatmul.mubr.f32.gmra.mrb[0].mxu0 %v328
      %v461 = vpop.f32.mrb[0].mxu0
      %v462 = vadd.f32 0.0, %v461
      %v463 = vpop.f32.mrb[0].mxu0
      %464 = vmatprep.mubr.f32.mxu0 0.0
      %465 = vmatmul.mubr.f32.gmra.mrb[0].mxu0 %v331
      %v466 = vpop.f32.mrb[0].mxu0
      %v467 = vadd.f32 0.0, %v466
      %v468 = vpop.f32.mrb[0].mxu0
      %469 = vmatprep.mubr.f32.mxu0 0.0
      %470 = vmatmul.mubr.f32.gmra.mrb[0].mxu0 %v334
      %v471 = vpop.f32.mrb[0].mxu0
      %v472 = vadd.f32 0.0, %v471
      %v473 = vpop.f32.mrb[0].mxu0
      %474 = vmatprep.mubr.f32.mxu0 0.0
      %475 = vmatmul.mubr.f32.gmra.mrb[0].mxu0 %v337
      %v476 = vpop.f32.mrb[0].mxu0
      %v477 = vadd.f32 0.0, %v476
      %v478 = vpop.f32.mrb[0].mxu0
      %479 = vmatprep.mubr.f32.mxu0 0.0
      %480 = vmatmul.mubr.f32.gmra.mrb[0].mxu0 %v340
      %v481 = vpop.f32.mrb[0].mxu0
      %v482 = vadd.f32 0.0, %v481
      %v483 = vpop.f32.mrb[0].mxu0
      %484 = vmatprep.mubr.f32.mxu0 0.0
      %485 = vmatmul.mubr.f32.gmra.mrb[0].mxu0 %v343
      %v486 = vpop.f32.mrb[0].mxu0
      %v487 = vadd.f32 0.0, %v486
      %v488 = vpop.f32.mrb[0].mxu0
      %489 = vdwg.mxu0
      %v491 = vsel %vm296, %v232, 0
      %v494 = vsel %vm296, %v233, 0
      %v497 = vsel %vm296, %v234, 0
      %v500 = vsel %vm296, %v235, 0
      %v503 = vsel %vm296, %v236, 0
      %v506 = vsel %vm296, %v237, 0
      %v509 = vsel %vm296, %v238, 0
      %v512 = vsel %vm296, %v239, 0
      %v515 = vsel %vm296, %v240, 0
      %v518 = vsel %vm296, %v241, 0
      %v521 = vsel %vm296, %v242, 0
      %v524 = vsel %vm296, %v243, 0
      %v527 = vsel %vm296, %v244, 0
      %v530 = vsel %vm296, %v245, 0
      %v533 = vsel %vm296, %v246, 0
      %v536 = vsel %vm296, %v247, 0
      %538 = vmatprep.subr.mxu0 0.0
      %539 = vmatpush1.msra.mxu0 %v218
      %540 = vmatprep.subr.mxu0 0.0
      %541 = vmatpush1.msra.mxu0 %v219
      %542 = vmatprep.subr.mxu0 0.0
      %543 = vmatpush1.msra.mxu0 %v220
      %544 = vmatprep.subr.mxu0 0.0
      %545 = vmatpush1.msra.mxu0 %v221
      %546 = vmatprep.subr.mxu0 0.0
      %547 = vmatpush1.msra.mxu0 0.0
      %548 = vmatprep.subr.mxu0 0.0
      %549 = vmatpush1.msra.mxu0 0.0
      %550 = vmatprep.subr.mxu0 0.0
      %551 = vmatpush1.msra.mxu0 0.0
      %552 = vmatprep.subr.mxu0 0.0
      %553 = vmatpush1.msra.mxu0 0.0
      %554 = vmatprep.subr.mxu0 0.0
      %555 = vmatpush1.msra.mxu0 0.0
      %556 = vmatprep.subr.mxu0 0.0
      %557 = vmatpush1.msra.mxu0 0.0
      %558 = vmatprep.subr.mxu0 0.0
      %559 = vmatpush1.msra.mxu0 0.0
      %560 = vmatprep.subr.mxu0 0.0
      %561 = vmatpush1.msra.mxu0 0.0
      %562 = vmatprep.subr.mxu0 0.0
      %563 = vmatpush1.msra.mxu0 0.0
      %564 = vmatprep.subr.mxu0 0.0
      %565 = vmatpush1.msra.mxu0 0.0
      %566 = vmatprep.subr.mxu0 0.0
      %567 = vmatpush1.msra.mxu0 0.0
      %568 = vmatprep.subr.mxu0 0.0
      %569 = vmatpush1.msra.mxu0 0.0
      %570 = vmatprep.subr.mxu0 0.0
      %571 = vmatpush1.msra.mxu0 0.0
      %572 = vmatprep.subr.mxu0 0.0
      %573 = vmatpush1.msra.mxu0 0.0
      %574 = vmatprep.subr.mxu0 0.0
      %575 = vmatpush1.msra.mxu0 0.0
      %576 = vmatprep.subr.mxu0 0.0
      %577 = vmatpush1.msra.mxu0 0.0
      %578 = vmatprep.subr.mxu0 0.0
      %579 = vmatpush1.msra.mxu0 0.0
      %580 = vmatprep.subr.mxu0 0.0
      %581 = vmatpush1.msra.mxu0 0.0
      %582 = vmatprep.subr.mxu0 0.0
      %583 = vmatpush1.msra.mxu0 0.0
      %584 = vmatprep.subr.mxu0 0.0
      %585 = vmatpush1.msra.mxu0 0.0
      %586 = vmatprep.subr.mxu0 0.0
      %587 = vmatpush1.msra.mxu0 0.0
      %588 = vmatprep.subr.mxu0 0.0
      %589 = vmatpush1.msra.mxu0 0.0
      %590 = vmatprep.subr.mxu0 0.0
      %591 = vmatpush1.msra.mxu0 0.0
      %592 = vmatprep.subr.mxu0 0.0
      %593 = vmatpush1.msra.mxu0 0.0
      %594 = vmatprep.subr.mxu0 0.0
      %595 = vmatpush1.msra.mxu0 0.0
      %596 = vmatprep.subr.mxu0 0.0
      %597 = vmatpush1.msra.mxu0 0.0
      %598 = vmatprep.subr.mxu0 0.0
      %599 = vmatpush1.msra.mxu0 0.0
      %600 = vmatprep.subr.mxu0 0.0
      %601 = vmatpush1.msra.mxu0 0.0
      %602 = vmatprep.mubr.f32.mxu0 0.0
      %603 = vmatmul.mubr.f32.gmra.mrb[0].mxu0 %v491
      %v604 = vpop.f32.mrb[0].mxu0
      %v605 = vadd.f32 %v412, %v604
      %v606 = vpop.f32.mrb[0].mxu0
      %607 = vmatprep.mubr.f32.mxu0 0.0
      %608 = vmatmul.mubr.f32.gmra.mrb[0].mxu0 %v494
      %v609 = vpop.f32.mrb[0].mxu0
      %v610 = vadd.f32 %v417, %v609
      %v611 = vpop.f32.mrb[0].mxu0
      %612 = vmatprep.mubr.f32.mxu0 0.0
      %613 = vmatmul.mubr.f32.gmra.mrb[0].mxu0 %v497
      %v614 = vpop.f32.mrb[0].mxu0
      %v615 = vadd.f32 %v422, %v614
      %v616 = vpop.f32.mrb[0].mxu0
      %617 = vmatprep.mubr.f32.mxu0 0.0
      %618 = vmatmul.mubr.f32.gmra.mrb[0].mxu0 %v500
      %v619 = vpop.f32.mrb[0].mxu0
      %v620 = vadd.f32 %v427, %v619
      %v621 = vpop.f32.mrb[0].mxu0
      %622 = vmatprep.mubr.f32.mxu0 0.0
      %623 = vmatmul.mubr.f32.gmra.mrb[0].mxu0 %v503
      %v624 = vpop.f32.mrb[0].mxu0
      %v625 = vadd.f32 %v432, %v624
      %v626 = vpop.f32.mrb[0].mxu0
      %627 = vmatprep.mubr.f32.mxu0 0.0
      %628 = vmatmul.mubr.f32.gmra.mrb[0].mxu0 %v506
      %v629 = vpop.f32.mrb[0].mxu0
      %v630 = vadd.f32 %v437, %v629
      %v631 = vpop.f32.mrb[0].mxu0
      %632 = vmatprep.mubr.f32.mxu0 0.0
      %633 = vmatmul.mubr.f32.gmra.mrb[0].mxu0 %v509
      %v634 = vpop.f32.mrb[0].mxu0
      %v635 = vadd.f32 %v442, %v634
      %v636 = vpop.f32.mrb[0].mxu0
      %637 = vmatprep.mubr.f32.mxu0 0.0
      %638 = vmatmul.mubr.f32.gmra.mrb[0].mxu0 %v512
      %v639 = vpop.f32.mrb[0].mxu0
      %v640 = vadd.f32 %v447, %v639
      %v641 = vpop.f32.mrb[0].mxu0
      %642 = vmatprep.mubr.f32.mxu0 0.0
      %643 = vmatmul.mubr.f32.gmra.mrb[0].mxu0 %v515
      %v644 = vpop.f32.mrb[0].mxu0
      %v645 = vadd.f32 %v452, %v644
      %v646 = vpop.f32.mrb[0].mxu0
      %647 = vmatprep.mubr.f32.mxu0 0.0
      %648 = vmatmul.mubr.f32.gmra.mrb[0].mxu0 %v518
      %v649 = vpop.f32.mrb[0].mxu0
      %v650 = vadd.f32 %v457, %v649
      %v651 = vpop.f32.mrb[0].mxu0
      %652 = vmatprep.mubr.f32.mxu0 0.0
      %653 = vmatmul.mubr.f32.gmra.mrb[0].mxu0 %v521
      %v654 = vpop.f32.mrb[0].mxu0
      %v655 = vadd.f32 %v462, %v654
      %v656 = vpop.f32.mrb[0].mxu0
      %657 = vmatprep.mubr.f32.mxu0 0.0
      %658 = vmatmul.mubr.f32.gmra.mrb[0].mxu0 %v524
      %v659 = vpop.f32.mrb[0].mxu0
      %v660 = vadd.f32 %v467, %v659
      %v661 = vpop.f32.mrb[0].mxu0
      %662 = vmatprep.mubr.f32.mxu0 0.0
      %663 = vmatmul.mubr.f32.gmra.mrb[0].mxu0 %v527
      %v664 = vpop.f32.mrb[0].mxu0
      %v665 = vadd.f32 %v472, %v664
      %v666 = vpop.f32.mrb[0].mxu0
      %667 = vmatprep.mubr.f32.mxu0 0.0
      %668 = vmatmul.mubr.f32.gmra.mrb[0].mxu0 %v530
      %v669 = vpop.f32.mrb[0].mxu0
      %v670 = vadd.f32 %v477, %v669
      %v671 = vpop.f32.mrb[0].mxu0
      %672 = vmatprep.mubr.f32.mxu0 0.0
      %673 = vmatmul.mubr.f32.gmra.mrb[0].mxu0 %v533
      %v674 = vpop.f32.mrb[0].mxu0
      %v675 = vadd.f32 %v482, %v674
      %v676 = vpop.f32.mrb[0].mxu0
      %677 = vmatprep.mubr.f32.mxu0 0.0
      %678 = vmatmul.mubr.f32.gmra.mrb[0].mxu0 %v536
      %v679 = vpop.f32.mrb[0].mxu0
      %v680 = vadd.f32 %v487, %v679
      %v681 = vpop.f32.mrb[0].mxu0
      %682 = vdwg.mxu0
      %v684 = vsel %vm296, %v264, 0
      %v687 = vsel %vm296, %v265, 0
      %v690 = vsel %vm296, %v266, 0
      %v693 = vsel %vm296, %v267, 0
      %v696 = vsel %vm296, %v268, 0
      %v699 = vsel %vm296, %v269, 0
      %v702 = vsel %vm296, %v270, 0
      %v705 = vsel %vm296, %v271, 0
      %v708 = vsel %vm296, %v272, 0
      %v711 = vsel %vm296, %v273, 0
      %v714 = vsel %vm296, %v274, 0
      %v717 = vsel %vm296, %v275, 0
      %v720 = vsel %vm296, %v276, 0
      %v723 = vsel %vm296, %v277, 0
      %v726 = vsel %vm296, %v278, 0
      %v729 = vsel %vm296, %v279, 0
      %731 = vmatprep.subr.mxu0 0.0
      %732 = vmatpush1.msra.mxu0 %v228
      %733 = vmatprep.subr.mxu0 0.0
      %734 = vmatpush1.msra.mxu0 %v229
      %735 = vmatprep.subr.mxu0 0.0
      %736 = vmatpush1.msra.mxu0 %v230
      %737 = vmatprep.subr.mxu0 0.0
      %738 = vmatpush1.msra.mxu0 %v231
      %739 = vmatprep.subr.mxu0 0.0
      %740 = vmatpush1.msra.mxu0 0.0
      %741 = vmatprep.subr.mxu0 0.0
      %742 = vmatpush1.msra.mxu0 0.0
      %743 = vmatprep.subr.mxu0 0.0
      %744 = vmatpush1.msra.mxu0 0.0
      %745 = vmatprep.subr.mxu0 0.0
      %746 = vmatpush1.msra.mxu0 0.0
      %747 = vmatprep.subr.mxu0 0.0
      %748 = vmatpush1.msra.mxu0 0.0
      %749 = vmatprep.subr.mxu0 0.0
      %750 = vmatpush1.msra.mxu0 0.0
      %751 = vmatprep.subr.mxu0 0.0
      %752 = vmatpush1.msra.mxu0 0.0
      %753 = vmatprep.subr.mxu0 0.0
      %754 = vmatpush1.msra.mxu0 0.0
      %755 = vmatprep.subr.mxu0 0.0
      %756 = vmatpush1.msra.mxu0 0.0
      %757 = vmatprep.subr.mxu0 0.0
      %758 = vmatpush1.msra.mxu0 0.0
      %759 = vmatprep.subr.mxu0 0.0
      %760 = vmatpush1.msra.mxu0 0.0
      %761 = vmatprep.subr.mxu0 0.0
      %762 = vmatpush1.msra.mxu0 0.0
      %763 = vmatprep.subr.mxu0 0.0
      %764 = vmatpush1.msra.mxu0 0.0
      %765 = vmatprep.subr.mxu0 0.0
      %766 = vmatpush1.msra.mxu0 0.0
      %767 = vmatprep.subr.mxu0 0.0
      %768 = vmatpush1.msra.mxu0 0.0
      %769 = vmatprep.subr.mxu0 0.0
      %770 = vmatpush1.msra.mxu0 0.0
      %771 = vmatprep.subr.mxu0 0.0
      %772 = vmatpush1.msra.mxu0 0.0
      %773 = vmatprep.subr.mxu0 0.0
      %774 = vmatpush1.msra.mxu0 0.0
      %775 = vmatprep.subr.mxu0 0.0
      %776 = vmatpush1.msra.mxu0 0.0
      %777 = vmatprep.subr.mxu0 0.0
      %778 = vmatpush1.msra.mxu0 0.0
      %779 = vmatprep.subr.mxu0 0.0
      %780 = vmatpush1.msra.mxu0 0.0
      %781 = vmatprep.subr.mxu0 0.0
      %782 = vmatpush1.msra.mxu0 0.0
      %783 = vmatprep.subr.mxu0 0.0
      %784 = vmatpush1.msra.mxu0 0.0
      %785 = vmatprep.subr.mxu0 0.0
      %786 = vmatpush1.msra.mxu0 0.0
      %787 = vmatprep.subr.mxu0 0.0
      %788 = vmatpush1.msra.mxu0 0.0
      %789 = vmatprep.subr.mxu0 0.0
      %790 = vmatpush1.msra.mxu0 0.0
      %791 = vmatprep.subr.mxu0 0.0
      %792 = vmatpush1.msra.mxu0 0.0
      %793 = vmatprep.subr.mxu0 0.0
      %794 = vmatpush1.msra.mxu0 0.0
      %795 = vmatprep.mubr.f32.mxu0 0.0
      %796 = vmatmul.mubr.f32.gmra.mrb[0].mxu0 %v684
      %v797 = vpop.f32.mrb[0].mxu0
      %v798 = vadd.f32 0.0, %v797
      %v799 = vpop.f32.mrb[0].mxu0
      %800 = vmatprep.mubr.f32.mxu0 0.0
      %801 = vmatmul.mubr.f32.gmra.mrb[0].mxu0 %v687
      %v802 = vpop.f32.mrb[0].mxu0
      %v803 = vadd.f32 0.0, %v802
      %v804 = vpop.f32.mrb[0].mxu0
      %805 = vmatprep.mubr.f32.mxu0 0.0
      %806 = vmatmul.mubr.f32.gmra.mrb[0].mxu0 %v690
      %v807 = vpop.f32.mrb[0].mxu0
      %v808 = vadd.f32 0.0, %v807
      %v809 = vpop.f32.mrb[0].mxu0
      %810 = vmatprep.mubr.f32.mxu0 0.0
      %811 = vmatmul.mubr.f32.gmra.mrb[0].mxu0 %v693
      %v812 = vpop.f32.mrb[0].mxu0
      %v813 = vadd.f32 0.0, %v812
      %v814 = vpop.f32.mrb[0].mxu0
      %815 = vmatprep.mubr.f32.mxu0 0.0
      %816 = vmatmul.mubr.f32.gmra.mrb[0].mxu0 %v696
      %v817 = vpop.f32.mrb[0].mxu0
      %v818 = vadd.f32 0.0, %v817
      %v819 = vpop.f32.mrb[0].mxu0
      %820 = vmatprep.mubr.f32.mxu0 0.0
      %821 = vmatmul.mubr.f32.gmra.mrb[0].mxu0 %v699
      %v822 = vpop.f32.mrb[0].mxu0
      %v823 = vadd.f32 0.0, %v822
      %v824 = vpop.f32.mrb[0].mxu0
      %825 = vmatprep.mubr.f32.mxu0 0.0
      %826 = vmatmul.mubr.f32.gmra.mrb[0].mxu0 %v702
      %v827 = vpop.f32.mrb[0].mxu0
      %v828 = vadd.f32 0.0, %v827
      %v829 = vpop.f32.mrb[0].mxu0
      %830 = vmatprep.mubr.f32.mxu0 0.0
      %831 = vmatmul.mubr.f32.gmra.mrb[0].mxu0 %v705
      %v832 = vpop.f32.mrb[0].mxu0
      %v833 = vadd.f32 0.0, %v832
      %v834 = vpop.f32.mrb[0].mxu0
      %835 = vmatprep.mubr.f32.mxu0 0.0
      %836 = vmatmul.mubr.f32.gmra.mrb[0].mxu0 %v708
      %v837 = vpop.f32.mrb[0].mxu0
      %v838 = vadd.f32 0.0, %v837
      %v839 = vpop.f32.mrb[0].mxu0
      %840 = vmatprep.mubr.f32.mxu0 0.0
      %841 = vmatmul.mubr.f32.gmra.mrb[0].mxu0 %v711
      %v842 = vpop.f32.mrb[0].mxu0
      %v843 = vadd.f32 0.0, %v842
      %v844 = vpop.f32.mrb[0].mxu0
      %845 = vmatprep.mubr.f32.mxu0 0.0
      %846 = vmatmul.mubr.f32.gmra.mrb[0].mxu0 %v714
      %v847 = vpop.f32.mrb[0].mxu0
      %v848 = vadd.f32 0.0, %v847
      %v849 = vpop.f32.mrb[0].mxu0
      %850 = vmatprep.mubr.f32.mxu0 0.0
      %851 = vmatmul.mubr.f32.gmra.mrb[0].mxu0 %v717
      %v852 = vpop.f32.mrb[0].mxu0
      %v853 = vadd.f32 0.0, %v852
      %v854 = vpop.f32.mrb[0].mxu0
      %855 = vmatprep.mubr.f32.mxu0 0.0
      %856 = vmatmul.mubr.f32.gmra.mrb[0].mxu0 %v720
      %v857 = vpop.f32.mrb[0].mxu0
      %v858 = vadd.f32 0.0, %v857
      %v859 = vpop.f32.mrb[0].mxu0
      %860 = vmatprep.mubr.f32.mxu0 0.0
      %861 = vmatmul.mubr.f32.gmra.mrb[0].mxu0 %v723
      %v862 = vpop.f32.mrb[0].mxu0
      %v863 = vadd.f32 0.0, %v862
      %v864 = vpop.f32.mrb[0].mxu0
      %865 = vmatprep.mubr.f32.mxu0 0.0
      %866 = vmatmul.mubr.f32.gmra.mrb[0].mxu0 %v726
      %v867 = vpop.f32.mrb[0].mxu0
      %v868 = vadd.f32 0.0, %v867
      %v869 = vpop.f32.mrb[0].mxu0
      %870 = vmatprep.mubr.f32.mxu0 0.0
      %871 = vmatmul.mubr.f32.gmra.mrb[0].mxu0 %v729
      %v872 = vpop.f32.mrb[0].mxu0
      %v873 = vadd.f32 0.0, %v872
      %v874 = vpop.f32.mrb[0].mxu0
      %875 = vdwg.mxu0
      %v876 = vadd.f32 %v605, %v798
      %v877 = vadd.f32 %v610, %v803
      %v878 = vadd.f32 %v615, %v808
      %v879 = vadd.f32 %v620, %v813
      %v880 = vadd.f32 %v625, %v818
      %v881 = vadd.f32 %v630, %v823
      %v882 = vadd.f32 %v635, %v828
      %v883 = vadd.f32 %v640, %v833
      %v884 = vadd.f32 %v645, %v838
      %v885 = vadd.f32 %v650, %v843
      %v886 = vadd.f32 %v655, %v848
      %v887 = vadd.f32 %v660, %v853
      %v888 = vadd.f32 %v665, %v858
      %v889 = vadd.f32 %v670, %v863
      %v890 = vadd.f32 %v675, %v868
      %v891 = vadd.f32 %v680, %v873
      %892 = vmatprep.subr.mxu0 0.0
      %893 = vmatpush1.msra.mxu0 %v223
      %894 = vmatprep.subr.mxu0 0.0
      %895 = vmatpush1.msra.mxu0 %v224
      %896 = vmatprep.subr.mxu0 0.0
      %897 = vmatpush1.msra.mxu0 %v225
      %898 = vmatprep.subr.mxu0 0.0
      %899 = vmatpush1.msra.mxu0 %v226
      %900 = vmatprep.subr.mxu0 0.0
      %901 = vmatpush1.msra.mxu0 0.0
      %902 = vmatprep.subr.mxu0 0.0
      %903 = vmatpush1.msra.mxu0 0.0
      %904 = vmatprep.subr.mxu0 0.0
      %905 = vmatpush1.msra.mxu0 0.0
      %906 = vmatprep.subr.mxu0 0.0
      %907 = vmatpush1.msra.mxu0 0.0
      %908 = vmatprep.subr.mxu0 0.0
      %909 = vmatpush1.msra.mxu0 0.0
      %910 = vmatprep.subr.mxu0 0.0
      %911 = vmatpush1.msra.mxu0 0.0
      %912 = vmatprep.subr.mxu0 0.0
      %913 = vmatpush1.msra.mxu0 0.0
      %914 = vmatprep.subr.mxu0 0.0
      %915 = vmatpush1.msra.mxu0 0.0
      %916 = vmatprep.subr.mxu0 0.0
      %917 = vmatpush1.msra.mxu0 0.0
      %918 = vmatprep.subr.mxu0 0.0
      %919 = vmatpush1.msra.mxu0 0.0
      %920 = vmatprep.subr.mxu0 0.0
      %921 = vmatpush1.msra.mxu0 0.0
      %922 = vmatprep.subr.mxu0 0.0
      %923 = vmatpush1.msra.mxu0 0.0
      %924 = vmatprep.subr.mxu0 0.0
      %925 = vmatpush1.msra.mxu0 0.0
      %926 = vmatprep.subr.mxu0 0.0
      %927 = vmatpush1.msra.mxu0 0.0
      %928 = vmatprep.subr.mxu0 0.0
      %929 = vmatpush1.msra.mxu0 0.0
      %930 = vmatprep.subr.mxu0 0.0
      %931 = vmatpush1.msra.mxu0 0.0
      %932 = vmatprep.subr.mxu0 0.0
      %933 = vmatpush1.msra.mxu0 0.0
      %934 = vmatprep.subr.mxu0 0.0
      %935 = vmatpush1.msra.mxu0 0.0
      %936 = vmatprep.subr.mxu0 0.0
      %937 = vmatpush1.msra.mxu0 0.0
      %938 = vmatprep.subr.mxu0 0.0
      %939 = vmatpush1.msra.mxu0 0.0
      %940 = vmatprep.subr.mxu0 0.0
      %941 = vmatpush1.msra.mxu0 0.0
      %942 = vmatprep.subr.mxu0 0.0
      %943 = vmatpush1.msra.mxu0 0.0
      %944 = vmatprep.subr.mxu0 0.0
      %945 = vmatpush1.msra.mxu0 0.0
      %946 = vmatprep.subr.mxu0 0.0
      %947 = vmatpush1.msra.mxu0 0.0
      %948 = vmatprep.subr.mxu0 0.0
      %949 = vmatpush1.msra.mxu0 0.0
      %950 = vmatprep.subr.mxu0 0.0
      %951 = vmatpush1.msra.mxu0 0.0
      %952 = vmatprep.subr.mxu0 0.0
      %953 = vmatpush1.msra.mxu0 0.0
      %954 = vmatprep.subr.mxu0 0.0
      %955 = vmatpush1.msra.mxu0 0.0
      %956 = vmatprep.mubr.f32.mxu0 0.0
      %957 = vmatmul.mubr.f32.gmra.mrb[0].mxu0 %v684
      %v958 = vpop.f32.mrb[0].mxu0
      %v959 = vadd.f32 0.0, %v958
      %v960 = vpop.f32.mrb[0].mxu0
      %961 = vmatprep.mubr.f32.mxu0 0.0
      %962 = vmatmul.mubr.f32.gmra.mrb[0].mxu0 %v687
      %v963 = vpop.f32.mrb[0].mxu0
      %v964 = vadd.f32 0.0, %v963
      %v965 = vpop.f32.mrb[0].mxu0
      %966 = vmatprep.mubr.f32.mxu0 0.0
      %967 = vmatmul.mubr.f32.gmra.mrb[0].mxu0 %v690
      %v968 = vpop.f32.mrb[0].mxu0
      %v969 = vadd.f32 0.0, %v968
      %v970 = vpop.f32.mrb[0].mxu0
      %971 = vmatprep.mubr.f32.mxu0 0.0
      %972 = vmatmul.mubr.f32.gmra.mrb[0].mxu0 %v693
      %v973 = vpop.f32.mrb[0].mxu0
      %v974 = vadd.f32 0.0, %v973
      %v975 = vpop.f32.mrb[0].mxu0
      %976 = vmatprep.mubr.f32.mxu0 0.0
      %977 = vmatmul.mubr.f32.gmra.mrb[0].mxu0 %v696
      %v978 = vpop.f32.mrb[0].mxu0
      %v979 = vadd.f32 0.0, %v978
      %v980 = vpop.f32.mrb[0].mxu0
      %981 = vmatprep.mubr.f32.mxu0 0.0
      %982 = vmatmul.mubr.f32.gmra.mrb[0].mxu0 %v699
      %v983 = vpop.f32.mrb[0].mxu0
      %v984 = vadd.f32 0.0, %v983
      %v985 = vpop.f32.mrb[0].mxu0
      %986 = vmatprep.mubr.f32.mxu0 0.0
      %987 = vmatmul.mubr.f32.gmra.mrb[0].mxu0 %v702
      %v988 = vpop.f32.mrb[0].mxu0
      %v989 = vadd.f32 0.0, %v988
      %v990 = vpop.f32.mrb[0].mxu0
      %991 = vmatprep.mubr.f32.mxu0 0.0
      %992 = vmatmul.mubr.f32.gmra.mrb[0].mxu0 %v705
      %v993 = vpop.f32.mrb[0].mxu0
      %v994 = vadd.f32 0.0, %v993
      %v995 = vpop.f32.mrb[0].mxu0
      %996 = vmatprep.mubr.f32.mxu0 0.0
      %997 = vmatmul.mubr.f32.gmra.mrb[0].mxu0 %v708
      %v998 = vpop.f32.mrb[0].mxu0
      %v999 = vadd.f32 0.0, %v998
      %v1000 = vpop.f32.mrb[0].mxu0
      %1001 = vmatprep.mubr.f32.mxu0 0.0
      %1002 = vmatmul.mubr.f32.gmra.mrb[0].mxu0 %v711
      %v1003 = vpop.f32.mrb[0].mxu0
      %v1004 = vadd.f32 0.0, %v1003
      %v1005 = vpop.f32.mrb[0].mxu0
      %1006 = vmatprep.mubr.f32.mxu0 0.0
      %1007 = vmatmul.mubr.f32.gmra.mrb[0].mxu0 %v714
      %v1008 = vpop.f32.mrb[0].mxu0
      %v1009 = vadd.f32 0.0, %v1008
      %v1010 = vpop.f32.mrb[0].mxu0
      %1011 = vmatprep.mubr.f32.mxu0 0.0
      %1012 = vmatmul.mubr.f32.gmra.mrb[0].mxu0 %v717
      %v1013 = vpop.f32.mrb[0].mxu0
      %v1014 = vadd.f32 0.0, %v1013
      %v1015 = vpop.f32.mrb[0].mxu0
      %1016 = vmatprep.mubr.f32.mxu0 0.0
      %1017 = vmatmul.mubr.f32.gmra.mrb[0].mxu0 %v720
      %v1018 = vpop.f32.mrb[0].mxu0
      %v1019 = vadd.f32 0.0, %v1018
      %v1020 = vpop.f32.mrb[0].mxu0
      %1021 = vmatprep.mubr.f32.mxu0 0.0
      %1022 = vmatmul.mubr.f32.gmra.mrb[0].mxu0 %v723
      %v1023 = vpop.f32.mrb[0].mxu0
      %v1024 = vadd.f32 0.0, %v1023
      %v1025 = vpop.f32.mrb[0].mxu0
      %1026 = vmatprep.mubr.f32.mxu0 0.0
      %1027 = vmatmul.mubr.f32.gmra.mrb[0].mxu0 %v726
      %v1028 = vpop.f32.mrb[0].mxu0
      %v1029 = vadd.f32 0.0, %v1028
      %v1030 = vpop.f32.mrb[0].mxu0
      %1031 = vmatprep.mubr.f32.mxu0 0.0
      %1032 = vmatmul.mubr.f32.gmra.mrb[0].mxu0 %v729
      %v1033 = vpop.f32.mrb[0].mxu0
      %v1034 = vadd.f32 0.0, %v1033
      %v1035 = vpop.f32.mrb[0].mxu0
      %1036 = vdwg.mxu0
      %1037 = vmatprep.subr.mxu0 0.0
      %1038 = vmatpush1.msra.mxu0 %v218
      %1039 = vmatprep.subr.mxu0 0.0
      %1040 = vmatpush1.msra.mxu0 %v219
      %1041 = vmatprep.subr.mxu0 0.0
      %1042 = vmatpush1.msra.mxu0 %v220
      %1043 = vmatprep.subr.mxu0 0.0
      %1044 = vmatpush1.msra.mxu0 %v221
      %1045 = vmatprep.subr.mxu0 0.0
      %1046 = vmatpush1.msra.mxu0 0.0
      %1047 = vmatprep.subr.mxu0 0.0
      %1048 = vmatpush1.msra.mxu0 0.0
      %1049 = vmatprep.subr.mxu0 0.0
      %1050 = vmatpush1.msra.mxu0 0.0
      %1051 = vmatprep.subr.mxu0 0.0
      %1052 = vmatpush1.msra.mxu0 0.0
      %1053 = vmatprep.subr.mxu0 0.0
      %1054 = vmatpush1.msra.mxu0 0.0
      %1055 = vmatprep.subr.mxu0 0.0
      %1056 = vmatpush1.msra.mxu0 0.0
      %1057 = vmatprep.subr.mxu0 0.0
      %1058 = vmatpush1.msra.mxu0 0.0
      %1059 = vmatprep.subr.mxu0 0.0
      %1060 = vmatpush1.msra.mxu0 0.0
      %1061 = vmatprep.subr.mxu0 0.0
      %1062 = vmatpush1.msra.mxu0 0.0
      %1063 = vmatprep.subr.mxu0 0.0
      %1064 = vmatpush1.msra.mxu0 0.0
      %1065 = vmatprep.subr.mxu0 0.0
      %1066 = vmatpush1.msra.mxu0 0.0
      %1067 = vmatprep.subr.mxu0 0.0
      %1068 = vmatpush1.msra.mxu0 0.0
      %1069 = vmatprep.subr.mxu0 0.0
      %1070 = vmatpush1.msra.mxu0 0.0
      %1071 = vmatprep.subr.mxu0 0.0
      %1072 = vmatpush1.msra.mxu0 0.0
      %1073 = vmatprep.subr.mxu0 0.0
      %1074 = vmatpush1.msra.mxu0 0.0
      %1075 = vmatprep.subr.mxu0 0.0
      %1076 = vmatpush1.msra.mxu0 0.0
      %1077 = vmatprep.subr.mxu0 0.0
      %1078 = vmatpush1.msra.mxu0 0.0
      %1079 = vmatprep.subr.mxu0 0.0
      %1080 = vmatpush1.msra.mxu0 0.0
      %1081 = vmatprep.subr.mxu0 0.0
      %1082 = vmatpush1.msra.mxu0 0.0
      %1083 = vmatprep.subr.mxu0 0.0
      %1084 = vmatpush1.msra.mxu0 0.0
      %1085 = vmatprep.subr.mxu0 0.0
      %1086 = vmatpush1.msra.mxu0 0.0
      %1087 = vmatprep.subr.mxu0 0.0
      %1088 = vmatpush1.msra.mxu0 0.0
      %1089 = vmatprep.subr.mxu0 0.0
      %1090 = vmatpush1.msra.mxu0 0.0
      %1091 = vmatprep.subr.mxu0 0.0
      %1092 = vmatpush1.msra.mxu0 0.0
      %1093 = vmatprep.subr.mxu0 0.0
      %1094 = vmatpush1.msra.mxu0 0.0
      %1095 = vmatprep.subr.mxu0 0.0
      %1096 = vmatpush1.msra.mxu0 0.0
      %1097 = vmatprep.subr.mxu0 0.0
      %1098 = vmatpush1.msra.mxu0 0.0
      %1099 = vmatprep.subr.mxu0 0.0
      %1100 = vmatpush1.msra.mxu0 0.0
      %1101 = vmatprep.mubr.f32.mxu0 0.0
      %1102 = vmatmul.mubr.f32.gmra.mrb[0].mxu0 %v298
      %v1103 = vpop.f32.mrb[0].mxu0
      %v1104 = vadd.f32 %v959, %v1103
      %v1105 = vpop.f32.mrb[0].mxu0
      %1106 = vmatprep.mubr.f32.mxu0 0.0
      %1107 = vmatmul.mubr.f32.gmra.mrb[0].mxu0 %v301
      %v1108 = vpop.f32.mrb[0].mxu0
      %v1109 = vadd.f32 %v964, %v1108
      %v1110 = vpop.f32.mrb[0].mxu0
      %1111 = vmatprep.mubr.f32.mxu0 0.0
      %1112 = vmatmul.mubr.f32.gmra.mrb[0].mxu0 %v304
      %v1113 = vpop.f32.mrb[0].mxu0
      %v1114 = vadd.f32 %v969, %v1113
      %v1115 = vpop.f32.mrb[0].mxu0
      %1116 = vmatprep.mubr.f32.mxu0 0.0
      %1117 = vmatmul.mubr.f32.gmra.mrb[0].mxu0 %v307
      %v1118 = vpop.f32.mrb[0].mxu0
      %v1119 = vadd.f32 %v974, %v1118
      %v1120 = vpop.f32.mrb[0].mxu0
      %1121 = vmatprep.mubr.f32.mxu0 0.0
      %1122 = vmatmul.mubr.f32.gmra.mrb[0].mxu0 %v310
      %v1123 = vpop.f32.mrb[0].mxu0
      %v1124 = vadd.f32 %v979, %v1123
      %v1125 = vpop.f32.mrb[0].mxu0
      %1126 = vmatprep.mubr.f32.mxu0 0.0
      %1127 = vmatmul.mubr.f32.gmra.mrb[0].mxu0 %v313
      %v1128 = vpop.f32.mrb[0].mxu0
      %v1129 = vadd.f32 %v984, %v1128
      %v1130 = vpop.f32.mrb[0].mxu0
      %1131 = vmatprep.mubr.f32.mxu0 0.0
      %1132 = vmatmul.mubr.f32.gmra.mrb[0].mxu0 %v316
      %v1133 = vpop.f32.mrb[0].mxu0
      %v1134 = vadd.f32 %v989, %v1133
      %v1135 = vpop.f32.mrb[0].mxu0
      %1136 = vmatprep.mubr.f32.mxu0 0.0
      %1137 = vmatmul.mubr.f32.gmra.mrb[0].mxu0 %v319
      %v1138 = vpop.f32.mrb[0].mxu0
      %v1139 = vadd.f32 %v994, %v1138
      %v1140 = vpop.f32.mrb[0].mxu0
      %1141 = vmatprep.mubr.f32.mxu0 0.0
      %1142 = vmatmul.mubr.f32.gmra.mrb[0].mxu0 %v322
      %v1143 = vpop.f32.mrb[0].mxu0
      %v1144 = vadd.f32 %v999, %v1143
      %v1145 = vpop.f32.mrb[0].mxu0
      %1146 = vmatprep.mubr.f32.mxu0 0.0
      %1147 = vmatmul.mubr.f32.gmra.mrb[0].mxu0 %v325
      %v1148 = vpop.f32.mrb[0].mxu0
      %v1149 = vadd.f32 %v1004, %v1148
      %v1150 = vpop.f32.mrb[0].mxu0
      %1151 = vmatprep.mubr.f32.mxu0 0.0
      %1152 = vmatmul.mubr.f32.gmra.mrb[0].mxu0 %v328
      %v1153 = vpop.f32.mrb[0].mxu0
      %v1154 = vadd.f32 %v1009, %v1153
      %v1155 = vpop.f32.mrb[0].mxu0
      %1156 = vmatprep.mubr.f32.mxu0 0.0
      %1157 = vmatmul.mubr.f32.gmra.mrb[0].mxu0 %v331
      %v1158 = vpop.f32.mrb[0].mxu0
      %v1159 = vadd.f32 %v1014, %v1158
      %v1160 = vpop.f32.mrb[0].mxu0
      %1161 = vmatprep.mubr.f32.mxu0 0.0
      %1162 = vmatmul.mubr.f32.gmra.mrb[0].mxu0 %v334
      %v1163 = vpop.f32.mrb[0].mxu0
      %v1164 = vadd.f32 %v1019, %v1163
      %v1165 = vpop.f32.mrb[0].mxu0
      %1166 = vmatprep.mubr.f32.mxu0 0.0
      %1167 = vmatmul.mubr.f32.gmra.mrb[0].mxu0 %v337
      %v1168 = vpop.f32.mrb[0].mxu0
      %v1169 = vadd.f32 %v1024, %v1168
      %v1170 = vpop.f32.mrb[0].mxu0
      %1171 = vmatprep.mubr.f32.mxu0 0.0
      %1172 = vmatmul.mubr.f32.gmra.mrb[0].mxu0 %v340
      %v1173 = vpop.f32.mrb[0].mxu0
      %v1174 = vadd.f32 %v1029, %v1173
      %v1175 = vpop.f32.mrb[0].mxu0
      %1176 = vmatprep.mubr.f32.mxu0 0.0
      %1177 = vmatmul.mubr.f32.gmra.mrb[0].mxu0 %v343
      %v1178 = vpop.f32.mrb[0].mxu0
      %v1179 = vadd.f32 %v1034, %v1178
      %v1180 = vpop.f32.mrb[0].mxu0
      %1181 = vdwg.mxu0
      %v1183 = vsel %vm296, %v280, 0
      %v1186 = vsel %vm296, %v281, 0
      %v1189 = vsel %vm296, %v282, 0
      %v1192 = vsel %vm296, %v283, 0
      %v1195 = vsel %vm296, %v284, 0
      %v1198 = vsel %vm296, %v285, 0
      %v1201 = vsel %vm296, %v286, 0
      %v1204 = vsel %vm296, %v287, 0
      %v1207 = vsel %vm296, %v288, 0
      %v1210 = vsel %vm296, %v289, 0
      %v1213 = vsel %vm296, %v290, 0
      %v1216 = vsel %vm296, %v291, 0
      %v1219 = vsel %vm296, %v292, 0
      %v1222 = vsel %vm296, %v293, 0
      %v1225 = vsel %vm296, %v294, 0
      %v1228 = vsel %vm296, %v295, 0
      %1230 = vmatprep.subr.mxu0 0.0
      %1231 = vmatpush1.msra.mxu0 %v228
      %1232 = vmatprep.subr.mxu0 0.0
      %1233 = vmatpush1.msra.mxu0 %v229
      %1234 = vmatprep.subr.mxu0 0.0
      %1235 = vmatpush1.msra.mxu0 %v230
      %1236 = vmatprep.subr.mxu0 0.0
      %1237 = vmatpush1.msra.mxu0 %v231
      %1238 = vmatprep.subr.mxu0 0.0
      %1239 = vmatpush1.msra.mxu0 0.0
      %1240 = vmatprep.subr.mxu0 0.0
      %1241 = vmatpush1.msra.mxu0 0.0
      %1242 = vmatprep.subr.mxu0 0.0
      %1243 = vmatpush1.msra.mxu0 0.0
      %1244 = vmatprep.subr.mxu0 0.0
      %1245 = vmatpush1.msra.mxu0 0.0
      %1246 = vmatprep.subr.mxu0 0.0
      %1247 = vmatpush1.msra.mxu0 0.0
      %1248 = vmatprep.subr.mxu0 0.0
      %1249 = vmatpush1.msra.mxu0 0.0
      %1250 = vmatprep.subr.mxu0 0.0
      %1251 = vmatpush1.msra.mxu0 0.0
      %1252 = vmatprep.subr.mxu0 0.0
      %1253 = vmatpush1.msra.mxu0 0.0
      %1254 = vmatprep.subr.mxu0 0.0
      %1255 = vmatpush1.msra.mxu0 0.0
      %1256 = vmatprep.subr.mxu0 0.0
      %1257 = vmatpush1.msra.mxu0 0.0
      %1258 = vmatprep.subr.mxu0 0.0
      %1259 = vmatpush1.msra.mxu0 0.0
      %1260 = vmatprep.subr.mxu0 0.0
      %1261 = vmatpush1.msra.mxu0 0.0
      %1262 = vmatprep.subr.mxu0 0.0
      %1263 = vmatpush1.msra.mxu0 0.0
      %1264 = vmatprep.subr.mxu0 0.0
      %1265 = vmatpush1.msra.mxu0 0.0
      %1266 = vmatprep.subr.mxu0 0.0
      %1267 = vmatpush1.msra.mxu0 0.0
      %1268 = vmatprep.subr.mxu0 0.0
      %1269 = vmatpush1.msra.mxu0 0.0
      %1270 = vmatprep.subr.mxu0 0.0
      %1271 = vmatpush1.msra.mxu0 0.0
      %1272 = vmatprep.subr.mxu0 0.0
      %1273 = vmatpush1.msra.mxu0 0.0
      %1274 = vmatprep.subr.mxu0 0.0
      %1275 = vmatpush1.msra.mxu0 0.0
      %1276 = vmatprep.subr.mxu0 0.0
      %1277 = vmatpush1.msra.mxu0 0.0
      %1278 = vmatprep.subr.mxu0 0.0
      %1279 = vmatpush1.msra.mxu0 0.0
      %1280 = vmatprep.subr.mxu0 0.0
      %1281 = vmatpush1.msra.mxu0 0.0
      %1282 = vmatprep.subr.mxu0 0.0
      %1283 = vmatpush1.msra.mxu0 0.0
      %1284 = vmatprep.subr.mxu0 0.0
      %1285 = vmatpush1.msra.mxu0 0.0
      %1286 = vmatprep.subr.mxu0 0.0
      %1287 = vmatpush1.msra.mxu0 0.0
      %1288 = vmatprep.subr.mxu0 0.0
      %1289 = vmatpush1.msra.mxu0 0.0
      %1290 = vmatprep.subr.mxu0 0.0
      %1291 = vmatpush1.msra.mxu0 0.0
      %1292 = vmatprep.subr.mxu0 0.0
      %1293 = vmatpush1.msra.mxu0 0.0
      %1294 = vmatprep.mubr.f32.mxu0 0.0
      %1295 = vmatmul.mubr.f32.gmra.mrb[0].mxu0 %v1183
      %v1296 = vpop.f32.mrb[0].mxu0
      %v1297 = vadd.f32 0.0, %v1296
      %v1298 = vpop.f32.mrb[0].mxu0
      %1299 = vmatprep.mubr.f32.mxu0 0.0
      %1300 = vmatmul.mubr.f32.gmra.mrb[0].mxu0 %v1186
      %v1301 = vpop.f32.mrb[0].mxu0
      %v1302 = vadd.f32 0.0, %v1301
      %v1303 = vpop.f32.mrb[0].mxu0
      %1304 = vmatprep.mubr.f32.mxu0 0.0
      %1305 = vmatmul.mubr.f32.gmra.mrb[0].mxu0 %v1189
      %v1306 = vpop.f32.mrb[0].mxu0
      %v1307 = vadd.f32 0.0, %v1306
      %v1308 = vpop.f32.mrb[0].mxu0
      %1309 = vmatprep.mubr.f32.mxu0 0.0
      %1310 = vmatmul.mubr.f32.gmra.mrb[0].mxu0 %v1192
      %v1311 = vpop.f32.mrb[0].mxu0
      %v1312 = vadd.f32 0.0, %v1311
      %v1313 = vpop.f32.mrb[0].mxu0
      %1314 = vmatprep.mubr.f32.mxu0 0.0
      %1315 = vmatmul.mubr.f32.gmra.mrb[0].mxu0 %v1195
      %v1316 = vpop.f32.mrb[0].mxu0
      %v1317 = vadd.f32 0.0, %v1316
      %v1318 = vpop.f32.mrb[0].mxu0
      %1319 = vmatprep.mubr.f32.mxu0 0.0
      %1320 = vmatmul.mubr.f32.gmra.mrb[0].mxu0 %v1198
      %v1321 = vpop.f32.mrb[0].mxu0
      %v1322 = vadd.f32 0.0, %v1321
      %v1323 = vpop.f32.mrb[0].mxu0
      %1324 = vmatprep.mubr.f32.mxu0 0.0
      %1325 = vmatmul.mubr.f32.gmra.mrb[0].mxu0 %v1201
      %v1326 = vpop.f32.mrb[0].mxu0
      %v1327 = vadd.f32 0.0, %v1326
      %v1328 = vpop.f32.mrb[0].mxu0
      %1329 = vmatprep.mubr.f32.mxu0 0.0
      %1330 = vmatmul.mubr.f32.gmra.mrb[0].mxu0 %v1204
      %v1331 = vpop.f32.mrb[0].mxu0
      %v1332 = vadd.f32 0.0, %v1331
      %v1333 = vpop.f32.mrb[0].mxu0
      %1334 = vmatprep.mubr.f32.mxu0 0.0
      %1335 = vmatmul.mubr.f32.gmra.mrb[0].mxu0 %v1207
      %v1336 = vpop.f32.mrb[0].mxu0
      %v1337 = vadd.f32 0.0, %v1336
      %v1338 = vpop.f32.mrb[0].mxu0
      %1339 = vmatprep.mubr.f32.mxu0 0.0
      %1340 = vmatmul.mubr.f32.gmra.mrb[0].mxu0 %v1210
      %v1341 = vpop.f32.mrb[0].mxu0
      %v1342 = vadd.f32 0.0, %v1341
      %v1343 = vpop.f32.mrb[0].mxu0
      %1344 = vmatprep.mubr.f32.mxu0 0.0
      %1345 = vmatmul.mubr.f32.gmra.mrb[0].mxu0 %v1213
      %v1346 = vpop.f32.mrb[0].mxu0
      %v1347 = vadd.f32 0.0, %v1346
      %v1348 = vpop.f32.mrb[0].mxu0
      %1349 = vmatprep.mubr.f32.mxu0 0.0
      %1350 = vmatmul.mubr.f32.gmra.mrb[0].mxu0 %v1216
      %v1351 = vpop.f32.mrb[0].mxu0
      %v1352 = vadd.f32 0.0, %v1351
      %v1353 = vpop.f32.mrb[0].mxu0
      %1354 = vmatprep.mubr.f32.mxu0 0.0
      %1355 = vmatmul.mubr.f32.gmra.mrb[0].mxu0 %v1219
      %v1356 = vpop.f32.mrb[0].mxu0
      %v1357 = vadd.f32 0.0, %v1356
      %v1358 = vpop.f32.mrb[0].mxu0
      %1359 = vmatprep.mubr.f32.mxu0 0.0
      %1360 = vmatmul.mubr.f32.gmra.mrb[0].mxu0 %v1222
      %v1361 = vpop.f32.mrb[0].mxu0
      %v1362 = vadd.f32 0.0, %v1361
      %v1363 = vpop.f32.mrb[0].mxu0
      %1364 = vmatprep.mubr.f32.mxu0 0.0
      %1365 = vmatmul.mubr.f32.gmra.mrb[0].mxu0 %v1225
      %v1366 = vpop.f32.mrb[0].mxu0
      %v1367 = vadd.f32 0.0, %v1366
      %v1368 = vpop.f32.mrb[0].mxu0
      %1369 = vmatprep.mubr.f32.mxu0 0.0
      %1370 = vmatmul.mubr.f32.gmra.mrb[0].mxu0 %v1228
      %v1371 = vpop.f32.mrb[0].mxu0
      %v1372 = vadd.f32 0.0, %v1371
      %v1373 = vpop.f32.mrb[0].mxu0
      %1374 = vdwg.mxu0
      %v1375 = vadd.f32 %v1104, %v1297
      %v1376 = vadd.f32 %v1109, %v1302
      %v1377 = vadd.f32 %v1114, %v1307
      %v1378 = vadd.f32 %v1119, %v1312
      %v1379 = vadd.f32 %v1124, %v1317
      %v1380 = vadd.f32 %v1129, %v1322
      %v1381 = vadd.f32 %v1134, %v1327
      %v1382 = vadd.f32 %v1139, %v1332
      %v1383 = vadd.f32 %v1144, %v1337
      %v1384 = vadd.f32 %v1149, %v1342
      %v1385 = vadd.f32 %v1154, %v1347
      %v1386 = vadd.f32 %v1159, %v1352
      %v1387 = vadd.f32 %v1164, %v1357
      %v1388 = vadd.f32 %v1169, %v1362
      %v1389 = vadd.f32 %v1174, %v1367
      %v1390 = vadd.f32 %v1179, %v1372
      %s1391 = scalar_lea.vmem %s2, 96
      %v1392 = vld [vmem:[%s1391] sm:$0xff]
      %v1393 = vld [vmem:[%s1391 + $0x8] sm:$0xff]
      %v1394 = vld [vmem:[%s1391 + $0x10] sm:$0xff]
      %v1395 = vld [vmem:[%s1391 + $0x18] sm:$0xff]
      %s1396 = scalar_lea.vmem %s2, 128
      %v1397 = vld [vmem:[%s1396] sm:$0xff]
      %v1398 = vld [vmem:[%s1396 + $0x8] sm:$0xff]
      %v1399 = vld [vmem:[%s1396 + $0x10] sm:$0xff]
      %v1400 = vld [vmem:[%s1396 + $0x18] sm:$0xff]
      %s1401 = scalar_lea.vmem %s2, 160
      %v1402 = vld [vmem:[%s1401] sm:$0xff]
      %v1403 = vld [vmem:[%s1401 + $0x8] sm:$0xff]
      %v1404 = vld [vmem:[%s1401 + $0x10] sm:$0xff]
      %v1405 = vld [vmem:[%s1401 + $0x18] sm:$0xff]
      %s1406 = scalar_lea.vmem %s207, 16
      %v1407 = vld [vmem:[%s1406] sm:$0xff]
      %v1408 = vld [vmem:[%s1406 + $0x10] sm:$0xff]
      %v1409 = vld [vmem:[%s1406 + $0x20] sm:$0xff]
      %v1410 = vld [vmem:[%s1406 + $0x30] sm:$0xff]
      %v1411 = vld [vmem:[%s1406 + $0x40] sm:$0xff]
      %v1412 = vld [vmem:[%s1406 + $0x50] sm:$0xff]
      %v1413 = vld [vmem:[%s1406 + $0x60] sm:$0xff]
      %v1414 = vld [vmem:[%s1406 + $0x70] sm:$0xff]
      %v1415 = vld [vmem:[%s1406 + $0x80] sm:$0xff]
      %v1416 = vld [vmem:[%s1406 + $0x90] sm:$0xff]
      %v1417 = vld [vmem:[%s1406 + $0xa0] sm:$0xff]
      %v1418 = vld [vmem:[%s1406 + $0xb0] sm:$0xff]
      %v1419 = vld [vmem:[%s1406 + $0xc0] sm:$0xff]
      %v1420 = vld [vmem:[%s1406 + $0xd0] sm:$0xff]
      %v1421 = vld [vmem:[%s1406 + $0xe0] sm:$0xff]
      %v1422 = vld [vmem:[%s1406 + $0xf0] sm:$0xff]
      %s1423 = scalar_lea.vmem %s212, 16
      %v1424 = vld [vmem:[%s1423] sm:$0xff]
      %v1425 = vld [vmem:[%s1423 + $0x10] sm:$0xff]
      %v1426 = vld [vmem:[%s1423 + $0x20] sm:$0xff]
      %v1427 = vld [vmem:[%s1423 + $0x30] sm:$0xff]
      %v1428 = vld [vmem:[%s1423 + $0x40] sm:$0xff]
      %v1429 = vld [vmem:[%s1423 + $0x50] sm:$0xff]
      %v1430 = vld [vmem:[%s1423 + $0x60] sm:$0xff]
      %v1431 = vld [vmem:[%s1423 + $0x70] sm:$0xff]
      %v1432 = vld [vmem:[%s1423 + $0x80] sm:$0xff]
      %v1433 = vld [vmem:[%s1423 + $0x90] sm:$0xff]
      %v1434 = vld [vmem:[%s1423 + $0xa0] sm:$0xff]
      %v1435 = vld [vmem:[%s1423 + $0xb0] sm:$0xff]
      %v1436 = vld [vmem:[%s1423 + $0xc0] sm:$0xff]
      %v1437 = vld [vmem:[%s1423 + $0xd0] sm:$0xff]
      %v1438 = vld [vmem:[%s1423 + $0xe0] sm:$0xff]
      %v1439 = vld [vmem:[%s1423 + $0xf0] sm:$0xff]
      %v1440 = vld [vmem:[%s1406 + $0x1] sm:$0xff]
      %v1441 = vld [vmem:[%s1406 + $0x11] sm:$0xff]
      %v1442 = vld [vmem:[%s1406 + $0x21] sm:$0xff]
      %v1443 = vld [vmem:[%s1406 + $0x31] sm:$0xff]
      %v1444 = vld [vmem:[%s1406 + $0x41] sm:$0xff]
      %v1445 = vld [vmem:[%s1406 + $0x51] sm:$0xff]
      %v1446 = vld [vmem:[%s1406 + $0x61] sm:$0xff]
      %v1447 = vld [vmem:[%s1406 + $0x71] sm:$0xff]
      %v1448 = vld [vmem:[%s1406 + $0x81] sm:$0xff]
      %v1449 = vld [vmem:[%s1406 + $0x91] sm:$0xff]
      %v1450 = vld [vmem:[%s1406 + $0xa1] sm:$0xff]
      %v1451 = vld [vmem:[%s1406 + $0xb1] sm:$0xff]
      %v1452 = vld [vmem:[%s1406 + $0xc1] sm:$0xff]
      %v1453 = vld [vmem:[%s1406 + $0xd1] sm:$0xff]
      %v1454 = vld [vmem:[%s1406 + $0xe1] sm:$0xff]
      %v1455 = vld [vmem:[%s1406 + $0xf1] sm:$0xff]
      %v1456 = vld [vmem:[%s1423 + $0x1] sm:$0xff]
      %v1457 = vld [vmem:[%s1423 + $0x11] sm:$0xff]
      %v1458 = vld [vmem:[%s1423 + $0x21] sm:$0xff]
      %v1459 = vld [vmem:[%s1423 + $0x31] sm:$0xff]
      %v1460 = vld [vmem:[%s1423 + $0x41] sm:$0xff]
      %v1461 = vld [vmem:[%s1423 + $0x51] sm:$0xff]
      %v1462 = vld [vmem:[%s1423 + $0x61] sm:$0xff]
      %v1463 = vld [vmem:[%s1423 + $0x71] sm:$0xff]
      %v1464 = vld [vmem:[%s1423 + $0x81] sm:$0xff]
      %v1465 = vld [vmem:[%s1423 + $0x91] sm:$0xff]
      %v1466 = vld [vmem:[%s1423 + $0xa1] sm:$0xff]
      %v1467 = vld [vmem:[%s1423 + $0xb1] sm:$0xff]
      %v1468 = vld [vmem:[%s1423 + $0xc1] sm:$0xff]
      %v1469 = vld [vmem:[%s1423 + $0xd1] sm:$0xff]
      %v1470 = vld [vmem:[%s1423 + $0xe1] sm:$0xff]
      %v1471 = vld [vmem:[%s1423 + $0xf1] sm:$0xff]
      %v1473 = vsel %vm296, %v1407, 0
      %v1476 = vsel %vm296, %v1408, 0
      %v1479 = vsel %vm296, %v1409, 0
      %v1482 = vsel %vm296, %v1410, 0
      %v1485 = vsel %vm296, %v1411, 0
      %v1488 = vsel %vm296, %v1412, 0
      %v1491 = vsel %vm296, %v1413, 0
      %v1494 = vsel %vm296, %v1414, 0
      %v1497 = vsel %vm296, %v1415, 0
      %v1500 = vsel %vm296, %v1416, 0
      %v1503 = vsel %vm296, %v1417, 0
      %v1506 = vsel %vm296, %v1418, 0
      %v1509 = vsel %vm296, %v1419, 0
      %v1512 = vsel %vm296, %v1420, 0
      %v1515 = vsel %vm296, %v1421, 0
      %v1518 = vsel %vm296, %v1422, 0
      %1520 = vmatprep.subr.mxu0 0.0
      %1521 = vmatpush1.msra.mxu0 %v1392
      %1522 = vmatprep.subr.mxu0 0.0
      %1523 = vmatpush1.msra.mxu0 %v1393
      %1524 = vmatprep.subr.mxu0 0.0
      %1525 = vmatpush1.msra.mxu0 %v1394
      %1526 = vmatprep.subr.mxu0 0.0
      %1527 = vmatpush1.msra.mxu0 %v1395
      %1528 = vmatprep.subr.mxu0 0.0
      %1529 = vmatpush1.msra.mxu0 0.0
      %1530 = vmatprep.subr.mxu0 0.0
      %1531 = vmatpush1.msra.mxu0 0.0
      %1532 = vmatprep.subr.mxu0 0.0
      %1533 = vmatpush1.msra.mxu0 0.0
      %1534 = vmatprep.subr.mxu0 0.0
      %1535 = vmatpush1.msra.mxu0 0.0
      %1536 = vmatprep.subr.mxu0 0.0
      %1537 = vmatpush1.msra.mxu0 0.0
      %1538 = vmatprep.subr.mxu0 0.0
      %1539 = vmatpush1.msra.mxu0 0.0
      %1540 = vmatprep.subr.mxu0 0.0
      %1541 = vmatpush1.msra.mxu0 0.0
      %1542 = vmatprep.subr.mxu0 0.0
      %1543 = vmatpush1.msra.mxu0 0.0
      %1544 = vmatprep.subr.mxu0 0.0
      %1545 = vmatpush1.msra.mxu0 0.0
      %1546 = vmatprep.subr.mxu0 0.0
      %1547 = vmatpush1.msra.mxu0 0.0
      %1548 = vmatprep.subr.mxu0 0.0
      %1549 = vmatpush1.msra.mxu0 0.0
      %1550 = vmatprep.subr.mxu0 0.0
      %1551 = vmatpush1.msra.mxu0 0.0
      %1552 = vmatprep.subr.mxu0 0.0
      %1553 = vmatpush1.msra.mxu0 0.0
      %1554 = vmatprep.subr.mxu0 0.0
      %1555 = vmatpush1.msra.mxu0 0.0
      %1556 = vmatprep.subr.mxu0 0.0
      %1557 = vmatpush1.msra.mxu0 0.0
      %1558 = vmatprep.subr.mxu0 0.0
      %1559 = vmatpush1.msra.mxu0 0.0
      %1560 = vmatprep.subr.mxu0 0.0
      %1561 = vmatpush1.msra.mxu0 0.0
      %1562 = vmatprep.subr.mxu0 0.0
      %1563 = vmatpush1.msra.mxu0 0.0
      %1564 = vmatprep.subr.mxu0 0.0
      %1565 = vmatpush1.msra.mxu0 0.0
      %1566 = vmatprep.subr.mxu0 0.0
      %1567 = vmatpush1.msra.mxu0 0.0
      %1568 = vmatprep.subr.mxu0 0.0
      %1569 = vmatpush1.msra.mxu0 0.0
      %1570 = vmatprep.subr.mxu0 0.0
      %1571 = vmatpush1.msra.mxu0 0.0
      %1572 = vmatprep.subr.mxu0 0.0
      %1573 = vmatpush1.msra.mxu0 0.0
      %1574 = vmatprep.subr.mxu0 0.0
      %1575 = vmatpush1.msra.mxu0 0.0
      %1576 = vmatprep.subr.mxu0 0.0
      %1577 = vmatpush1.msra.mxu0 0.0
      %1578 = vmatprep.subr.mxu0 0.0
      %1579 = vmatpush1.msra.mxu0 0.0
      %1580 = vmatprep.subr.mxu0 0.0
      %1581 = vmatpush1.msra.mxu0 0.0
      %1582 = vmatprep.subr.mxu0 0.0
      %1583 = vmatpush1.msra.mxu0 0.0
      %1584 = vmatprep.mubr.f32.mxu0 0.0
      %1585 = vmatmul.mubr.f32.gmra.mrb[0].mxu0 %v1473
      %v1586 = vpop.f32.mrb[0].mxu0
      %v1587 = vadd.f32 0.0, %v1586
      %v1588 = vpop.f32.mrb[0].mxu0
      %1589 = vmatprep.mubr.f32.mxu0 0.0
      %1590 = vmatmul.mubr.f32.gmra.mrb[0].mxu0 %v1476
      %v1591 = vpop.f32.mrb[0].mxu0
      %v1592 = vadd.f32 0.0, %v1591
      %v1593 = vpop.f32.mrb[0].mxu0
      %1594 = vmatprep.mubr.f32.mxu0 0.0
      %1595 = vmatmul.mubr.f32.gmra.mrb[0].mxu0 %v1479
      %v1596 = vpop.f32.mrb[0].mxu0
      %v1597 = vadd.f32 0.0, %v1596
      %v1598 = vpop.f32.mrb[0].mxu0
      %1599 = vmatprep.mubr.f32.mxu0 0.0
      %1600 = vmatmul.mubr.f32.gmra.mrb[0].mxu0 %v1482
      %v1601 = vpop.f32.mrb[0].mxu0
      %v1602 = vadd.f32 0.0, %v1601
      %v1603 = vpop.f32.mrb[0].mxu0
      %1604 = vmatprep.mubr.f32.mxu0 0.0
      %1605 = vmatmul.mubr.f32.gmra.mrb[0].mxu0 %v1485
      %v1606 = vpop.f32.mrb[0].mxu0
      %v1607 = vadd.f32 0.0, %v1606
      %v1608 = vpop.f32.mrb[0].mxu0
      %1609 = vmatprep.mubr.f32.mxu0 0.0
      %1610 = vmatmul.mubr.f32.gmra.mrb[0].mxu0 %v1488
      %v1611 = vpop.f32.mrb[0].mxu0
      %v1612 = vadd.f32 0.0, %v1611
      %v1613 = vpop.f32.mrb[0].mxu0
      %1614 = vmatprep.mubr.f32.mxu0 0.0
      %1615 = vmatmul.mubr.f32.gmra.mrb[0].mxu0 %v1491
      %v1616 = vpop.f32.mrb[0].mxu0
      %v1617 = vadd.f32 0.0, %v1616
      %v1618 = vpop.f32.mrb[0].mxu0
      %1619 = vmatprep.mubr.f32.mxu0 0.0
      %1620 = vmatmul.mubr.f32.gmra.mrb[0].mxu0 %v1494
      %v1621 = vpop.f32.mrb[0].mxu0
      %v1622 = vadd.f32 0.0, %v1621
      %v1623 = vpop.f32.mrb[0].mxu0
      %1624 = vmatprep.mubr.f32.mxu0 0.0
      %1625 = vmatmul.mubr.f32.gmra.mrb[0].mxu0 %v1497
      %v1626 = vpop.f32.mrb[0].mxu0
      %v1627 = vadd.f32 0.0, %v1626
      %v1628 = vpop.f32.mrb[0].mxu0
      %1629 = vmatprep.mubr.f32.mxu0 0.0
      %1630 = vmatmul.mubr.f32.gmra.mrb[0].mxu0 %v1500
      %v1631 = vpop.f32.mrb[0].mxu0
      %v1632 = vadd.f32 0.0, %v1631
      %v1633 = vpop.f32.mrb[0].mxu0
      %1634 = vmatprep.mubr.f32.mxu0 0.0
      %1635 = vmatmul.mubr.f32.gmra.mrb[0].mxu0 %v1503
      %v1636 = vpop.f32.mrb[0].mxu0
      %v1637 = vadd.f32 0.0, %v1636
      %v1638 = vpop.f32.mrb[0].mxu0
      %1639 = vmatprep.mubr.f32.mxu0 0.0
      %1640 = vmatmul.mubr.f32.gmra.mrb[0].mxu0 %v1506
      %v1641 = vpop.f32.mrb[0].mxu0
      %v1642 = vadd.f32 0.0, %v1641
      %v1643 = vpop.f32.mrb[0].mxu0
      %1644 = vmatprep.mubr.f32.mxu0 0.0
      %1645 = vmatmul.mubr.f32.gmra.mrb[0].mxu0 %v1509
      %v1646 = vpop.f32.mrb[0].mxu0
      %v1647 = vadd.f32 0.0, %v1646
      %v1648 = vpop.f32.mrb[0].mxu0
      %1649 = vmatprep.mubr.f32.mxu0 0.0
      %1650 = vmatmul.mubr.f32.gmra.mrb[0].mxu0 %v1512
      %v1651 = vpop.f32.mrb[0].mxu0
      %v1652 = vadd.f32 0.0, %v1651
      %v1653 = vpop.f32.mrb[0].mxu0
      %1654 = vmatprep.mubr.f32.mxu0 0.0
      %1655 = vmatmul.mubr.f32.gmra.mrb[0].mxu0 %v1515
      %v1656 = vpop.f32.mrb[0].mxu0
      %v1657 = vadd.f32 0.0, %v1656
      %v1658 = vpop.f32.mrb[0].mxu0
      %1659 = vmatprep.mubr.f32.mxu0 0.0
      %1660 = vmatmul.mubr.f32.gmra.mrb[0].mxu0 %v1518
      %v1661 = vpop.f32.mrb[0].mxu0
      %v1662 = vadd.f32 0.0, %v1661
      %v1663 = vpop.f32.mrb[0].mxu0
      %1664 = vdwg.mxu0
      %v1665 = vadd.f32 %v876, %v1587
      %v1666 = vadd.f32 %v877, %v1592
      %v1667 = vadd.f32 %v878, %v1597
      %v1668 = vadd.f32 %v879, %v1602
      %v1669 = vadd.f32 %v880, %v1607
      %v1670 = vadd.f32 %v881, %v1612
      %v1671 = vadd.f32 %v882, %v1617
      %v1672 = vadd.f32 %v883, %v1622
      %v1673 = vadd.f32 %v884, %v1627
      %v1674 = vadd.f32 %v885, %v1632
      %v1675 = vadd.f32 %v886, %v1637
      %v1676 = vadd.f32 %v887, %v1642
      %v1677 = vadd.f32 %v888, %v1647
      %v1678 = vadd.f32 %v889, %v1652
      %v1679 = vadd.f32 %v890, %v1657
      %v1680 = vadd.f32 %v891, %v1662
      %v1682 = vsel %vm296, %v1424, 0
      %v1685 = vsel %vm296, %v1425, 0
      %v1688 = vsel %vm296, %v1426, 0
      %v1691 = vsel %vm296, %v1427, 0
      %v1694 = vsel %vm296, %v1428, 0
      %v1697 = vsel %vm296, %v1429, 0
      %v1700 = vsel %vm296, %v1430, 0
      %v1703 = vsel %vm296, %v1431, 0
      %v1706 = vsel %vm296, %v1432, 0
      %v1709 = vsel %vm296, %v1433, 0
      %v1712 = vsel %vm296, %v1434, 0
      %v1715 = vsel %vm296, %v1435, 0
      %v1718 = vsel %vm296, %v1436, 0
      %v1721 = vsel %vm296, %v1437, 0
      %v1724 = vsel %vm296, %v1438, 0
      %v1727 = vsel %vm296, %v1439, 0
      %1729 = vmatprep.subr.mxu0 0.0
      %1730 = vmatpush1.msra.mxu0 %v1397
      %1731 = vmatprep.subr.mxu0 0.0
      %1732 = vmatpush1.msra.mxu0 %v1398
      %1733 = vmatprep.subr.mxu0 0.0
      %1734 = vmatpush1.msra.mxu0 %v1399
      %1735 = vmatprep.subr.mxu0 0.0
      %1736 = vmatpush1.msra.mxu0 %v1400
      %1737 = vmatprep.subr.mxu0 0.0
      %1738 = vmatpush1.msra.mxu0 0.0
      %1739 = vmatprep.subr.mxu0 0.0
      %1740 = vmatpush1.msra.mxu0 0.0
      %1741 = vmatprep.subr.mxu0 0.0
      %1742 = vmatpush1.msra.mxu0 0.0
      %1743 = vmatprep.subr.mxu0 0.0
      %1744 = vmatpush1.msra.mxu0 0.0
      %1745 = vmatprep.subr.mxu0 0.0
      %1746 = vmatpush1.msra.mxu0 0.0
      %1747 = vmatprep.subr.mxu0 0.0
      %1748 = vmatpush1.msra.mxu0 0.0
      %1749 = vmatprep.subr.mxu0 0.0
      %1750 = vmatpush1.msra.mxu0 0.0
      %1751 = vmatprep.subr.mxu0 0.0
      %1752 = vmatpush1.msra.mxu0 0.0
      %1753 = vmatprep.subr.mxu0 0.0
      %1754 = vmatpush1.msra.mxu0 0.0
      %1755 = vmatprep.subr.mxu0 0.0
      %1756 = vmatpush1.msra.mxu0 0.0
      %1757 = vmatprep.subr.mxu0 0.0
      %1758 = vmatpush1.msra.mxu0 0.0
      %1759 = vmatprep.subr.mxu0 0.0
      %1760 = vmatpush1.msra.mxu0 0.0
      %1761 = vmatprep.subr.mxu0 0.0
      %1762 = vmatpush1.msra.mxu0 0.0
      %1763 = vmatprep.subr.mxu0 0.0
      %1764 = vmatpush1.msra.mxu0 0.0
      %1765 = vmatprep.subr.mxu0 0.0
      %1766 = vmatpush1.msra.mxu0 0.0
      %1767 = vmatprep.subr.mxu0 0.0
      %1768 = vmatpush1.msra.mxu0 0.0
      %1769 = vmatprep.subr.mxu0 0.0
      %1770 = vmatpush1.msra.mxu0 0.0
      %1771 = vmatprep.subr.mxu0 0.0
      %1772 = vmatpush1.msra.mxu0 0.0
      %1773 = vmatprep.subr.mxu0 0.0
      %1774 = vmatpush1.msra.mxu0 0.0
      %1775 = vmatprep.subr.mxu0 0.0
      %1776 = vmatpush1.msra.mxu0 0.0
      %1777 = vmatprep.subr.mxu0 0.0
      %1778 = vmatpush1.msra.mxu0 0.0
      %1779 = vmatprep.subr.mxu0 0.0
      %1780 = vmatpush1.msra.mxu0 0.0
      %1781 = vmatprep.subr.mxu0 0.0
      %1782 = vmatpush1.msra.mxu0 0.0
      %1783 = vmatprep.subr.mxu0 0.0
      %1784 = vmatpush1.msra.mxu0 0.0
      %1785 = vmatprep.subr.mxu0 0.0
      %1786 = vmatpush1.msra.mxu0 0.0
      %1787 = vmatprep.subr.mxu0 0.0
      %1788 = vmatpush1.msra.mxu0 0.0
      %1789 = vmatprep.subr.mxu0 0.0
      %1790 = vmatpush1.msra.mxu0 0.0
      %1791 = vmatprep.subr.mxu0 0.0
      %1792 = vmatpush1.msra.mxu0 0.0
      %1793 = vmatprep.mubr.f32.mxu0 0.0
      %1794 = vmatmul.mubr.f32.gmra.mrb[0].mxu0 %v1682
      %v1795 = vpop.f32.mrb[0].mxu0
      %v1796 = vadd.f32 0.0, %v1795
      %v1797 = vpop.f32.mrb[0].mxu0
      %1798 = vmatprep.mubr.f32.mxu0 0.0
      %1799 = vmatmul.mubr.f32.gmra.mrb[0].mxu0 %v1685
      %v1800 = vpop.f32.mrb[0].mxu0
      %v1801 = vadd.f32 0.0, %v1800
      %v1802 = vpop.f32.mrb[0].mxu0
      %1803 = vmatprep.mubr.f32.mxu0 0.0
      %1804 = vmatmul.mubr.f32.gmra.mrb[0].mxu0 %v1688
      %v1805 = vpop.f32.mrb[0].mxu0
      %v1806 = vadd.f32 0.0, %v1805
      %v1807 = vpop.f32.mrb[0].mxu0
      %1808 = vmatprep.mubr.f32.mxu0 0.0
      %1809 = vmatmul.mubr.f32.gmra.mrb[0].mxu0 %v1691
      %v1810 = vpop.f32.mrb[0].mxu0
      %v1811 = vadd.f32 0.0, %v1810
      %v1812 = vpop.f32.mrb[0].mxu0
      %1813 = vmatprep.mubr.f32.mxu0 0.0
      %1814 = vmatmul.mubr.f32.gmra.mrb[0].mxu0 %v1694
      %v1815 = vpop.f32.mrb[0].mxu0
      %v1816 = vadd.f32 0.0, %v1815
      %v1817 = vpop.f32.mrb[0].mxu0
      %1818 = vmatprep.mubr.f32.mxu0 0.0
      %1819 = vmatmul.mubr.f32.gmra.mrb[0].mxu0 %v1697
      %v1820 = vpop.f32.mrb[0].mxu0
      %v1821 = vadd.f32 0.0, %v1820
      %v1822 = vpop.f32.mrb[0].mxu0
      %1823 = vmatprep.mubr.f32.mxu0 0.0
      %1824 = vmatmul.mubr.f32.gmra.mrb[0].mxu0 %v1700
      %v1825 = vpop.f32.mrb[0].mxu0
      %v1826 = vadd.f32 0.0, %v1825
      %v1827 = vpop.f32.mrb[0].mxu0
      %1828 = vmatprep.mubr.f32.mxu0 0.0
      %1829 = vmatmul.mubr.f32.gmra.mrb[0].mxu0 %v1703
      %v1830 = vpop.f32.mrb[0].mxu0
      %v1831 = vadd.f32 0.0, %v1830
      %v1832 = vpop.f32.mrb[0].mxu0
      %1833 = vmatprep.mubr.f32.mxu0 0.0
      %1834 = vmatmul.mubr.f32.gmra.mrb[0].mxu0 %v1706
      %v1835 = vpop.f32.mrb[0].mxu0
      %v1836 = vadd.f32 0.0, %v1835
      %v1837 = vpop.f32.mrb[0].mxu0
      %1838 = vmatprep.mubr.f32.mxu0 0.0
      %1839 = vmatmul.mubr.f32.gmra.mrb[0].mxu0 %v1709
      %v1840 = vpop.f32.mrb[0].mxu0
      %v1841 = vadd.f32 0.0, %v1840
      %v1842 = vpop.f32.mrb[0].mxu0
      %1843 = vmatprep.mubr.f32.mxu0 0.0
      %1844 = vmatmul.mubr.f32.gmra.mrb[0].mxu0 %v1712
      %v1845 = vpop.f32.mrb[0].mxu0
      %v1846 = vadd.f32 0.0, %v1845
      %v1847 = vpop.f32.mrb[0].mxu0
      %1848 = vmatprep.mubr.f32.mxu0 0.0
      %1849 = vmatmul.mubr.f32.gmra.mrb[0].mxu0 %v1715
      %v1850 = vpop.f32.mrb[0].mxu0
      %v1851 = vadd.f32 0.0, %v1850
      %v1852 = vpop.f32.mrb[0].mxu0
      %1853 = vmatprep.mubr.f32.mxu0 0.0
      %1854 = vmatmul.mubr.f32.gmra.mrb[0].mxu0 %v1718
      %v1855 = vpop.f32.mrb[0].mxu0
      %v1856 = vadd.f32 0.0, %v1855
      %v1857 = vpop.f32.mrb[0].mxu0
      %1858 = vmatprep.mubr.f32.mxu0 0.0
      %1859 = vmatmul.mubr.f32.gmra.mrb[0].mxu0 %v1721
      %v1860 = vpop.f32.mrb[0].mxu0
      %v1861 = vadd.f32 0.0, %v1860
      %v1862 = vpop.f32.mrb[0].mxu0
      %1863 = vmatprep.mubr.f32.mxu0 0.0
      %1864 = vmatmul.mubr.f32.gmra.mrb[0].mxu0 %v1724
      %v1865 = vpop.f32.mrb[0].mxu0
      %v1866 = vadd.f32 0.0, %v1865
      %v1867 = vpop.f32.mrb[0].mxu0
      %1868 = vmatprep.mubr.f32.mxu0 0.0
      %1869 = vmatmul.mubr.f32.gmra.mrb[0].mxu0 %v1727
      %v1870 = vpop.f32.mrb[0].mxu0
      %v1871 = vadd.f32 0.0, %v1870
      %v1872 = vpop.f32.mrb[0].mxu0
      %1873 = vdwg.mxu0
      %v1874 = vadd.f32 %v1665, %v1796
      %v1875 = vadd.f32 %v1666, %v1801
      %v1876 = vadd.f32 %v1667, %v1806
      %v1877 = vadd.f32 %v1668, %v1811
      %v1878 = vadd.f32 %v1669, %v1816
      %v1879 = vadd.f32 %v1670, %v1821
      %v1880 = vadd.f32 %v1671, %v1826
      %v1881 = vadd.f32 %v1672, %v1831
      %v1882 = vadd.f32 %v1673, %v1836
      %v1883 = vadd.f32 %v1674, %v1841
      %v1884 = vadd.f32 %v1675, %v1846
      %v1885 = vadd.f32 %v1676, %v1851
      %v1886 = vadd.f32 %v1677, %v1856
      %v1887 = vadd.f32 %v1678, %v1861
      %v1888 = vadd.f32 %v1679, %v1866
      %v1889 = vadd.f32 %v1680, %v1871
      %v1891 = vsel %vm296, %v1440, 0
      %v1894 = vsel %vm296, %v1441, 0
      %v1897 = vsel %vm296, %v1442, 0
      %v1900 = vsel %vm296, %v1443, 0
      %v1903 = vsel %vm296, %v1444, 0
      %v1906 = vsel %vm296, %v1445, 0
      %v1909 = vsel %vm296, %v1446, 0
      %v1912 = vsel %vm296, %v1447, 0
      %v1915 = vsel %vm296, %v1448, 0
      %v1918 = vsel %vm296, %v1449, 0
      %v1921 = vsel %vm296, %v1450, 0
      %v1924 = vsel %vm296, %v1451, 0
      %v1927 = vsel %vm296, %v1452, 0
      %v1930 = vsel %vm296, %v1453, 0
      %v1933 = vsel %vm296, %v1454, 0
      %v1936 = vsel %vm296, %v1455, 0
      %1938 = vmatprep.subr.mxu0 0.0
      %1939 = vmatpush1.msra.mxu0 %v1402
      %1940 = vmatprep.subr.mxu0 0.0
      %1941 = vmatpush1.msra.mxu0 %v1403
      %1942 = vmatprep.subr.mxu0 0.0
      %1943 = vmatpush1.msra.mxu0 %v1404
      %1944 = vmatprep.subr.mxu0 0.0
      %1945 = vmatpush1.msra.mxu0 %v1405
      %1946 = vmatprep.subr.mxu0 0.0
      %1947 = vmatpush1.msra.mxu0 0.0
      %1948 = vmatprep.subr.mxu0 0.0
      %1949 = vmatpush1.msra.mxu0 0.0
      %1950 = vmatprep.subr.mxu0 0.0
      %1951 = vmatpush1.msra.mxu0 0.0
      %1952 = vmatprep.subr.mxu0 0.0
      %1953 = vmatpush1.msra.mxu0 0.0
      %1954 = vmatprep.subr.mxu0 0.0
      %1955 = vmatpush1.msra.mxu0 0.0
      %1956 = vmatprep.subr.mxu0 0.0
      %1957 = vmatpush1.msra.mxu0 0.0
      %1958 = vmatprep.subr.mxu0 0.0
      %1959 = vmatpush1.msra.mxu0 0.0
      %1960 = vmatprep.subr.mxu0 0.0
      %1961 = vmatpush1.msra.mxu0 0.0
      %1962 = vmatprep.subr.mxu0 0.0
      %1963 = vmatpush1.msra.mxu0 0.0
      %1964 = vmatprep.subr.mxu0 0.0
      %1965 = vmatpush1.msra.mxu0 0.0
      %1966 = vmatprep.subr.mxu0 0.0
      %1967 = vmatpush1.msra.mxu0 0.0
      %1968 = vmatprep.subr.mxu0 0.0
      %1969 = vmatpush1.msra.mxu0 0.0
      %1970 = vmatprep.subr.mxu0 0.0
      %1971 = vmatpush1.msra.mxu0 0.0
      %1972 = vmatprep.subr.mxu0 0.0
      %1973 = vmatpush1.msra.mxu0 0.0
      %1974 = vmatprep.subr.mxu0 0.0
      %1975 = vmatpush1.msra.mxu0 0.0
      %1976 = vmatprep.subr.mxu0 0.0
      %1977 = vmatpush1.msra.mxu0 0.0
      %1978 = vmatprep.subr.mxu0 0.0
      %1979 = vmatpush1.msra.mxu0 0.0
      %1980 = vmatprep.subr.mxu0 0.0
      %1981 = vmatpush1.msra.mxu0 0.0
      %1982 = vmatprep.subr.mxu0 0.0
      %1983 = vmatpush1.msra.mxu0 0.0
      %1984 = vmatprep.subr.mxu0 0.0
      %1985 = vmatpush1.msra.mxu0 0.0
      %1986 = vmatprep.subr.mxu0 0.0
      %1987 = vmatpush1.msra.mxu0 0.0
      %1988 = vmatprep.subr.mxu0 0.0
      %1989 = vmatpush1.msra.mxu0 0.0
      %1990 = vmatprep.subr.mxu0 0.0
      %1991 = vmatpush1.msra.mxu0 0.0
      %1992 = vmatprep.subr.mxu0 0.0
      %1993 = vmatpush1.msra.mxu0 0.0
      %1994 = vmatprep.subr.mxu0 0.0
      %1995 = vmatpush1.msra.mxu0 0.0
      %1996 = vmatprep.subr.mxu0 0.0
      %1997 = vmatpush1.msra.mxu0 0.0
      %1998 = vmatprep.subr.mxu0 0.0
      %1999 = vmatpush1.msra.mxu0 0.0
      %2000 = vmatprep.subr.mxu0 0.0
      %2001 = vmatpush1.msra.mxu0 0.0
      %2002 = vmatprep.mubr.f32.mxu0 0.0
      %2003 = vmatmul.mubr.f32.gmra.mrb[0].mxu0 %v1891
      %v2004 = vpop.f32.mrb[0].mxu0
      %v2005 = vadd.f32 0.0, %v2004
      %v2006 = vpop.f32.mrb[0].mxu0
      %2007 = vmatprep.mubr.f32.mxu0 0.0
      %2008 = vmatmul.mubr.f32.gmra.mrb[0].mxu0 %v1894
      %v2009 = vpop.f32.mrb[0].mxu0
      %v2010 = vadd.f32 0.0, %v2009
      %v2011 = vpop.f32.mrb[0].mxu0
      %2012 = vmatprep.mubr.f32.mxu0 0.0
      %2013 = vmatmul.mubr.f32.gmra.mrb[0].mxu0 %v1897
      %v2014 = vpop.f32.mrb[0].mxu0
      %v2015 = vadd.f32 0.0, %v2014
      %v2016 = vpop.f32.mrb[0].mxu0
      %2017 = vmatprep.mubr.f32.mxu0 0.0
      %2018 = vmatmul.mubr.f32.gmra.mrb[0].mxu0 %v1900
      %v2019 = vpop.f32.mrb[0].mxu0
      %v2020 = vadd.f32 0.0, %v2019
      %v2021 = vpop.f32.mrb[0].mxu0
      %2022 = vmatprep.mubr.f32.mxu0 0.0
      %2023 = vmatmul.mubr.f32.gmra.mrb[0].mxu0 %v1903
      %v2024 = vpop.f32.mrb[0].mxu0
      %v2025 = vadd.f32 0.0, %v2024
      %v2026 = vpop.f32.mrb[0].mxu0
      %2027 = vmatprep.mubr.f32.mxu0 0.0
      %2028 = vmatmul.mubr.f32.gmra.mrb[0].mxu0 %v1906
      %v2029 = vpop.f32.mrb[0].mxu0
      %v2030 = vadd.f32 0.0, %v2029
      %v2031 = vpop.f32.mrb[0].mxu0
      %2032 = vmatprep.mubr.f32.mxu0 0.0
      %2033 = vmatmul.mubr.f32.gmra.mrb[0].mxu0 %v1909
      %v2034 = vpop.f32.mrb[0].mxu0
      %v2035 = vadd.f32 0.0, %v2034
      %v2036 = vpop.f32.mrb[0].mxu0
      %2037 = vmatprep.mubr.f32.mxu0 0.0
      %2038 = vmatmul.mubr.f32.gmra.mrb[0].mxu0 %v1912
      %v2039 = vpop.f32.mrb[0].mxu0
      %v2040 = vadd.f32 0.0, %v2039
      %v2041 = vpop.f32.mrb[0].mxu0
      %2042 = vmatprep.mubr.f32.mxu0 0.0
      %2043 = vmatmul.mubr.f32.gmra.mrb[0].mxu0 %v1915
      %v2044 = vpop.f32.mrb[0].mxu0
      %v2045 = vadd.f32 0.0, %v2044
      %v2046 = vpop.f32.mrb[0].mxu0
      %2047 = vmatprep.mubr.f32.mxu0 0.0
      %2048 = vmatmul.mubr.f32.gmra.mrb[0].mxu0 %v1918
      %v2049 = vpop.f32.mrb[0].mxu0
      %v2050 = vadd.f32 0.0, %v2049
      %v2051 = vpop.f32.mrb[0].mxu0
      %2052 = vmatprep.mubr.f32.mxu0 0.0
      %2053 = vmatmul.mubr.f32.gmra.mrb[0].mxu0 %v1921
      %v2054 = vpop.f32.mrb[0].mxu0
      %v2055 = vadd.f32 0.0, %v2054
      %v2056 = vpop.f32.mrb[0].mxu0
      %2057 = vmatprep.mubr.f32.mxu0 0.0
      %2058 = vmatmul.mubr.f32.gmra.mrb[0].mxu0 %v1924
      %v2059 = vpop.f32.mrb[0].mxu0
      %v2060 = vadd.f32 0.0, %v2059
      %v2061 = vpop.f32.mrb[0].mxu0
      %2062 = vmatprep.mubr.f32.mxu0 0.0
      %2063 = vmatmul.mubr.f32.gmra.mrb[0].mxu0 %v1927
      %v2064 = vpop.f32.mrb[0].mxu0
      %v2065 = vadd.f32 0.0, %v2064
      %v2066 = vpop.f32.mrb[0].mxu0
      %2067 = vmatprep.mubr.f32.mxu0 0.0
      %2068 = vmatmul.mubr.f32.gmra.mrb[0].mxu0 %v1930
      %v2069 = vpop.f32.mrb[0].mxu0
      %v2070 = vadd.f32 0.0, %v2069
      %v2071 = vpop.f32.mrb[0].mxu0
      %2072 = vmatprep.mubr.f32.mxu0 0.0
      %2073 = vmatmul.mubr.f32.gmra.mrb[0].mxu0 %v1933
      %v2074 = vpop.f32.mrb[0].mxu0
      %v2075 = vadd.f32 0.0, %v2074
      %v2076 = vpop.f32.mrb[0].mxu0
      %2077 = vmatprep.mubr.f32.mxu0 0.0
      %2078 = vmatmul.mubr.f32.gmra.mrb[0].mxu0 %v1936
      %v2079 = vpop.f32.mrb[0].mxu0
      %v2080 = vadd.f32 0.0, %v2079
      %v2081 = vpop.f32.mrb[0].mxu0
      %2082 = vdwg.mxu0
      %v2083 = vadd.f32 %v1874, %v2005
      %v2084 = vadd.f32 %v1875, %v2010
      %v2085 = vadd.f32 %v1876, %v2015
      %v2086 = vadd.f32 %v1877, %v2020
      %v2087 = vadd.f32 %v1878, %v2025
      %v2088 = vadd.f32 %v1879, %v2030
      %v2089 = vadd.f32 %v1880, %v2035
      %v2090 = vadd.f32 %v1881, %v2040
      %v2091 = vadd.f32 %v1882, %v2045
      %v2092 = vadd.f32 %v1883, %v2050
      %v2093 = vadd.f32 %v1884, %v2055
      %v2094 = vadd.f32 %v1885, %v2060
      %v2095 = vadd.f32 %v1886, %v2065
      %v2096 = vadd.f32 %v1887, %v2070
      %v2097 = vadd.f32 %v1888, %v2075
      %v2098 = vadd.f32 %v1889, %v2080
      %2099 = vmatprep.subr.mxu0 0.0
      %2100 = vmatpush1.msra.mxu0 %v1392
      %2101 = vmatprep.subr.mxu0 0.0
      %2102 = vmatpush1.msra.mxu0 %v1393
      %2103 = vmatprep.subr.mxu0 0.0
      %2104 = vmatpush1.msra.mxu0 %v1394
      %2105 = vmatprep.subr.mxu0 0.0
      %2106 = vmatpush1.msra.mxu0 %v1395
      %2107 = vmatprep.subr.mxu0 0.0
      %2108 = vmatpush1.msra.mxu0 0.0
      %2109 = vmatprep.subr.mxu0 0.0
      %2110 = vmatpush1.msra.mxu0 0.0
      %2111 = vmatprep.subr.mxu0 0.0
      %2112 = vmatpush1.msra.mxu0 0.0
      %2113 = vmatprep.subr.mxu0 0.0
      %2114 = vmatpush1.msra.mxu0 0.0
      %2115 = vmatprep.subr.mxu0 0.0
      %2116 = vmatpush1.msra.mxu0 0.0
      %2117 = vmatprep.subr.mxu0 0.0
      %2118 = vmatpush1.msra.mxu0 0.0
      %2119 = vmatprep.subr.mxu0 0.0
      %2120 = vmatpush1.msra.mxu0 0.0
      %2121 = vmatprep.subr.mxu0 0.0
      %2122 = vmatpush1.msra.mxu0 0.0
      %2123 = vmatprep.subr.mxu0 0.0
      %2124 = vmatpush1.msra.mxu0 0.0
      %2125 = vmatprep.subr.mxu0 0.0
      %2126 = vmatpush1.msra.mxu0 0.0
      %2127 = vmatprep.subr.mxu0 0.0
      %2128 = vmatpush1.msra.mxu0 0.0
      %2129 = vmatprep.subr.mxu0 0.0
      %2130 = vmatpush1.msra.mxu0 0.0
      %2131 = vmatprep.subr.mxu0 0.0
      %2132 = vmatpush1.msra.mxu0 0.0
      %2133 = vmatprep.subr.mxu0 0.0
      %2134 = vmatpush1.msra.mxu0 0.0
      %2135 = vmatprep.subr.mxu0 0.0
      %2136 = vmatpush1.msra.mxu0 0.0
      %2137 = vmatprep.subr.mxu0 0.0
      %2138 = vmatpush1.msra.mxu0 0.0
      %2139 = vmatprep.subr.mxu0 0.0
      %2140 = vmatpush1.msra.mxu0 0.0
      %2141 = vmatprep.subr.mxu0 0.0
      %2142 = vmatpush1.msra.mxu0 0.0
      %2143 = vmatprep.subr.mxu0 0.0
      %2144 = vmatpush1.msra.mxu0 0.0
      %2145 = vmatprep.subr.mxu0 0.0
      %2146 = vmatpush1.msra.mxu0 0.0
      %2147 = vmatprep.subr.mxu0 0.0
      %2148 = vmatpush1.msra.mxu0 0.0
      %2149 = vmatprep.subr.mxu0 0.0
      %2150 = vmatpush1.msra.mxu0 0.0
      %2151 = vmatprep.subr.mxu0 0.0
      %2152 = vmatpush1.msra.mxu0 0.0
      %2153 = vmatprep.subr.mxu0 0.0
      %2154 = vmatpush1.msra.mxu0 0.0
      %2155 = vmatprep.subr.mxu0 0.0
      %2156 = vmatpush1.msra.mxu0 0.0
      %2157 = vmatprep.subr.mxu0 0.0
      %2158 = vmatpush1.msra.mxu0 0.0
      %2159 = vmatprep.subr.mxu0 0.0
      %2160 = vmatpush1.msra.mxu0 0.0
      %2161 = vmatprep.subr.mxu0 0.0
      %2162 = vmatpush1.msra.mxu0 0.0
      %2163 = vmatprep.mubr.f32.mxu0 0.0
      %2164 = vmatmul.mubr.f32.gmra.mrb[0].mxu0 %v1682
      %v2165 = vpop.f32.mrb[0].mxu0
      %v2166 = vadd.f32 0.0, %v2165
      %v2167 = vpop.f32.mrb[0].mxu0
      %2168 = vmatprep.mubr.f32.mxu0 0.0
      %2169 = vmatmul.mubr.f32.gmra.mrb[0].mxu0 %v1685
      %v2170 = vpop.f32.mrb[0].mxu0
      %v2171 = vadd.f32 0.0, %v2170
      %v2172 = vpop.f32.mrb[0].mxu0
      %2173 = vmatprep.mubr.f32.mxu0 0.0
      %2174 = vmatmul.mubr.f32.gmra.mrb[0].mxu0 %v1688
      %v2175 = vpop.f32.mrb[0].mxu0
      %v2176 = vadd.f32 0.0, %v2175
      %v2177 = vpop.f32.mrb[0].mxu0
      %2178 = vmatprep.mubr.f32.mxu0 0.0
      %2179 = vmatmul.mubr.f32.gmra.mrb[0].mxu0 %v1691
      %v2180 = vpop.f32.mrb[0].mxu0
      %v2181 = vadd.f32 0.0, %v2180
      %v2182 = vpop.f32.mrb[0].mxu0
      %2183 = vmatprep.mubr.f32.mxu0 0.0
      %2184 = vmatmul.mubr.f32.gmra.mrb[0].mxu0 %v1694
      %v2185 = vpop.f32.mrb[0].mxu0
      %v2186 = vadd.f32 0.0, %v2185
      %v2187 = vpop.f32.mrb[0].mxu0
      %2188 = vmatprep.mubr.f32.mxu0 0.0
      %2189 = vmatmul.mubr.f32.gmra.mrb[0].mxu0 %v1697
      %v2190 = vpop.f32.mrb[0].mxu0
      %v2191 = vadd.f32 0.0, %v2190
      %v2192 = vpop.f32.mrb[0].mxu0
      %2193 = vmatprep.mubr.f32.mxu0 0.0
      %2194 = vmatmul.mubr.f32.gmra.mrb[0].mxu0 %v1700
      %v2195 = vpop.f32.mrb[0].mxu0
      %v2196 = vadd.f32 0.0, %v2195
      %v2197 = vpop.f32.mrb[0].mxu0
      %2198 = vmatprep.mubr.f32.mxu0 0.0
      %2199 = vmatmul.mubr.f32.gmra.mrb[0].mxu0 %v1703
      %v2200 = vpop.f32.mrb[0].mxu0
      %v2201 = vadd.f32 0.0, %v2200
      %v2202 = vpop.f32.mrb[0].mxu0
      %2203 = vmatprep.mubr.f32.mxu0 0.0
      %2204 = vmatmul.mubr.f32.gmra.mrb[0].mxu0 %v1706
      %v2205 = vpop.f32.mrb[0].mxu0
      %v2206 = vadd.f32 0.0, %v2205
      %v2207 = vpop.f32.mrb[0].mxu0
      %2208 = vmatprep.mubr.f32.mxu0 0.0
      %2209 = vmatmul.mubr.f32.gmra.mrb[0].mxu0 %v1709
      %v2210 = vpop.f32.mrb[0].mxu0
      %v2211 = vadd.f32 0.0, %v2210
      %v2212 = vpop.f32.mrb[0].mxu0
      %2213 = vmatprep.mubr.f32.mxu0 0.0
      %2214 = vmatmul.mubr.f32.gmra.mrb[0].mxu0 %v1712
      %v2215 = vpop.f32.mrb[0].mxu0
      %v2216 = vadd.f32 0.0, %v2215
      %v2217 = vpop.f32.mrb[0].mxu0
      %2218 = vmatprep.mubr.f32.mxu0 0.0
      %2219 = vmatmul.mubr.f32.gmra.mrb[0].mxu0 %v1715
      %v2220 = vpop.f32.mrb[0].mxu0
      %v2221 = vadd.f32 0.0, %v2220
      %v2222 = vpop.f32.mrb[0].mxu0
      %2223 = vmatprep.mubr.f32.mxu0 0.0
      %2224 = vmatmul.mubr.f32.gmra.mrb[0].mxu0 %v1718
      %v2225 = vpop.f32.mrb[0].mxu0
      %v2226 = vadd.f32 0.0, %v2225
      %v2227 = vpop.f32.mrb[0].mxu0
      %2228 = vmatprep.mubr.f32.mxu0 0.0
      %2229 = vmatmul.mubr.f32.gmra.mrb[0].mxu0 %v1721
      %v2230 = vpop.f32.mrb[0].mxu0
      %v2231 = vadd.f32 0.0, %v2230
      %v2232 = vpop.f32.mrb[0].mxu0
      %2233 = vmatprep.mubr.f32.mxu0 0.0
      %2234 = vmatmul.mubr.f32.gmra.mrb[0].mxu0 %v1724
      %v2235 = vpop.f32.mrb[0].mxu0
      %v2236 = vadd.f32 0.0, %v2235
      %v2237 = vpop.f32.mrb[0].mxu0
      %2238 = vmatprep.mubr.f32.mxu0 0.0
      %2239 = vmatmul.mubr.f32.gmra.mrb[0].mxu0 %v1727
      %v2240 = vpop.f32.mrb[0].mxu0
      %v2241 = vadd.f32 0.0, %v2240
      %v2242 = vpop.f32.mrb[0].mxu0
      %2243 = vdwg.mxu0
      %v2244 = vadd.f32 %v1375, %v2166
      %v2245 = vadd.f32 %v1376, %v2171
      %v2246 = vadd.f32 %v1377, %v2176
      %v2247 = vadd.f32 %v1378, %v2181
      %v2248 = vadd.f32 %v1379, %v2186
      %v2249 = vadd.f32 %v1380, %v2191
      %v2250 = vadd.f32 %v1381, %v2196
      %v2251 = vadd.f32 %v1382, %v2201
      %v2252 = vadd.f32 %v1383, %v2206
      %v2253 = vadd.f32 %v1384, %v2211
      %v2254 = vadd.f32 %v1385, %v2216
      %v2255 = vadd.f32 %v1386, %v2221
      %v2256 = vadd.f32 %v1387, %v2226
      %v2257 = vadd.f32 %v1388, %v2231
      %v2258 = vadd.f32 %v1389, %v2236
      %v2259 = vadd.f32 %v1390, %v2241
      %2260 = vmatprep.subr.mxu0 0.0
      %2261 = vmatpush1.msra.mxu0 %v1397
      %2262 = vmatprep.subr.mxu0 0.0
      %2263 = vmatpush1.msra.mxu0 %v1398
      %2264 = vmatprep.subr.mxu0 0.0
      %2265 = vmatpush1.msra.mxu0 %v1399
      %2266 = vmatprep.subr.mxu0 0.0
      %2267 = vmatpush1.msra.mxu0 %v1400
      %2268 = vmatprep.subr.mxu0 0.0
      %2269 = vmatpush1.msra.mxu0 0.0
      %2270 = vmatprep.subr.mxu0 0.0
      %2271 = vmatpush1.msra.mxu0 0.0
      %2272 = vmatprep.subr.mxu0 0.0
      %2273 = vmatpush1.msra.mxu0 0.0
      %2274 = vmatprep.subr.mxu0 0.0
      %2275 = vmatpush1.msra.mxu0 0.0
      %2276 = vmatprep.subr.mxu0 0.0
      %2277 = vmatpush1.msra.mxu0 0.0
      %2278 = vmatprep.subr.mxu0 0.0
      %2279 = vmatpush1.msra.mxu0 0.0
      %2280 = vmatprep.subr.mxu0 0.0
      %2281 = vmatpush1.msra.mxu0 0.0
      %2282 = vmatprep.subr.mxu0 0.0
      %2283 = vmatpush1.msra.mxu0 0.0
      %2284 = vmatprep.subr.mxu0 0.0
      %2285 = vmatpush1.msra.mxu0 0.0
      %2286 = vmatprep.subr.mxu0 0.0
      %2287 = vmatpush1.msra.mxu0 0.0
      %2288 = vmatprep.subr.mxu0 0.0
      %2289 = vmatpush1.msra.mxu0 0.0
      %2290 = vmatprep.subr.mxu0 0.0
      %2291 = vmatpush1.msra.mxu0 0.0
      %2292 = vmatprep.subr.mxu0 0.0
      %2293 = vmatpush1.msra.mxu0 0.0
      %2294 = vmatprep.subr.mxu0 0.0
      %2295 = vmatpush1.msra.mxu0 0.0
      %2296 = vmatprep.subr.mxu0 0.0
      %2297 = vmatpush1.msra.mxu0 0.0
      %2298 = vmatprep.subr.mxu0 0.0
      %2299 = vmatpush1.msra.mxu0 0.0
      %2300 = vmatprep.subr.mxu0 0.0
      %2301 = vmatpush1.msra.mxu0 0.0
      %2302 = vmatprep.subr.mxu0 0.0
      %2303 = vmatpush1.msra.mxu0 0.0
      %2304 = vmatprep.subr.mxu0 0.0
      %2305 = vmatpush1.msra.mxu0 0.0
      %2306 = vmatprep.subr.mxu0 0.0
      %2307 = vmatpush1.msra.mxu0 0.0
      %2308 = vmatprep.subr.mxu0 0.0
      %2309 = vmatpush1.msra.mxu0 0.0
      %2310 = vmatprep.subr.mxu0 0.0
      %2311 = vmatpush1.msra.mxu0 0.0
      %2312 = vmatprep.subr.mxu0 0.0
      %2313 = vmatpush1.msra.mxu0 0.0
      %2314 = vmatprep.subr.mxu0 0.0
      %2315 = vmatpush1.msra.mxu0 0.0
      %2316 = vmatprep.subr.mxu0 0.0
      %2317 = vmatpush1.msra.mxu0 0.0
      %2318 = vmatprep.subr.mxu0 0.0
      %2319 = vmatpush1.msra.mxu0 0.0
      %2320 = vmatprep.subr.mxu0 0.0
      %2321 = vmatpush1.msra.mxu0 0.0
      %2322 = vmatprep.subr.mxu0 0.0
      %2323 = vmatpush1.msra.mxu0 0.0
      %2324 = vmatprep.mubr.f32.mxu0 0.0
      %2325 = vmatmul.mubr.f32.gmra.mrb[0].mxu0 %v1891
      %v2326 = vpop.f32.mrb[0].mxu0
      %v2327 = vadd.f32 0.0, %v2326
      %v2328 = vpop.f32.mrb[0].mxu0
      %2329 = vmatprep.mubr.f32.mxu0 0.0
      %2330 = vmatmul.mubr.f32.gmra.mrb[0].mxu0 %v1894
      %v2331 = vpop.f32.mrb[0].mxu0
      %v2332 = vadd.f32 0.0, %v2331
      %v2333 = vpop.f32.mrb[0].mxu0
      %2334 = vmatprep.mubr.f32.mxu0 0.0
      %2335 = vmatmul.mubr.f32.gmra.mrb[0].mxu0 %v1897
      %v2336 = vpop.f32.mrb[0].mxu0
      %v2337 = vadd.f32 0.0, %v2336
      %v2338 = vpop.f32.mrb[0].mxu0
      %2339 = vmatprep.mubr.f32.mxu0 0.0
      %2340 = vmatmul.mubr.f32.gmra.mrb[0].mxu0 %v1900
      %v2341 = vpop.f32.mrb[0].mxu0
      %v2342 = vadd.f32 0.0, %v2341
      %v2343 = vpop.f32.mrb[0].mxu0
      %2344 = vmatprep.mubr.f32.mxu0 0.0
      %2345 = vmatmul.mubr.f32.gmra.mrb[0].mxu0 %v1903
      %v2346 = vpop.f32.mrb[0].mxu0
      %v2347 = vadd.f32 0.0, %v2346
      %v2348 = vpop.f32.mrb[0].mxu0
      %2349 = vmatprep.mubr.f32.mxu0 0.0
      %2350 = vmatmul.mubr.f32.gmra.mrb[0].mxu0 %v1906
      %v2351 = vpop.f32.mrb[0].mxu0
      %v2352 = vadd.f32 0.0, %v2351
      %v2353 = vpop.f32.mrb[0].mxu0
      %2354 = vmatprep.mubr.f32.mxu0 0.0
      %2355 = vmatmul.mubr.f32.gmra.mrb[0].mxu0 %v1909
      %v2356 = vpop.f32.mrb[0].mxu0
      %v2357 = vadd.f32 0.0, %v2356
      %v2358 = vpop.f32.mrb[0].mxu0
      %2359 = vmatprep.mubr.f32.mxu0 0.0
      %2360 = vmatmul.mubr.f32.gmra.mrb[0].mxu0 %v1912
      %v2361 = vpop.f32.mrb[0].mxu0
      %v2362 = vadd.f32 0.0, %v2361
      %v2363 = vpop.f32.mrb[0].mxu0
      %2364 = vmatprep.mubr.f32.mxu0 0.0
      %2365 = vmatmul.mubr.f32.gmra.mrb[0].mxu0 %v1915
      %v2366 = vpop.f32.mrb[0].mxu0
      %v2367 = vadd.f32 0.0, %v2366
      %v2368 = vpop.f32.mrb[0].mxu0
      %2369 = vmatprep.mubr.f32.mxu0 0.0
      %2370 = vmatmul.mubr.f32.gmra.mrb[0].mxu0 %v1918
      %v2371 = vpop.f32.mrb[0].mxu0
      %v2372 = vadd.f32 0.0, %v2371
      %v2373 = vpop.f32.mrb[0].mxu0
      %2374 = vmatprep.mubr.f32.mxu0 0.0
      %2375 = vmatmul.mubr.f32.gmra.mrb[0].mxu0 %v1921
      %v2376 = vpop.f32.mrb[0].mxu0
      %v2377 = vadd.f32 0.0, %v2376
      %v2378 = vpop.f32.mrb[0].mxu0
      %2379 = vmatprep.mubr.f32.mxu0 0.0
      %2380 = vmatmul.mubr.f32.gmra.mrb[0].mxu0 %v1924
      %v2381 = vpop.f32.mrb[0].mxu0
      %v2382 = vadd.f32 0.0, %v2381
      %v2383 = vpop.f32.mrb[0].mxu0
      %2384 = vmatprep.mubr.f32.mxu0 0.0
      %2385 = vmatmul.mubr.f32.gmra.mrb[0].mxu0 %v1927
      %v2386 = vpop.f32.mrb[0].mxu0
      %v2387 = vadd.f32 0.0, %v2386
      %v2388 = vpop.f32.mrb[0].mxu0
      %2389 = vmatprep.mubr.f32.mxu0 0.0
      %2390 = vmatmul.mubr.f32.gmra.mrb[0].mxu0 %v1930
      %v2391 = vpop.f32.mrb[0].mxu0
      %v2392 = vadd.f32 0.0, %v2391
      %v2393 = vpop.f32.mrb[0].mxu0
      %2394 = vmatprep.mubr.f32.mxu0 0.0
      %2395 = vmatmul.mubr.f32.gmra.mrb[0].mxu0 %v1933
      %v2396 = vpop.f32.mrb[0].mxu0
      %v2397 = vadd.f32 0.0, %v2396
      %v2398 = vpop.f32.mrb[0].mxu0
      %2399 = vmatprep.mubr.f32.mxu0 0.0
      %2400 = vmatmul.mubr.f32.gmra.mrb[0].mxu0 %v1936
      %v2401 = vpop.f32.mrb[0].mxu0
      %v2402 = vadd.f32 0.0, %v2401
      %v2403 = vpop.f32.mrb[0].mxu0
      %2404 = vdwg.mxu0
      %v2405 = vadd.f32 %v2244, %v2327
      %v2406 = vadd.f32 %v2245, %v2332
      %v2407 = vadd.f32 %v2246, %v2337
      %v2408 = vadd.f32 %v2247, %v2342
      %v2409 = vadd.f32 %v2248, %v2347
      %v2410 = vadd.f32 %v2249, %v2352
      %v2411 = vadd.f32 %v2250, %v2357
      %v2412 = vadd.f32 %v2251, %v2362
      %v2413 = vadd.f32 %v2252, %v2367
      %v2414 = vadd.f32 %v2253, %v2372
      %v2415 = vadd.f32 %v2254, %v2377
      %v2416 = vadd.f32 %v2255, %v2382
      %v2417 = vadd.f32 %v2256, %v2387
      %v2418 = vadd.f32 %v2257, %v2392
      %v2419 = vadd.f32 %v2258, %v2397
      %v2420 = vadd.f32 %v2259, %v2402
      %v2422 = vsel %vm296, %v1456, 0
      %v2425 = vsel %vm296, %v1457, 0
      %v2428 = vsel %vm296, %v1458, 0
      %v2431 = vsel %vm296, %v1459, 0
      %v2434 = vsel %vm296, %v1460, 0
      %v2437 = vsel %vm296, %v1461, 0
      %v2440 = vsel %vm296, %v1462, 0
      %v2443 = vsel %vm296, %v1463, 0
      %v2446 = vsel %vm296, %v1464, 0
      %v2449 = vsel %vm296, %v1465, 0
      %v2452 = vsel %vm296, %v1466, 0
      %v2455 = vsel %vm296, %v1467, 0
      %v2458 = vsel %vm296, %v1468, 0
      %v2461 = vsel %vm296, %v1469, 0
      %v2464 = vsel %vm296, %v1470, 0
      %v2467 = vsel %vm296, %v1471, 0
      %2469 = vmatprep.subr.mxu0 0.0
      %2470 = vmatpush1.msra.mxu0 %v1402
      %2471 = vmatprep.subr.mxu0 0.0
      %2472 = vmatpush1.msra.mxu0 %v1403
      %2473 = vmatprep.subr.mxu0 0.0
      %2474 = vmatpush1.msra.mxu0 %v1404
      %2475 = vmatprep.subr.mxu0 0.0
      %2476 = vmatpush1.msra.mxu0 %v1405
      %2477 = vmatprep.subr.mxu0 0.0
      %2478 = vmatpush1.msra.mxu0 0.0
      %2479 = vmatprep.subr.mxu0 0.0
      %2480 = vmatpush1.msra.mxu0 0.0
      %2481 = vmatprep.subr.mxu0 0.0
      %2482 = vmatpush1.msra.mxu0 0.0
      %2483 = vmatprep.subr.mxu0 0.0
      %2484 = vmatpush1.msra.mxu0 0.0
      %2485 = vmatprep.subr.mxu0 0.0
      %2486 = vmatpush1.msra.mxu0 0.0
      %2487 = vmatprep.subr.mxu0 0.0
      %2488 = vmatpush1.msra.mxu0 0.0
      %2489 = vmatprep.subr.mxu0 0.0
      %2490 = vmatpush1.msra.mxu0 0.0
      %2491 = vmatprep.subr.mxu0 0.0
      %2492 = vmatpush1.msra.mxu0 0.0
      %2493 = vmatprep.subr.mxu0 0.0
      %2494 = vmatpush1.msra.mxu0 0.0
      %2495 = vmatprep.subr.mxu0 0.0
      %2496 = vmatpush1.msra.mxu0 0.0
      %2497 = vmatprep.subr.mxu0 0.0
      %2498 = vmatpush1.msra.mxu0 0.0
      %2499 = vmatprep.subr.mxu0 0.0
      %2500 = vmatpush1.msra.mxu0 0.0
      %2501 = vmatprep.subr.mxu0 0.0
      %2502 = vmatpush1.msra.mxu0 0.0
      %2503 = vmatprep.subr.mxu0 0.0
      %2504 = vmatpush1.msra.mxu0 0.0
      %2505 = vmatprep.subr.mxu0 0.0
      %2506 = vmatpush1.msra.mxu0 0.0
      %2507 = vmatprep.subr.mxu0 0.0
      %2508 = vmatpush1.msra.mxu0 0.0
      %2509 = vmatprep.subr.mxu0 0.0
      %2510 = vmatpush1.msra.mxu0 0.0
      %2511 = vmatprep.subr.mxu0 0.0
      %2512 = vmatpush1.msra.mxu0 0.0
      %2513 = vmatprep.subr.mxu0 0.0
      %2514 = vmatpush1.msra.mxu0 0.0
      %2515 = vmatprep.subr.mxu0 0.0
      %2516 = vmatpush1.msra.mxu0 0.0
      %2517 = vmatprep.subr.mxu0 0.0
      %2518 = vmatpush1.msra.mxu0 0.0
      %2519 = vmatprep.subr.mxu0 0.0
      %2520 = vmatpush1.msra.mxu0 0.0
      %2521 = vmatprep.subr.mxu0 0.0
      %2522 = vmatpush1.msra.mxu0 0.0
      %2523 = vmatprep.subr.mxu0 0.0
      %2524 = vmatpush1.msra.mxu0 0.0
      %2525 = vmatprep.subr.mxu0 0.0
      %2526 = vmatpush1.msra.mxu0 0.0
      %2527 = vmatprep.subr.mxu0 0.0
      %2528 = vmatpush1.msra.mxu0 0.0
      %2529 = vmatprep.subr.mxu0 0.0
      %2530 = vmatpush1.msra.mxu0 0.0
      %2531 = vmatprep.subr.mxu0 0.0
      %2532 = vmatpush1.msra.mxu0 0.0
      %2533 = vmatprep.mubr.f32.mxu0 0.0
      %2534 = vmatmul.mubr.f32.gmra.mrb[0].mxu0 %v2422
      %v2535 = vpop.f32.mrb[0].mxu0
      %v2536 = vadd.f32 0.0, %v2535
      %v2537 = vpop.f32.mrb[0].mxu0
      %2538 = vmatprep.mubr.f32.mxu0 0.0
      %2539 = vmatmul.mubr.f32.gmra.mrb[0].mxu0 %v2425
      %v2540 = vpop.f32.mrb[0].mxu0
      %v2541 = vadd.f32 0.0, %v2540
      %v2542 = vpop.f32.mrb[0].mxu0
      %2543 = vmatprep.mubr.f32.mxu0 0.0
      %2544 = vmatmul.mubr.f32.gmra.mrb[0].mxu0 %v2428
      %v2545 = vpop.f32.mrb[0].mxu0
      %v2546 = vadd.f32 0.0, %v2545
      %v2547 = vpop.f32.mrb[0].mxu0
      %2548 = vmatprep.mubr.f32.mxu0 0.0
      %2549 = vmatmul.mubr.f32.gmra.mrb[0].mxu0 %v2431
      %v2550 = vpop.f32.mrb[0].mxu0
      %v2551 = vadd.f32 0.0, %v2550
      %v2552 = vpop.f32.mrb[0].mxu0
      %2553 = vmatprep.mubr.f32.mxu0 0.0
      %2554 = vmatmul.mubr.f32.gmra.mrb[0].mxu0 %v2434
      %v2555 = vpop.f32.mrb[0].mxu0
      %v2556 = vadd.f32 0.0, %v2555
      %v2557 = vpop.f32.mrb[0].mxu0
      %2558 = vmatprep.mubr.f32.mxu0 0.0
      %2559 = vmatmul.mubr.f32.gmra.mrb[0].mxu0 %v2437
      %v2560 = vpop.f32.mrb[0].mxu0
      %v2561 = vadd.f32 0.0, %v2560
      %v2562 = vpop.f32.mrb[0].mxu0
      %2563 = vmatprep.mubr.f32.mxu0 0.0
      %2564 = vmatmul.mubr.f32.gmra.mrb[0].mxu0 %v2440
      %v2565 = vpop.f32.mrb[0].mxu0
      %v2566 = vadd.f32 0.0, %v2565
      %v2567 = vpop.f32.mrb[0].mxu0
      %2568 = vmatprep.mubr.f32.mxu0 0.0
      %2569 = vmatmul.mubr.f32.gmra.mrb[0].mxu0 %v2443
      %v2570 = vpop.f32.mrb[0].mxu0
      %v2571 = vadd.f32 0.0, %v2570
      %v2572 = vpop.f32.mrb[0].mxu0
      %2573 = vmatprep.mubr.f32.mxu0 0.0
      %2574 = vmatmul.mubr.f32.gmra.mrb[0].mxu0 %v2446
      %v2575 = vpop.f32.mrb[0].mxu0
      %v2576 = vadd.f32 0.0, %v2575
      %v2577 = vpop.f32.mrb[0].mxu0
      %2578 = vmatprep.mubr.f32.mxu0 0.0
      %2579 = vmatmul.mubr.f32.gmra.mrb[0].mxu0 %v2449
      %v2580 = vpop.f32.mrb[0].mxu0
      %v2581 = vadd.f32 0.0, %v2580
      %v2582 = vpop.f32.mrb[0].mxu0
      %2583 = vmatprep.mubr.f32.mxu0 0.0
      %2584 = vmatmul.mubr.f32.gmra.mrb[0].mxu0 %v2452
      %v2585 = vpop.f32.mrb[0].mxu0
      %v2586 = vadd.f32 0.0, %v2585
      %v2587 = vpop.f32.mrb[0].mxu0
      %2588 = vmatprep.mubr.f32.mxu0 0.0
      %2589 = vmatmul.mubr.f32.gmra.mrb[0].mxu0 %v2455
      %v2590 = vpop.f32.mrb[0].mxu0
      %v2591 = vadd.f32 0.0, %v2590
      %v2592 = vpop.f32.mrb[0].mxu0
      %2593 = vmatprep.mubr.f32.mxu0 0.0
      %2594 = vmatmul.mubr.f32.gmra.mrb[0].mxu0 %v2458
      %v2595 = vpop.f32.mrb[0].mxu0
      %v2596 = vadd.f32 0.0, %v2595
      %v2597 = vpop.f32.mrb[0].mxu0
      %2598 = vmatprep.mubr.f32.mxu0 0.0
      %2599 = vmatmul.mubr.f32.gmra.mrb[0].mxu0 %v2461
      %v2600 = vpop.f32.mrb[0].mxu0
      %v2601 = vadd.f32 0.0, %v2600
      %v2602 = vpop.f32.mrb[0].mxu0
      %2603 = vmatprep.mubr.f32.mxu0 0.0
      %2604 = vmatmul.mubr.f32.gmra.mrb[0].mxu0 %v2464
      %v2605 = vpop.f32.mrb[0].mxu0
      %v2606 = vadd.f32 0.0, %v2605
      %v2607 = vpop.f32.mrb[0].mxu0
      %2608 = vmatprep.mubr.f32.mxu0 0.0
      %2609 = vmatmul.mubr.f32.gmra.mrb[0].mxu0 %v2467
      %v2610 = vpop.f32.mrb[0].mxu0
      %v2611 = vadd.f32 0.0, %v2610
      %v2612 = vpop.f32.mrb[0].mxu0
      %2613 = vdwg.mxu0
      %v2614 = vadd.f32 %v2405, %v2536
      %v2615 = vadd.f32 %v2406, %v2541
      %v2616 = vadd.f32 %v2407, %v2546
      %v2617 = vadd.f32 %v2408, %v2551
      %v2618 = vadd.f32 %v2409, %v2556
      %v2619 = vadd.f32 %v2410, %v2561
      %v2620 = vadd.f32 %v2411, %v2566
      %v2621 = vadd.f32 %v2412, %v2571
      %v2622 = vadd.f32 %v2413, %v2576
      %v2623 = vadd.f32 %v2414, %v2581
      %v2624 = vadd.f32 %v2415, %v2586
      %v2625 = vadd.f32 %v2416, %v2591
      %v2626 = vadd.f32 %v2417, %v2596
      %v2627 = vadd.f32 %v2418, %v2601
      %v2628 = vadd.f32 %v2419, %v2606
      %v2629 = vadd.f32 %v2420, %v2611
      %s2630 = scalar_lea.vmem %s2, 192
      %v2631 = vld [vmem:[%s2630] sm:$0xff]
      %v2632 = vld [vmem:[%s2630 + $0x8] sm:$0xff]
      %v2633 = vld [vmem:[%s2630 + $0x10] sm:$0xff]
      %v2634 = vld [vmem:[%s2630 + $0x18] sm:$0xff]
      %s2635 = scalar_lea.vmem %s2, 224
      %v2636 = vld [vmem:[%s2635] sm:$0xff]
      %v2637 = vld [vmem:[%s2635 + $0x8] sm:$0xff]
      %v2638 = vld [vmem:[%s2635 + $0x10] sm:$0xff]
      %v2639 = vld [vmem:[%s2635 + $0x18] sm:$0xff]
      %s2640 = scalar_lea.vmem %s2, 256
      %v2641 = vld [vmem:[%s2640] sm:$0xff]
      %v2642 = vld [vmem:[%s2640 + $0x8] sm:$0xff]
      %v2643 = vld [vmem:[%s2640 + $0x10] sm:$0xff]
      %v2644 = vld [vmem:[%s2640 + $0x18] sm:$0xff]
      %s2645 = scalar_lea.vmem %s207, 32
      %v2646 = vld [vmem:[%s2645] sm:$0xff]
      %v2647 = vld [vmem:[%s2645 + $0x10] sm:$0xff]
      %v2648 = vld [vmem:[%s2645 + $0x20] sm:$0xff]
      %v2649 = vld [vmem:[%s2645 + $0x30] sm:$0xff]
      %v2650 = vld [vmem:[%s2645 + $0x40] sm:$0xff]
      %v2651 = vld [vmem:[%s2645 + $0x50] sm:$0xff]
      %v2652 = vld [vmem:[%s2645 + $0x60] sm:$0xff]
      %v2653 = vld [vmem:[%s2645 + $0x70] sm:$0xff]
      %v2654 = vld [vmem:[%s2645 + $0x80] sm:$0xff]
      %v2655 = vld [vmem:[%s2645 + $0x90] sm:$0xff]
      %v2656 = vld [vmem:[%s2645 + $0xa0] sm:$0xff]
      %v2657 = vld [vmem:[%s2645 + $0xb0] sm:$0xff]
      %v2658 = vld [vmem:[%s2645 + $0xc0] sm:$0xff]
      %v2659 = vld [vmem:[%s2645 + $0xd0] sm:$0xff]
      %v2660 = vld [vmem:[%s2645 + $0xe0] sm:$0xff]
      %v2661 = vld [vmem:[%s2645 + $0xf0] sm:$0xff]
      %s2662 = scalar_lea.vmem %s212, 32
      %v2663 = vld [vmem:[%s2662] sm:$0xff]
      %v2664 = vld [vmem:[%s2662 + $0x10] sm:$0xff]
      %v2665 = vld [vmem:[%s2662 + $0x20] sm:$0xff]
      %v2666 = vld [vmem:[%s2662 + $0x30] sm:$0xff]
      %v2667 = vld [vmem:[%s2662 + $0x40] sm:$0xff]
      %v2668 = vld [vmem:[%s2662 + $0x50] sm:$0xff]
      %v2669 = vld [vmem:[%s2662 + $0x60] sm:$0xff]
      %v2670 = vld [vmem:[%s2662 + $0x70] sm:$0xff]
      %v2671 = vld [vmem:[%s2662 + $0x80] sm:$0xff]
      %v2672 = vld [vmem:[%s2662 + $0x90] sm:$0xff]
      %v2673 = vld [vmem:[%s2662 + $0xa0] sm:$0xff]
      %v2674 = vld [vmem:[%s2662 + $0xb0] sm:$0xff]
      %v2675 = vld [vmem:[%s2662 + $0xc0] sm:$0xff]
      %v2676 = vld [vmem:[%s2662 + $0xd0] sm:$0xff]
      %v2677 = vld [vmem:[%s2662 + $0xe0] sm:$0xff]
      %v2678 = vld [vmem:[%s2662 + $0xf0] sm:$0xff]
      %v2679 = vld [vmem:[%s2645 + $0x1] sm:$0xff]
      %v2680 = vld [vmem:[%s2645 + $0x11] sm:$0xff]
      %v2681 = vld [vmem:[%s2645 + $0x21] sm:$0xff]
      %v2682 = vld [vmem:[%s2645 + $0x31] sm:$0xff]
      %v2683 = vld [vmem:[%s2645 + $0x41] sm:$0xff]
      %v2684 = vld [vmem:[%s2645 + $0x51] sm:$0xff]
      %v2685 = vld [vmem:[%s2645 + $0x61] sm:$0xff]
      %v2686 = vld [vmem:[%s2645 + $0x71] sm:$0xff]
      %v2687 = vld [vmem:[%s2645 + $0x81] sm:$0xff]
      %v2688 = vld [vmem:[%s2645 + $0x91] sm:$0xff]
      %v2689 = vld [vmem:[%s2645 + $0xa1] sm:$0xff]
      %v2690 = vld [vmem:[%s2645 + $0xb1] sm:$0xff]
      %v2691 = vld [vmem:[%s2645 + $0xc1] sm:$0xff]
      %v2692 = vld [vmem:[%s2645 + $0xd1] sm:$0xff]
      %v2693 = vld [vmem:[%s2645 + $0xe1] sm:$0xff]
      %v2694 = vld [vmem:[%s2645 + $0xf1] sm:$0xff]
      %v2695 = vld [vmem:[%s2662 + $0x1] sm:$0xff]
      %v2696 = vld [vmem:[%s2662 + $0x11] sm:$0xff]
      %v2697 = vld [vmem:[%s2662 + $0x21] sm:$0xff]
      %v2698 = vld [vmem:[%s2662 + $0x31] sm:$0xff]
      %v2699 = vld [vmem:[%s2662 + $0x41] sm:$0xff]
      %v2700 = vld [vmem:[%s2662 + $0x51] sm:$0xff]
      %v2701 = vld [vmem:[%s2662 + $0x61] sm:$0xff]
      %v2702 = vld [vmem:[%s2662 + $0x71] sm:$0xff]
      %v2703 = vld [vmem:[%s2662 + $0x81] sm:$0xff]
      %v2704 = vld [vmem:[%s2662 + $0x91] sm:$0xff]
      %v2705 = vld [vmem:[%s2662 + $0xa1] sm:$0xff]
      %v2706 = vld [vmem:[%s2662 + $0xb1] sm:$0xff]
      %v2707 = vld [vmem:[%s2662 + $0xc1] sm:$0xff]
      %v2708 = vld [vmem:[%s2662 + $0xd1] sm:$0xff]
      %v2709 = vld [vmem:[%s2662 + $0xe1] sm:$0xff]
      %v2710 = vld [vmem:[%s2662 + $0xf1] sm:$0xff]
      %v2712 = vsel %vm296, %v2646, 0
      %v2715 = vsel %vm296, %v2647, 0
      %v2718 = vsel %vm296, %v2648, 0
      %v2721 = vsel %vm296, %v2649, 0
      %v2724 = vsel %vm296, %v2650, 0
      %v2727 = vsel %vm296, %v2651, 0
      %v2730 = vsel %vm296, %v2652, 0
      %v2733 = vsel %vm296, %v2653, 0
      %v2736 = vsel %vm296, %v2654, 0
      %v2739 = vsel %vm296, %v2655, 0
      %v2742 = vsel %vm296, %v2656, 0
      %v2745 = vsel %vm296, %v2657, 0
      %v2748 = vsel %vm296, %v2658, 0
      %v2751 = vsel %vm296, %v2659, 0
      %v2754 = vsel %vm296, %v2660, 0
      %v2757 = vsel %vm296, %v2661, 0
      %2759 = vmatprep.subr.mxu0 0.0
      %2760 = vmatpush1.msra.mxu0 %v2631
      %2761 = vmatprep.subr.mxu0 0.0
      %2762 = vmatpush1.msra.mxu0 %v2632
      %2763 = vmatprep.subr.mxu0 0.0
      %2764 = vmatpush1.msra.mxu0 %v2633
      %2765 = vmatprep.subr.mxu0 0.0
      %2766 = vmatpush1.msra.mxu0 %v2634
      %2767 = vmatprep.subr.mxu0 0.0
      %2768 = vmatpush1.msra.mxu0 0.0
      %2769 = vmatprep.subr.mxu0 0.0
      %2770 = vmatpush1.msra.mxu0 0.0
      %2771 = vmatprep.subr.mxu0 0.0
      %2772 = vmatpush1.msra.mxu0 0.0
      %2773 = vmatprep.subr.mxu0 0.0
      %2774 = vmatpush1.msra.mxu0 0.0
      %2775 = vmatprep.subr.mxu0 0.0
      %2776 = vmatpush1.msra.mxu0 0.0
      %2777 = vmatprep.subr.mxu0 0.0
      %2778 = vmatpush1.msra.mxu0 0.0
      %2779 = vmatprep.subr.mxu0 0.0
      %2780 = vmatpush1.msra.mxu0 0.0
      %2781 = vmatprep.subr.mxu0 0.0
      %2782 = vmatpush1.msra.mxu0 0.0
      %2783 = vmatprep.subr.mxu0 0.0
      %2784 = vmatpush1.msra.mxu0 0.0
      %2785 = vmatprep.subr.mxu0 0.0
      %2786 = vmatpush1.msra.mxu0 0.0
      %2787 = vmatprep.subr.mxu0 0.0
      %2788 = vmatpush1.msra.mxu0 0.0
      %2789 = vmatprep.subr.mxu0 0.0
      %2790 = vmatpush1.msra.mxu0 0.0
      %2791 = vmatprep.subr.mxu0 0.0
      %2792 = vmatpush1.msra.mxu0 0.0
      %2793 = vmatprep.subr.mxu0 0.0
      %2794 = vmatpush1.msra.mxu0 0.0
      %2795 = vmatprep.subr.mxu0 0.0
      %2796 = vmatpush1.msra.mxu0 0.0
      %2797 = vmatprep.subr.mxu0 0.0
      %2798 = vmatpush1.msra.mxu0 0.0
      %2799 = vmatprep.subr.mxu0 0.0
      %2800 = vmatpush1.msra.mxu0 0.0
      %2801 = vmatprep.subr.mxu0 0.0
      %2802 = vmatpush1.msra.mxu0 0.0
      %2803 = vmatprep.subr.mxu0 0.0
      %2804 = vmatpush1.msra.mxu0 0.0
      %2805 = vmatprep.subr.mxu0 0.0
      %2806 = vmatpush1.msra.mxu0 0.0
      %2807 = vmatprep.subr.mxu0 0.0
      %2808 = vmatpush1.msra.mxu0 0.0
      %2809 = vmatprep.subr.mxu0 0.0
      %2810 = vmatpush1.msra.mxu0 0.0
      %2811 = vmatprep.subr.mxu0 0.0
      %2812 = vmatpush1.msra.mxu0 0.0
      %2813 = vmatprep.subr.mxu0 0.0
      %2814 = vmatpush1.msra.mxu0 0.0
      %2815 = vmatprep.subr.mxu0 0.0
      %2816 = vmatpush1.msra.mxu0 0.0
      %2817 = vmatprep.subr.mxu0 0.0
      %2818 = vmatpush1.msra.mxu0 0.0
      %2819 = vmatprep.subr.mxu0 0.0
      %2820 = vmatpush1.msra.mxu0 0.0
      %2821 = vmatprep.subr.mxu0 0.0
      %2822 = vmatpush1.msra.mxu0 0.0
      %2823 = vmatprep.mubr.f32.mxu0 0.0
      %2824 = vmatmul.mubr.f32.gmra.mrb[0].mxu0 %v2712
      %v2825 = vpop.f32.mrb[0].mxu0
      %v2826 = vadd.f32 0.0, %v2825
      %v2827 = vpop.f32.mrb[0].mxu0
      %2828 = vmatprep.mubr.f32.mxu0 0.0
      %2829 = vmatmul.mubr.f32.gmra.mrb[0].mxu0 %v2715
      %v2830 = vpop.f32.mrb[0].mxu0
      %v2831 = vadd.f32 0.0, %v2830
      %v2832 = vpop.f32.mrb[0].mxu0
      %2833 = vmatprep.mubr.f32.mxu0 0.0
      %2834 = vmatmul.mubr.f32.gmra.mrb[0].mxu0 %v2718
      %v2835 = vpop.f32.mrb[0].mxu0
      %v2836 = vadd.f32 0.0, %v2835
      %v2837 = vpop.f32.mrb[0].mxu0
      %2838 = vmatprep.mubr.f32.mxu0 0.0
      %2839 = vmatmul.mubr.f32.gmra.mrb[0].mxu0 %v2721
      %v2840 = vpop.f32.mrb[0].mxu0
      %v2841 = vadd.f32 0.0, %v2840
      %v2842 = vpop.f32.mrb[0].mxu0
      %2843 = vmatprep.mubr.f32.mxu0 0.0
      %2844 = vmatmul.mubr.f32.gmra.mrb[0].mxu0 %v2724
      %v2845 = vpop.f32.mrb[0].mxu0
      %v2846 = vadd.f32 0.0, %v2845
      %v2847 = vpop.f32.mrb[0].mxu0
      %2848 = vmatprep.mubr.f32.mxu0 0.0
      %2849 = vmatmul.mubr.f32.gmra.mrb[0].mxu0 %v2727
      %v2850 = vpop.f32.mrb[0].mxu0
      %v2851 = vadd.f32 0.0, %v2850
      %v2852 = vpop.f32.mrb[0].mxu0
      %2853 = vmatprep.mubr.f32.mxu0 0.0
      %2854 = vmatmul.mubr.f32.gmra.mrb[0].mxu0 %v2730
      %v2855 = vpop.f32.mrb[0].mxu0
      %v2856 = vadd.f32 0.0, %v2855
      %v2857 = vpop.f32.mrb[0].mxu0
      %2858 = vmatprep.mubr.f32.mxu0 0.0
      %2859 = vmatmul.mubr.f32.gmra.mrb[0].mxu0 %v2733
      %v2860 = vpop.f32.mrb[0].mxu0
      %v2861 = vadd.f32 0.0, %v2860
      %v2862 = vpop.f32.mrb[0].mxu0
      %2863 = vmatprep.mubr.f32.mxu0 0.0
      %2864 = vmatmul.mubr.f32.gmra.mrb[0].mxu0 %v2736
      %v2865 = vpop.f32.mrb[0].mxu0
      %v2866 = vadd.f32 0.0, %v2865
      %v2867 = vpop.f32.mrb[0].mxu0
      %2868 = vmatprep.mubr.f32.mxu0 0.0
      %2869 = vmatmul.mubr.f32.gmra.mrb[0].mxu0 %v2739
      %v2870 = vpop.f32.mrb[0].mxu0
      %v2871 = vadd.f32 0.0, %v2870
      %v2872 = vpop.f32.mrb[0].mxu0
      %2873 = vmatprep.mubr.f32.mxu0 0.0
      %2874 = vmatmul.mubr.f32.gmra.mrb[0].mxu0 %v2742
      %v2875 = vpop.f32.mrb[0].mxu0
      %v2876 = vadd.f32 0.0, %v2875
      %v2877 = vpop.f32.mrb[0].mxu0
      %2878 = vmatprep.mubr.f32.mxu0 0.0
      %2879 = vmatmul.mubr.f32.gmra.mrb[0].mxu0 %v2745
      %v2880 = vpop.f32.mrb[0].mxu0
      %v2881 = vadd.f32 0.0, %v2880
      %v2882 = vpop.f32.mrb[0].mxu0
      %2883 = vmatprep.mubr.f32.mxu0 0.0
      %2884 = vmatmul.mubr.f32.gmra.mrb[0].mxu0 %v2748
      %v2885 = vpop.f32.mrb[0].mxu0
      %v2886 = vadd.f32 0.0, %v2885
      %v2887 = vpop.f32.mrb[0].mxu0
      %2888 = vmatprep.mubr.f32.mxu0 0.0
      %2889 = vmatmul.mubr.f32.gmra.mrb[0].mxu0 %v2751
      %v2890 = vpop.f32.mrb[0].mxu0
      %v2891 = vadd.f32 0.0, %v2890
      %v2892 = vpop.f32.mrb[0].mxu0
      %2893 = vmatprep.mubr.f32.mxu0 0.0
      %2894 = vmatmul.mubr.f32.gmra.mrb[0].mxu0 %v2754
      %v2895 = vpop.f32.mrb[0].mxu0
      %v2896 = vadd.f32 0.0, %v2895
      %v2897 = vpop.f32.mrb[0].mxu0
      %2898 = vmatprep.mubr.f32.mxu0 0.0
      %2899 = vmatmul.mubr.f32.gmra.mrb[0].mxu0 %v2757
      %v2900 = vpop.f32.mrb[0].mxu0
      %v2901 = vadd.f32 0.0, %v2900
      %v2902 = vpop.f32.mrb[0].mxu0
      %2903 = vdwg.mxu0
      %v2904 = vadd.f32 %v2083, %v2826
      %v2905 = vadd.f32 %v2084, %v2831
      %v2906 = vadd.f32 %v2085, %v2836
      %v2907 = vadd.f32 %v2086, %v2841
      %v2908 = vadd.f32 %v2087, %v2846
      %v2909 = vadd.f32 %v2088, %v2851
      %v2910 = vadd.f32 %v2089, %v2856
      %v2911 = vadd.f32 %v2090, %v2861
      %v2912 = vadd.f32 %v2091, %v2866
      %v2913 = vadd.f32 %v2092, %v2871
      %v2914 = vadd.f32 %v2093, %v2876
      %v2915 = vadd.f32 %v2094, %v2881
      %v2916 = vadd.f32 %v2095, %v2886
      %v2917 = vadd.f32 %v2096, %v2891
      %v2918 = vadd.f32 %v2097, %v2896
      %v2919 = vadd.f32 %v2098, %v2901
      %v2921 = vsel %vm296, %v2663, 0
      %v2924 = vsel %vm296, %v2664, 0
      %v2927 = vsel %vm296, %v2665, 0
      %v2930 = vsel %vm296, %v2666, 0
      %v2933 = vsel %vm296, %v2667, 0
      %v2936 = vsel %vm296, %v2668, 0
      %v2939 = vsel %vm296, %v2669, 0
      %v2942 = vsel %vm296, %v2670, 0
      %v2945 = vsel %vm296, %v2671, 0
      %v2948 = vsel %vm296, %v2672, 0
      %v2951 = vsel %vm296, %v2673, 0
      %v2954 = vsel %vm296, %v2674, 0
      %v2957 = vsel %vm296, %v2675, 0
      %v2960 = vsel %vm296, %v2676, 0
      %v2963 = vsel %vm296, %v2677, 0
      %v2966 = vsel %vm296, %v2678, 0
      %2968 = vmatprep.subr.mxu0 0.0
      %2969 = vmatpush1.msra.mxu0 %v2636
      %2970 = vmatprep.subr.mxu0 0.0
      %2971 = vmatpush1.msra.mxu0 %v2637
      %2972 = vmatprep.subr.mxu0 0.0
      %2973 = vmatpush1.msra.mxu0 %v2638
      %2974 = vmatprep.subr.mxu0 0.0
      %2975 = vmatpush1.msra.mxu0 %v2639
      %2976 = vmatprep.subr.mxu0 0.0
      %2977 = vmatpush1.msra.mxu0 0.0
      %2978 = vmatprep.subr.mxu0 0.0
      %2979 = vmatpush1.msra.mxu0 0.0
      %2980 = vmatprep.subr.mxu0 0.0
      %2981 = vmatpush1.msra.mxu0 0.0
      %2982 = vmatprep.subr.mxu0 0.0
      %2983 = vmatpush1.msra.mxu0 0.0
      %2984 = vmatprep.subr.mxu0 0.0
      %2985 = vmatpush1.msra.mxu0 0.0
      %2986 = vmatprep.subr.mxu0 0.0
      %2987 = vmatpush1.msra.mxu0 0.0
      %2988 = vmatprep.subr.mxu0 0.0
      %2989 = vmatpush1.msra.mxu0 0.0
      %2990 = vmatprep.subr.mxu0 0.0
      %2991 = vmatpush1.msra.mxu0 0.0
      %2992 = vmatprep.subr.mxu0 0.0
      %2993 = vmatpush1.msra.mxu0 0.0
      %2994 = vmatprep.subr.mxu0 0.0
      %2995 = vmatpush1.msra.mxu0 0.0
      %2996 = vmatprep.subr.mxu0 0.0
      %2997 = vmatpush1.msra.mxu0 0.0
      %2998 = vmatprep.subr.mxu0 0.0
      %2999 = vmatpush1.msra.mxu0 0.0
      %3000 = vmatprep.subr.mxu0 0.0
      %3001 = vmatpush1.msra.mxu0 0.0
      %3002 = vmatprep.subr.mxu0 0.0
      %3003 = vmatpush1.msra.mxu0 0.0
      %3004 = vmatprep.subr.mxu0 0.0
      %3005 = vmatpush1.msra.mxu0 0.0
      %3006 = vmatprep.subr.mxu0 0.0
      %3007 = vmatpush1.msra.mxu0 0.0
      %3008 = vmatprep.subr.mxu0 0.0
      %3009 = vmatpush1.msra.mxu0 0.0
      %3010 = vmatprep.subr.mxu0 0.0
      %3011 = vmatpush1.msra.mxu0 0.0
      %3012 = vmatprep.subr.mxu0 0.0
      %3013 = vmatpush1.msra.mxu0 0.0
      %3014 = vmatprep.subr.mxu0 0.0
      %3015 = vmatpush1.msra.mxu0 0.0
      %3016 = vmatprep.subr.mxu0 0.0
      %3017 = vmatpush1.msra.mxu0 0.0
      %3018 = vmatprep.subr.mxu0 0.0
      %3019 = vmatpush1.msra.mxu0 0.0
      %3020 = vmatprep.subr.mxu0 0.0
      %3021 = vmatpush1.msra.mxu0 0.0
      %3022 = vmatprep.subr.mxu0 0.0
      %3023 = vmatpush1.msra.mxu0 0.0
      %3024 = vmatprep.subr.mxu0 0.0
      %3025 = vmatpush1.msra.mxu0 0.0
      %3026 = vmatprep.subr.mxu0 0.0
      %3027 = vmatpush1.msra.mxu0 0.0
      %3028 = vmatprep.subr.mxu0 0.0
      %3029 = vmatpush1.msra.mxu0 0.0
      %3030 = vmatprep.subr.mxu0 0.0
      %3031 = vmatpush1.msra.mxu0 0.0
      %3032 = vmatprep.mubr.f32.mxu0 0.0
      %3033 = vmatmul.mubr.f32.gmra.mrb[0].mxu0 %v2921
      %v3034 = vpop.f32.mrb[0].mxu0
      %v3035 = vadd.f32 0.0, %v3034
      %v3036 = vpop.f32.mrb[0].mxu0
      %3037 = vmatprep.mubr.f32.mxu0 0.0
      %3038 = vmatmul.mubr.f32.gmra.mrb[0].mxu0 %v2924
      %v3039 = vpop.f32.mrb[0].mxu0
      %v3040 = vadd.f32 0.0, %v3039
      %v3041 = vpop.f32.mrb[0].mxu0
      %3042 = vmatprep.mubr.f32.mxu0 0.0
      %3043 = vmatmul.mubr.f32.gmra.mrb[0].mxu0 %v2927
      %v3044 = vpop.f32.mrb[0].mxu0
      %v3045 = vadd.f32 0.0, %v3044
      %v3046 = vpop.f32.mrb[0].mxu0
      %3047 = vmatprep.mubr.f32.mxu0 0.0
      %3048 = vmatmul.mubr.f32.gmra.mrb[0].mxu0 %v2930
      %v3049 = vpop.f32.mrb[0].mxu0
      %v3050 = vadd.f32 0.0, %v3049
      %v3051 = vpop.f32.mrb[0].mxu0
      %3052 = vmatprep.mubr.f32.mxu0 0.0
      %3053 = vmatmul.mubr.f32.gmra.mrb[0].mxu0 %v2933
      %v3054 = vpop.f32.mrb[0].mxu0
      %v3055 = vadd.f32 0.0, %v3054
      %v3056 = vpop.f32.mrb[0].mxu0
      %3057 = vmatprep.mubr.f32.mxu0 0.0
      %3058 = vmatmul.mubr.f32.gmra.mrb[0].mxu0 %v2936
      %v3059 = vpop.f32.mrb[0].mxu0
      %v3060 = vadd.f32 0.0, %v3059
      %v3061 = vpop.f32.mrb[0].mxu0
      %3062 = vmatprep.mubr.f32.mxu0 0.0
      %3063 = vmatmul.mubr.f32.gmra.mrb[0].mxu0 %v2939
      %v3064 = vpop.f32.mrb[0].mxu0
      %v3065 = vadd.f32 0.0, %v3064
      %v3066 = vpop.f32.mrb[0].mxu0
      %3067 = vmatprep.mubr.f32.mxu0 0.0
      %3068 = vmatmul.mubr.f32.gmra.mrb[0].mxu0 %v2942
      %v3069 = vpop.f32.mrb[0].mxu0
      %v3070 = vadd.f32 0.0, %v3069
      %v3071 = vpop.f32.mrb[0].mxu0
      %3072 = vmatprep.mubr.f32.mxu0 0.0
      %3073 = vmatmul.mubr.f32.gmra.mrb[0].mxu0 %v2945
      %v3074 = vpop.f32.mrb[0].mxu0
      %v3075 = vadd.f32 0.0, %v3074
      %v3076 = vpop.f32.mrb[0].mxu0
      %3077 = vmatprep.mubr.f32.mxu0 0.0
      %3078 = vmatmul.mubr.f32.gmra.mrb[0].mxu0 %v2948
      %v3079 = vpop.f32.mrb[0].mxu0
      %v3080 = vadd.f32 0.0, %v3079
      %v3081 = vpop.f32.mrb[0].mxu0
      %3082 = vmatprep.mubr.f32.mxu0 0.0
      %3083 = vmatmul.mubr.f32.gmra.mrb[0].mxu0 %v2951
      %v3084 = vpop.f32.mrb[0].mxu0
      %v3085 = vadd.f32 0.0, %v3084
      %v3086 = vpop.f32.mrb[0].mxu0
      %3087 = vmatprep.mubr.f32.mxu0 0.0
      %3088 = vmatmul.mubr.f32.gmra.mrb[0].mxu0 %v2954
      %v3089 = vpop.f32.mrb[0].mxu0
      %v3090 = vadd.f32 0.0, %v3089
      %v3091 = vpop.f32.mrb[0].mxu0
      %3092 = vmatprep.mubr.f32.mxu0 0.0
      %3093 = vmatmul.mubr.f32.gmra.mrb[0].mxu0 %v2957
      %v3094 = vpop.f32.mrb[0].mxu0
      %v3095 = vadd.f32 0.0, %v3094
      %v3096 = vpop.f32.mrb[0].mxu0
      %3097 = vmatprep.mubr.f32.mxu0 0.0
      %3098 = vmatmul.mubr.f32.gmra.mrb[0].mxu0 %v2960
      %v3099 = vpop.f32.mrb[0].mxu0
      %v3100 = vadd.f32 0.0, %v3099
      %v3101 = vpop.f32.mrb[0].mxu0
      %3102 = vmatprep.mubr.f32.mxu0 0.0
      %3103 = vmatmul.mubr.f32.gmra.mrb[0].mxu0 %v2963
      %v3104 = vpop.f32.mrb[0].mxu0
      %v3105 = vadd.f32 0.0, %v3104
      %v3106 = vpop.f32.mrb[0].mxu0
      %3107 = vmatprep.mubr.f32.mxu0 0.0
      %3108 = vmatmul.mubr.f32.gmra.mrb[0].mxu0 %v2966
      %v3109 = vpop.f32.mrb[0].mxu0
      %v3110 = vadd.f32 0.0, %v3109
      %v3111 = vpop.f32.mrb[0].mxu0
      %3112 = vdwg.mxu0
      %v3113 = vadd.f32 %v2904, %v3035
      %v3114 = vadd.f32 %v2905, %v3040
      %v3115 = vadd.f32 %v2906, %v3045
      %v3116 = vadd.f32 %v2907, %v3050
      %v3117 = vadd.f32 %v2908, %v3055
      %v3118 = vadd.f32 %v2909, %v3060
      %v3119 = vadd.f32 %v2910, %v3065
      %v3120 = vadd.f32 %v2911, %v3070
      %v3121 = vadd.f32 %v2912, %v3075
      %v3122 = vadd.f32 %v2913, %v3080
      %v3123 = vadd.f32 %v2914, %v3085
      %v3124 = vadd.f32 %v2915, %v3090
      %v3125 = vadd.f32 %v2916, %v3095
      %v3126 = vadd.f32 %v2917, %v3100
      %v3127 = vadd.f32 %v2918, %v3105
      %v3128 = vadd.f32 %v2919, %v3110
      %v3130 = vsel %vm296, %v2679, 0
      %v3133 = vsel %vm296, %v2680, 0
      %v3136 = vsel %vm296, %v2681, 0
      %v3139 = vsel %vm296, %v2682, 0
      %v3142 = vsel %vm296, %v2683, 0
      %v3145 = vsel %vm296, %v2684, 0
      %v3148 = vsel %vm296, %v2685, 0
      %v3151 = vsel %vm296, %v2686, 0
      %v3154 = vsel %vm296, %v2687, 0
      %v3157 = vsel %vm296, %v2688, 0
      %v3160 = vsel %vm296, %v2689, 0
      %v3163 = vsel %vm296, %v2690, 0
      %v3166 = vsel %vm296, %v2691, 0
      %v3169 = vsel %vm296, %v2692, 0
      %v3172 = vsel %vm296, %v2693, 0
      %v3175 = vsel %vm296, %v2694, 0
      %3177 = vmatprep.subr.mxu0 0.0
      %3178 = vmatpush1.msra.mxu0 %v2641
      %3179 = vmatprep.subr.mxu0 0.0
      %3180 = vmatpush1.msra.mxu0 %v2642
      %3181 = vmatprep.subr.mxu0 0.0
      %3182 = vmatpush1.msra.mxu0 %v2643
      %3183 = vmatprep.subr.mxu0 0.0
      %3184 = vmatpush1.msra.mxu0 %v2644
      %3185 = vmatprep.subr.mxu0 0.0
      %3186 = vmatpush1.msra.mxu0 0.0
      %3187 = vmatprep.subr.mxu0 0.0
      %3188 = vmatpush1.msra.mxu0 0.0
      %3189 = vmatprep.subr.mxu0 0.0
      %3190 = vmatpush1.msra.mxu0 0.0
      %3191 = vmatprep.subr.mxu0 0.0
      %3192 = vmatpush1.msra.mxu0 0.0
      %3193 = vmatprep.subr.mxu0 0.0
      %3194 = vmatpush1.msra.mxu0 0.0
      %3195 = vmatprep.subr.mxu0 0.0
      %3196 = vmatpush1.msra.mxu0 0.0
      %3197 = vmatprep.subr.mxu0 0.0
      %3198 = vmatpush1.msra.mxu0 0.0
      %3199 = vmatprep.subr.mxu0 0.0
      %3200 = vmatpush1.msra.mxu0 0.0
      %3201 = vmatprep.subr.mxu0 0.0
      %3202 = vmatpush1.msra.mxu0 0.0
      %3203 = vmatprep.subr.mxu0 0.0
      %3204 = vmatpush1.msra.mxu0 0.0
      %3205 = vmatprep.subr.mxu0 0.0
      %3206 = vmatpush1.msra.mxu0 0.0
      %3207 = vmatprep.subr.mxu0 0.0
      %3208 = vmatpush1.msra.mxu0 0.0
      %3209 = vmatprep.subr.mxu0 0.0
      %3210 = vmatpush1.msra.mxu0 0.0
      %3211 = vmatprep.subr.mxu0 0.0
      %3212 = vmatpush1.msra.mxu0 0.0
      %3213 = vmatprep.subr.mxu0 0.0
      %3214 = vmatpush1.msra.mxu0 0.0
      %3215 = vmatprep.subr.mxu0 0.0
      %3216 = vmatpush1.msra.mxu0 0.0
      %3217 = vmatprep.subr.mxu0 0.0
      %3218 = vmatpush1.msra.mxu0 0.0
      %3219 = vmatprep.subr.mxu0 0.0
      %3220 = vmatpush1.msra.mxu0 0.0
      %3221 = vmatprep.subr.mxu0 0.0
      %3222 = vmatpush1.msra.mxu0 0.0
      %3223 = vmatprep.subr.mxu0 0.0
      %3224 = vmatpush1.msra.mxu0 0.0
      %3225 = vmatprep.subr.mxu0 0.0
      %3226 = vmatpush1.msra.mxu0 0.0
      %3227 = vmatprep.subr.mxu0 0.0
      %3228 = vmatpush1.msra.mxu0 0.0
      %3229 = vmatprep.subr.mxu0 0.0
      %3230 = vmatpush1.msra.mxu0 0.0
      %3231 = vmatprep.subr.mxu0 0.0
      %3232 = vmatpush1.msra.mxu0 0.0
      %3233 = vmatprep.subr.mxu0 0.0
      %3234 = vmatpush1.msra.mxu0 0.0
      %3235 = vmatprep.subr.mxu0 0.0
      %3236 = vmatpush1.msra.mxu0 0.0
      %3237 = vmatprep.subr.mxu0 0.0
      %3238 = vmatpush1.msra.mxu0 0.0
      %3239 = vmatprep.subr.mxu0 0.0
      %3240 = vmatpush1.msra.mxu0 0.0
      %3241 = vmatprep.mubr.f32.mxu0 0.0
      %3242 = vmatmul.mubr.f32.gmra.mrb[0].mxu0 %v3130
      %v3243 = vpop.f32.mrb[0].mxu0
      %v3244 = vadd.f32 0.0, %v3243
      %v3245 = vpop.f32.mrb[0].mxu0
      %3246 = vmatprep.mubr.f32.mxu0 0.0
      %3247 = vmatmul.mubr.f32.gmra.mrb[0].mxu0 %v3133
      %v3248 = vpop.f32.mrb[0].mxu0
      %v3249 = vadd.f32 0.0, %v3248
      %v3250 = vpop.f32.mrb[0].mxu0
      %3251 = vmatprep.mubr.f32.mxu0 0.0
      %3252 = vmatmul.mubr.f32.gmra.mrb[0].mxu0 %v3136
      %v3253 = vpop.f32.mrb[0].mxu0
      %v3254 = vadd.f32 0.0, %v3253
      %v3255 = vpop.f32.mrb[0].mxu0
      %3256 = vmatprep.mubr.f32.mxu0 0.0
      %3257 = vmatmul.mubr.f32.gmra.mrb[0].mxu0 %v3139
      %v3258 = vpop.f32.mrb[0].mxu0
      %v3259 = vadd.f32 0.0, %v3258
      %v3260 = vpop.f32.mrb[0].mxu0
      %3261 = vmatprep.mubr.f32.mxu0 0.0
      %3262 = vmatmul.mubr.f32.gmra.mrb[0].mxu0 %v3142
      %v3263 = vpop.f32.mrb[0].mxu0
      %v3264 = vadd.f32 0.0, %v3263
      %v3265 = vpop.f32.mrb[0].mxu0
      %3266 = vmatprep.mubr.f32.mxu0 0.0
      %3267 = vmatmul.mubr.f32.gmra.mrb[0].mxu0 %v3145
      %v3268 = vpop.f32.mrb[0].mxu0
      %v3269 = vadd.f32 0.0, %v3268
      %v3270 = vpop.f32.mrb[0].mxu0
      %3271 = vmatprep.mubr.f32.mxu0 0.0
      %3272 = vmatmul.mubr.f32.gmra.mrb[0].mxu0 %v3148
      %v3273 = vpop.f32.mrb[0].mxu0
      %v3274 = vadd.f32 0.0, %v3273
      %v3275 = vpop.f32.mrb[0].mxu0
      %3276 = vmatprep.mubr.f32.mxu0 0.0
      %3277 = vmatmul.mubr.f32.gmra.mrb[0].mxu0 %v3151
      %v3278 = vpop.f32.mrb[0].mxu0
      %v3279 = vadd.f32 0.0, %v3278
      %v3280 = vpop.f32.mrb[0].mxu0
      %3281 = vmatprep.mubr.f32.mxu0 0.0
      %3282 = vmatmul.mubr.f32.gmra.mrb[0].mxu0 %v3154
      %v3283 = vpop.f32.mrb[0].mxu0
      %v3284 = vadd.f32 0.0, %v3283
      %v3285 = vpop.f32.mrb[0].mxu0
      %3286 = vmatprep.mubr.f32.mxu0 0.0
      %3287 = vmatmul.mubr.f32.gmra.mrb[0].mxu0 %v3157
      %v3288 = vpop.f32.mrb[0].mxu0
      %v3289 = vadd.f32 0.0, %v3288
      %v3290 = vpop.f32.mrb[0].mxu0
      %3291 = vmatprep.mubr.f32.mxu0 0.0
      %3292 = vmatmul.mubr.f32.gmra.mrb[0].mxu0 %v3160
      %v3293 = vpop.f32.mrb[0].mxu0
      %v3294 = vadd.f32 0.0, %v3293
      %v3295 = vpop.f32.mrb[0].mxu0
      %3296 = vmatprep.mubr.f32.mxu0 0.0
      %3297 = vmatmul.mubr.f32.gmra.mrb[0].mxu0 %v3163
      %v3298 = vpop.f32.mrb[0].mxu0
      %v3299 = vadd.f32 0.0, %v3298
      %v3300 = vpop.f32.mrb[0].mxu0
      %3301 = vmatprep.mubr.f32.mxu0 0.0
      %3302 = vmatmul.mubr.f32.gmra.mrb[0].mxu0 %v3166
      %v3303 = vpop.f32.mrb[0].mxu0
      %v3304 = vadd.f32 0.0, %v3303
      %v3305 = vpop.f32.mrb[0].mxu0
      %3306 = vmatprep.mubr.f32.mxu0 0.0
      %3307 = vmatmul.mubr.f32.gmra.mrb[0].mxu0 %v3169
      %v3308 = vpop.f32.mrb[0].mxu0
      %v3309 = vadd.f32 0.0, %v3308
      %v3310 = vpop.f32.mrb[0].mxu0
      %3311 = vmatprep.mubr.f32.mxu0 0.0
      %3312 = vmatmul.mubr.f32.gmra.mrb[0].mxu0 %v3172
      %v3313 = vpop.f32.mrb[0].mxu0
      %v3314 = vadd.f32 0.0, %v3313
      %v3315 = vpop.f32.mrb[0].mxu0
      %3316 = vmatprep.mubr.f32.mxu0 0.0
      %3317 = vmatmul.mubr.f32.gmra.mrb[0].mxu0 %v3175
      %v3318 = vpop.f32.mrb[0].mxu0
      %v3319 = vadd.f32 0.0, %v3318
      %v3320 = vpop.f32.mrb[0].mxu0
      %3321 = vdwg.mxu0
      %v3322 = vadd.f32 %v3113, %v3244
      %v3323 = vadd.f32 %v3114, %v3249
      %v3324 = vadd.f32 %v3115, %v3254
      %v3325 = vadd.f32 %v3116, %v3259
      %v3326 = vadd.f32 %v3117, %v3264
      %v3327 = vadd.f32 %v3118, %v3269
      %v3328 = vadd.f32 %v3119, %v3274
      %v3329 = vadd.f32 %v3120, %v3279
      %v3330 = vadd.f32 %v3121, %v3284
      %v3331 = vadd.f32 %v3122, %v3289
      %v3332 = vadd.f32 %v3123, %v3294
      %v3333 = vadd.f32 %v3124, %v3299
      %v3334 = vadd.f32 %v3125, %v3304
      %v3335 = vadd.f32 %v3126, %v3309
      %v3336 = vadd.f32 %v3127, %v3314
      %v3337 = vadd.f32 %v3128, %v3319
      %3338 = vmatprep.subr.mxu0 0.0
      %3339 = vmatpush1.msra.mxu0 %v2631
      %3340 = vmatprep.subr.mxu0 0.0
      %3341 = vmatpush1.msra.mxu0 %v2632
      %3342 = vmatprep.subr.mxu0 0.0
      %3343 = vmatpush1.msra.mxu0 %v2633
      %3344 = vmatprep.subr.mxu0 0.0
      %3345 = vmatpush1.msra.mxu0 %v2634
      %3346 = vmatprep.subr.mxu0 0.0
      %3347 = vmatpush1.msra.mxu0 0.0
      %3348 = vmatprep.subr.mxu0 0.0
      %3349 = vmatpush1.msra.mxu0 0.0
      %3350 = vmatprep.subr.mxu0 0.0
      %3351 = vmatpush1.msra.mxu0 0.0
      %3352 = vmatprep.subr.mxu0 0.0
      %3353 = vmatpush1.msra.mxu0 0.0
      %3354 = vmatprep.subr.mxu0 0.0
      %3355 = vmatpush1.msra.mxu0 0.0
      %3356 = vmatprep.subr.mxu0 0.0
      %3357 = vmatpush1.msra.mxu0 0.0
      %3358 = vmatprep.subr.mxu0 0.0
      %3359 = vmatpush1.msra.mxu0 0.0
      %3360 = vmatprep.subr.mxu0 0.0
      %3361 = vmatpush1.msra.mxu0 0.0
      %3362 = vmatprep.subr.mxu0 0.0
      %3363 = vmatpush1.msra.mxu0 0.0
      %3364 = vmatprep.subr.mxu0 0.0
      %3365 = vmatpush1.msra.mxu0 0.0
      %3366 = vmatprep.subr.mxu0 0.0
      %3367 = vmatpush1.msra.mxu0 0.0
      %3368 = vmatprep.subr.mxu0 0.0
      %3369 = vmatpush1.msra.mxu0 0.0
      %3370 = vmatprep.subr.mxu0 0.0
      %3371 = vmatpush1.msra.mxu0 0.0
      %3372 = vmatprep.subr.mxu0 0.0
      %3373 = vmatpush1.msra.mxu0 0.0
      %3374 = vmatprep.subr.mxu0 0.0
      %3375 = vmatpush1.msra.mxu0 0.0
      %3376 = vmatprep.subr.mxu0 0.0
      %3377 = vmatpush1.msra.mxu0 0.0
      %3378 = vmatprep.subr.mxu0 0.0
      %3379 = vmatpush1.msra.mxu0 0.0
      %3380 = vmatprep.subr.mxu0 0.0
      %3381 = vmatpush1.msra.mxu0 0.0
      %3382 = vmatprep.subr.mxu0 0.0
      %3383 = vmatpush1.msra.mxu0 0.0
      %3384 = vmatprep.subr.mxu0 0.0
      %3385 = vmatpush1.msra.mxu0 0.0
      %3386 = vmatprep.subr.mxu0 0.0
      %3387 = vmatpush1.msra.mxu0 0.0
      %3388 = vmatprep.subr.mxu0 0.0
      %3389 = vmatpush1.msra.mxu0 0.0
      %3390 = vmatprep.subr.mxu0 0.0
      %3391 = vmatpush1.msra.mxu0 0.0
      %3392 = vmatprep.subr.mxu0 0.0
      %3393 = vmatpush1.msra.mxu0 0.0
      %3394 = vmatprep.subr.mxu0 0.0
      %3395 = vmatpush1.msra.mxu0 0.0
      %3396 = vmatprep.subr.mxu0 0.0
      %3397 = vmatpush1.msra.mxu0 0.0
      %3398 = vmatprep.subr.mxu0 0.0
      %3399 = vmatpush1.msra.mxu0 0.0
      %3400 = vmatprep.subr.mxu0 0.0
      %3401 = vmatpush1.msra.mxu0 0.0
      %3402 = vmatprep.mubr.f32.mxu0 0.0
      %3403 = vmatmul.mubr.f32.gmra.mrb[0].mxu0 %v2921
      %v3404 = vpop.f32.mrb[0].mxu0
      %v3405 = vadd.f32 0.0, %v3404
      %v3406 = vpop.f32.mrb[0].mxu0
      %3407 = vmatprep.mubr.f32.mxu0 0.0
      %3408 = vmatmul.mubr.f32.gmra.mrb[0].mxu0 %v2924
      %v3409 = vpop.f32.mrb[0].mxu0
      %v3410 = vadd.f32 0.0, %v3409
      %v3411 = vpop.f32.mrb[0].mxu0
      %3412 = vmatprep.mubr.f32.mxu0 0.0
      %3413 = vmatmul.mubr.f32.gmra.mrb[0].mxu0 %v2927
      %v3414 = vpop.f32.mrb[0].mxu0
      %v3415 = vadd.f32 0.0, %v3414
      %v3416 = vpop.f32.mrb[0].mxu0
      %3417 = vmatprep.mubr.f32.mxu0 0.0
      %3418 = vmatmul.mubr.f32.gmra.mrb[0].mxu0 %v2930
      %v3419 = vpop.f32.mrb[0].mxu0
      %v3420 = vadd.f32 0.0, %v3419
      %v3421 = vpop.f32.mrb[0].mxu0
      %3422 = vmatprep.mubr.f32.mxu0 0.0
      %3423 = vmatmul.mubr.f32.gmra.mrb[0].mxu0 %v2933
      %v3424 = vpop.f32.mrb[0].mxu0
      %v3425 = vadd.f32 0.0, %v3424
      %v3426 = vpop.f32.mrb[0].mxu0
      %3427 = vmatprep.mubr.f32.mxu0 0.0
      %3428 = vmatmul.mubr.f32.gmra.mrb[0].mxu0 %v2936
      %v3429 = vpop.f32.mrb[0].mxu0
      %v3430 = vadd.f32 0.0, %v3429
      %v3431 = vpop.f32.mrb[0].mxu0
      %3432 = vmatprep.mubr.f32.mxu0 0.0
      %3433 = vmatmul.mubr.f32.gmra.mrb[0].mxu0 %v2939
      %v3434 = vpop.f32.mrb[0].mxu0
      %v3435 = vadd.f32 0.0, %v3434
      %v3436 = vpop.f32.mrb[0].mxu0
      %3437 = vmatprep.mubr.f32.mxu0 0.0
      %3438 = vmatmul.mubr.f32.gmra.mrb[0].mxu0 %v2942
      %v3439 = vpop.f32.mrb[0].mxu0
      %v3440 = vadd.f32 0.0, %v3439
      %v3441 = vpop.f32.mrb[0].mxu0
      %3442 = vmatprep.mubr.f32.mxu0 0.0
      %3443 = vmatmul.mubr.f32.gmra.mrb[0].mxu0 %v2945
      %v3444 = vpop.f32.mrb[0].mxu0
      %v3445 = vadd.f32 0.0, %v3444
      %v3446 = vpop.f32.mrb[0].mxu0
      %3447 = vmatprep.mubr.f32.mxu0 0.0
      %3448 = vmatmul.mubr.f32.gmra.mrb[0].mxu0 %v2948
      %v3449 = vpop.f32.mrb[0].mxu0
      %v3450 = vadd.f32 0.0, %v3449
      %v3451 = vpop.f32.mrb[0].mxu0
      %3452 = vmatprep.mubr.f32.mxu0 0.0
      %3453 = vmatmul.mubr.f32.gmra.mrb[0].mxu0 %v2951
      %v3454 = vpop.f32.mrb[0].mxu0
      %v3455 = vadd.f32 0.0, %v3454
      %v3456 = vpop.f32.mrb[0].mxu0
      %3457 = vmatprep.mubr.f32.mxu0 0.0
      %3458 = vmatmul.mubr.f32.gmra.mrb[0].mxu0 %v2954
      %v3459 = vpop.f32.mrb[0].mxu0
      %v3460 = vadd.f32 0.0, %v3459
      %v3461 = vpop.f32.mrb[0].mxu0
      %3462 = vmatprep.mubr.f32.mxu0 0.0
      %3463 = vmatmul.mubr.f32.gmra.mrb[0].mxu0 %v2957
      %v3464 = vpop.f32.mrb[0].mxu0
      %v3465 = vadd.f32 0.0, %v3464
      %v3466 = vpop.f32.mrb[0].mxu0
      %3467 = vmatprep.mubr.f32.mxu0 0.0
      %3468 = vmatmul.mubr.f32.gmra.mrb[0].mxu0 %v2960
      %v3469 = vpop.f32.mrb[0].mxu0
      %v3470 = vadd.f32 0.0, %v3469
      %v3471 = vpop.f32.mrb[0].mxu0
      %3472 = vmatprep.mubr.f32.mxu0 0.0
      %3473 = vmatmul.mubr.f32.gmra.mrb[0].mxu0 %v2963
      %v3474 = vpop.f32.mrb[0].mxu0
      %v3475 = vadd.f32 0.0, %v3474
      %v3476 = vpop.f32.mrb[0].mxu0
      %3477 = vmatprep.mubr.f32.mxu0 0.0
      %3478 = vmatmul.mubr.f32.gmra.mrb[0].mxu0 %v2966
      %v3479 = vpop.f32.mrb[0].mxu0
      %v3480 = vadd.f32 0.0, %v3479
      %v3481 = vpop.f32.mrb[0].mxu0
      %3482 = vdwg.mxu0
      %v3483 = vadd.f32 %v2614, %v3405
      %v3484 = vadd.f32 %v2615, %v3410
      %v3485 = vadd.f32 %v2616, %v3415
      %v3486 = vadd.f32 %v2617, %v3420
      %v3487 = vadd.f32 %v2618, %v3425
      %v3488 = vadd.f32 %v2619, %v3430
      %v3489 = vadd.f32 %v2620, %v3435
      %v3490 = vadd.f32 %v2621, %v3440
      %v3491 = vadd.f32 %v2622, %v3445
      %v3492 = vadd.f32 %v2623, %v3450
      %v3493 = vadd.f32 %v2624, %v3455
      %v3494 = vadd.f32 %v2625, %v3460
      %v3495 = vadd.f32 %v2626, %v3465
      %v3496 = vadd.f32 %v2627, %v3470
      %v3497 = vadd.f32 %v2628, %v3475
      %v3498 = vadd.f32 %v2629, %v3480
      %3499 = vmatprep.subr.mxu0 0.0
      %3500 = vmatpush1.msra.mxu0 %v2636
      %3501 = vmatprep.subr.mxu0 0.0
      %3502 = vmatpush1.msra.mxu0 %v2637
      %3503 = vmatprep.subr.mxu0 0.0
      %3504 = vmatpush1.msra.mxu0 %v2638
      %3505 = vmatprep.subr.mxu0 0.0
      %3506 = vmatpush1.msra.mxu0 %v2639
      %3507 = vmatprep.subr.mxu0 0.0
      %3508 = vmatpush1.msra.mxu0 0.0
      %3509 = vmatprep.subr.mxu0 0.0
      %3510 = vmatpush1.msra.mxu0 0.0
      %3511 = vmatprep.subr.mxu0 0.0
      %3512 = vmatpush1.msra.mxu0 0.0
      %3513 = vmatprep.subr.mxu0 0.0
      %3514 = vmatpush1.msra.mxu0 0.0
      %3515 = vmatprep.subr.mxu0 0.0
      %3516 = vmatpush1.msra.mxu0 0.0
      %3517 = vmatprep.subr.mxu0 0.0
      %3518 = vmatpush1.msra.mxu0 0.0
      %3519 = vmatprep.subr.mxu0 0.0
      %3520 = vmatpush1.msra.mxu0 0.0
      %3521 = vmatprep.subr.mxu0 0.0
      %3522 = vmatpush1.msra.mxu0 0.0
      %3523 = vmatprep.subr.mxu0 0.0
      %3524 = vmatpush1.msra.mxu0 0.0
      %3525 = vmatprep.subr.mxu0 0.0
      %3526 = vmatpush1.msra.mxu0 0.0
      %3527 = vmatprep.subr.mxu0 0.0
      %3528 = vmatpush1.msra.mxu0 0.0
      %3529 = vmatprep.subr.mxu0 0.0
      %3530 = vmatpush1.msra.mxu0 0.0
      %3531 = vmatprep.subr.mxu0 0.0
      %3532 = vmatpush1.msra.mxu0 0.0
      %3533 = vmatprep.subr.mxu0 0.0
      %3534 = vmatpush1.msra.mxu0 0.0
      %3535 = vmatprep.subr.mxu0 0.0
      %3536 = vmatpush1.msra.mxu0 0.0
      %3537 = vmatprep.subr.mxu0 0.0
      %3538 = vmatpush1.msra.mxu0 0.0
      %3539 = vmatprep.subr.mxu0 0.0
      %3540 = vmatpush1.msra.mxu0 0.0
      %3541 = vmatprep.subr.mxu0 0.0
      %3542 = vmatpush1.msra.mxu0 0.0
      %3543 = vmatprep.subr.mxu0 0.0
      %3544 = vmatpush1.msra.mxu0 0.0
      %3545 = vmatprep.subr.mxu0 0.0
      %3546 = vmatpush1.msra.mxu0 0.0
      %3547 = vmatprep.subr.mxu0 0.0
      %3548 = vmatpush1.msra.mxu0 0.0
      %3549 = vmatprep.subr.mxu0 0.0
      %3550 = vmatpush1.msra.mxu0 0.0
      %3551 = vmatprep.subr.mxu0 0.0
      %3552 = vmatpush1.msra.mxu0 0.0
      %3553 = vmatprep.subr.mxu0 0.0
      %3554 = vmatpush1.msra.mxu0 0.0
      %3555 = vmatprep.subr.mxu0 0.0
      %3556 = vmatpush1.msra.mxu0 0.0
      %3557 = vmatprep.subr.mxu0 0.0
      %3558 = vmatpush1.msra.mxu0 0.0
      %3559 = vmatprep.subr.mxu0 0.0
      %3560 = vmatpush1.msra.mxu0 0.0
      %3561 = vmatprep.subr.mxu0 0.0
      %3562 = vmatpush1.msra.mxu0 0.0
      %3563 = vmatprep.mubr.f32.mxu0 0.0
      %3564 = vmatmul.mubr.f32.gmra.mrb[0].mxu0 %v3130
      %v3565 = vpop.f32.mrb[0].mxu0
      %v3566 = vadd.f32 0.0, %v3565
      %v3567 = vpop.f32.mrb[0].mxu0
      %3568 = vmatprep.mubr.f32.mxu0 0.0
      %3569 = vmatmul.mubr.f32.gmra.mrb[0].mxu0 %v3133
      %v3570 = vpop.f32.mrb[0].mxu0
      %v3571 = vadd.f32 0.0, %v3570
      %v3572 = vpop.f32.mrb[0].mxu0
      %3573 = vmatprep.mubr.f32.mxu0 0.0
      %3574 = vmatmul.mubr.f32.gmra.mrb[0].mxu0 %v3136
      %v3575 = vpop.f32.mrb[0].mxu0
      %v3576 = vadd.f32 0.0, %v3575
      %v3577 = vpop.f32.mrb[0].mxu0
      %3578 = vmatprep.mubr.f32.mxu0 0.0
      %3579 = vmatmul.mubr.f32.gmra.mrb[0].mxu0 %v3139
      %v3580 = vpop.f32.mrb[0].mxu0
      %v3581 = vadd.f32 0.0, %v3580
      %v3582 = vpop.f32.mrb[0].mxu0
      %3583 = vmatprep.mubr.f32.mxu0 0.0
      %3584 = vmatmul.mubr.f32.gmra.mrb[0].mxu0 %v3142
      %v3585 = vpop.f32.mrb[0].mxu0
      %v3586 = vadd.f32 0.0, %v3585
      %v3587 = vpop.f32.mrb[0].mxu0
      %3588 = vmatprep.mubr.f32.mxu0 0.0
      %3589 = vmatmul.mubr.f32.gmra.mrb[0].mxu0 %v3145
      %v3590 = vpop.f32.mrb[0].mxu0
      %v3591 = vadd.f32 0.0, %v3590
      %v3592 = vpop.f32.mrb[0].mxu0
      %3593 = vmatprep.mubr.f32.mxu0 0.0
      %3594 = vmatmul.mubr.f32.gmra.mrb[0].mxu0 %v3148
      %v3595 = vpop.f32.mrb[0].mxu0
      %v3596 = vadd.f32 0.0, %v3595
      %v3597 = vpop.f32.mrb[0].mxu0
      %3598 = vmatprep.mubr.f32.mxu0 0.0
      %3599 = vmatmul.mubr.f32.gmra.mrb[0].mxu0 %v3151
      %v3600 = vpop.f32.mrb[0].mxu0
      %v3601 = vadd.f32 0.0, %v3600
      %v3602 = vpop.f32.mrb[0].mxu0
      %3603 = vmatprep.mubr.f32.mxu0 0.0
      %3604 = vmatmul.mubr.f32.gmra.mrb[0].mxu0 %v3154
      %v3605 = vpop.f32.mrb[0].mxu0
      %v3606 = vadd.f32 0.0, %v3605
      %v3607 = vpop.f32.mrb[0].mxu0
      %3608 = vmatprep.mubr.f32.mxu0 0.0
      %3609 = vmatmul.mubr.f32.gmra.mrb[0].mxu0 %v3157
      %v3610 = vpop.f32.mrb[0].mxu0
      %v3611 = vadd.f32 0.0, %v3610
      %v3612 = vpop.f32.mrb[0].mxu0
      %3613 = vmatprep.mubr.f32.mxu0 0.0
      %3614 = vmatmul.mubr.f32.gmra.mrb[0].mxu0 %v3160
      %v3615 = vpop.f32.mrb[0].mxu0
      %v3616 = vadd.f32 0.0, %v3615
      %v3617 = vpop.f32.mrb[0].mxu0
      %3618 = vmatprep.mubr.f32.mxu0 0.0
      %3619 = vmatmul.mubr.f32.gmra.mrb[0].mxu0 %v3163
      %v3620 = vpop.f32.mrb[0].mxu0
      %v3621 = vadd.f32 0.0, %v3620
      %v3622 = vpop.f32.mrb[0].mxu0
      %3623 = vmatprep.mubr.f32.mxu0 0.0
      %3624 = vmatmul.mubr.f32.gmra.mrb[0].mxu0 %v3166
      %v3625 = vpop.f32.mrb[0].mxu0
      %v3626 = vadd.f32 0.0, %v3625
      %v3627 = vpop.f32.mrb[0].mxu0
      %3628 = vmatprep.mubr.f32.mxu0 0.0
      %3629 = vmatmul.mubr.f32.gmra.mrb[0].mxu0 %v3169
      %v3630 = vpop.f32.mrb[0].mxu0
      %v3631 = vadd.f32 0.0, %v3630
      %v3632 = vpop.f32.mrb[0].mxu0
      %3633 = vmatprep.mubr.f32.mxu0 0.0
      %3634 = vmatmul.mubr.f32.gmra.mrb[0].mxu0 %v3172
      %v3635 = vpop.f32.mrb[0].mxu0
      %v3636 = vadd.f32 0.0, %v3635
      %v3637 = vpop.f32.mrb[0].mxu0
      %3638 = vmatprep.mubr.f32.mxu0 0.0
      %3639 = vmatmul.mubr.f32.gmra.mrb[0].mxu0 %v3175
      %v3640 = vpop.f32.mrb[0].mxu0
      %v3641 = vadd.f32 0.0, %v3640
      %v3642 = vpop.f32.mrb[0].mxu0
      %3643 = vdwg.mxu0
      %v3644 = vadd.f32 %v3483, %v3566
      %v3645 = vadd.f32 %v3484, %v3571
      %v3646 = vadd.f32 %v3485, %v3576
      %v3647 = vadd.f32 %v3486, %v3581
      %v3648 = vadd.f32 %v3487, %v3586
      %v3649 = vadd.f32 %v3488, %v3591
      %v3650 = vadd.f32 %v3489, %v3596
      %v3651 = vadd.f32 %v3490, %v3601
      %v3652 = vadd.f32 %v3491, %v3606
      %v3653 = vadd.f32 %v3492, %v3611
      %v3654 = vadd.f32 %v3493, %v3616
      %v3655 = vadd.f32 %v3494, %v3621
      %v3656 = vadd.f32 %v3495, %v3626
      %v3657 = vadd.f32 %v3496, %v3631
      %v3658 = vadd.f32 %v3497, %v3636
      %v3659 = vadd.f32 %v3498, %v3641
      %v3661 = vsel %vm296, %v2695, 0
      %v3664 = vsel %vm296, %v2696, 0
      %v3667 = vsel %vm296, %v2697, 0
      %v3670 = vsel %vm296, %v2698, 0
      %v3673 = vsel %vm296, %v2699, 0
      %v3676 = vsel %vm296, %v2700, 0
      %v3679 = vsel %vm296, %v2701, 0
      %v3682 = vsel %vm296, %v2702, 0
      %v3685 = vsel %vm296, %v2703, 0
      %v3688 = vsel %vm296, %v2704, 0
      %v3691 = vsel %vm296, %v2705, 0
      %v3694 = vsel %vm296, %v2706, 0
      %v3697 = vsel %vm296, %v2707, 0
      %v3700 = vsel %vm296, %v2708, 0
      %v3703 = vsel %vm296, %v2709, 0
      %v3706 = vsel %vm296, %v2710, 0
      %3708 = vmatprep.subr.mxu0 0.0
      %3709 = vmatpush1.msra.mxu0 %v2641
      %3710 = vmatprep.subr.mxu0 0.0
      %3711 = vmatpush1.msra.mxu0 %v2642
      %3712 = vmatprep.subr.mxu0 0.0
      %3713 = vmatpush1.msra.mxu0 %v2643
      %3714 = vmatprep.subr.mxu0 0.0
      %3715 = vmatpush1.msra.mxu0 %v2644
      %3716 = vmatprep.subr.mxu0 0.0
      %3717 = vmatpush1.msra.mxu0 0.0
      %3718 = vmatprep.subr.mxu0 0.0
      %3719 = vmatpush1.msra.mxu0 0.0
      %3720 = vmatprep.subr.mxu0 0.0
      %3721 = vmatpush1.msra.mxu0 0.0
      %3722 = vmatprep.subr.mxu0 0.0
      %3723 = vmatpush1.msra.mxu0 0.0
      %3724 = vmatprep.subr.mxu0 0.0
      %3725 = vmatpush1.msra.mxu0 0.0
      %3726 = vmatprep.subr.mxu0 0.0
      %3727 = vmatpush1.msra.mxu0 0.0
      %3728 = vmatprep.subr.mxu0 0.0
      %3729 = vmatpush1.msra.mxu0 0.0
      %3730 = vmatprep.subr.mxu0 0.0
      %3731 = vmatpush1.msra.mxu0 0.0
      %3732 = vmatprep.subr.mxu0 0.0
      %3733 = vmatpush1.msra.mxu0 0.0
      %3734 = vmatprep.subr.mxu0 0.0
      %3735 = vmatpush1.msra.mxu0 0.0
      %3736 = vmatprep.subr.mxu0 0.0
      %3737 = vmatpush1.msra.mxu0 0.0
      %3738 = vmatprep.subr.mxu0 0.0
      %3739 = vmatpush1.msra.mxu0 0.0
      %3740 = vmatprep.subr.mxu0 0.0
      %3741 = vmatpush1.msra.mxu0 0.0
      %3742 = vmatprep.subr.mxu0 0.0
      %3743 = vmatpush1.msra.mxu0 0.0
      %3744 = vmatprep.subr.mxu0 0.0
      %3745 = vmatpush1.msra.mxu0 0.0
      %3746 = vmatprep.subr.mxu0 0.0
      %3747 = vmatpush1.msra.mxu0 0.0
      %3748 = vmatprep.subr.mxu0 0.0
      %3749 = vmatpush1.msra.mxu0 0.0
      %3750 = vmatprep.subr.mxu0 0.0
      %3751 = vmatpush1.msra.mxu0 0.0
      %3752 = vmatprep.subr.mxu0 0.0
      %3753 = vmatpush1.msra.mxu0 0.0
      %3754 = vmatprep.subr.mxu0 0.0
      %3755 = vmatpush1.msra.mxu0 0.0
      %3756 = vmatprep.subr.mxu0 0.0
      %3757 = vmatpush1.msra.mxu0 0.0
      %3758 = vmatprep.subr.mxu0 0.0
      %3759 = vmatpush1.msra.mxu0 0.0
      %3760 = vmatprep.subr.mxu0 0.0
      %3761 = vmatpush1.msra.mxu0 0.0
      %3762 = vmatprep.subr.mxu0 0.0
      %3763 = vmatpush1.msra.mxu0 0.0
      %3764 = vmatprep.subr.mxu0 0.0
      %3765 = vmatpush1.msra.mxu0 0.0
      %3766 = vmatprep.subr.mxu0 0.0
      %3767 = vmatpush1.msra.mxu0 0.0
      %3768 = vmatprep.subr.mxu0 0.0
      %3769 = vmatpush1.msra.mxu0 0.0
      %3770 = vmatprep.subr.mxu0 0.0
      %3771 = vmatpush1.msra.mxu0 0.0
      %3772 = vmatprep.mubr.f32.mxu0 0.0
      %3773 = vmatmul.mubr.f32.gmra.mrb[0].mxu0 %v3661
      %v3774 = vpop.f32.mrb[0].mxu0
      %v3775 = vadd.f32 0.0, %v3774
      %v3776 = vpop.f32.mrb[0].mxu0
      %3777 = vmatprep.mubr.f32.mxu0 0.0
      %3778 = vmatmul.mubr.f32.gmra.mrb[0].mxu0 %v3664
      %v3779 = vpop.f32.mrb[0].mxu0
      %v3780 = vadd.f32 0.0, %v3779
      %v3781 = vpop.f32.mrb[0].mxu0
      %3782 = vmatprep.mubr.f32.mxu0 0.0
      %3783 = vmatmul.mubr.f32.gmra.mrb[0].mxu0 %v3667
      %v3784 = vpop.f32.mrb[0].mxu0
      %v3785 = vadd.f32 0.0, %v3784
      %v3786 = vpop.f32.mrb[0].mxu0
      %3787 = vmatprep.mubr.f32.mxu0 0.0
      %3788 = vmatmul.mubr.f32.gmra.mrb[0].mxu0 %v3670
      %v3789 = vpop.f32.mrb[0].mxu0
      %v3790 = vadd.f32 0.0, %v3789
      %v3791 = vpop.f32.mrb[0].mxu0
      %3792 = vmatprep.mubr.f32.mxu0 0.0
      %3793 = vmatmul.mubr.f32.gmra.mrb[0].mxu0 %v3673
      %v3794 = vpop.f32.mrb[0].mxu0
      %v3795 = vadd.f32 0.0, %v3794
      %v3796 = vpop.f32.mrb[0].mxu0
      %3797 = vmatprep.mubr.f32.mxu0 0.0
      %3798 = vmatmul.mubr.f32.gmra.mrb[0].mxu0 %v3676
      %v3799 = vpop.f32.mrb[0].mxu0
      %v3800 = vadd.f32 0.0, %v3799
      %v3801 = vpop.f32.mrb[0].mxu0
      %3802 = vmatprep.mubr.f32.mxu0 0.0
      %3803 = vmatmul.mubr.f32.gmra.mrb[0].mxu0 %v3679
      %v3804 = vpop.f32.mrb[0].mxu0
      %v3805 = vadd.f32 0.0, %v3804
      %v3806 = vpop.f32.mrb[0].mxu0
      %3807 = vmatprep.mubr.f32.mxu0 0.0
      %3808 = vmatmul.mubr.f32.gmra.mrb[0].mxu0 %v3682
      %v3809 = vpop.f32.mrb[0].mxu0
      %v3810 = vadd.f32 0.0, %v3809
      %v3811 = vpop.f32.mrb[0].mxu0
      %3812 = vmatprep.mubr.f32.mxu0 0.0
      %3813 = vmatmul.mubr.f32.gmra.mrb[0].mxu0 %v3685
      %v3814 = vpop.f32.mrb[0].mxu0
      %v3815 = vadd.f32 0.0, %v3814
      %v3816 = vpop.f32.mrb[0].mxu0
      %3817 = vmatprep.mubr.f32.mxu0 0.0
      %3818 = vmatmul.mubr.f32.gmra.mrb[0].mxu0 %v3688
      %v3819 = vpop.f32.mrb[0].mxu0
      %v3820 = vadd.f32 0.0, %v3819
      %v3821 = vpop.f32.mrb[0].mxu0
      %3822 = vmatprep.mubr.f32.mxu0 0.0
      %3823 = vmatmul.mubr.f32.gmra.mrb[0].mxu0 %v3691
      %v3824 = vpop.f32.mrb[0].mxu0
      %v3825 = vadd.f32 0.0, %v3824
      %v3826 = vpop.f32.mrb[0].mxu0
      %3827 = vmatprep.mubr.f32.mxu0 0.0
      %3828 = vmatmul.mubr.f32.gmra.mrb[0].mxu0 %v3694
      %v3829 = vpop.f32.mrb[0].mxu0
      %v3830 = vadd.f32 0.0, %v3829
      %v3831 = vpop.f32.mrb[0].mxu0
      %3832 = vmatprep.mubr.f32.mxu0 0.0
      %3833 = vmatmul.mubr.f32.gmra.mrb[0].mxu0 %v3697
      %v3834 = vpop.f32.mrb[0].mxu0
      %v3835 = vadd.f32 0.0, %v3834
      %v3836 = vpop.f32.mrb[0].mxu0
      %3837 = vmatprep.mubr.f32.mxu0 0.0
      %3838 = vmatmul.mubr.f32.gmra.mrb[0].mxu0 %v3700
      %v3839 = vpop.f32.mrb[0].mxu0
      %v3840 = vadd.f32 0.0, %v3839
      %v3841 = vpop.f32.mrb[0].mxu0
      %3842 = vmatprep.mubr.f32.mxu0 0.0
      %3843 = vmatmul.mubr.f32.gmra.mrb[0].mxu0 %v3703
      %v3844 = vpop.f32.mrb[0].mxu0
      %v3845 = vadd.f32 0.0, %v3844
      %v3846 = vpop.f32.mrb[0].mxu0
      %3847 = vmatprep.mubr.f32.mxu0 0.0
      %3848 = vmatmul.mubr.f32.gmra.mrb[0].mxu0 %v3706
      %v3849 = vpop.f32.mrb[0].mxu0
      %v3850 = vadd.f32 0.0, %v3849
      %v3851 = vpop.f32.mrb[0].mxu0
      %3852 = vdwg.mxu0
      %v3853 = vadd.f32 %v3644, %v3775
      %v3854 = vadd.f32 %v3645, %v3780
      %v3855 = vadd.f32 %v3646, %v3785
      %v3856 = vadd.f32 %v3647, %v3790
      %v3857 = vadd.f32 %v3648, %v3795
      %v3858 = vadd.f32 %v3649, %v3800
      %v3859 = vadd.f32 %v3650, %v3805
      %v3860 = vadd.f32 %v3651, %v3810
      %v3861 = vadd.f32 %v3652, %v3815
      %v3862 = vadd.f32 %v3653, %v3820
      %v3863 = vadd.f32 %v3654, %v3825
      %v3864 = vadd.f32 %v3655, %v3830
      %v3865 = vadd.f32 %v3656, %v3835
      %v3866 = vadd.f32 %v3657, %v3840
      %v3867 = vadd.f32 %v3658, %v3845
      %v3868 = vadd.f32 %v3659, %v3850
      %v3869 = vmax.f32 %v3322, %v3853
      %v3870 = vmax.f32 %v3323, %v3854
      %v3871 = vmax.f32 %v3324, %v3855
      %v3872 = vmax.f32 %v3325, %v3856
      %v3873 = vmax.f32 %v3326, %v3857
      %v3874 = vmax.f32 %v3327, %v3858
      %v3875 = vmax.f32 %v3328, %v3859
      %v3876 = vmax.f32 %v3329, %v3860
      %v3877 = vmax.f32 %v3330, %v3861
      %v3878 = vmax.f32 %v3331, %v3862
      %v3879 = vmax.f32 %v3332, %v3863
      %v3880 = vmax.f32 %v3333, %v3864
      %v3881 = vmax.f32 %v3334, %v3865
      %v3882 = vmax.f32 %v3335, %v3866
      %v3883 = vmax.f32 %v3336, %v3867
      %v3884 = vmax.f32 %v3337, %v3868
      %v3885 = vmax.f32 %v3869, %v3870
      %v3886 = vmax.f32 %v3871, %v3872
      %v3887 = vmax.f32 %v3873, %v3874
      %v3888 = vmax.f32 %v3875, %v3876
      %v3889 = vmax.f32 %v3877, %v3878
      %v3890 = vmax.f32 %v3879, %v3880
      %v3891 = vmax.f32 %v3881, %v3882
      %v3892 = vmax.f32 %v3883, %v3884
      %v3893 = vld [vmem:[%s3] sm:$0x1]
      %v3895 = vlaneseq
      %v3896 = vshrl.u32 %v3895, 7
      %v3897 = vsub.s32 0, %v3896
      %v3898 = vrot.slane %v3893, %v3897
      %v3900 = vadd.f32 %v3885, %v3898
      %v3901 = vadd.f32 %v3886, %v3898
      %v3902 = vadd.f32 %v3887, %v3898
      %v3903 = vadd.f32 %v3888, %v3898
      %v3904 = vadd.f32 %v3889, %v3898
      %v3905 = vadd.f32 %v3890, %v3898
      %v3906 = vadd.f32 %v3891, %v3898
      %v3907 = vadd.f32 %v3892, %v3898
      %v3908 = vmax.f32 %v3900, 0.0
      %v3909 = vmax.f32 %v3901, 0.0
      %v3910 = vmax.f32 %v3902, 0.0
      %v3911 = vmax.f32 %v3903, 0.0
      %v3912 = vmax.f32 %v3904, 0.0
      %v3913 = vmax.f32 %v3905, 0.0
      %v3914 = vmax.f32 %v3906, 0.0
      %v3915 = vmax.f32 %v3907, 0.0
      %vm3916 = vcmask 523264
      %3917 = vst.msk [vmem:[%s217] sm:$0xff] %vm3916, %v3908
      %3918 = vst.msk [vmem:[%s217 + $0x8] sm:$0xff] %vm3916, %v3909
      %3919 = vst.msk [vmem:[%s217 + $0x10] sm:$0xff] %vm3916, %v3910
      %3920 = vst.msk [vmem:[%s217 + $0x18] sm:$0xff] %vm3916, %v3911
      %3921 = vst.msk [vmem:[%s217 + $0x20] sm:$0xff] %vm3916, %v3912
      %3922 = vst.msk [vmem:[%s217 + $0x28] sm:$0xff] %vm3916, %v3913
      %3923 = vst.msk [vmem:[%s217 + $0x30] sm:$0xff] %vm3916, %v3914
      %3924 = vst.msk [vmem:[%s217 + $0x38] sm:$0xff] %vm3916, %v3915
      %p3925 = scmp.lt.s32.totalorder %s15, 1
      %s3926 = scalar_select %p3925, %s15, 1
      %s3927 = smul.addr %s3926, 8
      %s3928 = smul.addr %s3927, 8
      %s3929 = scalar_lea.vmem %s4, %s3928
      // Predicated region
      $region37: #{complete_test_model_forward.4} parent=35 // pred_check
        %p3930 = pneg %p127
      $region38: #{complete_test_model_forward.4} parent=35 // pred_check_branch
        %3932 = sbr.rel (%p3930) target = $region40
      $region39: #{complete_test_model_forward.4} parent=35 // pred_region
        _
      $region40: #{complete_test_model_forward.4} parent=35 // pred_fallthru
        _
    $region36: #{complete_test_model_forward.4} parent=5 // pred_fallthru
      _
    %p3933 = scmp.le.s32.totalorder 2, %s10
    // Predicated region
    $region41: #{complete_test_model_forward.4} parent=5 // pred_check
      %p3934 = pneg %p3933
    $region42: #{complete_test_model_forward.4} parent=5 // pred_check_branch
      %3936 = sbr.rel (%p3934) target = $region44
    $region43: #{complete_test_model_forward.4} parent=5 // pred_region
      %s3937 = ssub.s32 %s10, 2
      // Predicated region
      $region45: #{complete_test_model_forward.4} parent=43 // pred_check
        %p3938 = pneg %p133
      $region46: #{complete_test_model_forward.4} parent=43 // pred_check_branch
        %3940 = sbr.rel (%p3938) target = $region48
      $region47: #{complete_test_model_forward.4} parent=43 // pred_region
        %p3941 = scmp.lt.s32.totalorder %s16, 1
        %s3942 = scalar_select %p3941, %s16, 1
        %s3943 = smul.addr %s3942, 8
        %s3944 = smul.addr %s3943, 8
        %s3945 = scalar_lea.vmem %s4, %s3944
      $region48: #{complete_test_model_forward.4} parent=43 // pred_fallthru
        _
    $region44: #{complete_test_model_forward.4} parent=5 // pred_fallthru
      _
  $region6: #{complete_test_model_forward.4} parent=0 // loop_footer
    %s14 = sadd.s32 1, %s10
  $region7: #{complete_test_model_forward.4} parent=0 // loop_footer_branch
    %9 = sbr.rel target = $region3
  $region8: #{complete_test_model_forward.4} parent=0 // loop_exit
    _

</llo_original>
